<compile_context>
chip_gen: v5e
topology: v5e:2x2
jax: 0.10.0
libtpu: 0.0.40
codegen_flags: <defaults>
</compile_context>

<pallas_src>
import functools
import math

import jax
import jax.numpy as jnp
from jax import lax
from jax.experimental import pallas as pl
from jax.experimental.pallas import tpu as pltpu

LEAKY_SLOPE = 0.01   # torch.nn.LeakyReLU() default
BN_EPS = 1e-5        # nn.BatchNorm1d default

# Architecture constants (input length 44).
L_IN = 44
L1 = 40          # after conv1 (k5, s1)
L2 = 36          # after conv2 (k5, s1)
L2_FULL = 32     # stride-1 positions computed for conv3 before stride-2 select
L3 = 16          # after conv3 (k5, s2)
C1, C2, C3 = 64, 64, 128
F1 = 2048        # 128 * 16
F1_OUT, F2_OUT, N_CLS = 1000, 100, 7
F1_OUT_P, F2_OUT_P, N_CLS_P = 1024, 128, 128   # lane-dense padded sizes
K = 5


# ---------------------------------------------------------------------------
# The single fused kernel
# ---------------------------------------------------------------------------
def _net_fwd_kernel(
    x_ref,                                      # (L_IN, N) f32   x[l, n]
    w1_ref, b1_ref, g1_ref, be1_ref,            # (K, C1) f32, (1, C1) f32 x3
    w2_ref, b2_ref, g2_ref, be2_ref,            # (K, C1, C2) bf16, (1, C2) f32
    w3_ref, b3_ref, g3_ref, be3_ref,            # (K, C2, C3) bf16, (1, C3) f32
    wfc1_ref, bfc1_ref, gfc1_ref, befc1_ref,    # (L3, C3, 1024) bf16, (1,1024)
    wfc2_ref, bfc2_ref, gfc2_ref, befc2_ref,    # (1024, 128) bf16, (1, 128)
    wcls_ref, bcls_ref,                         # (128, 128) bf16, (1, 128)
    out_ref,                                    # (N, 128) f32
):
    n_batch = out_ref.shape[0]
    f32 = jnp.float32
    bf16 = jnp.bfloat16

    def leaky(v):
        return jnp.where(v >= 0, v, LEAKY_SLOPE * v)

    def batch_stats(zs, count):
        # Single-pass biased stats: mean, 1/sqrt(var + eps) over rows of all zs.
        s = zs[0].sum(axis=0, keepdims=True)
        q = (zs[0] * zs[0]).sum(axis=0, keepdims=True)
        for z in zs[1:]:
            s = s + z.sum(axis=0, keepdims=True)
            q = q + (z * z).sum(axis=0, keepdims=True)
        inv_count = 1.0 / float(count)
        mean = s * inv_count
        var = q * inv_count - mean * mean
        return mean, lax.rsqrt(var + BN_EPS)

    # ---------------- conv1: Conv1d(1, 64, k=5) -- VPU shifted MACs ----------
    w1 = w1_ref[...]                       # (K, C1) f32
    b1 = b1_ref[...]
    z1 = []
    for n in range(n_batch):
        acc = jnp.zeros((L1, C1), f32)
        for k in range(K):
            # (L1, 1) * (1, C1) broadcast multiply-add on the VPU.
            acc = acc + x_ref[k:k + L1, n:n + 1] * w1[k:k + 1, :]
        z1.append(leaky(acc + b1))
    mean1, inv1 = batch_stats(z1, n_batch * L1)
    a1 = [(z - mean1) * inv1 * g1_ref[...] + be1_ref[...] for z in z1]

    # ---------------- conv2: Conv1d(64, 64, k=5) -- 5 shifted MXU matmuls ----
    b2 = b2_ref[...]
    z2 = []
    for n in range(n_batch):
        acc = jnp.zeros((L2, C2), f32)
        for k in range(K):
            lhs = a1[n][k:k + L2, :].astype(bf16)          # (L2, C1)
            acc = acc + jnp.dot(lhs, w2_ref[k], preferred_element_type=f32)
        z2.append(leaky(acc + b2))
    mean2, inv2 = batch_stats(z2, n_batch * L2)
    a2 = [(z - mean2) * inv2 * g2_ref[...] + be2_ref[...] for z in z2]

    # ---------------- conv3: Conv1d(64, 128, k=5, stride=2) ------------------
    # Compute the stride-1 outputs at 32 positions, then pick the 16 even rows
    # with a constant 0/1 selection matmul (avoids strided slices in-kernel).
    b3 = b3_ref[...]
    rows = lax.broadcasted_iota(jnp.int32, (L3, L2_FULL), 0)
    cols = lax.broadcasted_iota(jnp.int32, (L3, L2_FULL), 1)
    sel = jnp.where(cols == 2 * rows, 1.0, 0.0).astype(f32)   # (16, 32)
    z3 = []
    for n in range(n_batch):
        acc = jnp.zeros((L2_FULL, C3), f32)
        for k in range(K):
            lhs = a2[n][k:k + L2_FULL, :].astype(bf16)     # (32, C2)
            acc = acc + jnp.dot(lhs, w3_ref[k], preferred_element_type=f32)
        strided = jnp.dot(sel, acc, preferred_element_type=f32)   # (16, 128)
        z3.append(leaky(strided + b3))
    mean3, inv3 = batch_stats(z3, n_batch * L3)
    a3 = [(z - mean3) * inv3 * g3_ref[...] + be3_ref[...] for z in z3]

    # ---------------- fc1: Linear(2048, 1000) --------------------------------
    # torch flatten of (N, 128, 16) is f = c*16 + l; wfc1 was reordered on the
    # host to (l, c, j), so fc1 = sum_l (N,128) @ (128,1024).
    acc = jnp.zeros((n_batch, F1_OUT_P), f32)
    for l in range(L3):
        r = jnp.concatenate([a3[n][l:l + 1, :] for n in range(n_batch)],
                            axis=0).astype(bf16)           # (N, 128)
        acc = acc + jnp.dot(r, wfc1_ref[l], preferred_element_type=f32)
    y1 = leaky(acc + bfc1_ref[...])                         # (N, 1024)
    mean, inv = batch_stats([y1], n_batch)
    a_fc1 = (y1 - mean) * inv * gfc1_ref[...] + befc1_ref[...]

    # ---------------- fc2: Linear(1000, 100) ---------------------------------
    y2 = jnp.dot(a_fc1.astype(bf16), wfc2_ref[...],
                 preferred_element_type=f32) + bfc2_ref[...]
    y2 = leaky(y2)
    mean, inv = batch_stats([y2], n_batch)
    a_fc2 = (y2 - mean) * inv * gfc2_ref[...] + befc2_ref[...]

    # ---------------- classifier: Linear(100, 7) (fused, padded to 128) ------
    logits = jnp.dot(a_fc2.astype(bf16), wcls_ref[...],
                     preferred_element_type=f32) + bcls_ref[...]
    out_ref[...] = logits


def _vmem_spec():
    # Whole array resident in VMEM, no grid pipelining (=> no double buffer).
    return pl.BlockSpec(memory_space=pltpu.MemorySpace.VMEM)


@functools.partial(jax.jit, static_argnames=("adaption",))
def net_forward(params, x, constant=1.0, adaption=False):
    """x: (N, 1, 44) float32  ->  logits (N, 7) float32."""
    n = x.shape[0]
    assert x.shape[1] == 1 and x.shape[2] == L_IN, x.shape
    x_t = jnp.transpose(x[:, 0, :], (1, 0)).astype(jnp.float32)   # (44, N)

    inputs = (
        x_t,
        params["w1"], params["b1"], params["g1"], params["be1"],
        params["w2"], params["b2"], params["g2"], params["be2"],
        params["w3"], params["b3"], params["g3"], params["be3"],
        params["wfc1"], params["bfc1"], params["gfc1"], params["befc1"],
        params["wfc2"], params["bfc2"], params["gfc2"], params["befc2"],
        params["wcls"], params["bcls"],
    )
    out = pl.pallas_call(
        _net_fwd_kernel,
        out_shape=jax.ShapeDtypeStruct((n, N_CLS_P), jnp.float32),
        in_specs=[_vmem_spec() for _ in inputs],
        out_specs=_vmem_spec(),
        compiler_params=pltpu.CompilerParams(
            vmem_limit_bytes=48 * 1024 * 1024),   # below v7x's 64 MiB physical
    )(*inputs)

    if adaption:
        # grad_reverse is identity in the forward pass; it is already fused.
        # TODO(synk): custom_vjp gradient reversal not implemented (forward-only kernel).
        pass
    return out[:, :N_CLS]


# ---------------------------------------------------------------------------
# Parameter construction: PyTorch-default-style init, then kernel layout
# ---------------------------------------------------------------------------
def _uniform(key, shape, bound):
    return jax.random.uniform(key, shape, jnp.float32, -bound, bound)


def init_torch_params(key):
    """Parameters in PyTorch-native layouts (Conv1d: (C_out,C_in,K), Linear:
    (F_out,F_in)), drawn with PyTorch default uniform bounds; BN gamma=1, beta=0."""
    ks = jax.random.split(key, 12)

    def conv(kw, kb, c_out, c_in, ksz):
        bound = 1.0 / math.sqrt(c_in * ksz)
        return _uniform(kw, (c_out, c_in, ksz), bound), _uniform(kb, (c_out,), bound)

    def lin(kw, kb, f_out, f_in):
        bound = 1.0 / math.sqrt(f_in)
        return _uniform(kw, (f_out, f_in), bound), _uniform(kb, (f_out,), bound)

    p = {}
    p["conv1.w"], p["conv1.b"] = conv(ks[0], ks[1], C1, 1, K)
    p["conv2.w"], p["conv2.b"] = conv(ks[2], ks[3], C2, C1, K)
    p["conv3.w"], p["conv3.b"] = conv(ks[4], ks[5], C3, C2, K)
    p["fc1.w"], p["fc1.b"] = lin(ks[6], ks[7], F1_OUT, F1)
    p["fc2.w"], p["fc2.b"] = lin(ks[8], ks[9], F2_OUT, F1_OUT)
    p["cls.w"], p["cls.b"] = lin(ks[10], ks[11], N_CLS, F2_OUT)
    for name, c in (("bn1", C1), ("bn2", C2), ("bn3", C3),
                    ("bn_fc1", F1_OUT), ("bn_fc2", F2_OUT)):
        p[f"{name}.g"] = jnp.ones((c,), jnp.float32)
        p[f"{name}.b"] = jnp.zeros((c,), jnp.float32)
    return p


def _row_vec(v, n_pad=None, pad_value=0.0):
    v = v.reshape(1, -1).astype(jnp.float32)
    if n_pad is not None and v.shape[1] < n_pad:
        v = jnp.pad(v, ((0, 0), (0, n_pad - v.shape[1])),
                    constant_values=pad_value)
    return v


def prepare_params(tp):
    """One-time conversion from PyTorch layout to the kernel-resident layout
    (bf16 matmul weights, zero-padded lane-dense FC dims, fc1 reordered so the
    torch .view flatten order f = c*16 + l needs no in-kernel reshape)."""
    kp = {}
    # conv1 (VPU path, f32): (K, C1) with w1[k, c] = W[c, 0, k]
    kp["w1"] = jnp.transpose(tp["conv1.w"][:, 0, :], (1, 0)).astype(jnp.float32)
    kp["b1"] = _row_vec(tp["conv1.b"])
    kp["g1"] = _row_vec(tp["bn1.g"]); kp["be1"] = _row_vec(tp["bn1.b"])
    # conv2 / conv3: (K, C_in, C_out) bf16 with w[k, ci, co] = W[co, ci, k]
    kp["w2"] = jnp.transpose(tp["conv2.w"], (2, 1, 0)).astype(jnp.bfloat16)
    kp["b2"] = _row_vec(tp["conv2.b"])
    kp["g2"] = _row_vec(tp["bn2.g"]); kp["be2"] = _row_vec(tp["bn2.b"])
    kp["w3"] = jnp.transpose(tp["conv3.w"], (2, 1, 0)).astype(jnp.bfloat16)
    kp["b3"] = _row_vec(tp["conv3.b"])
    kp["g3"] = _row_vec(tp["bn3.g"]); kp["be3"] = _row_vec(tp["bn3.b"])
    # fc1: (1000, 2048) -> (2048, 1024 pad) -> (128, 16, 1024) -> (16, 128, 1024)
    w = jnp.transpose(tp["fc1.w"], (1, 0))                       # (2048, 1000)
    w = jnp.pad(w, ((0, 0), (0, F1_OUT_P - F1_OUT)))             # (2048, 1024)
    w = w.reshape(C3, L3, F1_OUT_P).transpose(1, 0, 2)           # (16, 128, 1024)
    kp["wfc1"] = w.astype(jnp.bfloat16)
    kp["bfc1"] = _row_vec(tp["fc1.b"], F1_OUT_P)
    kp["gfc1"] = _row_vec(tp["bn_fc1.g"], F1_OUT_P, 1.0)
    kp["befc1"] = _row_vec(tp["bn_fc1.b"], F1_OUT_P)
    # fc2: (100, 1000) -> (1024, 128) zero padded
    w = jnp.transpose(tp["fc2.w"], (1, 0))
    w = jnp.pad(w, ((0, F1_OUT_P - F1_OUT), (0, F2_OUT_P - F2_OUT)))
    kp["wfc2"] = w.astype(jnp.bfloat16)
    kp["bfc2"] = _row_vec(tp["fc2.b"], F2_OUT_P)
    kp["gfc2"] = _row_vec(tp["bn_fc2.g"], F2_OUT_P, 1.0)
    kp["befc2"] = _row_vec(tp["bn_fc2.b"], F2_OUT_P)
    # classifier: (7, 100) -> (128, 128) zero padded
    w = jnp.transpose(tp["cls.w"], (1, 0))
    w = jnp.pad(w, ((0, F2_OUT_P - F2_OUT), (0, N_CLS_P - N_CLS)))
    kp["wcls"] = w.astype(jnp.bfloat16)
    kp["bcls"] = _row_vec(tp["cls.b"], N_CLS_P)
    return kp


if __name__ == "__main__":
    key = jax.random.PRNGKey(0)
    pkey, xkey = jax.random.split(key)
    params = prepare_params(init_torch_params(pkey))

    batch = 2
    x = jax.random.normal(xkey, (batch, 1, L_IN), jnp.float32)

    out = net_forward(params, x)
    out = jax.block_until_ready(out)
    assert out.shape == (batch, N_CLS), out.shape
    assert bool(jnp.all(jnp.isfinite(out)))
    print("KERNEL_OK")
</pallas_src>

<mosaic_0001>
module attributes {stable_mosaic.version = 11 : i64} {
  func.func @_net_fwd_kernel(%arg0: memref<44x2xf32, #tpu.memory_space<vmem>>, %arg1: memref<5x64xf32, #tpu.memory_space<vmem>>, %arg2: memref<1x64xf32, #tpu.memory_space<vmem>>, %arg3: memref<1x64xf32, #tpu.memory_space<vmem>>, %arg4: memref<1x64xf32, #tpu.memory_space<vmem>>, %arg5: memref<5x64x64xbf16, #tpu.memory_space<vmem>>, %arg6: memref<1x64xf32, #tpu.memory_space<vmem>>, %arg7: memref<1x64xf32, #tpu.memory_space<vmem>>, %arg8: memref<1x64xf32, #tpu.memory_space<vmem>>, %arg9: memref<5x64x128xbf16, #tpu.memory_space<vmem>>, %arg10: memref<1x128xf32, #tpu.memory_space<vmem>>, %arg11: memref<1x128xf32, #tpu.memory_space<vmem>>, %arg12: memref<1x128xf32, #tpu.memory_space<vmem>>, %arg13: memref<16x128x1024xbf16, #tpu.memory_space<vmem>>, %arg14: memref<1x1024xf32, #tpu.memory_space<vmem>>, %arg15: memref<1x1024xf32, #tpu.memory_space<vmem>>, %arg16: memref<1x1024xf32, #tpu.memory_space<vmem>>, %arg17: memref<1024x128xbf16, #tpu.memory_space<vmem>>, %arg18: memref<1x128xf32, #tpu.memory_space<vmem>>, %arg19: memref<1x128xf32, #tpu.memory_space<vmem>>, %arg20: memref<1x128xf32, #tpu.memory_space<vmem>>, %arg21: memref<128x128xbf16, #tpu.memory_space<vmem>>, %arg22: memref<1x128xf32, #tpu.memory_space<vmem>>, %arg23: memref<2x128xf32, #tpu.memory_space<vmem>>) attributes {dimension_semantics = [], scalar_prefetch = 0 : i64, scratch_operands = 0 : i64, tpu.core_type = #tpu.core_type<tc>} {
    %c0 = arith.constant 0 : index
    %c0_0 = arith.constant 0 : index
    %0 = vector.load %arg1[%c0, %c0_0] : memref<5x64xf32, #tpu.memory_space<vmem>>, vector<5x64xf32>
    %c0_1 = arith.constant 0 : index
    %c0_2 = arith.constant 0 : index
    %1 = vector.load %arg2[%c0_1, %c0_2] : memref<1x64xf32, #tpu.memory_space<vmem>>, vector<1x64xf32>
    %cst = arith.constant 0.000000e+00 : f32
    %2 = vector.broadcast %cst : f32 to vector<40x64xf32>
    %c0_3 = arith.constant 0 : index
    %c0_4 = arith.constant 0 : index
    %3 = vector.load %arg0[%c0_3, %c0_4] : memref<44x2xf32, #tpu.memory_space<vmem>>, vector<40x1xf32>
    %4 = vector.extract_strided_slice %0 {offsets = [0, 0], sizes = [1, 64], strides = [1, 1]} : vector<5x64xf32> to vector<1x64xf32>
    %5 = vector.broadcast %3 : vector<40x1xf32> to vector<40x64xf32>
    %6 = vector.broadcast %4 : vector<1x64xf32> to vector<40x64xf32>
    %7 = arith.mulf %5, %6 : vector<40x64xf32>
    %8 = arith.addf %2, %7 : vector<40x64xf32>
    %c1 = arith.constant 1 : index
    %c0_5 = arith.constant 0 : index
    %9 = vector.load %arg0[%c1, %c0_5] : memref<44x2xf32, #tpu.memory_space<vmem>>, vector<40x1xf32>
    %10 = vector.extract_strided_slice %0 {offsets = [1, 0], sizes = [1, 64], strides = [1, 1]} : vector<5x64xf32> to vector<1x64xf32>
    %11 = vector.broadcast %9 : vector<40x1xf32> to vector<40x64xf32>
    %12 = vector.broadcast %10 : vector<1x64xf32> to vector<40x64xf32>
    %13 = arith.mulf %11, %12 : vector<40x64xf32>
    %14 = arith.addf %8, %13 : vector<40x64xf32>
    %c2 = arith.constant 2 : index
    %c0_6 = arith.constant 0 : index
    %15 = vector.load %arg0[%c2, %c0_6] : memref<44x2xf32, #tpu.memory_space<vmem>>, vector<40x1xf32>
    %16 = vector.extract_strided_slice %0 {offsets = [2, 0], sizes = [1, 64], strides = [1, 1]} : vector<5x64xf32> to vector<1x64xf32>
    %17 = vector.broadcast %15 : vector<40x1xf32> to vector<40x64xf32>
    %18 = vector.broadcast %16 : vector<1x64xf32> to vector<40x64xf32>
    %19 = arith.mulf %17, %18 : vector<40x64xf32>
    %20 = arith.addf %14, %19 : vector<40x64xf32>
    %c3 = arith.constant 3 : index
    %c0_7 = arith.constant 0 : index
    %21 = vector.load %arg0[%c3, %c0_7] : memref<44x2xf32, #tpu.memory_space<vmem>>, vector<40x1xf32>
    %22 = vector.extract_strided_slice %0 {offsets = [3, 0], sizes = [1, 64], strides = [1, 1]} : vector<5x64xf32> to vector<1x64xf32>
    %23 = vector.broadcast %21 : vector<40x1xf32> to vector<40x64xf32>
    %24 = vector.broadcast %22 : vector<1x64xf32> to vector<40x64xf32>
    %25 = arith.mulf %23, %24 : vector<40x64xf32>
    %26 = arith.addf %20, %25 : vector<40x64xf32>
    %c4 = arith.constant 4 : index
    %c0_8 = arith.constant 0 : index
    %27 = vector.load %arg0[%c4, %c0_8] : memref<44x2xf32, #tpu.memory_space<vmem>>, vector<40x1xf32>
    %28 = vector.extract_strided_slice %0 {offsets = [4, 0], sizes = [1, 64], strides = [1, 1]} : vector<5x64xf32> to vector<1x64xf32>
    %29 = vector.broadcast %27 : vector<40x1xf32> to vector<40x64xf32>
    %30 = vector.broadcast %28 : vector<1x64xf32> to vector<40x64xf32>
    %31 = arith.mulf %29, %30 : vector<40x64xf32>
    %32 = arith.addf %26, %31 : vector<40x64xf32>
    %33 = vector.broadcast %1 : vector<1x64xf32> to vector<40x64xf32>
    %34 = arith.addf %32, %33 : vector<40x64xf32>
    %cst_9 = arith.constant 0.000000e+00 : f32
    %35 = vector.broadcast %cst_9 : f32 to vector<40x64xf32>
    %36 = arith.cmpf oge, %34, %35 : vector<40x64xf32>
    %cst_10 = arith.constant 0.00999999977 : f32
    %37 = vector.broadcast %cst_10 : f32 to vector<40x64xf32>
    %38 = arith.mulf %37, %34 : vector<40x64xf32>
    %39 = arith.select %36, %34, %38 : vector<40x64xi1>, vector<40x64xf32>
    %cst_11 = arith.constant 0.000000e+00 : f32
    %40 = vector.broadcast %cst_11 : f32 to vector<40x64xf32>
    %c0_12 = arith.constant 0 : index
    %c1_13 = arith.constant 1 : index
    %41 = vector.load %arg0[%c0_12, %c1_13] : memref<44x2xf32, #tpu.memory_space<vmem>>, vector<40x1xf32>
    %42 = vector.extract_strided_slice %0 {offsets = [0, 0], sizes = [1, 64], strides = [1, 1]} : vector<5x64xf32> to vector<1x64xf32>
    %43 = vector.broadcast %41 : vector<40x1xf32> to vector<40x64xf32>
    %44 = vector.broadcast %42 : vector<1x64xf32> to vector<40x64xf32>
    %45 = arith.mulf %43, %44 : vector<40x64xf32>
    %46 = arith.addf %40, %45 : vector<40x64xf32>
    %c1_14 = arith.constant 1 : index
    %c1_15 = arith.constant 1 : index
    %47 = vector.load %arg0[%c1_14, %c1_15] : memref<44x2xf32, #tpu.memory_space<vmem>>, vector<40x1xf32>
    %48 = vector.extract_strided_slice %0 {offsets = [1, 0], sizes = [1, 64], strides = [1, 1]} : vector<5x64xf32> to vector<1x64xf32>
    %49 = vector.broadcast %47 : vector<40x1xf32> to vector<40x64xf32>
    %50 = vector.broadcast %48 : vector<1x64xf32> to vector<40x64xf32>
    %51 = arith.mulf %49, %50 : vector<40x64xf32>
    %52 = arith.addf %46, %51 : vector<40x64xf32>
    %c2_16 = arith.constant 2 : index
    %c1_17 = arith.constant 1 : index
    %53 = vector.load %arg0[%c2_16, %c1_17] : memref<44x2xf32, #tpu.memory_space<vmem>>, vector<40x1xf32>
    %54 = vector.extract_strided_slice %0 {offsets = [2, 0], sizes = [1, 64], strides = [1, 1]} : vector<5x64xf32> to vector<1x64xf32>
    %55 = vector.broadcast %53 : vector<40x1xf32> to vector<40x64xf32>
    %56 = vector.broadcast %54 : vector<1x64xf32> to vector<40x64xf32>
    %57 = arith.mulf %55, %56 : vector<40x64xf32>
    %58 = arith.addf %52, %57 : vector<40x64xf32>
    %c3_18 = arith.constant 3 : index
    %c1_19 = arith.constant 1 : index
    %59 = vector.load %arg0[%c3_18, %c1_19] : memref<44x2xf32, #tpu.memory_space<vmem>>, vector<40x1xf32>
    %60 = vector.extract_strided_slice %0 {offsets = [3, 0], sizes = [1, 64], strides = [1, 1]} : vector<5x64xf32> to vector<1x64xf32>
    %61 = vector.broadcast %59 : vector<40x1xf32> to vector<40x64xf32>
    %62 = vector.broadcast %60 : vector<1x64xf32> to vector<40x64xf32>
    %63 = arith.mulf %61, %62 : vector<40x64xf32>
    %64 = arith.addf %58, %63 : vector<40x64xf32>
    %c4_20 = arith.constant 4 : index
    %c1_21 = arith.constant 1 : index
    %65 = vector.load %arg0[%c4_20, %c1_21] : memref<44x2xf32, #tpu.memory_space<vmem>>, vector<40x1xf32>
    %66 = vector.extract_strided_slice %0 {offsets = [4, 0], sizes = [1, 64], strides = [1, 1]} : vector<5x64xf32> to vector<1x64xf32>
    %67 = vector.broadcast %65 : vector<40x1xf32> to vector<40x64xf32>
    %68 = vector.broadcast %66 : vector<1x64xf32> to vector<40x64xf32>
    %69 = arith.mulf %67, %68 : vector<40x64xf32>
    %70 = arith.addf %64, %69 : vector<40x64xf32>
    %71 = vector.broadcast %1 : vector<1x64xf32> to vector<40x64xf32>
    %72 = arith.addf %70, %71 : vector<40x64xf32>
    %cst_22 = arith.constant 0.000000e+00 : f32
    %73 = vector.broadcast %cst_22 : f32 to vector<40x64xf32>
    %74 = arith.cmpf oge, %72, %73 : vector<40x64xf32>
    %cst_23 = arith.constant 0.00999999977 : f32
    %75 = vector.broadcast %cst_23 : f32 to vector<40x64xf32>
    %76 = arith.mulf %75, %72 : vector<40x64xf32>
    %77 = arith.select %74, %72, %76 : vector<40x64xi1>, vector<40x64xf32>
    %cst_24 = arith.constant dense<0.000000e+00> : vector<64xf32>
    %78 = vector.multi_reduction <add>, %39, %cst_24 [0] : vector<40x64xf32> to vector<64xf32>
    %79 = vector.shape_cast %78 : vector<64xf32> to vector<1x64xf32>
    %80 = arith.mulf %39, %39 : vector<40x64xf32>
    %cst_25 = arith.constant dense<0.000000e+00> : vector<64xf32>
    %81 = vector.multi_reduction <add>, %80, %cst_25 [0] : vector<40x64xf32> to vector<64xf32>
    %82 = vector.shape_cast %81 : vector<64xf32> to vector<1x64xf32>
    %cst_26 = arith.constant dense<0.000000e+00> : vector<64xf32>
    %83 = vector.multi_reduction <add>, %77, %cst_26 [0] : vector<40x64xf32> to vector<64xf32>
    %84 = vector.shape_cast %83 : vector<64xf32> to vector<1x64xf32>
    %85 = arith.addf %79, %84 : vector<1x64xf32>
    %86 = arith.mulf %77, %77 : vector<40x64xf32>
    %cst_27 = arith.constant dense<0.000000e+00> : vector<64xf32>
    %87 = vector.multi_reduction <add>, %86, %cst_27 [0] : vector<40x64xf32> to vector<64xf32>
    %88 = vector.shape_cast %87 : vector<64xf32> to vector<1x64xf32>
    %89 = arith.addf %82, %88 : vector<1x64xf32>
    %cst_28 = arith.constant 1.250000e-02 : f32
    %90 = vector.broadcast %cst_28 : f32 to vector<1x64xf32>
    %91 = arith.mulf %85, %90 : vector<1x64xf32>
    %cst_29 = arith.constant 1.250000e-02 : f32
    %92 = vector.broadcast %cst_29 : f32 to vector<1x64xf32>
    %93 = arith.mulf %89, %92 : vector<1x64xf32>
    %94 = arith.mulf %91, %91 : vector<1x64xf32>
    %95 = arith.subf %93, %94 : vector<1x64xf32>
    %cst_30 = arith.constant 9.99999974E-6 : f32
    %96 = vector.broadcast %cst_30 : f32 to vector<1x64xf32>
    %97 = arith.addf %95, %96 : vector<1x64xf32>
    %98 = math.rsqrt %97 : vector<1x64xf32>
    %99 = vector.broadcast %91 : vector<1x64xf32> to vector<40x64xf32>
    %100 = arith.subf %39, %99 : vector<40x64xf32>
    %101 = vector.broadcast %98 : vector<1x64xf32> to vector<40x64xf32>
    %102 = arith.mulf %100, %101 : vector<40x64xf32>
    %c0_31 = arith.constant 0 : index
    %c0_32 = arith.constant 0 : index
    %103 = vector.load %arg3[%c0_31, %c0_32] : memref<1x64xf32, #tpu.memory_space<vmem>>, vector<1x64xf32>
    %104 = vector.broadcast %103 : vector<1x64xf32> to vector<40x64xf32>
    %105 = arith.mulf %102, %104 : vector<40x64xf32>
    %c0_33 = arith.constant 0 : index
    %c0_34 = arith.constant 0 : index
    %106 = vector.load %arg4[%c0_33, %c0_34] : memref<1x64xf32, #tpu.memory_space<vmem>>, vector<1x64xf32>
    %107 = vector.broadcast %106 : vector<1x64xf32> to vector<40x64xf32>
    %108 = arith.addf %105, %107 : vector<40x64xf32>
    %109 = vector.broadcast %91 : vector<1x64xf32> to vector<40x64xf32>
    %110 = arith.subf %77, %109 : vector<40x64xf32>
    %111 = vector.broadcast %98 : vector<1x64xf32> to vector<40x64xf32>
    %112 = arith.mulf %110, %111 : vector<40x64xf32>
    %c0_35 = arith.constant 0 : index
    %c0_36 = arith.constant 0 : index
    %113 = vector.load %arg3[%c0_35, %c0_36] : memref<1x64xf32, #tpu.memory_space<vmem>>, vector<1x64xf32>
    %114 = vector.broadcast %113 : vector<1x64xf32> to vector<40x64xf32>
    %115 = arith.mulf %112, %114 : vector<40x64xf32>
    %c0_37 = arith.constant 0 : index
    %c0_38 = arith.constant 0 : index
    %116 = vector.load %arg4[%c0_37, %c0_38] : memref<1x64xf32, #tpu.memory_space<vmem>>, vector<1x64xf32>
    %117 = vector.broadcast %116 : vector<1x64xf32> to vector<40x64xf32>
    %118 = arith.addf %115, %117 : vector<40x64xf32>
    %c0_39 = arith.constant 0 : index
    %c0_40 = arith.constant 0 : index
    %119 = vector.load %arg6[%c0_39, %c0_40] : memref<1x64xf32, #tpu.memory_space<vmem>>, vector<1x64xf32>
    %cst_41 = arith.constant 0.000000e+00 : f32
    %120 = vector.broadcast %cst_41 : f32 to vector<36x64xf32>
    %121 = vector.extract_strided_slice %108 {offsets = [0, 0], sizes = [36, 64], strides = [1, 1]} : vector<40x64xf32> to vector<36x64xf32>
    %122 = arith.truncf %121 : vector<36x64xf32> to vector<36x64xbf16>
    %c0_42 = arith.constant 0 : index
    %c0_43 = arith.constant 0 : index
    %c0_44 = arith.constant 0 : index
    %123 = vector.load %arg5[%c0_42, %c0_43, %c0_44] : memref<5x64x64xbf16, #tpu.memory_space<vmem>>, vector<1x64x64xbf16>
    %124 = vector.shape_cast %123 : vector<1x64x64xbf16> to vector<64x64xbf16>
    %cst_45 = arith.constant dense<0.000000e+00> : vector<36x64xf32>
    %125 = tpu.matmul %122, %124, %cst_45 {dimension_numbers = #tpu.dot_dimension_numbers<[1], [0], [0], [1], [0, 0, 1, 1], [], []>} : vector<36x64xbf16>, vector<64x64xbf16>, vector<36x64xf32> -> vector<36x64xf32>
    %126 = arith.addf %120, %125 : vector<36x64xf32>
    %127 = vector.extract_strided_slice %108 {offsets = [1, 0], sizes = [36, 64], strides = [1, 1]} : vector<40x64xf32> to vector<36x64xf32>
    %128 = arith.truncf %127 : vector<36x64xf32> to vector<36x64xbf16>
    %c1_46 = arith.constant 1 : index
    %c0_47 = arith.constant 0 : index
    %c0_48 = arith.constant 0 : index
    %129 = vector.load %arg5[%c1_46, %c0_47, %c0_48] : memref<5x64x64xbf16, #tpu.memory_space<vmem>>, vector<1x64x64xbf16>
    %130 = vector.shape_cast %129 : vector<1x64x64xbf16> to vector<64x64xbf16>
    %cst_49 = arith.constant dense<0.000000e+00> : vector<36x64xf32>
    %131 = tpu.matmul %128, %130, %cst_49 {dimension_numbers = #tpu.dot_dimension_numbers<[1], [0], [0], [1], [0, 0, 1, 1], [], []>} : vector<36x64xbf16>, vector<64x64xbf16>, vector<36x64xf32> -> vector<36x64xf32>
    %132 = arith.addf %126, %131 : vector<36x64xf32>
    %133 = vector.extract_strided_slice %108 {offsets = [2, 0], sizes = [36, 64], strides = [1, 1]} : vector<40x64xf32> to vector<36x64xf32>
    %134 = arith.truncf %133 : vector<36x64xf32> to vector<36x64xbf16>
    %c2_50 = arith.constant 2 : index
    %c0_51 = arith.constant 0 : index
    %c0_52 = arith.constant 0 : index
    %135 = vector.load %arg5[%c2_50, %c0_51, %c0_52] : memref<5x64x64xbf16, #tpu.memory_space<vmem>>, vector<1x64x64xbf16>
    %136 = vector.shape_cast %135 : vector<1x64x64xbf16> to vector<64x64xbf16>
    %cst_53 = arith.constant dense<0.000000e+00> : vector<36x64xf32>
    %137 = tpu.matmul %134, %136, %cst_53 {dimension_numbers = #tpu.dot_dimension_numbers<[1], [0], [0], [1], [0, 0, 1, 1], [], []>} : vector<36x64xbf16>, vector<64x64xbf16>, vector<36x64xf32> -> vector<36x64xf32>
    %138 = arith.addf %132, %137 : vector<36x64xf32>
    %139 = vector.extract_strided_slice %108 {offsets = [3, 0], sizes = [36, 64], strides = [1, 1]} : vector<40x64xf32> to vector<36x64xf32>
    %140 = arith.truncf %139 : vector<36x64xf32> to vector<36x64xbf16>
    %c3_54 = arith.constant 3 : index
    %c0_55 = arith.constant 0 : index
    %c0_56 = arith.constant 0 : index
    %141 = vector.load %arg5[%c3_54, %c0_55, %c0_56] : memref<5x64x64xbf16, #tpu.memory_space<vmem>>, vector<1x64x64xbf16>
    %142 = vector.shape_cast %141 : vector<1x64x64xbf16> to vector<64x64xbf16>
    %cst_57 = arith.constant dense<0.000000e+00> : vector<36x64xf32>
    %143 = tpu.matmul %140, %142, %cst_57 {dimension_numbers = #tpu.dot_dimension_numbers<[1], [0], [0], [1], [0, 0, 1, 1], [], []>} : vector<36x64xbf16>, vector<64x64xbf16>, vector<36x64xf32> -> vector<36x64xf32>
    %144 = arith.addf %138, %143 : vector<36x64xf32>
    %145 = vector.extract_strided_slice %108 {offsets = [4, 0], sizes = [36, 64], strides = [1, 1]} : vector<40x64xf32> to vector<36x64xf32>
    %146 = arith.truncf %145 : vector<36x64xf32> to vector<36x64xbf16>
    %c4_58 = arith.constant 4 : index
    %c0_59 = arith.constant 0 : index
    %c0_60 = arith.constant 0 : index
    %147 = vector.load %arg5[%c4_58, %c0_59, %c0_60] : memref<5x64x64xbf16, #tpu.memory_space<vmem>>, vector<1x64x64xbf16>
    %148 = vector.shape_cast %147 : vector<1x64x64xbf16> to vector<64x64xbf16>
    %cst_61 = arith.constant dense<0.000000e+00> : vector<36x64xf32>
    %149 = tpu.matmul %146, %148, %cst_61 {dimension_numbers = #tpu.dot_dimension_numbers<[1], [0], [0], [1], [0, 0, 1, 1], [], []>} : vector<36x64xbf16>, vector<64x64xbf16>, vector<36x64xf32> -> vector<36x64xf32>
    %150 = arith.addf %144, %149 : vector<36x64xf32>
    %151 = vector.broadcast %119 : vector<1x64xf32> to vector<36x64xf32>
    %152 = arith.addf %150, %151 : vector<36x64xf32>
    %cst_62 = arith.constant 0.000000e+00 : f32
    %153 = vector.broadcast %cst_62 : f32 to vector<36x64xf32>
    %154 = arith.cmpf oge, %152, %153 : vector<36x64xf32>
    %cst_63 = arith.constant 0.00999999977 : f32
    %155 = vector.broadcast %cst_63 : f32 to vector<36x64xf32>
    %156 = arith.mulf %155, %152 : vector<36x64xf32>
    %157 = arith.select %154, %152, %156 : vector<36x64xi1>, vector<36x64xf32>
    %cst_64 = arith.constant 0.000000e+00 : f32
    %158 = vector.broadcast %cst_64 : f32 to vector<36x64xf32>
    %159 = vector.extract_strided_slice %118 {offsets = [0, 0], sizes = [36, 64], strides = [1, 1]} : vector<40x64xf32> to vector<36x64xf32>
    %160 = arith.truncf %159 : vector<36x64xf32> to vector<36x64xbf16>
    %c0_65 = arith.constant 0 : index
    %c0_66 = arith.constant 0 : index
    %c0_67 = arith.constant 0 : index
    %161 = vector.load %arg5[%c0_65, %c0_66, %c0_67] : memref<5x64x64xbf16, #tpu.memory_space<vmem>>, vector<1x64x64xbf16>
    %162 = vector.shape_cast %161 : vector<1x64x64xbf16> to vector<64x64xbf16>
    %cst_68 = arith.constant dense<0.000000e+00> : vector<36x64xf32>
    %163 = tpu.matmul %160, %162, %cst_68 {dimension_numbers = #tpu.dot_dimension_numbers<[1], [0], [0], [1], [0, 0, 1, 1], [], []>} : vector<36x64xbf16>, vector<64x64xbf16>, vector<36x64xf32> -> vector<36x64xf32>
    %164 = arith.addf %158, %163 : vector<36x64xf32>
    %165 = vector.extract_strided_slice %118 {offsets = [1, 0], sizes = [36, 64], strides = [1, 1]} : vector<40x64xf32> to vector<36x64xf32>
    %166 = arith.truncf %165 : vector<36x64xf32> to vector<36x64xbf16>
    %c1_69 = arith.constant 1 : index
    %c0_70 = arith.constant 0 : index
    %c0_71 = arith.constant 0 : index
    %167 = vector.load %arg5[%c1_69, %c0_70, %c0_71] : memref<5x64x64xbf16, #tpu.memory_space<vmem>>, vector<1x64x64xbf16>
    %168 = vector.shape_cast %167 : vector<1x64x64xbf16> to vector<64x64xbf16>
    %cst_72 = arith.constant dense<0.000000e+00> : vector<36x64xf32>
    %169 = tpu.matmul %166, %168, %cst_72 {dimension_numbers = #tpu.dot_dimension_numbers<[1], [0], [0], [1], [0, 0, 1, 1], [], []>} : vector<36x64xbf16>, vector<64x64xbf16>, vector<36x64xf32> -> vector<36x64xf32>
    %170 = arith.addf %164, %169 : vector<36x64xf32>
    %171 = vector.extract_strided_slice %118 {offsets = [2, 0], sizes = [36, 64], strides = [1, 1]} : vector<40x64xf32> to vector<36x64xf32>
    %172 = arith.truncf %171 : vector<36x64xf32> to vector<36x64xbf16>
    %c2_73 = arith.constant 2 : index
    %c0_74 = arith.constant 0 : index
    %c0_75 = arith.constant 0 : index
    %173 = vector.load %arg5[%c2_73, %c0_74, %c0_75] : memref<5x64x64xbf16, #tpu.memory_space<vmem>>, vector<1x64x64xbf16>
    %174 = vector.shape_cast %173 : vector<1x64x64xbf16> to vector<64x64xbf16>
    %cst_76 = arith.constant dense<0.000000e+00> : vector<36x64xf32>
    %175 = tpu.matmul %172, %174, %cst_76 {dimension_numbers = #tpu.dot_dimension_numbers<[1], [0], [0], [1], [0, 0, 1, 1], [], []>} : vector<36x64xbf16>, vector<64x64xbf16>, vector<36x64xf32> -> vector<36x64xf32>
    %176 = arith.addf %170, %175 : vector<36x64xf32>
    %177 = vector.extract_strided_slice %118 {offsets = [3, 0], sizes = [36, 64], strides = [1, 1]} : vector<40x64xf32> to vector<36x64xf32>
    %178 = arith.truncf %177 : vector<36x64xf32> to vector<36x64xbf16>
    %c3_77 = arith.constant 3 : index
    %c0_78 = arith.constant 0 : index
    %c0_79 = arith.constant 0 : index
    %179 = vector.load %arg5[%c3_77, %c0_78, %c0_79] : memref<5x64x64xbf16, #tpu.memory_space<vmem>>, vector<1x64x64xbf16>
    %180 = vector.shape_cast %179 : vector<1x64x64xbf16> to vector<64x64xbf16>
    %cst_80 = arith.constant dense<0.000000e+00> : vector<36x64xf32>
    %181 = tpu.matmul %178, %180, %cst_80 {dimension_numbers = #tpu.dot_dimension_numbers<[1], [0], [0], [1], [0, 0, 1, 1], [], []>} : vector<36x64xbf16>, vector<64x64xbf16>, vector<36x64xf32> -> vector<36x64xf32>
    %182 = arith.addf %176, %181 : vector<36x64xf32>
    %183 = vector.extract_strided_slice %118 {offsets = [4, 0], sizes = [36, 64], strides = [1, 1]} : vector<40x64xf32> to vector<36x64xf32>
    %184 = arith.truncf %183 : vector<36x64xf32> to vector<36x64xbf16>
    %c4_81 = arith.constant 4 : index
    %c0_82 = arith.constant 0 : index
    %c0_83 = arith.constant 0 : index
    %185 = vector.load %arg5[%c4_81, %c0_82, %c0_83] : memref<5x64x64xbf16, #tpu.memory_space<vmem>>, vector<1x64x64xbf16>
    %186 = vector.shape_cast %185 : vector<1x64x64xbf16> to vector<64x64xbf16>
    %cst_84 = arith.constant dense<0.000000e+00> : vector<36x64xf32>
    %187 = tpu.matmul %184, %186, %cst_84 {dimension_numbers = #tpu.dot_dimension_numbers<[1], [0], [0], [1], [0, 0, 1, 1], [], []>} : vector<36x64xbf16>, vector<64x64xbf16>, vector<36x64xf32> -> vector<36x64xf32>
    %188 = arith.addf %182, %187 : vector<36x64xf32>
    %189 = vector.broadcast %119 : vector<1x64xf32> to vector<36x64xf32>
    %190 = arith.addf %188, %189 : vector<36x64xf32>
    %cst_85 = arith.constant 0.000000e+00 : f32
    %191 = vector.broadcast %cst_85 : f32 to vector<36x64xf32>
    %192 = arith.cmpf oge, %190, %191 : vector<36x64xf32>
    %cst_86 = arith.constant 0.00999999977 : f32
    %193 = vector.broadcast %cst_86 : f32 to vector<36x64xf32>
    %194 = arith.mulf %193, %190 : vector<36x64xf32>
    %195 = arith.select %192, %190, %194 : vector<36x64xi1>, vector<36x64xf32>
    %cst_87 = arith.constant dense<0.000000e+00> : vector<64xf32>
    %196 = vector.multi_reduction <add>, %157, %cst_87 [0] : vector<36x64xf32> to vector<64xf32>
    %197 = vector.shape_cast %196 : vector<64xf32> to vector<1x64xf32>
    %198 = arith.mulf %157, %157 : vector<36x64xf32>
    %cst_88 = arith.constant dense<0.000000e+00> : vector<64xf32>
    %199 = vector.multi_reduction <add>, %198, %cst_88 [0] : vector<36x64xf32> to vector<64xf32>
    %200 = vector.shape_cast %199 : vector<64xf32> to vector<1x64xf32>
    %cst_89 = arith.constant dense<0.000000e+00> : vector<64xf32>
    %201 = vector.multi_reduction <add>, %195, %cst_89 [0] : vector<36x64xf32> to vector<64xf32>
    %202 = vector.shape_cast %201 : vector<64xf32> to vector<1x64xf32>
    %203 = arith.addf %197, %202 : vector<1x64xf32>
    %204 = arith.mulf %195, %195 : vector<36x64xf32>
    %cst_90 = arith.constant dense<0.000000e+00> : vector<64xf32>
    %205 = vector.multi_reduction <add>, %204, %cst_90 [0] : vector<36x64xf32> to vector<64xf32>
    %206 = vector.shape_cast %205 : vector<64xf32> to vector<1x64xf32>
    %207 = arith.addf %200, %206 : vector<1x64xf32>
    %cst_91 = arith.constant 0.013888889 : f32
    %208 = vector.broadcast %cst_91 : f32 to vector<1x64xf32>
    %209 = arith.mulf %203, %208 : vector<1x64xf32>
    %cst_92 = arith.constant 0.013888889 : f32
    %210 = vector.broadcast %cst_92 : f32 to vector<1x64xf32>
    %211 = arith.mulf %207, %210 : vector<1x64xf32>
    %212 = arith.mulf %209, %209 : vector<1x64xf32>
    %213 = arith.subf %211, %212 : vector<1x64xf32>
    %cst_93 = arith.constant 9.99999974E-6 : f32
    %214 = vector.broadcast %cst_93 : f32 to vector<1x64xf32>
    %215 = arith.addf %213, %214 : vector<1x64xf32>
    %216 = math.rsqrt %215 : vector<1x64xf32>
    %217 = vector.broadcast %209 : vector<1x64xf32> to vector<36x64xf32>
    %218 = arith.subf %157, %217 : vector<36x64xf32>
    %219 = vector.broadcast %216 : vector<1x64xf32> to vector<36x64xf32>
    %220 = arith.mulf %218, %219 : vector<36x64xf32>
    %c0_94 = arith.constant 0 : index
    %c0_95 = arith.constant 0 : index
    %221 = vector.load %arg7[%c0_94, %c0_95] : memref<1x64xf32, #tpu.memory_space<vmem>>, vector<1x64xf32>
    %222 = vector.broadcast %221 : vector<1x64xf32> to vector<36x64xf32>
    %223 = arith.mulf %220, %222 : vector<36x64xf32>
    %c0_96 = arith.constant 0 : index
    %c0_97 = arith.constant 0 : index
    %224 = vector.load %arg8[%c0_96, %c0_97] : memref<1x64xf32, #tpu.memory_space<vmem>>, vector<1x64xf32>
    %225 = vector.broadcast %224 : vector<1x64xf32> to vector<36x64xf32>
    %226 = arith.addf %223, %225 : vector<36x64xf32>
    %227 = vector.broadcast %209 : vector<1x64xf32> to vector<36x64xf32>
    %228 = arith.subf %195, %227 : vector<36x64xf32>
    %229 = vector.broadcast %216 : vector<1x64xf32> to vector<36x64xf32>
    %230 = arith.mulf %228, %229 : vector<36x64xf32>
    %c0_98 = arith.constant 0 : index
    %c0_99 = arith.constant 0 : index
    %231 = vector.load %arg7[%c0_98, %c0_99] : memref<1x64xf32, #tpu.memory_space<vmem>>, vector<1x64xf32>
    %232 = vector.broadcast %231 : vector<1x64xf32> to vector<36x64xf32>
    %233 = arith.mulf %230, %232 : vector<36x64xf32>
    %c0_100 = arith.constant 0 : index
    %c0_101 = arith.constant 0 : index
    %234 = vector.load %arg8[%c0_100, %c0_101] : memref<1x64xf32, #tpu.memory_space<vmem>>, vector<1x64xf32>
    %235 = vector.broadcast %234 : vector<1x64xf32> to vector<36x64xf32>
    %236 = arith.addf %233, %235 : vector<36x64xf32>
    %c0_102 = arith.constant 0 : index
    %c0_103 = arith.constant 0 : index
    %237 = vector.load %arg10[%c0_102, %c0_103] : memref<1x128xf32, #tpu.memory_space<vmem>>, vector<1x128xf32>
    %238 = tpu.iota {dimensions = array<i32: 0>} : vector<16x32xi32>
    %239 = tpu.iota {dimensions = array<i32: 1>} : vector<16x32xi32>
    %c2_i32 = arith.constant 2 : i32
    %240 = vector.broadcast %c2_i32 : i32 to vector<16x32xi32>
    %241 = arith.muli %240, %238 : vector<16x32xi32>
    %242 = arith.cmpi eq, %239, %241 : vector<16x32xi32>
    %cst_104 = arith.constant 1.000000e+00 : f32
    %cst_105 = arith.constant 0.000000e+00 : f32
    %243 = vector.broadcast %cst_104 : f32 to vector<16x32xf32>
    %244 = vector.broadcast %cst_105 : f32 to vector<16x32xf32>
    %245 = arith.select %242, %243, %244 : vector<16x32xi1>, vector<16x32xf32>
    %cst_106 = arith.constant 0.000000e+00 : f32
    %246 = vector.broadcast %cst_106 : f32 to vector<32x128xf32>
    %247 = vector.extract_strided_slice %226 {offsets = [0, 0], sizes = [32, 64], strides = [1, 1]} : vector<36x64xf32> to vector<32x64xf32>
    %248 = arith.truncf %247 : vector<32x64xf32> to vector<32x64xbf16>
    %c0_107 = arith.constant 0 : index
    %c0_108 = arith.constant 0 : index
    %c0_109 = arith.constant 0 : index
    %249 = vector.load %arg9[%c0_107, %c0_108, %c0_109] : memref<5x64x128xbf16, #tpu.memory_space<vmem>>, vector<1x64x128xbf16>
    %250 = vector.shape_cast %249 : vector<1x64x128xbf16> to vector<64x128xbf16>
    %cst_110 = arith.constant dense<0.000000e+00> : vector<32x128xf32>
    %251 = tpu.matmul %248, %250, %cst_110 {dimension_numbers = #tpu.dot_dimension_numbers<[1], [0], [0], [1], [0, 0, 1, 1], [], []>} : vector<32x64xbf16>, vector<64x128xbf16>, vector<32x128xf32> -> vector<32x128xf32>
    %252 = arith.addf %246, %251 : vector<32x128xf32>
    %253 = vector.extract_strided_slice %226 {offsets = [1, 0], sizes = [32, 64], strides = [1, 1]} : vector<36x64xf32> to vector<32x64xf32>
    %254 = arith.truncf %253 : vector<32x64xf32> to vector<32x64xbf16>
    %c1_111 = arith.constant 1 : index
    %c0_112 = arith.constant 0 : index
    %c0_113 = arith.constant 0 : index
    %255 = vector.load %arg9[%c1_111, %c0_112, %c0_113] : memref<5x64x128xbf16, #tpu.memory_space<vmem>>, vector<1x64x128xbf16>
    %256 = vector.shape_cast %255 : vector<1x64x128xbf16> to vector<64x128xbf16>
    %cst_114 = arith.constant dense<0.000000e+00> : vector<32x128xf32>
    %257 = tpu.matmul %254, %256, %cst_114 {dimension_numbers = #tpu.dot_dimension_numbers<[1], [0], [0], [1], [0, 0, 1, 1], [], []>} : vector<32x64xbf16>, vector<64x128xbf16>, vector<32x128xf32> -> vector<32x128xf32>
    %258 = arith.addf %252, %257 : vector<32x128xf32>
    %259 = vector.extract_strided_slice %226 {offsets = [2, 0], sizes = [32, 64], strides = [1, 1]} : vector<36x64xf32> to vector<32x64xf32>
    %260 = arith.truncf %259 : vector<32x64xf32> to vector<32x64xbf16>
    %c2_115 = arith.constant 2 : index
    %c0_116 = arith.constant 0 : index
    %c0_117 = arith.constant 0 : index
    %261 = vector.load %arg9[%c2_115, %c0_116, %c0_117] : memref<5x64x128xbf16, #tpu.memory_space<vmem>>, vector<1x64x128xbf16>
    %262 = vector.shape_cast %261 : vector<1x64x128xbf16> to vector<64x128xbf16>
    %cst_118 = arith.constant dense<0.000000e+00> : vector<32x128xf32>
    %263 = tpu.matmul %260, %262, %cst_118 {dimension_numbers = #tpu.dot_dimension_numbers<[1], [0], [0], [1], [0, 0, 1, 1], [], []>} : vector<32x64xbf16>, vector<64x128xbf16>, vector<32x128xf32> -> vector<32x128xf32>
    %264 = arith.addf %258, %263 : vector<32x128xf32>
    %265 = vector.extract_strided_slice %226 {offsets = [3, 0], sizes = [32, 64], strides = [1, 1]} : vector<36x64xf32> to vector<32x64xf32>
    %266 = arith.truncf %265 : vector<32x64xf32> to vector<32x64xbf16>
    %c3_119 = arith.constant 3 : index
    %c0_120 = arith.constant 0 : index
    %c0_121 = arith.constant 0 : index
    %267 = vector.load %arg9[%c3_119, %c0_120, %c0_121] : memref<5x64x128xbf16, #tpu.memory_space<vmem>>, vector<1x64x128xbf16>
    %268 = vector.shape_cast %267 : vector<1x64x128xbf16> to vector<64x128xbf16>
    %cst_122 = arith.constant dense<0.000000e+00> : vector<32x128xf32>
    %269 = tpu.matmul %266, %268, %cst_122 {dimension_numbers = #tpu.dot_dimension_numbers<[1], [0], [0], [1], [0, 0, 1, 1], [], []>} : vector<32x64xbf16>, vector<64x128xbf16>, vector<32x128xf32> -> vector<32x128xf32>
    %270 = arith.addf %264, %269 : vector<32x128xf32>
    %271 = vector.extract_strided_slice %226 {offsets = [4, 0], sizes = [32, 64], strides = [1, 1]} : vector<36x64xf32> to vector<32x64xf32>
    %272 = arith.truncf %271 : vector<32x64xf32> to vector<32x64xbf16>
    %c4_123 = arith.constant 4 : index
    %c0_124 = arith.constant 0 : index
    %c0_125 = arith.constant 0 : index
    %273 = vector.load %arg9[%c4_123, %c0_124, %c0_125] : memref<5x64x128xbf16, #tpu.memory_space<vmem>>, vector<1x64x128xbf16>
    %274 = vector.shape_cast %273 : vector<1x64x128xbf16> to vector<64x128xbf16>
    %cst_126 = arith.constant dense<0.000000e+00> : vector<32x128xf32>
    %275 = tpu.matmul %272, %274, %cst_126 {dimension_numbers = #tpu.dot_dimension_numbers<[1], [0], [0], [1], [0, 0, 1, 1], [], []>} : vector<32x64xbf16>, vector<64x128xbf16>, vector<32x128xf32> -> vector<32x128xf32>
    %276 = arith.addf %270, %275 : vector<32x128xf32>
    %cst_127 = arith.constant dense<0.000000e+00> : vector<16x128xf32>
    %277 = tpu.matmul %245, %276, %cst_127 {dimension_numbers = #tpu.dot_dimension_numbers<[1], [0], [0], [1], [0, 0, 1, 1], [], []>} : vector<16x32xf32>, vector<32x128xf32>, vector<16x128xf32> -> vector<16x128xf32>
    %278 = vector.broadcast %237 : vector<1x128xf32> to vector<16x128xf32>
    %279 = arith.addf %277, %278 : vector<16x128xf32>
    %cst_128 = arith.constant 0.000000e+00 : f32
    %280 = vector.broadcast %cst_128 : f32 to vector<16x128xf32>
    %281 = arith.cmpf oge, %279, %280 : vector<16x128xf32>
    %cst_129 = arith.constant 0.00999999977 : f32
    %282 = vector.broadcast %cst_129 : f32 to vector<16x128xf32>
    %283 = arith.mulf %282, %279 : vector<16x128xf32>
    %284 = arith.select %281, %279, %283 : vector<16x128xi1>, vector<16x128xf32>
    %cst_130 = arith.constant 0.000000e+00 : f32
    %285 = vector.broadcast %cst_130 : f32 to vector<32x128xf32>
    %286 = vector.extract_strided_slice %236 {offsets = [0, 0], sizes = [32, 64], strides = [1, 1]} : vector<36x64xf32> to vector<32x64xf32>
    %287 = arith.truncf %286 : vector<32x64xf32> to vector<32x64xbf16>
    %c0_131 = arith.constant 0 : index
    %c0_132 = arith.constant 0 : index
    %c0_133 = arith.constant 0 : index
    %288 = vector.load %arg9[%c0_131, %c0_132, %c0_133] : memref<5x64x128xbf16, #tpu.memory_space<vmem>>, vector<1x64x128xbf16>
    %289 = vector.shape_cast %288 : vector<1x64x128xbf16> to vector<64x128xbf16>
    %cst_134 = arith.constant dense<0.000000e+00> : vector<32x128xf32>
    %290 = tpu.matmul %287, %289, %cst_134 {dimension_numbers = #tpu.dot_dimension_numbers<[1], [0], [0], [1], [0, 0, 1, 1], [], []>} : vector<32x64xbf16>, vector<64x128xbf16>, vector<32x128xf32> -> vector<32x128xf32>
    %291 = arith.addf %285, %290 : vector<32x128xf32>
    %292 = vector.extract_strided_slice %236 {offsets = [1, 0], sizes = [32, 64], strides = [1, 1]} : vector<36x64xf32> to vector<32x64xf32>
    %293 = arith.truncf %292 : vector<32x64xf32> to vector<32x64xbf16>
    %c1_135 = arith.constant 1 : index
    %c0_136 = arith.constant 0 : index
    %c0_137 = arith.constant 0 : index
    %294 = vector.load %arg9[%c1_135, %c0_136, %c0_137] : memref<5x64x128xbf16, #tpu.memory_space<vmem>>, vector<1x64x128xbf16>
    %295 = vector.shape_cast %294 : vector<1x64x128xbf16> to vector<64x128xbf16>
    %cst_138 = arith.constant dense<0.000000e+00> : vector<32x128xf32>
    %296 = tpu.matmul %293, %295, %cst_138 {dimension_numbers = #tpu.dot_dimension_numbers<[1], [0], [0], [1], [0, 0, 1, 1], [], []>} : vector<32x64xbf16>, vector<64x128xbf16>, vector<32x128xf32> -> vector<32x128xf32>
    %297 = arith.addf %291, %296 : vector<32x128xf32>
    %298 = vector.extract_strided_slice %236 {offsets = [2, 0], sizes = [32, 64], strides = [1, 1]} : vector<36x64xf32> to vector<32x64xf32>
    %299 = arith.truncf %298 : vector<32x64xf32> to vector<32x64xbf16>
    %c2_139 = arith.constant 2 : index
    %c0_140 = arith.constant 0 : index
    %c0_141 = arith.constant 0 : index
    %300 = vector.load %arg9[%c2_139, %c0_140, %c0_141] : memref<5x64x128xbf16, #tpu.memory_space<vmem>>, vector<1x64x128xbf16>
    %301 = vector.shape_cast %300 : vector<1x64x128xbf16> to vector<64x128xbf16>
    %cst_142 = arith.constant dense<0.000000e+00> : vector<32x128xf32>
    %302 = tpu.matmul %299, %301, %cst_142 {dimension_numbers = #tpu.dot_dimension_numbers<[1], [0], [0], [1], [0, 0, 1, 1], [], []>} : vector<32x64xbf16>, vector<64x128xbf16>, vector<32x128xf32> -> vector<32x128xf32>
    %303 = arith.addf %297, %302 : vector<32x128xf32>
    %304 = vector.extract_strided_slice %236 {offsets = [3, 0], sizes = [32, 64], strides = [1, 1]} : vector<36x64xf32> to vector<32x64xf32>
    %305 = arith.truncf %304 : vector<32x64xf32> to vector<32x64xbf16>
    %c3_143 = arith.constant 3 : index
    %c0_144 = arith.constant 0 : index
    %c0_145 = arith.constant 0 : index
    %306 = vector.load %arg9[%c3_143, %c0_144, %c0_145] : memref<5x64x128xbf16, #tpu.memory_space<vmem>>, vector<1x64x128xbf16>
    %307 = vector.shape_cast %306 : vector<1x64x128xbf16> to vector<64x128xbf16>
    %cst_146 = arith.constant dense<0.000000e+00> : vector<32x128xf32>
    %308 = tpu.matmul %305, %307, %cst_146 {dimension_numbers = #tpu.dot_dimension_numbers<[1], [0], [0], [1], [0, 0, 1, 1], [], []>} : vector<32x64xbf16>, vector<64x128xbf16>, vector<32x128xf32> -> vector<32x128xf32>
    %309 = arith.addf %303, %308 : vector<32x128xf32>
    %310 = vector.extract_strided_slice %236 {offsets = [4, 0], sizes = [32, 64], strides = [1, 1]} : vector<36x64xf32> to vector<32x64xf32>
    %311 = arith.truncf %310 : vector<32x64xf32> to vector<32x64xbf16>
    %c4_147 = arith.constant 4 : index
    %c0_148 = arith.constant 0 : index
    %c0_149 = arith.constant 0 : index
    %312 = vector.load %arg9[%c4_147, %c0_148, %c0_149] : memref<5x64x128xbf16, #tpu.memory_space<vmem>>, vector<1x64x128xbf16>
    %313 = vector.shape_cast %312 : vector<1x64x128xbf16> to vector<64x128xbf16>
    %cst_150 = arith.constant dense<0.000000e+00> : vector<32x128xf32>
    %314 = tpu.matmul %311, %313, %cst_150 {dimension_numbers = #tpu.dot_dimension_numbers<[1], [0], [0], [1], [0, 0, 1, 1], [], []>} : vector<32x64xbf16>, vector<64x128xbf16>, vector<32x128xf32> -> vector<32x128xf32>
    %315 = arith.addf %309, %314 : vector<32x128xf32>
    %cst_151 = arith.constant dense<0.000000e+00> : vector<16x128xf32>
    %316 = tpu.matmul %245, %315, %cst_151 {dimension_numbers = #tpu.dot_dimension_numbers<[1], [0], [0], [1], [0, 0, 1, 1], [], []>} : vector<16x32xf32>, vector<32x128xf32>, vector<16x128xf32> -> vector<16x128xf32>
    %317 = vector.broadcast %237 : vector<1x128xf32> to vector<16x128xf32>
    %318 = arith.addf %316, %317 : vector<16x128xf32>
    %cst_152 = arith.constant 0.000000e+00 : f32
    %319 = vector.broadcast %cst_152 : f32 to vector<16x128xf32>
    %320 = arith.cmpf oge, %318, %319 : vector<16x128xf32>
    %cst_153 = arith.constant 0.00999999977 : f32
    %321 = vector.broadcast %cst_153 : f32 to vector<16x128xf32>
    %322 = arith.mulf %321, %318 : vector<16x128xf32>
    %323 = arith.select %320, %318, %322 : vector<16x128xi1>, vector<16x128xf32>
    %cst_154 = arith.constant dense<0.000000e+00> : vector<128xf32>
    %324 = vector.multi_reduction <add>, %284, %cst_154 [0] : vector<16x128xf32> to vector<128xf32>
    %325 = vector.shape_cast %324 : vector<128xf32> to vector<1x128xf32>
    %326 = arith.mulf %284, %284 : vector<16x128xf32>
    %cst_155 = arith.constant dense<0.000000e+00> : vector<128xf32>
    %327 = vector.multi_reduction <add>, %326, %cst_155 [0] : vector<16x128xf32> to vector<128xf32>
    %328 = vector.shape_cast %327 : vector<128xf32> to vector<1x128xf32>
    %cst_156 = arith.constant dense<0.000000e+00> : vector<128xf32>
    %329 = vector.multi_reduction <add>, %323, %cst_156 [0] : vector<16x128xf32> to vector<128xf32>
    %330 = vector.shape_cast %329 : vector<128xf32> to vector<1x128xf32>
    %331 = arith.addf %325, %330 : vector<1x128xf32>
    %332 = arith.mulf %323, %323 : vector<16x128xf32>
    %cst_157 = arith.constant dense<0.000000e+00> : vector<128xf32>
    %333 = vector.multi_reduction <add>, %332, %cst_157 [0] : vector<16x128xf32> to vector<128xf32>
    %334 = vector.shape_cast %333 : vector<128xf32> to vector<1x128xf32>
    %335 = arith.addf %328, %334 : vector<1x128xf32>
    %cst_158 = arith.constant 3.125000e-02 : f32
    %336 = vector.broadcast %cst_158 : f32 to vector<1x128xf32>
    %337 = arith.mulf %331, %336 : vector<1x128xf32>
    %cst_159 = arith.constant 3.125000e-02 : f32
    %338 = vector.broadcast %cst_159 : f32 to vector<1x128xf32>
    %339 = arith.mulf %335, %338 : vector<1x128xf32>
    %340 = arith.mulf %337, %337 : vector<1x128xf32>
    %341 = arith.subf %339, %340 : vector<1x128xf32>
    %cst_160 = arith.constant 9.99999974E-6 : f32
    %342 = vector.broadcast %cst_160 : f32 to vector<1x128xf32>
    %343 = arith.addf %341, %342 : vector<1x128xf32>
    %344 = math.rsqrt %343 : vector<1x128xf32>
    %345 = vector.broadcast %337 : vector<1x128xf32> to vector<16x128xf32>
    %346 = arith.subf %284, %345 : vector<16x128xf32>
    %347 = vector.broadcast %344 : vector<1x128xf32> to vector<16x128xf32>
    %348 = arith.mulf %346, %347 : vector<16x128xf32>
    %c0_161 = arith.constant 0 : index
    %c0_162 = arith.constant 0 : index
    %349 = vector.load %arg11[%c0_161, %c0_162] : memref<1x128xf32, #tpu.memory_space<vmem>>, vector<1x128xf32>
    %350 = vector.broadcast %349 : vector<1x128xf32> to vector<16x128xf32>
    %351 = arith.mulf %348, %350 : vector<16x128xf32>
    %c0_163 = arith.constant 0 : index
    %c0_164 = arith.constant 0 : index
    %352 = vector.load %arg12[%c0_163, %c0_164] : memref<1x128xf32, #tpu.memory_space<vmem>>, vector<1x128xf32>
    %353 = vector.broadcast %352 : vector<1x128xf32> to vector<16x128xf32>
    %354 = arith.addf %351, %353 : vector<16x128xf32>
    %355 = vector.broadcast %337 : vector<1x128xf32> to vector<16x128xf32>
    %356 = arith.subf %323, %355 : vector<16x128xf32>
    %357 = vector.broadcast %344 : vector<1x128xf32> to vector<16x128xf32>
    %358 = arith.mulf %356, %357 : vector<16x128xf32>
    %c0_165 = arith.constant 0 : index
    %c0_166 = arith.constant 0 : index
    %359 = vector.load %arg11[%c0_165, %c0_166] : memref<1x128xf32, #tpu.memory_space<vmem>>, vector<1x128xf32>
    %360 = vector.broadcast %359 : vector<1x128xf32> to vector<16x128xf32>
    %361 = arith.mulf %358, %360 : vector<16x128xf32>
    %c0_167 = arith.constant 0 : index
    %c0_168 = arith.constant 0 : index
    %362 = vector.load %arg12[%c0_167, %c0_168] : memref<1x128xf32, #tpu.memory_space<vmem>>, vector<1x128xf32>
    %363 = vector.broadcast %362 : vector<1x128xf32> to vector<16x128xf32>
    %364 = arith.addf %361, %363 : vector<16x128xf32>
    %cst_169 = arith.constant 0.000000e+00 : f32
    %365 = vector.broadcast %cst_169 : f32 to vector<2x1024xf32>
    %366 = vector.extract_strided_slice %354 {offsets = [0, 0], sizes = [1, 128], strides = [1, 1]} : vector<16x128xf32> to vector<1x128xf32>
    %367 = vector.extract_strided_slice %364 {offsets = [0, 0], sizes = [1, 128], strides = [1, 1]} : vector<16x128xf32> to vector<1x128xf32>
    %368 = tpu.concatenate %366, %367 in 0 : vector<1x128xf32>, vector<1x128xf32> -> vector<2x128xf32>
    %369 = arith.truncf %368 : vector<2x128xf32> to vector<2x128xbf16>
    %c0_170 = arith.constant 0 : index
    %c0_171 = arith.constant 0 : index
    %c0_172 = arith.constant 0 : index
    %370 = vector.load %arg13[%c0_170, %c0_171, %c0_172] : memref<16x128x1024xbf16, #tpu.memory_space<vmem>>, vector<1x128x1024xbf16>
    %371 = vector.shape_cast %370 : vector<1x128x1024xbf16> to vector<128x1024xbf16>
    %cst_173 = arith.constant dense<0.000000e+00> : vector<2x1024xf32>
    %372 = tpu.matmul %369, %371, %cst_173 {dimension_numbers = #tpu.dot_dimension_numbers<[1], [0], [0], [1], [0, 0, 1, 1], [], []>} : vector<2x128xbf16>, vector<128x1024xbf16>, vector<2x1024xf32> -> vector<2x1024xf32>
    %373 = arith.addf %365, %372 : vector<2x1024xf32>
    %374 = vector.extract_strided_slice %354 {offsets = [1, 0], sizes = [1, 128], strides = [1, 1]} : vector<16x128xf32> to vector<1x128xf32>
    %375 = vector.extract_strided_slice %364 {offsets = [1, 0], sizes = [1, 128], strides = [1, 1]} : vector<16x128xf32> to vector<1x128xf32>
    %376 = tpu.concatenate %374, %375 in 0 : vector<1x128xf32>, vector<1x128xf32> -> vector<2x128xf32>
    %377 = arith.truncf %376 : vector<2x128xf32> to vector<2x128xbf16>
    %c1_174 = arith.constant 1 : index
    %c0_175 = arith.constant 0 : index
    %c0_176 = arith.constant 0 : index
    %378 = vector.load %arg13[%c1_174, %c0_175, %c0_176] : memref<16x128x1024xbf16, #tpu.memory_space<vmem>>, vector<1x128x1024xbf16>
    %379 = vector.shape_cast %378 : vector<1x128x1024xbf16> to vector<128x1024xbf16>
    %cst_177 = arith.constant dense<0.000000e+00> : vector<2x1024xf32>
    %380 = tpu.matmul %377, %379, %cst_177 {dimension_numbers = #tpu.dot_dimension_numbers<[1], [0], [0], [1], [0, 0, 1, 1], [], []>} : vector<2x128xbf16>, vector<128x1024xbf16>, vector<2x1024xf32> -> vector<2x1024xf32>
    %381 = arith.addf %373, %380 : vector<2x1024xf32>
    %382 = vector.extract_strided_slice %354 {offsets = [2, 0], sizes = [1, 128], strides = [1, 1]} : vector<16x128xf32> to vector<1x128xf32>
    %383 = vector.extract_strided_slice %364 {offsets = [2, 0], sizes = [1, 128], strides = [1, 1]} : vector<16x128xf32> to vector<1x128xf32>
    %384 = tpu.concatenate %382, %383 in 0 : vector<1x128xf32>, vector<1x128xf32> -> vector<2x128xf32>
    %385 = arith.truncf %384 : vector<2x128xf32> to vector<2x128xbf16>
    %c2_178 = arith.constant 2 : index
    %c0_179 = arith.constant 0 : index
    %c0_180 = arith.constant 0 : index
    %386 = vector.load %arg13[%c2_178, %c0_179, %c0_180] : memref<16x128x1024xbf16, #tpu.memory_space<vmem>>, vector<1x128x1024xbf16>
    %387 = vector.shape_cast %386 : vector<1x128x1024xbf16> to vector<128x1024xbf16>
    %cst_181 = arith.constant dense<0.000000e+00> : vector<2x1024xf32>
    %388 = tpu.matmul %385, %387, %cst_181 {dimension_numbers = #tpu.dot_dimension_numbers<[1], [0], [0], [1], [0, 0, 1, 1], [], []>} : vector<2x128xbf16>, vector<128x1024xbf16>, vector<2x1024xf32> -> vector<2x1024xf32>
    %389 = arith.addf %381, %388 : vector<2x1024xf32>
    %390 = vector.extract_strided_slice %354 {offsets = [3, 0], sizes = [1, 128], strides = [1, 1]} : vector<16x128xf32> to vector<1x128xf32>
    %391 = vector.extract_strided_slice %364 {offsets = [3, 0], sizes = [1, 128], strides = [1, 1]} : vector<16x128xf32> to vector<1x128xf32>
    %392 = tpu.concatenate %390, %391 in 0 : vector<1x128xf32>, vector<1x128xf32> -> vector<2x128xf32>
    %393 = arith.truncf %392 : vector<2x128xf32> to vector<2x128xbf16>
    %c3_182 = arith.constant 3 : index
    %c0_183 = arith.constant 0 : index
    %c0_184 = arith.constant 0 : index
    %394 = vector.load %arg13[%c3_182, %c0_183, %c0_184] : memref<16x128x1024xbf16, #tpu.memory_space<vmem>>, vector<1x128x1024xbf16>
    %395 = vector.shape_cast %394 : vector<1x128x1024xbf16> to vector<128x1024xbf16>
    %cst_185 = arith.constant dense<0.000000e+00> : vector<2x1024xf32>
    %396 = tpu.matmul %393, %395, %cst_185 {dimension_numbers = #tpu.dot_dimension_numbers<[1], [0], [0], [1], [0, 0, 1, 1], [], []>} : vector<2x128xbf16>, vector<128x1024xbf16>, vector<2x1024xf32> -> vector<2x1024xf32>
    %397 = arith.addf %389, %396 : vector<2x1024xf32>
    %398 = vector.extract_strided_slice %354 {offsets = [4, 0], sizes = [1, 128], strides = [1, 1]} : vector<16x128xf32> to vector<1x128xf32>
    %399 = vector.extract_strided_slice %364 {offsets = [4, 0], sizes = [1, 128], strides = [1, 1]} : vector<16x128xf32> to vector<1x128xf32>
    %400 = tpu.concatenate %398, %399 in 0 : vector<1x128xf32>, vector<1x128xf32> -> vector<2x128xf32>
    %401 = arith.truncf %400 : vector<2x128xf32> to vector<2x128xbf16>
    %c4_186 = arith.constant 4 : index
    %c0_187 = arith.constant 0 : index
    %c0_188 = arith.constant 0 : index
    %402 = vector.load %arg13[%c4_186, %c0_187, %c0_188] : memref<16x128x1024xbf16, #tpu.memory_space<vmem>>, vector<1x128x1024xbf16>
    %403 = vector.shape_cast %402 : vector<1x128x1024xbf16> to vector<128x1024xbf16>
    %cst_189 = arith.constant dense<0.000000e+00> : vector<2x1024xf32>
    %404 = tpu.matmul %401, %403, %cst_189 {dimension_numbers = #tpu.dot_dimension_numbers<[1], [0], [0], [1], [0, 0, 1, 1], [], []>} : vector<2x128xbf16>, vector<128x1024xbf16>, vector<2x1024xf32> -> vector<2x1024xf32>
    %405 = arith.addf %397, %404 : vector<2x1024xf32>
    %406 = vector.extract_strided_slice %354 {offsets = [5, 0], sizes = [1, 128], strides = [1, 1]} : vector<16x128xf32> to vector<1x128xf32>
    %407 = vector.extract_strided_slice %364 {offsets = [5, 0], sizes = [1, 128], strides = [1, 1]} : vector<16x128xf32> to vector<1x128xf32>
    %408 = tpu.concatenate %406, %407 in 0 : vector<1x128xf32>, vector<1x128xf32> -> vector<2x128xf32>
    %409 = arith.truncf %408 : vector<2x128xf32> to vector<2x128xbf16>
    %c5 = arith.constant 5 : index
    %c0_190 = arith.constant 0 : index
    %c0_191 = arith.constant 0 : index
    %410 = vector.load %arg13[%c5, %c0_190, %c0_191] : memref<16x128x1024xbf16, #tpu.memory_space<vmem>>, vector<1x128x1024xbf16>
    %411 = vector.shape_cast %410 : vector<1x128x1024xbf16> to vector<128x1024xbf16>
    %cst_192 = arith.constant dense<0.000000e+00> : vector<2x1024xf32>
    %412 = tpu.matmul %409, %411, %cst_192 {dimension_numbers = #tpu.dot_dimension_numbers<[1], [0], [0], [1], [0, 0, 1, 1], [], []>} : vector<2x128xbf16>, vector<128x1024xbf16>, vector<2x1024xf32> -> vector<2x1024xf32>
    %413 = arith.addf %405, %412 : vector<2x1024xf32>
    %414 = vector.extract_strided_slice %354 {offsets = [6, 0], sizes = [1, 128], strides = [1, 1]} : vector<16x128xf32> to vector<1x128xf32>
    %415 = vector.extract_strided_slice %364 {offsets = [6, 0], sizes = [1, 128], strides = [1, 1]} : vector<16x128xf32> to vector<1x128xf32>
    %416 = tpu.concatenate %414, %415 in 0 : vector<1x128xf32>, vector<1x128xf32> -> vector<2x128xf32>
    %417 = arith.truncf %416 : vector<2x128xf32> to vector<2x128xbf16>
    %c6 = arith.constant 6 : index
    %c0_193 = arith.constant 0 : index
    %c0_194 = arith.constant 0 : index
    %418 = vector.load %arg13[%c6, %c0_193, %c0_194] : memref<16x128x1024xbf16, #tpu.memory_space<vmem>>, vector<1x128x1024xbf16>
    %419 = vector.shape_cast %418 : vector<1x128x1024xbf16> to vector<128x1024xbf16>
    %cst_195 = arith.constant dense<0.000000e+00> : vector<2x1024xf32>
    %420 = tpu.matmul %417, %419, %cst_195 {dimension_numbers = #tpu.dot_dimension_numbers<[1], [0], [0], [1], [0, 0, 1, 1], [], []>} : vector<2x128xbf16>, vector<128x1024xbf16>, vector<2x1024xf32> -> vector<2x1024xf32>
    %421 = arith.addf %413, %420 : vector<2x1024xf32>
    %422 = vector.extract_strided_slice %354 {offsets = [7, 0], sizes = [1, 128], strides = [1, 1]} : vector<16x128xf32> to vector<1x128xf32>
    %423 = vector.extract_strided_slice %364 {offsets = [7, 0], sizes = [1, 128], strides = [1, 1]} : vector<16x128xf32> to vector<1x128xf32>
    %424 = tpu.concatenate %422, %423 in 0 : vector<1x128xf32>, vector<1x128xf32> -> vector<2x128xf32>
    %425 = arith.truncf %424 : vector<2x128xf32> to vector<2x128xbf16>
    %c7 = arith.constant 7 : index
    %c0_196 = arith.constant 0 : index
    %c0_197 = arith.constant 0 : index
    %426 = vector.load %arg13[%c7, %c0_196, %c0_197] : memref<16x128x1024xbf16, #tpu.memory_space<vmem>>, vector<1x128x1024xbf16>
    %427 = vector.shape_cast %426 : vector<1x128x1024xbf16> to vector<128x1024xbf16>
    %cst_198 = arith.constant dense<0.000000e+00> : vector<2x1024xf32>
    %428 = tpu.matmul %425, %427, %cst_198 {dimension_numbers = #tpu.dot_dimension_numbers<[1], [0], [0], [1], [0, 0, 1, 1], [], []>} : vector<2x128xbf16>, vector<128x1024xbf16>, vector<2x1024xf32> -> vector<2x1024xf32>
    %429 = arith.addf %421, %428 : vector<2x1024xf32>
    %430 = vector.extract_strided_slice %354 {offsets = [8, 0], sizes = [1, 128], strides = [1, 1]} : vector<16x128xf32> to vector<1x128xf32>
    %431 = vector.extract_strided_slice %364 {offsets = [8, 0], sizes = [1, 128], strides = [1, 1]} : vector<16x128xf32> to vector<1x128xf32>
    %432 = tpu.concatenate %430, %431 in 0 : vector<1x128xf32>, vector<1x128xf32> -> vector<2x128xf32>
    %433 = arith.truncf %432 : vector<2x128xf32> to vector<2x128xbf16>
    %c8 = arith.constant 8 : index
    %c0_199 = arith.constant 0 : index
    %c0_200 = arith.constant 0 : index
    %434 = vector.load %arg13[%c8, %c0_199, %c0_200] : memref<16x128x1024xbf16, #tpu.memory_space<vmem>>, vector<1x128x1024xbf16>
    %435 = vector.shape_cast %434 : vector<1x128x1024xbf16> to vector<128x1024xbf16>
    %cst_201 = arith.constant dense<0.000000e+00> : vector<2x1024xf32>
    %436 = tpu.matmul %433, %435, %cst_201 {dimension_numbers = #tpu.dot_dimension_numbers<[1], [0], [0], [1], [0, 0, 1, 1], [], []>} : vector<2x128xbf16>, vector<128x1024xbf16>, vector<2x1024xf32> -> vector<2x1024xf32>
    %437 = arith.addf %429, %436 : vector<2x1024xf32>
    %438 = vector.extract_strided_slice %354 {offsets = [9, 0], sizes = [1, 128], strides = [1, 1]} : vector<16x128xf32> to vector<1x128xf32>
    %439 = vector.extract_strided_slice %364 {offsets = [9, 0], sizes = [1, 128], strides = [1, 1]} : vector<16x128xf32> to vector<1x128xf32>
    %440 = tpu.concatenate %438, %439 in 0 : vector<1x128xf32>, vector<1x128xf32> -> vector<2x128xf32>
    %441 = arith.truncf %440 : vector<2x128xf32> to vector<2x128xbf16>
    %c9 = arith.constant 9 : index
    %c0_202 = arith.constant 0 : index
    %c0_203 = arith.constant 0 : index
    %442 = vector.load %arg13[%c9, %c0_202, %c0_203] : memref<16x128x1024xbf16, #tpu.memory_space<vmem>>, vector<1x128x1024xbf16>
    %443 = vector.shape_cast %442 : vector<1x128x1024xbf16> to vector<128x1024xbf16>
    %cst_204 = arith.constant dense<0.000000e+00> : vector<2x1024xf32>
    %444 = tpu.matmul %441, %443, %cst_204 {dimension_numbers = #tpu.dot_dimension_numbers<[1], [0], [0], [1], [0, 0, 1, 1], [], []>} : vector<2x128xbf16>, vector<128x1024xbf16>, vector<2x1024xf32> -> vector<2x1024xf32>
    %445 = arith.addf %437, %444 : vector<2x1024xf32>
    %446 = vector.extract_strided_slice %354 {offsets = [10, 0], sizes = [1, 128], strides = [1, 1]} : vector<16x128xf32> to vector<1x128xf32>
    %447 = vector.extract_strided_slice %364 {offsets = [10, 0], sizes = [1, 128], strides = [1, 1]} : vector<16x128xf32> to vector<1x128xf32>
    %448 = tpu.concatenate %446, %447 in 0 : vector<1x128xf32>, vector<1x128xf32> -> vector<2x128xf32>
    %449 = arith.truncf %448 : vector<2x128xf32> to vector<2x128xbf16>
    %c10 = arith.constant 10 : index
    %c0_205 = arith.constant 0 : index
    %c0_206 = arith.constant 0 : index
    %450 = vector.load %arg13[%c10, %c0_205, %c0_206] : memref<16x128x1024xbf16, #tpu.memory_space<vmem>>, vector<1x128x1024xbf16>
    %451 = vector.shape_cast %450 : vector<1x128x1024xbf16> to vector<128x1024xbf16>
    %cst_207 = arith.constant dense<0.000000e+00> : vector<2x1024xf32>
    %452 = tpu.matmul %449, %451, %cst_207 {dimension_numbers = #tpu.dot_dimension_numbers<[1], [0], [0], [1], [0, 0, 1, 1], [], []>} : vector<2x128xbf16>, vector<128x1024xbf16>, vector<2x1024xf32> -> vector<2x1024xf32>
    %453 = arith.addf %445, %452 : vector<2x1024xf32>
    %454 = vector.extract_strided_slice %354 {offsets = [11, 0], sizes = [1, 128], strides = [1, 1]} : vector<16x128xf32> to vector<1x128xf32>
    %455 = vector.extract_strided_slice %364 {offsets = [11, 0], sizes = [1, 128], strides = [1, 1]} : vector<16x128xf32> to vector<1x128xf32>
    %456 = tpu.concatenate %454, %455 in 0 : vector<1x128xf32>, vector<1x128xf32> -> vector<2x128xf32>
    %457 = arith.truncf %456 : vector<2x128xf32> to vector<2x128xbf16>
    %c11 = arith.constant 11 : index
    %c0_208 = arith.constant 0 : index
    %c0_209 = arith.constant 0 : index
    %458 = vector.load %arg13[%c11, %c0_208, %c0_209] : memref<16x128x1024xbf16, #tpu.memory_space<vmem>>, vector<1x128x1024xbf16>
    %459 = vector.shape_cast %458 : vector<1x128x1024xbf16> to vector<128x1024xbf16>
    %cst_210 = arith.constant dense<0.000000e+00> : vector<2x1024xf32>
    %460 = tpu.matmul %457, %459, %cst_210 {dimension_numbers = #tpu.dot_dimension_numbers<[1], [0], [0], [1], [0, 0, 1, 1], [], []>} : vector<2x128xbf16>, vector<128x1024xbf16>, vector<2x1024xf32> -> vector<2x1024xf32>
    %461 = arith.addf %453, %460 : vector<2x1024xf32>
    %462 = vector.extract_strided_slice %354 {offsets = [12, 0], sizes = [1, 128], strides = [1, 1]} : vector<16x128xf32> to vector<1x128xf32>
    %463 = vector.extract_strided_slice %364 {offsets = [12, 0], sizes = [1, 128], strides = [1, 1]} : vector<16x128xf32> to vector<1x128xf32>
    %464 = tpu.concatenate %462, %463 in 0 : vector<1x128xf32>, vector<1x128xf32> -> vector<2x128xf32>
    %465 = arith.truncf %464 : vector<2x128xf32> to vector<2x128xbf16>
    %c12 = arith.constant 12 : index
    %c0_211 = arith.constant 0 : index
    %c0_212 = arith.constant 0 : index
    %466 = vector.load %arg13[%c12, %c0_211, %c0_212] : memref<16x128x1024xbf16, #tpu.memory_space<vmem>>, vector<1x128x1024xbf16>
    %467 = vector.shape_cast %466 : vector<1x128x1024xbf16> to vector<128x1024xbf16>
    %cst_213 = arith.constant dense<0.000000e+00> : vector<2x1024xf32>
    %468 = tpu.matmul %465, %467, %cst_213 {dimension_numbers = #tpu.dot_dimension_numbers<[1], [0], [0], [1], [0, 0, 1, 1], [], []>} : vector<2x128xbf16>, vector<128x1024xbf16>, vector<2x1024xf32> -> vector<2x1024xf32>
    %469 = arith.addf %461, %468 : vector<2x1024xf32>
    %470 = vector.extract_strided_slice %354 {offsets = [13, 0], sizes = [1, 128], strides = [1, 1]} : vector<16x128xf32> to vector<1x128xf32>
    %471 = vector.extract_strided_slice %364 {offsets = [13, 0], sizes = [1, 128], strides = [1, 1]} : vector<16x128xf32> to vector<1x128xf32>
    %472 = tpu.concatenate %470, %471 in 0 : vector<1x128xf32>, vector<1x128xf32> -> vector<2x128xf32>
    %473 = arith.truncf %472 : vector<2x128xf32> to vector<2x128xbf16>
    %c13 = arith.constant 13 : index
    %c0_214 = arith.constant 0 : index
    %c0_215 = arith.constant 0 : index
    %474 = vector.load %arg13[%c13, %c0_214, %c0_215] : memref<16x128x1024xbf16, #tpu.memory_space<vmem>>, vector<1x128x1024xbf16>
    %475 = vector.shape_cast %474 : vector<1x128x1024xbf16> to vector<128x1024xbf16>
    %cst_216 = arith.constant dense<0.000000e+00> : vector<2x1024xf32>
    %476 = tpu.matmul %473, %475, %cst_216 {dimension_numbers = #tpu.dot_dimension_numbers<[1], [0], [0], [1], [0, 0, 1, 1], [], []>} : vector<2x128xbf16>, vector<128x1024xbf16>, vector<2x1024xf32> -> vector<2x1024xf32>
    %477 = arith.addf %469, %476 : vector<2x1024xf32>
    %478 = vector.extract_strided_slice %354 {offsets = [14, 0], sizes = [1, 128], strides = [1, 1]} : vector<16x128xf32> to vector<1x128xf32>
    %479 = vector.extract_strided_slice %364 {offsets = [14, 0], sizes = [1, 128], strides = [1, 1]} : vector<16x128xf32> to vector<1x128xf32>
    %480 = tpu.concatenate %478, %479 in 0 : vector<1x128xf32>, vector<1x128xf32> -> vector<2x128xf32>
    %481 = arith.truncf %480 : vector<2x128xf32> to vector<2x128xbf16>
    %c14 = arith.constant 14 : index
    %c0_217 = arith.constant 0 : index
    %c0_218 = arith.constant 0 : index
    %482 = vector.load %arg13[%c14, %c0_217, %c0_218] : memref<16x128x1024xbf16, #tpu.memory_space<vmem>>, vector<1x128x1024xbf16>
    %483 = vector.shape_cast %482 : vector<1x128x1024xbf16> to vector<128x1024xbf16>
    %cst_219 = arith.constant dense<0.000000e+00> : vector<2x1024xf32>
    %484 = tpu.matmul %481, %483, %cst_219 {dimension_numbers = #tpu.dot_dimension_numbers<[1], [0], [0], [1], [0, 0, 1, 1], [], []>} : vector<2x128xbf16>, vector<128x1024xbf16>, vector<2x1024xf32> -> vector<2x1024xf32>
    %485 = arith.addf %477, %484 : vector<2x1024xf32>
    %486 = vector.extract_strided_slice %354 {offsets = [15, 0], sizes = [1, 128], strides = [1, 1]} : vector<16x128xf32> to vector<1x128xf32>
    %487 = vector.extract_strided_slice %364 {offsets = [15, 0], sizes = [1, 128], strides = [1, 1]} : vector<16x128xf32> to vector<1x128xf32>
    %488 = tpu.concatenate %486, %487 in 0 : vector<1x128xf32>, vector<1x128xf32> -> vector<2x128xf32>
    %489 = arith.truncf %488 : vector<2x128xf32> to vector<2x128xbf16>
    %c15 = arith.constant 15 : index
    %c0_220 = arith.constant 0 : index
    %c0_221 = arith.constant 0 : index
    %490 = vector.load %arg13[%c15, %c0_220, %c0_221] : memref<16x128x1024xbf16, #tpu.memory_space<vmem>>, vector<1x128x1024xbf16>
    %491 = vector.shape_cast %490 : vector<1x128x1024xbf16> to vector<128x1024xbf16>
    %cst_222 = arith.constant dense<0.000000e+00> : vector<2x1024xf32>
    %492 = tpu.matmul %489, %491, %cst_222 {dimension_numbers = #tpu.dot_dimension_numbers<[1], [0], [0], [1], [0, 0, 1, 1], [], []>} : vector<2x128xbf16>, vector<128x1024xbf16>, vector<2x1024xf32> -> vector<2x1024xf32>
    %493 = arith.addf %485, %492 : vector<2x1024xf32>
    %c0_223 = arith.constant 0 : index
    %c0_224 = arith.constant 0 : index
    %494 = vector.load %arg14[%c0_223, %c0_224] : memref<1x1024xf32, #tpu.memory_space<vmem>>, vector<1x1024xf32>
    %495 = vector.broadcast %494 : vector<1x1024xf32> to vector<2x1024xf32>
    %496 = arith.addf %493, %495 : vector<2x1024xf32>
    %cst_225 = arith.constant 0.000000e+00 : f32
    %497 = vector.broadcast %cst_225 : f32 to vector<2x1024xf32>
    %498 = arith.cmpf oge, %496, %497 : vector<2x1024xf32>
    %cst_226 = arith.constant 0.00999999977 : f32
    %499 = vector.broadcast %cst_226 : f32 to vector<2x1024xf32>
    %500 = arith.mulf %499, %496 : vector<2x1024xf32>
    %501 = arith.select %498, %496, %500 : vector<2x1024xi1>, vector<2x1024xf32>
    %cst_227 = arith.constant dense<0.000000e+00> : vector<1024xf32>
    %502 = vector.multi_reduction <add>, %501, %cst_227 [0] : vector<2x1024xf32> to vector<1024xf32>
    %503 = vector.shape_cast %502 : vector<1024xf32> to vector<1x1024xf32>
    %504 = arith.mulf %501, %501 : vector<2x1024xf32>
    %cst_228 = arith.constant dense<0.000000e+00> : vector<1024xf32>
    %505 = vector.multi_reduction <add>, %504, %cst_228 [0] : vector<2x1024xf32> to vector<1024xf32>
    %506 = vector.shape_cast %505 : vector<1024xf32> to vector<1x1024xf32>
    %cst_229 = arith.constant 5.000000e-01 : f32
    %507 = vector.broadcast %cst_229 : f32 to vector<1x1024xf32>
    %508 = arith.mulf %503, %507 : vector<1x1024xf32>
    %cst_230 = arith.constant 5.000000e-01 : f32
    %509 = vector.broadcast %cst_230 : f32 to vector<1x1024xf32>
    %510 = arith.mulf %506, %509 : vector<1x1024xf32>
    %511 = arith.mulf %508, %508 : vector<1x1024xf32>
    %512 = arith.subf %510, %511 : vector<1x1024xf32>
    %cst_231 = arith.constant 9.99999974E-6 : f32
    %513 = vector.broadcast %cst_231 : f32 to vector<1x1024xf32>
    %514 = arith.addf %512, %513 : vector<1x1024xf32>
    %515 = math.rsqrt %514 : vector<1x1024xf32>
    %516 = vector.broadcast %508 : vector<1x1024xf32> to vector<2x1024xf32>
    %517 = arith.subf %501, %516 : vector<2x1024xf32>
    %518 = vector.broadcast %515 : vector<1x1024xf32> to vector<2x1024xf32>
    %519 = arith.mulf %517, %518 : vector<2x1024xf32>
    %c0_232 = arith.constant 0 : index
    %c0_233 = arith.constant 0 : index
    %520 = vector.load %arg15[%c0_232, %c0_233] : memref<1x1024xf32, #tpu.memory_space<vmem>>, vector<1x1024xf32>
    %521 = vector.broadcast %520 : vector<1x1024xf32> to vector<2x1024xf32>
    %522 = arith.mulf %519, %521 : vector<2x1024xf32>
    %c0_234 = arith.constant 0 : index
    %c0_235 = arith.constant 0 : index
    %523 = vector.load %arg16[%c0_234, %c0_235] : memref<1x1024xf32, #tpu.memory_space<vmem>>, vector<1x1024xf32>
    %524 = vector.broadcast %523 : vector<1x1024xf32> to vector<2x1024xf32>
    %525 = arith.addf %522, %524 : vector<2x1024xf32>
    %526 = arith.truncf %525 : vector<2x1024xf32> to vector<2x1024xbf16>
    %c0_236 = arith.constant 0 : index
    %c0_237 = arith.constant 0 : index
    %527 = vector.load %arg17[%c0_236, %c0_237] : memref<1024x128xbf16, #tpu.memory_space<vmem>>, vector<1024x128xbf16>
    %cst_238 = arith.constant dense<0.000000e+00> : vector<2x128xf32>
    %528 = tpu.matmul %526, %527, %cst_238 {dimension_numbers = #tpu.dot_dimension_numbers<[1], [0], [0], [1], [0, 0, 1, 1], [], []>} : vector<2x1024xbf16>, vector<1024x128xbf16>, vector<2x128xf32> -> vector<2x128xf32>
    %c0_239 = arith.constant 0 : index
    %c0_240 = arith.constant 0 : index
    %529 = vector.load %arg18[%c0_239, %c0_240] : memref<1x128xf32, #tpu.memory_space<vmem>>, vector<1x128xf32>
    %530 = vector.broadcast %529 : vector<1x128xf32> to vector<2x128xf32>
    %531 = arith.addf %528, %530 : vector<2x128xf32>
    %cst_241 = arith.constant 0.000000e+00 : f32
    %532 = vector.broadcast %cst_241 : f32 to vector<2x128xf32>
    %533 = arith.cmpf oge, %531, %532 : vector<2x128xf32>
    %cst_242 = arith.constant 0.00999999977 : f32
    %534 = vector.broadcast %cst_242 : f32 to vector<2x128xf32>
    %535 = arith.mulf %534, %531 : vector<2x128xf32>
    %536 = arith.select %533, %531, %535 : vector<2x128xi1>, vector<2x128xf32>
    %cst_243 = arith.constant dense<0.000000e+00> : vector<128xf32>
    %537 = vector.multi_reduction <add>, %536, %cst_243 [0] : vector<2x128xf32> to vector<128xf32>
    %538 = vector.shape_cast %537 : vector<128xf32> to vector<1x128xf32>
    %539 = arith.mulf %536, %536 : vector<2x128xf32>
    %cst_244 = arith.constant dense<0.000000e+00> : vector<128xf32>
    %540 = vector.multi_reduction <add>, %539, %cst_244 [0] : vector<2x128xf32> to vector<128xf32>
    %541 = vector.shape_cast %540 : vector<128xf32> to vector<1x128xf32>
    %cst_245 = arith.constant 5.000000e-01 : f32
    %542 = vector.broadcast %cst_245 : f32 to vector<1x128xf32>
    %543 = arith.mulf %538, %542 : vector<1x128xf32>
    %cst_246 = arith.constant 5.000000e-01 : f32
    %544 = vector.broadcast %cst_246 : f32 to vector<1x128xf32>
    %545 = arith.mulf %541, %544 : vector<1x128xf32>
    %546 = arith.mulf %543, %543 : vector<1x128xf32>
    %547 = arith.subf %545, %546 : vector<1x128xf32>
    %cst_247 = arith.constant 9.99999974E-6 : f32
    %548 = vector.broadcast %cst_247 : f32 to vector<1x128xf32>
    %549 = arith.addf %547, %548 : vector<1x128xf32>
    %550 = math.rsqrt %549 : vector<1x128xf32>
    %551 = vector.broadcast %543 : vector<1x128xf32> to vector<2x128xf32>
    %552 = arith.subf %536, %551 : vector<2x128xf32>
    %553 = vector.broadcast %550 : vector<1x128xf32> to vector<2x128xf32>
    %554 = arith.mulf %552, %553 : vector<2x128xf32>
    %c0_248 = arith.constant 0 : index
    %c0_249 = arith.constant 0 : index
    %555 = vector.load %arg19[%c0_248, %c0_249] : memref<1x128xf32, #tpu.memory_space<vmem>>, vector<1x128xf32>
    %556 = vector.broadcast %555 : vector<1x128xf32> to vector<2x128xf32>
    %557 = arith.mulf %554, %556 : vector<2x128xf32>
    %c0_250 = arith.constant 0 : index
    %c0_251 = arith.constant 0 : index
    %558 = vector.load %arg20[%c0_250, %c0_251] : memref<1x128xf32, #tpu.memory_space<vmem>>, vector<1x128xf32>
    %559 = vector.broadcast %558 : vector<1x128xf32> to vector<2x128xf32>
    %560 = arith.addf %557, %559 : vector<2x128xf32>
    %561 = arith.truncf %560 : vector<2x128xf32> to vector<2x128xbf16>
    %c0_252 = arith.constant 0 : index
    %c0_253 = arith.constant 0 : index
    %562 = vector.load %arg21[%c0_252, %c0_253] : memref<128x128xbf16, #tpu.memory_space<vmem>>, vector<128x128xbf16>
    %cst_254 = arith.constant dense<0.000000e+00> : vector<2x128xf32>
    %563 = tpu.matmul %561, %562, %cst_254 {dimension_numbers = #tpu.dot_dimension_numbers<[1], [0], [0], [1], [0, 0, 1, 1], [], []>} : vector<2x128xbf16>, vector<128x128xbf16>, vector<2x128xf32> -> vector<2x128xf32>
    %c0_255 = arith.constant 0 : index
    %c0_256 = arith.constant 0 : index
    %564 = vector.load %arg22[%c0_255, %c0_256] : memref<1x128xf32, #tpu.memory_space<vmem>>, vector<1x128xf32>
    %565 = vector.broadcast %564 : vector<1x128xf32> to vector<2x128xf32>
    %566 = arith.addf %563, %565 : vector<2x128xf32>
    %c0_257 = arith.constant 0 : index
    %c0_258 = arith.constant 0 : index
    %567 = vector.load %arg23[%c0_257, %c0_258] : memref<2x128xf32, #tpu.memory_space<vmem>>, vector<2x128xf32>
    tpu.vector_store %arg23[%c0_257, %c0_258], %566 {strides = array<i32>} : memref<2x128xf32, #tpu.memory_space<vmem>>, vector<2x128xf32>,
    return
  }
}

</mosaic_0001>

<llo_original>
// kernel: net_forward.1
$region0: #{net_forward.1}
  #allocation0 [shape = 'u32[]', space=smem, size = 0x4, offset = 0x4, fixed_abs, tag = 'smem constant byte address 0x4 - core index']
  #allocation1 [shape = 'u32[72,128]{1,0:T(1,128)}', space=vmem, size = 0x9000, scoped, tag = 'internal scratch']
  %s0 = inlined_call_operand.vmem [shape: f32[44,2], index: 0, kind: input, shape index: {}]
  %s1 = inlined_call_operand.hbm [shape: f32[5,64], index: 1, kind: input, shape index: {}]
  %s2 = inlined_call_operand.hbm [shape: f32[1,64], index: 2, kind: input, shape index: {}]
  %s3 = inlined_call_operand.hbm [shape: f32[1,64], index: 3, kind: input, shape index: {}]
  %s4 = inlined_call_operand.hbm [shape: f32[1,64], index: 4, kind: input, shape index: {}]
  %s5 = inlined_call_operand.hbm [shape: bf16[5,64,64], index: 5, kind: input, shape index: {}]
  %s6 = inlined_call_operand.hbm [shape: f32[1,64], index: 6, kind: input, shape index: {}]
  %s7 = inlined_call_operand.hbm [shape: f32[1,64], index: 7, kind: input, shape index: {}]
  %s8 = inlined_call_operand.hbm [shape: f32[1,64], index: 8, kind: input, shape index: {}]
  %s9 = inlined_call_operand.hbm [shape: bf16[5,64,128], index: 9, kind: input, shape index: {}]
  %s10 = inlined_call_operand.hbm [shape: f32[1,128], index: 10, kind: input, shape index: {}]
  %s11 = inlined_call_operand.hbm [shape: f32[1,128], index: 11, kind: input, shape index: {}]
  %s12 = inlined_call_operand.hbm [shape: f32[1,128], index: 12, kind: input, shape index: {}]
  %s13 = inlined_call_operand.hbm [shape: bf16[16,128,1024], index: 13, kind: input, shape index: {}]
  %s14 = inlined_call_operand.hbm [shape: f32[1,1024], index: 14, kind: input, shape index: {}]
  %s15 = inlined_call_operand.hbm [shape: f32[1,1024], index: 15, kind: input, shape index: {}]
  %s16 = inlined_call_operand.hbm [shape: f32[1,1024], index: 16, kind: input, shape index: {}]
  %s17 = inlined_call_operand.hbm [shape: bf16[1024,128], index: 17, kind: input, shape index: {}]
  %s18 = inlined_call_operand.hbm [shape: f32[1,128], index: 18, kind: input, shape index: {}]
  %s19 = inlined_call_operand.hbm [shape: f32[1,128], index: 19, kind: input, shape index: {}]
  %s20 = inlined_call_operand.hbm [shape: f32[1,128], index: 20, kind: input, shape index: {}]
  %s21 = inlined_call_operand.hbm [shape: bf16[128,128], index: 21, kind: input, shape index: {}]
  %s22 = inlined_call_operand.hbm [shape: f32[1,128], index: 22, kind: input, shape index: {}]
  %s23 = inlined_call_operand.hbm [shape: f32[2,128], index: 23, kind: output, shape index: {}]
  %s24 = sld [smem:[#allocation0]]
  $region190: #{net_forward.1} parent=0
    _
  %s26 = ssub.s32 1, %s24
  %s27 = scalar_select 0, %s26, %s24
  $region1: #{net_forward.1} parent=0
    #allocation2 [shape = 'u8[4096]{0}', space=vmem, size = 0x1000, scoped, tag = 'input window, operand 1, single buffered']
    #allocation3 [shape = 's32[1]{0}', space=sflag, size = 0x4, scoped, tag = 'scoped memory for net_forward.1']
    #allocation4 [shape = 's32[1]{0}', space=sflag, size = 0x4, scoped, tag = 'scoped memory for net_forward.1']
    #allocation5 [shape = 'u8[512]{0}', space=vmem, size = 0x400, scoped, tag = 'input window, operand 2, single buffered']
    #allocation6 [shape = 's32[1]{0}', space=sflag, size = 0x4, scoped, tag = 'scoped memory for net_forward.1']
    #allocation7 [shape = 'u8[512]{0}', space=vmem, size = 0x400, scoped, tag = 'input window, operand 3, single buffered']
    #allocation8 [shape = 'u8[512]{0}', space=vmem, size = 0x400, scoped, tag = 'input window, operand 4, single buffered']
    #allocation9 [shape = 's32[1]{0}', space=sflag, size = 0x4, scoped, tag = 'scoped memory for net_forward.1']
    #allocation10 [shape = 'u8[81920]{0}', space=vmem, size = 0x14000, scoped, tag = 'input window, operand 5, single buffered']
    #allocation11 [shape = 'u8[512]{0}', space=vmem, size = 0x400, scoped, tag = 'input window, operand 6, single buffered']
    #allocation12 [shape = 's32[1]{0}', space=sflag, size = 0x4, scoped, tag = 'scoped memory for net_forward.1']
    #allocation13 [shape = 'u8[512]{0}', space=vmem, size = 0x400, scoped, tag = 'input window, operand 7, single buffered']
    #allocation14 [shape = 'u8[512]{0}', space=vmem, size = 0x400, scoped, tag = 'input window, operand 8, single buffered']
    #allocation15 [shape = 's32[1]{0}', space=sflag, size = 0x4, scoped, tag = 'scoped memory for net_forward.1']
    #allocation16 [shape = 'u8[81920]{0}', space=vmem, size = 0x14000, scoped, tag = 'input window, operand 9, single buffered']
    #allocation17 [shape = 'u8[512]{0}', space=vmem, size = 0x400, scoped, tag = 'input window, operand 10, single buffered']
    #allocation18 [shape = 's32[1]{0}', space=sflag, size = 0x4, scoped, tag = 'scoped memory for net_forward.1']
    #allocation19 [shape = 'u8[512]{0}', space=vmem, size = 0x400, scoped, tag = 'input window, operand 11, single buffered']
    #allocation20 [shape = 'u8[512]{0}', space=vmem, size = 0x400, scoped, tag = 'input window, operand 12, single buffered']
    #allocation21 [shape = 's32[1]{0}', space=sflag, size = 0x4, scoped, tag = 'scoped memory for net_forward.1']
    #allocation22 [shape = 'u8[4194304]{0}', space=vmem, size = 0x400000, scoped, tag = 'input window, operand 13, single buffered']
    #allocation23 [shape = 'u8[4096]{0}', space=vmem, size = 0x1000, scoped, tag = 'input window, operand 14, single buffered']
    #allocation24 [shape = 's32[1]{0}', space=sflag, size = 0x4, scoped, tag = 'scoped memory for net_forward.1']
    #allocation25 [shape = 'u8[4096]{0}', space=vmem, size = 0x1000, scoped, tag = 'input window, operand 15, single buffered']
    #allocation26 [shape = 'u8[4096]{0}', space=vmem, size = 0x1000, scoped, tag = 'input window, operand 16, single buffered']
    #allocation27 [shape = 's32[1]{0}', space=sflag, size = 0x4, scoped, tag = 'scoped memory for net_forward.1']
    #allocation28 [shape = 'u8[262144]{0}', space=vmem, size = 0x40000, scoped, tag = 'input window, operand 17, single buffered']
    #allocation29 [shape = 'u8[512]{0}', space=vmem, size = 0x400, scoped, tag = 'input window, operand 18, single buffered']
    #allocation30 [shape = 's32[1]{0}', space=sflag, size = 0x4, scoped, tag = 'scoped memory for net_forward.1']
    #allocation31 [shape = 'u8[512]{0}', space=vmem, size = 0x400, scoped, tag = 'input window, operand 19, single buffered']
    #allocation32 [shape = 'u8[512]{0}', space=vmem, size = 0x400, scoped, tag = 'input window, operand 20, single buffered']
    #allocation33 [shape = 's32[1]{0}', space=sflag, size = 0x4, scoped, tag = 'scoped memory for net_forward.1']
    #allocation34 [shape = 'u8[32768]{0}', space=vmem, size = 0x8000, scoped, tag = 'input window, operand 21, single buffered']
    #allocation35 [shape = 'u8[512]{0}', space=vmem, size = 0x400, scoped, tag = 'input window, operand 22, single buffered']
    #allocation36 [shape = 's32[1]{0}', space=sflag, size = 0x4, scoped, tag = 'scoped memory for net_forward.1']
    #allocation37 [shape = 'u8[1024]{0}', space=vmem, size = 0x400, scoped, tag = 'output window, operand 0, single buffered']
    %28 = vsyncpa [#allocation3], 0
    %29 = vsyncpa [#allocation6], 0
    %30 = vsyncpa [#allocation9], 0
    %31 = vsyncpa [#allocation12], 0
    %32 = vsyncpa [#allocation15], 0
    %33 = vsyncpa [#allocation18], 0
    %34 = vsyncpa [#allocation21], 0
    %35 = vsyncpa [#allocation24], 0
    %36 = vsyncpa [#allocation27], 0
    %37 = vsyncpa [#allocation30], 0
    %38 = vsyncpa [#allocation33], 0
    %39 = vsyncpa [#allocation36], 0
    %40 = vsyncpa [#allocation4], 0
    // Predicated region
    $region2: #{net_forward.1} parent=1 // pred_check
      _
    $region3: #{net_forward.1} parent=1 // pred_check_branch
      %42 = sbr.rel (0) target = $region5
    $region4: #{net_forward.1} parent=1 // pred_region
      _
    $region5: #{net_forward.1} parent=1 // pred_fallthru
      _
    // Predicated region
    $region6: #{net_forward.1} parent=1 // pred_check
      _
    $region7: #{net_forward.1} parent=1 // pred_check_branch
      %44 = sbr.rel (0) target = $region9
    $region8: #{net_forward.1} parent=1 // pred_region
      %46 = vsyncadd [#allocation3], 0
      %s48 = sshll.u32 %s1, 4
      %s49 = int_to_ptr.hbm [resolvable:$true] %s48
      %s50 = sshll.u32 [#allocation2], 4
      %s51 = int_to_ptr.vmem [resolvable:$true] %s50
      %53 = dma.hbm_to_vmem [thread:$0]  %s49, 128, %s51, [#allocation3]
    $region9: #{net_forward.1} parent=1 // pred_fallthru
      _
    // Predicated region
    $region10: #{net_forward.1} parent=1 // pred_check
      _
    $region11: #{net_forward.1} parent=1 // pred_check_branch
      %55 = sbr.rel (0) target = $region13
    $region12: #{net_forward.1} parent=1 // pred_region
      %57 = vsyncadd [#allocation6], 0
      %s59 = sshll.u32 %s2, 4
      %s60 = int_to_ptr.hbm [resolvable:$true] %s59
      %s61 = sshll.u32 [#allocation5], 4
      %s62 = int_to_ptr.vmem [resolvable:$true] %s61
      %64 = dma.hbm_to_vmem [thread:$0]  %s60, 16, %s62, [#allocation6]
    $region13: #{net_forward.1} parent=1 // pred_fallthru
      _
    // Predicated region
    $region14: #{net_forward.1} parent=1 // pred_check
      _
    $region15: #{net_forward.1} parent=1 // pred_check_branch
      %66 = sbr.rel (0) target = $region17
    $region16: #{net_forward.1} parent=1 // pred_region
      %68 = vsyncadd [#allocation6], 0
      %s70 = sshll.u32 %s3, 4
      %s71 = int_to_ptr.hbm [resolvable:$true] %s70
      %s72 = sshll.u32 [#allocation7], 4
      %s73 = int_to_ptr.vmem [resolvable:$true] %s72
      %75 = dma.hbm_to_vmem [thread:$0]  %s71, 16, %s73, [#allocation6]
    $region17: #{net_forward.1} parent=1 // pred_fallthru
      _
    // Predicated region
    $region18: #{net_forward.1} parent=1 // pred_check
      _
    $region19: #{net_forward.1} parent=1 // pred_check_branch
      %77 = sbr.rel (0) target = $region21
    $region20: #{net_forward.1} parent=1 // pred_region
      %79 = vsyncadd [#allocation9], 0
      %s81 = sshll.u32 %s4, 4
      %s82 = int_to_ptr.hbm [resolvable:$true] %s81
      %s83 = sshll.u32 [#allocation8], 4
      %s84 = int_to_ptr.vmem [resolvable:$true] %s83
      %86 = dma.hbm_to_vmem [thread:$0]  %s82, 16, %s84, [#allocation9]
    $region21: #{net_forward.1} parent=1 // pred_fallthru
      _
    // Predicated region
    $region22: #{net_forward.1} parent=1 // pred_check
      _
    $region23: #{net_forward.1} parent=1 // pred_check_branch
      %88 = sbr.rel (0) target = $region25
    $region24: #{net_forward.1} parent=1 // pred_region
      %90 = vsyncadd [#allocation9], 0
      %s91 = sshll.u32 %s5, 4
      %s92 = int_to_ptr.hbm [resolvable:$true] %s91
      %s93 = sshll.u32 [#allocation10], 4
      %s94 = int_to_ptr.vmem [resolvable:$true] %s93
      %99 = dma.hbm_to_vmem [thread:$0]  %s92, 2560, %s94, [#allocation9], 64, 64, 4
    $region25: #{net_forward.1} parent=1 // pred_fallthru
      _
    // Predicated region
    $region26: #{net_forward.1} parent=1 // pred_check
      _
    $region27: #{net_forward.1} parent=1 // pred_check_branch
      %101 = sbr.rel (0) target = $region29
    $region28: #{net_forward.1} parent=1 // pred_region
      %103 = vsyncadd [#allocation12], 0
      %s105 = sshll.u32 %s6, 4
      %s106 = int_to_ptr.hbm [resolvable:$true] %s105
      %s107 = sshll.u32 [#allocation11], 4
      %s108 = int_to_ptr.vmem [resolvable:$true] %s107
      %110 = dma.hbm_to_vmem [thread:$0]  %s106, 16, %s108, [#allocation12]
    $region29: #{net_forward.1} parent=1 // pred_fallthru
      _
    // Predicated region
    $region30: #{net_forward.1} parent=1 // pred_check
      _
    $region31: #{net_forward.1} parent=1 // pred_check_branch
      %112 = sbr.rel (0) target = $region33
    $region32: #{net_forward.1} parent=1 // pred_region
      %114 = vsyncadd [#allocation12], 0
      %s116 = sshll.u32 %s7, 4
      %s117 = int_to_ptr.hbm [resolvable:$true] %s116
      %s118 = sshll.u32 [#allocation13], 4
      %s119 = int_to_ptr.vmem [resolvable:$true] %s118
      %121 = dma.hbm_to_vmem [thread:$0]  %s117, 16, %s119, [#allocation12]
    $region33: #{net_forward.1} parent=1 // pred_fallthru
      _
    // Predicated region
    $region34: #{net_forward.1} parent=1 // pred_check
      _
    $region35: #{net_forward.1} parent=1 // pred_check_branch
      %123 = sbr.rel (0) target = $region37
    $region36: #{net_forward.1} parent=1 // pred_region
      %125 = vsyncadd [#allocation15], 0
      %s127 = sshll.u32 %s8, 4
      %s128 = int_to_ptr.hbm [resolvable:$true] %s127
      %s129 = sshll.u32 [#allocation14], 4
      %s130 = int_to_ptr.vmem [resolvable:$true] %s129
      %132 = dma.hbm_to_vmem [thread:$0]  %s128, 16, %s130, [#allocation15]
    $region37: #{net_forward.1} parent=1 // pred_fallthru
      _
    // Predicated region
    $region38: #{net_forward.1} parent=1 // pred_check
      _
    $region39: #{net_forward.1} parent=1 // pred_check_branch
      %134 = sbr.rel (0) target = $region41
    $region40: #{net_forward.1} parent=1 // pred_region
      %136 = vsyncadd [#allocation15], 0
      %s137 = sshll.u32 %s9, 4
      %s138 = int_to_ptr.hbm [resolvable:$true] %s137
      %s139 = sshll.u32 [#allocation16], 4
      %s140 = int_to_ptr.vmem [resolvable:$true] %s139
      %145 = dma.hbm_to_vmem [thread:$0]  %s138, 2560, %s140, [#allocation15], 64, 64, 4
    $region41: #{net_forward.1} parent=1 // pred_fallthru
      _
    // Predicated region
    $region42: #{net_forward.1} parent=1 // pred_check
      _
    $region43: #{net_forward.1} parent=1 // pred_check_branch
      %147 = sbr.rel (0) target = $region45
    $region44: #{net_forward.1} parent=1 // pred_region
      %149 = vsyncadd [#allocation18], 0
      %s151 = sshll.u32 %s10, 4
      %s152 = int_to_ptr.hbm [resolvable:$true] %s151
      %s153 = sshll.u32 [#allocation17], 4
      %s154 = int_to_ptr.vmem [resolvable:$true] %s153
      %156 = dma.hbm_to_vmem [thread:$0]  %s152, 16, %s154, [#allocation18]
    $region45: #{net_forward.1} parent=1 // pred_fallthru
      _
    // Predicated region
    $region46: #{net_forward.1} parent=1 // pred_check
      _
    $region47: #{net_forward.1} parent=1 // pred_check_branch
      %158 = sbr.rel (0) target = $region49
    $region48: #{net_forward.1} parent=1 // pred_region
      %160 = vsyncadd [#allocation18], 0
      %s162 = sshll.u32 %s11, 4
      %s163 = int_to_ptr.hbm [resolvable:$true] %s162
      %s164 = sshll.u32 [#allocation19], 4
      %s165 = int_to_ptr.vmem [resolvable:$true] %s164
      %167 = dma.hbm_to_vmem [thread:$0]  %s163, 16, %s165, [#allocation18]
    $region49: #{net_forward.1} parent=1 // pred_fallthru
      _
    // Predicated region
    $region50: #{net_forward.1} parent=1 // pred_check
      _
    $region51: #{net_forward.1} parent=1 // pred_check_branch
      %169 = sbr.rel (0) target = $region53
    $region52: #{net_forward.1} parent=1 // pred_region
      %171 = vsyncadd [#allocation21], 0
      %s173 = sshll.u32 %s12, 4
      %s174 = int_to_ptr.hbm [resolvable:$true] %s173
      %s175 = sshll.u32 [#allocation20], 4
      %s176 = int_to_ptr.vmem [resolvable:$true] %s175
      %178 = dma.hbm_to_vmem [thread:$0]  %s174, 16, %s176, [#allocation21]
    $region53: #{net_forward.1} parent=1 // pred_fallthru
      _
    // Predicated region
    $region54: #{net_forward.1} parent=1 // pred_check
      _
    $region55: #{net_forward.1} parent=1 // pred_check_branch
      %180 = sbr.rel (0) target = $region57
    $region56: #{net_forward.1} parent=1 // pred_region
      %182 = vsyncadd [#allocation21], 0
      %s183 = sshll.u32 %s13, 4
      %s184 = int_to_ptr.hbm [resolvable:$true] %s183
      %s185 = sshll.u32 [#allocation22], 4
      %s186 = int_to_ptr.vmem [resolvable:$true] %s185
      %191 = dma.hbm_to_vmem [thread:$0]  %s184, 131072, %s186, [#allocation21], 512, 512, 32
    $region57: #{net_forward.1} parent=1 // pred_fallthru
      _
    // Predicated region
    $region58: #{net_forward.1} parent=1 // pred_check
      _
    $region59: #{net_forward.1} parent=1 // pred_check_branch
      %193 = sbr.rel (0) target = $region61
    $region60: #{net_forward.1} parent=1 // pred_region
      %195 = vsyncadd [#allocation24], 0
      %s197 = sshll.u32 %s14, 4
      %s198 = int_to_ptr.hbm [resolvable:$true] %s197
      %s199 = sshll.u32 [#allocation23], 4
      %s200 = int_to_ptr.vmem [resolvable:$true] %s199
      %202 = dma.hbm_to_vmem [thread:$0]  %s198, 128, %s200, [#allocation24]
    $region61: #{net_forward.1} parent=1 // pred_fallthru
      _
    // Predicated region
    $region62: #{net_forward.1} parent=1 // pred_check
      _
    $region63: #{net_forward.1} parent=1 // pred_check_branch
      %204 = sbr.rel (0) target = $region65
    $region64: #{net_forward.1} parent=1 // pred_region
      %206 = vsyncadd [#allocation24], 0
      %s208 = sshll.u32 %s15, 4
      %s209 = int_to_ptr.hbm [resolvable:$true] %s208
      %s210 = sshll.u32 [#allocation25], 4
      %s211 = int_to_ptr.vmem [resolvable:$true] %s210
      %213 = dma.hbm_to_vmem [thread:$0]  %s209, 128, %s211, [#allocation24]
    $region65: #{net_forward.1} parent=1 // pred_fallthru
      _
    // Predicated region
    $region66: #{net_forward.1} parent=1 // pred_check
      _
    $region67: #{net_forward.1} parent=1 // pred_check_branch
      %215 = sbr.rel (0) target = $region69
    $region68: #{net_forward.1} parent=1 // pred_region
      %217 = vsyncadd [#allocation27], 0
      %s219 = sshll.u32 %s16, 4
      %s220 = int_to_ptr.hbm [resolvable:$true] %s219
      %s221 = sshll.u32 [#allocation26], 4
      %s222 = int_to_ptr.vmem [resolvable:$true] %s221
      %224 = dma.hbm_to_vmem [thread:$0]  %s220, 128, %s222, [#allocation27]
    $region69: #{net_forward.1} parent=1 // pred_fallthru
      _
    // Predicated region
    $region70: #{net_forward.1} parent=1 // pred_check
      _
    $region71: #{net_forward.1} parent=1 // pred_check_branch
      %226 = sbr.rel (0) target = $region73
    $region72: #{net_forward.1} parent=1 // pred_region
      %228 = vsyncadd [#allocation27], 0
      %s229 = sshll.u32 %s17, 4
      %s230 = int_to_ptr.hbm [resolvable:$true] %s229
      %s231 = sshll.u32 [#allocation28], 4
      %s232 = int_to_ptr.vmem [resolvable:$true] %s231
      %237 = dma.hbm_to_vmem [thread:$0]  %s230, 8192, %s232, [#allocation27], 64, 64, 4
    $region73: #{net_forward.1} parent=1 // pred_fallthru
      _
    // Predicated region
    $region74: #{net_forward.1} parent=1 // pred_check
      _
    $region75: #{net_forward.1} parent=1 // pred_check_branch
      %239 = sbr.rel (0) target = $region77
    $region76: #{net_forward.1} parent=1 // pred_region
      %241 = vsyncadd [#allocation30], 0
      %s243 = sshll.u32 %s18, 4
      %s244 = int_to_ptr.hbm [resolvable:$true] %s243
      %s245 = sshll.u32 [#allocation29], 4
      %s246 = int_to_ptr.vmem [resolvable:$true] %s245
      %248 = dma.hbm_to_vmem [thread:$0]  %s244, 16, %s246, [#allocation30]
    $region77: #{net_forward.1} parent=1 // pred_fallthru
      _
    // Predicated region
    $region78: #{net_forward.1} parent=1 // pred_check
      _
    $region79: #{net_forward.1} parent=1 // pred_check_branch
      %250 = sbr.rel (0) target = $region81
    $region80: #{net_forward.1} parent=1 // pred_region
      %252 = vsyncadd [#allocation30], 0
      %s254 = sshll.u32 %s19, 4
      %s255 = int_to_ptr.hbm [resolvable:$true] %s254
      %s256 = sshll.u32 [#allocation31], 4
      %s257 = int_to_ptr.vmem [resolvable:$true] %s256
      %259 = dma.hbm_to_vmem [thread:$0]  %s255, 16, %s257, [#allocation30]
    $region81: #{net_forward.1} parent=1 // pred_fallthru
      _
    // Predicated region
    $region82: #{net_forward.1} parent=1 // pred_check
      _
    $region83: #{net_forward.1} parent=1 // pred_check_branch
      %261 = sbr.rel (0) target = $region85
    $region84: #{net_forward.1} parent=1 // pred_region
      %263 = vsyncadd [#allocation33], 0
      %s265 = sshll.u32 %s20, 4
      %s266 = int_to_ptr.hbm [resolvable:$true] %s265
      %s267 = sshll.u32 [#allocation32], 4
      %s268 = int_to_ptr.vmem [resolvable:$true] %s267
      %270 = dma.hbm_to_vmem [thread:$0]  %s266, 16, %s268, [#allocation33]
    $region85: #{net_forward.1} parent=1 // pred_fallthru
      _
    // Predicated region
    $region86: #{net_forward.1} parent=1 // pred_check
      _
    $region87: #{net_forward.1} parent=1 // pred_check_branch
      %272 = sbr.rel (0) target = $region89
    $region88: #{net_forward.1} parent=1 // pred_region
      %274 = vsyncadd [#allocation33], 0
      %s275 = sshll.u32 %s21, 4
      %s276 = int_to_ptr.hbm [resolvable:$true] %s275
      %s277 = sshll.u32 [#allocation34], 4
      %s278 = int_to_ptr.vmem [resolvable:$true] %s277
      %283 = dma.hbm_to_vmem [thread:$0]  %s276, 1024, %s278, [#allocation33], 64, 64, 4
    $region89: #{net_forward.1} parent=1 // pred_fallthru
      _
    // Predicated region
    $region90: #{net_forward.1} parent=1 // pred_check
      _
    $region91: #{net_forward.1} parent=1 // pred_check_branch
      %285 = sbr.rel (0) target = $region93
    $region92: #{net_forward.1} parent=1 // pred_region
      %287 = vsyncadd [#allocation36], 0
      %s289 = sshll.u32 %s22, 4
      %s290 = int_to_ptr.hbm [resolvable:$true] %s289
      %s291 = sshll.u32 [#allocation35], 4
      %s292 = int_to_ptr.vmem [resolvable:$true] %s291
      %294 = dma.hbm_to_vmem [thread:$0]  %s290, 16, %s292, [#allocation36]
    $region93: #{net_forward.1} parent=1 // pred_fallthru
      _
    // Predicated region
    $region94: #{net_forward.1} parent=1 // pred_check
      _
    $region95: #{net_forward.1} parent=1 // pred_check_branch
      %296 = sbr.rel (0) target = $region97
    $region96: #{net_forward.1} parent=1 // pred_region
      %298 = dma.done [#allocation3], 128
    $region97: #{net_forward.1} parent=1 // pred_fallthru
      _
    // Predicated region
    $region98: #{net_forward.1} parent=1 // pred_check
      _
    $region99: #{net_forward.1} parent=1 // pred_check_branch
      %300 = sbr.rel (0) target = $region101
    $region100: #{net_forward.1} parent=1 // pred_region
      %302 = dma.done [#allocation6], 16
    $region101: #{net_forward.1} parent=1 // pred_fallthru
      _
    // Predicated region
    $region102: #{net_forward.1} parent=1 // pred_check
      _
    $region103: #{net_forward.1} parent=1 // pred_check_branch
      %304 = sbr.rel (0) target = $region105
    $region104: #{net_forward.1} parent=1 // pred_region
      %306 = dma.done [#allocation6], 16
    $region105: #{net_forward.1} parent=1 // pred_fallthru
      _
    // Predicated region
    $region106: #{net_forward.1} parent=1 // pred_check
      _
    $region107: #{net_forward.1} parent=1 // pred_check_branch
      %308 = sbr.rel (0) target = $region109
    $region108: #{net_forward.1} parent=1 // pred_region
      %310 = dma.done [#allocation9], 16
    $region109: #{net_forward.1} parent=1 // pred_fallthru
      _
    // Predicated region
    $region110: #{net_forward.1} parent=1 // pred_check
      _
    $region111: #{net_forward.1} parent=1 // pred_check_branch
      %312 = sbr.rel (0) target = $region113
    $region112: #{net_forward.1} parent=1 // pred_region
      %314 = dma.done [#allocation9], 2560
    $region113: #{net_forward.1} parent=1 // pred_fallthru
      _
    // Predicated region
    $region114: #{net_forward.1} parent=1 // pred_check
      _
    $region115: #{net_forward.1} parent=1 // pred_check_branch
      %316 = sbr.rel (0) target = $region117
    $region116: #{net_forward.1} parent=1 // pred_region
      %318 = dma.done [#allocation12], 16
    $region117: #{net_forward.1} parent=1 // pred_fallthru
      _
    // Predicated region
    $region118: #{net_forward.1} parent=1 // pred_check
      _
    $region119: #{net_forward.1} parent=1 // pred_check_branch
      %320 = sbr.rel (0) target = $region121
    $region120: #{net_forward.1} parent=1 // pred_region
      %322 = dma.done [#allocation12], 16
    $region121: #{net_forward.1} parent=1 // pred_fallthru
      _
    // Predicated region
    $region122: #{net_forward.1} parent=1 // pred_check
      _
    $region123: #{net_forward.1} parent=1 // pred_check_branch
      %324 = sbr.rel (0) target = $region125
    $region124: #{net_forward.1} parent=1 // pred_region
      %326 = dma.done [#allocation15], 16
    $region125: #{net_forward.1} parent=1 // pred_fallthru
      _
    // Predicated region
    $region126: #{net_forward.1} parent=1 // pred_check
      _
    $region127: #{net_forward.1} parent=1 // pred_check_branch
      %328 = sbr.rel (0) target = $region129
    $region128: #{net_forward.1} parent=1 // pred_region
      %330 = dma.done [#allocation15], 2560
    $region129: #{net_forward.1} parent=1 // pred_fallthru
      _
    // Predicated region
    $region130: #{net_forward.1} parent=1 // pred_check
      _
    $region131: #{net_forward.1} parent=1 // pred_check_branch
      %332 = sbr.rel (0) target = $region133
    $region132: #{net_forward.1} parent=1 // pred_region
      %334 = dma.done [#allocation18], 16
    $region133: #{net_forward.1} parent=1 // pred_fallthru
      _
    // Predicated region
    $region134: #{net_forward.1} parent=1 // pred_check
      _
    $region135: #{net_forward.1} parent=1 // pred_check_branch
      %336 = sbr.rel (0) target = $region137
    $region136: #{net_forward.1} parent=1 // pred_region
      %338 = dma.done [#allocation18], 16
    $region137: #{net_forward.1} parent=1 // pred_fallthru
      _
    // Predicated region
    $region138: #{net_forward.1} parent=1 // pred_check
      _
    $region139: #{net_forward.1} parent=1 // pred_check_branch
      %340 = sbr.rel (0) target = $region141
    $region140: #{net_forward.1} parent=1 // pred_region
      %342 = dma.done [#allocation21], 16
    $region141: #{net_forward.1} parent=1 // pred_fallthru
      _
    // Predicated region
    $region142: #{net_forward.1} parent=1 // pred_check
      _
    $region143: #{net_forward.1} parent=1 // pred_check_branch
      %344 = sbr.rel (0) target = $region145
    $region144: #{net_forward.1} parent=1 // pred_region
      %346 = dma.done [#allocation21], 131072
    $region145: #{net_forward.1} parent=1 // pred_fallthru
      _
    // Predicated region
    $region146: #{net_forward.1} parent=1 // pred_check
      _
    $region147: #{net_forward.1} parent=1 // pred_check_branch
      %348 = sbr.rel (0) target = $region149
    $region148: #{net_forward.1} parent=1 // pred_region
      %350 = dma.done [#allocation24], 128
    $region149: #{net_forward.1} parent=1 // pred_fallthru
      _
    // Predicated region
    $region150: #{net_forward.1} parent=1 // pred_check
      _
    $region151: #{net_forward.1} parent=1 // pred_check_branch
      %352 = sbr.rel (0) target = $region153
    $region152: #{net_forward.1} parent=1 // pred_region
      %354 = dma.done [#allocation24], 128
    $region153: #{net_forward.1} parent=1 // pred_fallthru
      _
    // Predicated region
    $region154: #{net_forward.1} parent=1 // pred_check
      _
    $region155: #{net_forward.1} parent=1 // pred_check_branch
      %356 = sbr.rel (0) target = $region157
    $region156: #{net_forward.1} parent=1 // pred_region
      %358 = dma.done [#allocation27], 128
    $region157: #{net_forward.1} parent=1 // pred_fallthru
      _
    // Predicated region
    $region158: #{net_forward.1} parent=1 // pred_check
      _
    $region159: #{net_forward.1} parent=1 // pred_check_branch
      %360 = sbr.rel (0) target = $region161
    $region160: #{net_forward.1} parent=1 // pred_region
      %362 = dma.done [#allocation27], 8192
    $region161: #{net_forward.1} parent=1 // pred_fallthru
      _
    // Predicated region
    $region162: #{net_forward.1} parent=1 // pred_check
      _
    $region163: #{net_forward.1} parent=1 // pred_check_branch
      %364 = sbr.rel (0) target = $region165
    $region164: #{net_forward.1} parent=1 // pred_region
      %366 = dma.done [#allocation30], 16
    $region165: #{net_forward.1} parent=1 // pred_fallthru
      _
    // Predicated region
    $region166: #{net_forward.1} parent=1 // pred_check
      _
    $region167: #{net_forward.1} parent=1 // pred_check_branch
      %368 = sbr.rel (0) target = $region169
    $region168: #{net_forward.1} parent=1 // pred_region
      %370 = dma.done [#allocation30], 16
    $region169: #{net_forward.1} parent=1 // pred_fallthru
      _
    // Predicated region
    $region170: #{net_forward.1} parent=1 // pred_check
      _
    $region171: #{net_forward.1} parent=1 // pred_check_branch
      %372 = sbr.rel (0) target = $region173
    $region172: #{net_forward.1} parent=1 // pred_region
      %374 = dma.done [#allocation33], 16
    $region173: #{net_forward.1} parent=1 // pred_fallthru
      _
    // Predicated region
    $region174: #{net_forward.1} parent=1 // pred_check
      _
    $region175: #{net_forward.1} parent=1 // pred_check_branch
      %376 = sbr.rel (0) target = $region177
    $region176: #{net_forward.1} parent=1 // pred_region
      %378 = dma.done [#allocation33], 1024
    $region177: #{net_forward.1} parent=1 // pred_fallthru
      _
    // Predicated region
    $region178: #{net_forward.1} parent=1 // pred_check
      _
    $region179: #{net_forward.1} parent=1 // pred_check_branch
      %380 = sbr.rel (0) target = $region181
    $region180: #{net_forward.1} parent=1 // pred_region
      %382 = dma.done [#allocation36], 16
    $region181: #{net_forward.1} parent=1 // pred_fallthru
      _
    %v384 = vld [vmem:[#allocation2] sm:$0x1f]
    %v385 = vld [vmem:[#allocation5] sm:$0x1]
    %v386 = vld [vmem:[%s0] sm:$0xff]
    %v387 = vld [vmem:[%s0 + $0x8] sm:$0xff]
    %v388 = vld [vmem:[%s0 + $0x10] sm:$0xff]
    %v389 = vld [vmem:[%s0 + $0x18] sm:$0xff]
    %v390 = vld [vmem:[%s0 + $0x20] sm:$0xff]
    %392 = vset.pattern.permute.xlu0 0
    %393 = vperm.xlu0 %392, %v386
    %v394 = vpop.permute.xlu0 %393
    %397 = vset.pattern.permute.xlu0 0
    %398 = vperm.xlu0 %397, %v387
    %v399 = vpop.permute.xlu0 %398
    %402 = vset.pattern.permute.xlu0 0
    %403 = vperm.xlu0 %402, %v388
    %v404 = vpop.permute.xlu0 %403
    %407 = vset.pattern.permute.xlu0 0
    %408 = vperm.xlu0 %407, %v389
    %v409 = vpop.permute.xlu0 %408
    %412 = vset.pattern.permute.xlu0 0
    %413 = vperm.xlu0 %412, %v390
    %v414 = vpop.permute.xlu0 %413
    %v416 = vperm.slane %v384, 0
    %v417 = vmul.f32 %v394, %v416
    %v418 = vmul.f32 %v399, %v416
    %v419 = vmul.f32 %v404, %v416
    %v420 = vmul.f32 %v409, %v416
    %v421 = vmul.f32 %v414, %v416
    %v422 = vadd.f32 %v417, 0.0
    %v423 = vadd.f32 %v418, 0.0
    %v424 = vadd.f32 %v419, 0.0
    %v425 = vadd.f32 %v420, 0.0
    %v426 = vadd.f32 %v421, 0.0
    %v427 = vld [vmem:[%s0 + $0x1] sm:$0xff]
    %v428 = vld [vmem:[%s0 + $0x9] sm:$0xff]
    %v429 = vld [vmem:[%s0 + $0x11] sm:$0xff]
    %v430 = vld [vmem:[%s0 + $0x19] sm:$0xff]
    %v431 = vld [vmem:[%s0 + $0x21] sm:$0xff]
    %433 = vset.pattern.permute.xlu0 0
    %434 = vperm.xlu0 %433, %v427
    %v435 = vpop.permute.xlu0 %434
    %438 = vset.pattern.permute.xlu0 0
    %439 = vperm.xlu0 %438, %v428
    %v440 = vpop.permute.xlu0 %439
    %443 = vset.pattern.permute.xlu0 0
    %444 = vperm.xlu0 %443, %v429
    %v445 = vpop.permute.xlu0 %444
    %448 = vset.pattern.permute.xlu0 0
    %449 = vperm.xlu0 %448, %v430
    %v450 = vpop.permute.xlu0 %449
    %453 = vset.pattern.permute.xlu0 0
    %454 = vperm.xlu0 %453, %v431
    %v455 = vpop.permute.xlu0 %454
    %v457 = vperm.slane %v384, 1
    %v458 = vmul.f32 %v435, %v457
    %v459 = vmul.f32 %v440, %v457
    %v460 = vmul.f32 %v445, %v457
    %v461 = vmul.f32 %v450, %v457
    %v462 = vmul.f32 %v455, %v457
    %v463 = vadd.f32 %v422, %v458
    %v464 = vadd.f32 %v423, %v459
    %v465 = vadd.f32 %v424, %v460
    %v466 = vadd.f32 %v425, %v461
    %v467 = vadd.f32 %v426, %v462
    %v468 = vld [vmem:[%s0 + $0x2] sm:$0xff]
    %v469 = vld [vmem:[%s0 + $0xa] sm:$0xff]
    %v470 = vld [vmem:[%s0 + $0x12] sm:$0xff]
    %v471 = vld [vmem:[%s0 + $0x1a] sm:$0xff]
    %v472 = vld [vmem:[%s0 + $0x22] sm:$0xff]
    %474 = vset.pattern.permute.xlu0 0
    %475 = vperm.xlu0 %474, %v468
    %v476 = vpop.permute.xlu0 %475
    %479 = vset.pattern.permute.xlu0 0
    %480 = vperm.xlu0 %479, %v469
    %v481 = vpop.permute.xlu0 %480
    %484 = vset.pattern.permute.xlu0 0
    %485 = vperm.xlu0 %484, %v470
    %v486 = vpop.permute.xlu0 %485
    %489 = vset.pattern.permute.xlu0 0
    %490 = vperm.xlu0 %489, %v471
    %v491 = vpop.permute.xlu0 %490
    %494 = vset.pattern.permute.xlu0 0
    %495 = vperm.xlu0 %494, %v472
    %v496 = vpop.permute.xlu0 %495
    %v498 = vperm.slane %v384, 2
    %v499 = vmul.f32 %v476, %v498
    %v500 = vmul.f32 %v481, %v498
    %v501 = vmul.f32 %v486, %v498
    %v502 = vmul.f32 %v491, %v498
    %v503 = vmul.f32 %v496, %v498
    %v504 = vadd.f32 %v463, %v499
    %v505 = vadd.f32 %v464, %v500
    %v506 = vadd.f32 %v465, %v501
    %v507 = vadd.f32 %v466, %v502
    %v508 = vadd.f32 %v467, %v503
    %v509 = vld [vmem:[%s0 + $0x3] sm:$0xff]
    %v510 = vld [vmem:[%s0 + $0xb] sm:$0xff]
    %v511 = vld [vmem:[%s0 + $0x13] sm:$0xff]
    %v512 = vld [vmem:[%s0 + $0x1b] sm:$0xff]
    %v513 = vld [vmem:[%s0 + $0x23] sm:$0xff]
    %515 = vset.pattern.permute.xlu0 0
    %516 = vperm.xlu0 %515, %v509
    %v517 = vpop.permute.xlu0 %516
    %520 = vset.pattern.permute.xlu0 0
    %521 = vperm.xlu0 %520, %v510
    %v522 = vpop.permute.xlu0 %521
    %525 = vset.pattern.permute.xlu0 0
    %526 = vperm.xlu0 %525, %v511
    %v527 = vpop.permute.xlu0 %526
    %530 = vset.pattern.permute.xlu0 0
    %531 = vperm.xlu0 %530, %v512
    %v532 = vpop.permute.xlu0 %531
    %535 = vset.pattern.permute.xlu0 0
    %536 = vperm.xlu0 %535, %v513
    %v537 = vpop.permute.xlu0 %536
    %v539 = vperm.slane %v384, 3
    %v540 = vmul.f32 %v517, %v539
    %v541 = vmul.f32 %v522, %v539
    %v542 = vmul.f32 %v527, %v539
    %v543 = vmul.f32 %v532, %v539
    %v544 = vmul.f32 %v537, %v539
    %v545 = vadd.f32 %v504, %v540
    %v546 = vadd.f32 %v505, %v541
    %v547 = vadd.f32 %v506, %v542
    %v548 = vadd.f32 %v507, %v543
    %v549 = vadd.f32 %v508, %v544
    %v550 = vld [vmem:[%s0 + $0x4] sm:$0xff]
    %v551 = vld [vmem:[%s0 + $0xc] sm:$0xff]
    %v552 = vld [vmem:[%s0 + $0x14] sm:$0xff]
    %v553 = vld [vmem:[%s0 + $0x1c] sm:$0xff]
    %v554 = vld [vmem:[%s0 + $0x24] sm:$0xff]
    %556 = vset.pattern.permute.xlu0 0
    %557 = vperm.xlu0 %556, %v550
    %v558 = vpop.permute.xlu0 %557
    %561 = vset.pattern.permute.xlu0 0
    %562 = vperm.xlu0 %561, %v551
    %v563 = vpop.permute.xlu0 %562
    %566 = vset.pattern.permute.xlu0 0
    %567 = vperm.xlu0 %566, %v552
    %v568 = vpop.permute.xlu0 %567
    %571 = vset.pattern.permute.xlu0 0
    %572 = vperm.xlu0 %571, %v553
    %v573 = vpop.permute.xlu0 %572
    %576 = vset.pattern.permute.xlu0 0
    %577 = vperm.xlu0 %576, %v554
    %v578 = vpop.permute.xlu0 %577
    %v580 = vperm.slane %v384, 4
    %v581 = vmul.f32 %v558, %v580
    %v582 = vmul.f32 %v563, %v580
    %v583 = vmul.f32 %v568, %v580
    %v584 = vmul.f32 %v573, %v580
    %v585 = vmul.f32 %v578, %v580
    %v586 = vadd.f32 %v545, %v581
    %v587 = vadd.f32 %v546, %v582
    %v588 = vadd.f32 %v547, %v583
    %v589 = vadd.f32 %v548, %v584
    %v590 = vadd.f32 %v549, %v585
    %v592 = vperm.slane %v385, 0
    %v594 = vadd.f32 %v586, %v592
    %v595 = vadd.f32 %v587, %v592
    %v596 = vadd.f32 %v588, %v592
    %v597 = vadd.f32 %v589, %v592
    %v598 = vadd.f32 %v590, %v592
    %vm599 = vcmp.ge.f32.partialorder %v594, 0.0
    %vm600 = vcmp.ge.f32.partialorder %v595, 0.0
    %vm601 = vcmp.ge.f32.partialorder %v596, 0.0
    %vm602 = vcmp.ge.f32.partialorder %v597, 0.0
    %vm603 = vcmp.ge.f32.partialorder %v598, 0.0
    %v604 = vmul.f32 %v594, 0.01
    %v605 = vmul.f32 %v595, 0.01
    %v606 = vmul.f32 %v596, 0.01
    %v607 = vmul.f32 %v597, 0.01
    %v608 = vmul.f32 %v598, 0.01
    %v609 = vsel %vm599, %v594, %v604
    %v610 = vsel %vm600, %v595, %v605
    %v611 = vsel %vm601, %v596, %v606
    %v612 = vsel %vm602, %v597, %v607
    %v613 = vsel %vm603, %v598, %v608
    %614 = vset.pattern.permute.xlu0 1
    %615 = vperm.xlu0 %614, %v386
    %v616 = vpop.permute.xlu0 %615
    %618 = vset.pattern.permute.xlu0 1
    %619 = vperm.xlu0 %618, %v387
    %v620 = vpop.permute.xlu0 %619
    %622 = vset.pattern.permute.xlu0 1
    %623 = vperm.xlu0 %622, %v388
    %v624 = vpop.permute.xlu0 %623
    %626 = vset.pattern.permute.xlu0 1
    %627 = vperm.xlu0 %626, %v389
    %v628 = vpop.permute.xlu0 %627
    %630 = vset.pattern.permute.xlu0 1
    %631 = vperm.xlu0 %630, %v390
    %v632 = vpop.permute.xlu0 %631
    %v634 = vmul.f32 %v616, %v416
    %v635 = vmul.f32 %v620, %v416
    %v636 = vmul.f32 %v624, %v416
    %v637 = vmul.f32 %v628, %v416
    %v638 = vmul.f32 %v632, %v416
    %v639 = vadd.f32 %v634, 0.0
    %v640 = vadd.f32 %v635, 0.0
    %v641 = vadd.f32 %v636, 0.0
    %v642 = vadd.f32 %v637, 0.0
    %v643 = vadd.f32 %v638, 0.0
    %644 = vset.pattern.permute.xlu0 1
    %645 = vperm.xlu0 %644, %v427
    %v646 = vpop.permute.xlu0 %645
    %648 = vset.pattern.permute.xlu0 1
    %649 = vperm.xlu0 %648, %v428
    %v650 = vpop.permute.xlu0 %649
    %652 = vset.pattern.permute.xlu0 1
    %653 = vperm.xlu0 %652, %v429
    %v654 = vpop.permute.xlu0 %653
    %656 = vset.pattern.permute.xlu0 1
    %657 = vperm.xlu0 %656, %v430
    %v658 = vpop.permute.xlu0 %657
    %660 = vset.pattern.permute.xlu0 1
    %661 = vperm.xlu0 %660, %v431
    %v662 = vpop.permute.xlu0 %661
    %v664 = vmul.f32 %v646, %v457
    %v665 = vmul.f32 %v650, %v457
    %v666 = vmul.f32 %v654, %v457
    %v667 = vmul.f32 %v658, %v457
    %v668 = vmul.f32 %v662, %v457
    %v669 = vadd.f32 %v639, %v664
    %v670 = vadd.f32 %v640, %v665
    %v671 = vadd.f32 %v641, %v666
    %v672 = vadd.f32 %v642, %v667
    %v673 = vadd.f32 %v643, %v668
    %674 = vset.pattern.permute.xlu0 1
    %675 = vperm.xlu0 %674, %v468
    %v676 = vpop.permute.xlu0 %675
    %678 = vset.pattern.permute.xlu0 1
    %679 = vperm.xlu0 %678, %v469
    %v680 = vpop.permute.xlu0 %679
    %682 = vset.pattern.permute.xlu0 1
    %683 = vperm.xlu0 %682, %v470
    %v684 = vpop.permute.xlu0 %683
    %686 = vset.pattern.permute.xlu0 1
    %687 = vperm.xlu0 %686, %v471
    %v688 = vpop.permute.xlu0 %687
    %690 = vset.pattern.permute.xlu0 1
    %691 = vperm.xlu0 %690, %v472
    %v692 = vpop.permute.xlu0 %691
    %v694 = vmul.f32 %v676, %v498
    %v695 = vmul.f32 %v680, %v498
    %v696 = vmul.f32 %v684, %v498
    %v697 = vmul.f32 %v688, %v498
    %v698 = vmul.f32 %v692, %v498
    %v699 = vadd.f32 %v669, %v694
    %v700 = vadd.f32 %v670, %v695
    %v701 = vadd.f32 %v671, %v696
    %v702 = vadd.f32 %v672, %v697
    %v703 = vadd.f32 %v673, %v698
    %704 = vset.pattern.permute.xlu0 1
    %705 = vperm.xlu0 %704, %v509
    %v706 = vpop.permute.xlu0 %705
    %708 = vset.pattern.permute.xlu0 1
    %709 = vperm.xlu0 %708, %v510
    %v710 = vpop.permute.xlu0 %709
    %712 = vset.pattern.permute.xlu0 1
    %713 = vperm.xlu0 %712, %v511
    %v714 = vpop.permute.xlu0 %713
    %716 = vset.pattern.permute.xlu0 1
    %717 = vperm.xlu0 %716, %v512
    %v718 = vpop.permute.xlu0 %717
    %720 = vset.pattern.permute.xlu0 1
    %721 = vperm.xlu0 %720, %v513
    %v722 = vpop.permute.xlu0 %721
    %v724 = vmul.f32 %v706, %v539
    %v725 = vmul.f32 %v710, %v539
    %v726 = vmul.f32 %v714, %v539
    %v727 = vmul.f32 %v718, %v539
    %v728 = vmul.f32 %v722, %v539
    %v729 = vadd.f32 %v699, %v724
    %v730 = vadd.f32 %v700, %v725
    %v731 = vadd.f32 %v701, %v726
    %v732 = vadd.f32 %v702, %v727
    %v733 = vadd.f32 %v703, %v728
    %734 = vset.pattern.permute.xlu0 1
    %735 = vperm.xlu0 %734, %v550
    %v736 = vpop.permute.xlu0 %735
    %738 = vset.pattern.permute.xlu0 1
    %739 = vperm.xlu0 %738, %v551
    %v740 = vpop.permute.xlu0 %739
    %742 = vset.pattern.permute.xlu0 1
    %743 = vperm.xlu0 %742, %v552
    %v744 = vpop.permute.xlu0 %743
    %746 = vset.pattern.permute.xlu0 1
    %747 = vperm.xlu0 %746, %v553
    %v748 = vpop.permute.xlu0 %747
    %750 = vset.pattern.permute.xlu0 1
    %751 = vperm.xlu0 %750, %v554
    %v752 = vpop.permute.xlu0 %751
    %v754 = vmul.f32 %v736, %v580
    %v755 = vmul.f32 %v740, %v580
    %v756 = vmul.f32 %v744, %v580
    %v757 = vmul.f32 %v748, %v580
    %v758 = vmul.f32 %v752, %v580
    %v759 = vadd.f32 %v729, %v754
    %v760 = vadd.f32 %v730, %v755
    %v761 = vadd.f32 %v731, %v756
    %v762 = vadd.f32 %v732, %v757
    %v763 = vadd.f32 %v733, %v758
    %v764 = vadd.f32 %v759, %v592
    %v765 = vadd.f32 %v760, %v592
    %v766 = vadd.f32 %v761, %v592
    %v767 = vadd.f32 %v762, %v592
    %v768 = vadd.f32 %v763, %v592
    %vm769 = vcmp.ge.f32.partialorder %v764, 0.0
    %vm770 = vcmp.ge.f32.partialorder %v765, 0.0
    %vm771 = vcmp.ge.f32.partialorder %v766, 0.0
    %vm772 = vcmp.ge.f32.partialorder %v767, 0.0
    %vm773 = vcmp.ge.f32.partialorder %v768, 0.0
    %v774 = vmul.f32 %v764, 0.01
    %v775 = vmul.f32 %v765, 0.01
    %v776 = vmul.f32 %v766, 0.01
    %v777 = vmul.f32 %v767, 0.01
    %v778 = vmul.f32 %v768, 0.01
    %v779 = vsel %vm769, %v764, %v774
    %v780 = vsel %vm770, %v765, %v775
    %v781 = vsel %vm771, %v766, %v776
    %v782 = vsel %vm772, %v767, %v777
    %v783 = vsel %vm773, %v768, %v778
    %vm784 = vcmask 523264
    %v785 = vsel %vm784, %v609, 0.0
    %v786 = vsel %vm784, %v610, 0.0
    %v787 = vadd.f32 %v785, %v786
    %v788 = vsel %vm784, %v611, 0.0
    %v789 = vadd.f32 %v787, %v788
    %v790 = vsel %vm784, %v612, 0.0
    %v791 = vadd.f32 %v789, %v790
    %v792 = vsel %vm784, %v613, 0.0
    %v793 = vadd.f32 %v791, %v792
    %v794 = vrot.slane %v793, 4
    %v795 = vadd.f32 %v793, %v794
    %v796 = vrot.slane %v795, 2
    %v797 = vadd.f32 %v795, %v796
    %v798 = vrot.slane %v797, 1
    %v799 = vadd.f32 %v797, %v798
    %v800 = vmul.f32 %v609, %v609
    %v801 = vmul.f32 %v610, %v610
    %v802 = vmul.f32 %v611, %v611
    %v803 = vmul.f32 %v612, %v612
    %v804 = vmul.f32 %v613, %v613
    %v805 = vsel %vm784, %v800, 0.0
    %v806 = vsel %vm784, %v801, 0.0
    %v807 = vadd.f32 %v805, %v806
    %v808 = vsel %vm784, %v802, 0.0
    %v809 = vadd.f32 %v807, %v808
    %v810 = vsel %vm784, %v803, 0.0
    %v811 = vadd.f32 %v809, %v810
    %v812 = vsel %vm784, %v804, 0.0
    %v813 = vadd.f32 %v811, %v812
    %v814 = vrot.slane %v813, 4
    %v815 = vadd.f32 %v813, %v814
    %v816 = vrot.slane %v815, 2
    %v817 = vadd.f32 %v815, %v816
    %v818 = vrot.slane %v817, 1
    %v819 = vadd.f32 %v817, %v818
    %v820 = vsel %vm784, %v779, 0.0
    %v821 = vsel %vm784, %v780, 0.0
    %v822 = vadd.f32 %v820, %v821
    %v823 = vsel %vm784, %v781, 0.0
    %v824 = vadd.f32 %v822, %v823
    %v825 = vsel %vm784, %v782, 0.0
    %v826 = vadd.f32 %v824, %v825
    %v827 = vsel %vm784, %v783, 0.0
    %v828 = vadd.f32 %v826, %v827
    %v829 = vrot.slane %v828, 4
    %v830 = vadd.f32 %v828, %v829
    %v831 = vrot.slane %v830, 2
    %v832 = vadd.f32 %v830, %v831
    %v833 = vrot.slane %v832, 1
    %v834 = vadd.f32 %v832, %v833
    %v835 = vadd.f32 %v799, %v834
    %v836 = vmul.f32 %v779, %v779
    %v837 = vmul.f32 %v780, %v780
    %v838 = vmul.f32 %v781, %v781
    %v839 = vmul.f32 %v782, %v782
    %v840 = vmul.f32 %v783, %v783
    %v841 = vsel %vm784, %v836, 0.0
    %v842 = vsel %vm784, %v837, 0.0
    %v843 = vadd.f32 %v841, %v842
    %v844 = vsel %vm784, %v838, 0.0
    %v845 = vadd.f32 %v843, %v844
    %v846 = vsel %vm784, %v839, 0.0
    %v847 = vadd.f32 %v845, %v846
    %v848 = vsel %vm784, %v840, 0.0
    %v849 = vadd.f32 %v847, %v848
    %v850 = vrot.slane %v849, 4
    %v851 = vadd.f32 %v849, %v850
    %v852 = vrot.slane %v851, 2
    %v853 = vadd.f32 %v851, %v852
    %v854 = vrot.slane %v853, 1
    %v855 = vadd.f32 %v853, %v854
    %v856 = vadd.f32 %v819, %v855
    %v857 = vmul.f32 %v835, 0.0125
    %v858 = vmul.f32 %v856, 0.0125
    %v859 = vmul.f32 %v857, %v857
    %v860 = vsub.f32 %v858, %v859
    %v861 = vadd.f32 %v860, 1e-05
    %v862 = vrsqrt.pop %v861
    %v863 = vmul.f32 %v862, %v861
    %v864 = vmul.f32 %v863, %v862
    %v865 = vmul.f32 0.5, %v864
    %v866 = vsub.f32 1.5, %v865
    %v867 = vmul.f32 %v862, %v866
    %vm868 = vweird.f32 %v861
    %vm869 = vweird.f32 %v862
    %vm870 = vmor %vm868, %vm869
    %v871 = vsel %vm870, %v862, %v867
    %v872 = vsub.f32 %v609, %v857
    %v873 = vsub.f32 %v610, %v857
    %v874 = vsub.f32 %v611, %v857
    %v875 = vsub.f32 %v612, %v857
    %v876 = vsub.f32 %v613, %v857
    %v877 = vmul.f32 %v872, %v871
    %v878 = vmul.f32 %v873, %v871
    %v879 = vmul.f32 %v874, %v871
    %v880 = vmul.f32 %v875, %v871
    %v881 = vmul.f32 %v876, %v871
    %v882 = vld [vmem:[#allocation7] sm:$0x1]
    %v884 = vperm.slane %v882, 0
    %v886 = vmul.f32 %v877, %v884
    %v887 = vmul.f32 %v878, %v884
    %v888 = vmul.f32 %v879, %v884
    %v889 = vmul.f32 %v880, %v884
    %v890 = vmul.f32 %v881, %v884
    %v891 = vld [vmem:[#allocation8] sm:$0x1]
    %v893 = vperm.slane %v891, 0
    %v895 = vadd.f32 %v886, %v893
    %v896 = vadd.f32 %v887, %v893
    %v897 = vadd.f32 %v888, %v893
    %v898 = vadd.f32 %v889, %v893
    %v899 = vadd.f32 %v890, %v893
    %v900 = vsub.f32 %v779, %v857
    %v901 = vsub.f32 %v780, %v857
    %v902 = vsub.f32 %v781, %v857
    %v903 = vsub.f32 %v782, %v857
    %v904 = vsub.f32 %v783, %v857
    %v905 = vmul.f32 %v900, %v871
    %v906 = vmul.f32 %v901, %v871
    %v907 = vmul.f32 %v902, %v871
    %v908 = vmul.f32 %v903, %v871
    %v909 = vmul.f32 %v904, %v871
    %v910 = vmul.f32 %v905, %v884
    %v911 = vmul.f32 %v906, %v884
    %v912 = vmul.f32 %v907, %v884
    %v913 = vmul.f32 %v908, %v884
    %v914 = vmul.f32 %v909, %v884
    %v915 = vadd.f32 %v910, %v893
    %v916 = vadd.f32 %v911, %v893
    %v917 = vadd.f32 %v912, %v893
    %v918 = vadd.f32 %v913, %v893
    %v919 = vadd.f32 %v914, %v893
    %v920 = vld [vmem:[#allocation11] sm:$0x1]
    %v921 = vpack.c.bf16 %v896, %v895
    %v922 = vpack.c.bf16 %v898, %v897
    %v923 = vpack.c.bf16 %v899, %v899
    %v924 = vld [vmem:[#allocation10] sm:$0xf]
    %v925 = vld [vmem:[#allocation10 + $0x4] sm:$0xf]
    %v926 = vld [vmem:[#allocation10 + $0x8] sm:$0xf]
    %v927 = vld [vmem:[#allocation10 + $0xc] sm:$0xf]
    %v928 = vld [vmem:[#allocation10 + $0x10] sm:$0xf]
    %v929 = vld [vmem:[#allocation10 + $0x14] sm:$0xf]
    %v930 = vld [vmem:[#allocation10 + $0x18] sm:$0xf]
    %v931 = vld [vmem:[#allocation10 + $0x1c] sm:$0xf]
    %s932 = scalar_lea.vmem [#allocation10], 32
    %v933 = vld [vmem:[%s932] sm:$0xf]
    %v934 = vld [vmem:[%s932 + $0x4] sm:$0xf]
    %v935 = vld [vmem:[%s932 + $0x8] sm:$0xf]
    %v936 = vld [vmem:[%s932 + $0xc] sm:$0xf]
    %v937 = vld [vmem:[%s932 + $0x10] sm:$0xf]
    %v938 = vld [vmem:[%s932 + $0x14] sm:$0xf]
    %v939 = vld [vmem:[%s932 + $0x18] sm:$0xf]
    %v940 = vld [vmem:[%s932 + $0x1c] sm:$0xf]
    %vm941 = vsmask.f32 7424
    %v943 = vshrl.u32 %v921, 16
    %v945 = vshll.u32 %v921, 16
    %v947 = vrot.slane %v945, 1
    %v948 = vor.u32 %v943, %v947
    %v950 = vshll.u32 %v922, 16
    %v952 = vrot.slane %v950, 1
    %v953 = vsel %vm941, %v948, %v952
    %v954 = vshrl.u32 %v922, 16
    %v956 = vor.u32 %v954, %v952
    %v958 = vshll.u32 %v923, 16
    %v960 = vrot.slane %v958, 1
    %v961 = vsel %vm941, %v956, %v960
    %v962 = vshrl.u32 %v923, 16
    %v964 = vor.u32 %v962, %v960
    %v973 = vunpack.c.l.b16 %v933
    %v974 = vunpack.c.l.b16 %v934
    %v975 = vunpack.c.l.b16 %v935
    %v976 = vunpack.c.l.b16 %v936
    %v977 = vunpack.c.l.b16 %v937
    %v978 = vunpack.c.l.b16 %v938
    %v979 = vunpack.c.l.b16 %v939
    %v980 = vunpack.c.l.b16 %v940
    %v981 = vpack.c.b16 %v974, %v973
    %v982 = vpack.c.b16 %v976, %v975
    %v983 = vpack.c.b16 %v978, %v977
    %v984 = vpack.c.b16 %v980, %v979
    %v990 = vsel %vm784, %v953, 0
    %v993 = vsel %vm784, %v961, 0
    %v996 = vsel %vm784, %v964, 0
    %998 = vmatpush.bf16.msra.mxu0 0
    %999 = vmatpush.bf16.msra.mxu0 0
    %1000 = vmatpush.bf16.msra.mxu0 0
    %1001 = vmatpush.bf16.msra.mxu0 0
    %1002 = vmatpush.bf16.msra.mxu0 %v984
    %1003 = vmatpush.bf16.msra.mxu0 %v983
    %1004 = vmatpush.bf16.msra.mxu0 %v982
    %1005 = vmatpush.bf16.msra.mxu0 %v981
    %1006 = vmatmul.bf16.gmra.mxu0 %v990
    %v1007 = vpop.f32.mrf.mxu0
    %v1008 = vadd.f32 0.0, %v1007
    %v1009 = vpop.f32.mrf.mxu0
    %v1010 = vadd.f32 0.0, %v1009
    %1011 = vmatmul.bf16.gmra.mxu0 %v993
    %v1012 = vpop.f32.mrf.mxu0
    %v1013 = vadd.f32 0.0, %v1012
    %v1014 = vpop.f32.mrf.mxu0
    %v1015 = vadd.f32 0.0, %v1014
    %1016 = vmatmul.bf16.gmra.mxu0 %v996
    %v1017 = vpop.f32.mrf.mxu0
    %v1018 = vadd.f32 0.0, %v1017
    %v1019 = vpop.f32.mrf.mxu0
    %1020 = vdwg.mxu0
    %v1029 = vunpack.c.l.b16 %v924
    %v1030 = vunpack.c.l.b16 %v925
    %v1031 = vunpack.c.l.b16 %v926
    %v1032 = vunpack.c.l.b16 %v927
    %v1033 = vunpack.c.l.b16 %v928
    %v1034 = vunpack.c.l.b16 %v929
    %v1035 = vunpack.c.l.b16 %v930
    %v1036 = vunpack.c.l.b16 %v931
    %v1037 = vpack.c.b16 %v1030, %v1029
    %v1038 = vpack.c.b16 %v1032, %v1031
    %v1039 = vpack.c.b16 %v1034, %v1033
    %v1040 = vpack.c.b16 %v1036, %v1035
    %v1045 = vsel %vm784, %v921, 0
    %v1047 = vsel %vm784, %v922, 0
    %v1049 = vsel %vm784, %v923, 0
    %1051 = vmatpush.bf16.msra.mxu0 0
    %1052 = vmatpush.bf16.msra.mxu0 0
    %1053 = vmatpush.bf16.msra.mxu0 0
    %1054 = vmatpush.bf16.msra.mxu0 0
    %1055 = vmatpush.bf16.msra.mxu0 %v1040
    %1056 = vmatpush.bf16.msra.mxu0 %v1039
    %1057 = vmatpush.bf16.msra.mxu0 %v1038
    %1058 = vmatpush.bf16.msra.mxu0 %v1037
    %1059 = vmatmul.bf16.gmra.mxu0 %v1045
    %v1060 = vpop.f32.mrf.mxu0
    %v1061 = vadd.f32 %v1008, %v1060
    %v1062 = vpop.f32.mrf.mxu0
    %v1063 = vadd.f32 %v1010, %v1062
    %1064 = vmatmul.bf16.gmra.mxu0 %v1047
    %v1065 = vpop.f32.mrf.mxu0
    %v1066 = vadd.f32 %v1013, %v1065
    %v1067 = vpop.f32.mrf.mxu0
    %v1068 = vadd.f32 %v1015, %v1067
    %1069 = vmatmul.bf16.gmra.mxu0 %v1049
    %v1070 = vpop.f32.mrf.mxu0
    %v1071 = vadd.f32 %v1018, %v1070
    %v1072 = vpop.f32.mrf.mxu0
    %1073 = vdwg.mxu0
    %s1074 = scalar_lea.vmem [#allocation10], 64
    %v1075 = vld [vmem:[%s1074] sm:$0xf]
    %v1076 = vld [vmem:[%s1074 + $0x4] sm:$0xf]
    %v1077 = vld [vmem:[%s1074 + $0x8] sm:$0xf]
    %v1078 = vld [vmem:[%s1074 + $0xc] sm:$0xf]
    %v1079 = vld [vmem:[%s1074 + $0x10] sm:$0xf]
    %v1080 = vld [vmem:[%s1074 + $0x14] sm:$0xf]
    %v1081 = vld [vmem:[%s1074 + $0x18] sm:$0xf]
    %v1082 = vld [vmem:[%s1074 + $0x1c] sm:$0xf]
    %vm1086 = vcmask 1046528
    %v1087 = vrot.slane %v921, 1
    %v1088 = vrot.slane %v922, 1
    %v1089 = vsel %vm1086, %v1087, %v1088
    %v1090 = vrot.slane %v923, 1
    %v1091 = vsel %vm1086, %v1088, %v1090
    %v1100 = vunpack.c.l.b16 %v1075
    %v1101 = vunpack.c.l.b16 %v1076
    %v1102 = vunpack.c.l.b16 %v1077
    %v1103 = vunpack.c.l.b16 %v1078
    %v1104 = vunpack.c.l.b16 %v1079
    %v1105 = vunpack.c.l.b16 %v1080
    %v1106 = vunpack.c.l.b16 %v1081
    %v1107 = vunpack.c.l.b16 %v1082
    %v1108 = vpack.c.b16 %v1101, %v1100
    %v1109 = vpack.c.b16 %v1103, %v1102
    %v1110 = vpack.c.b16 %v1105, %v1104
    %v1111 = vpack.c.b16 %v1107, %v1106
    %v1117 = vsel %vm784, %v1089, 0
    %v1120 = vsel %vm784, %v1091, 0
    %v1123 = vsel %vm784, %v1090, 0
    %1125 = vmatpush.bf16.msra.mxu0 0
    %1126 = vmatpush.bf16.msra.mxu0 0
    %1127 = vmatpush.bf16.msra.mxu0 0
    %1128 = vmatpush.bf16.msra.mxu0 0
    %1129 = vmatpush.bf16.msra.mxu0 %v1111
    %1130 = vmatpush.bf16.msra.mxu0 %v1110
    %1131 = vmatpush.bf16.msra.mxu0 %v1109
    %1132 = vmatpush.bf16.msra.mxu0 %v1108
    %1133 = vmatmul.bf16.gmra.mxu0 %v1117
    %v1134 = vpop.f32.mrf.mxu0
    %v1135 = vadd.f32 0.0, %v1134
    %v1136 = vpop.f32.mrf.mxu0
    %v1137 = vadd.f32 0.0, %v1136
    %1138 = vmatmul.bf16.gmra.mxu0 %v1120
    %v1139 = vpop.f32.mrf.mxu0
    %v1140 = vadd.f32 0.0, %v1139
    %v1141 = vpop.f32.mrf.mxu0
    %v1142 = vadd.f32 0.0, %v1141
    %1143 = vmatmul.bf16.gmra.mxu0 %v1123
    %v1144 = vpop.f32.mrf.mxu0
    %v1145 = vadd.f32 0.0, %v1144
    %v1146 = vpop.f32.mrf.mxu0
    %1147 = vdwg.mxu0
    %v1148 = vadd.f32 %v1061, %v1135
    %v1149 = vadd.f32 %v1063, %v1137
    %v1150 = vadd.f32 %v1066, %v1140
    %v1151 = vadd.f32 %v1068, %v1142
    %v1152 = vadd.f32 %v1071, %v1145
    %s1153 = scalar_lea.vmem [#allocation10], 96
    %v1154 = vld [vmem:[%s1153] sm:$0xf]
    %v1155 = vld [vmem:[%s1153 + $0x4] sm:$0xf]
    %v1156 = vld [vmem:[%s1153 + $0x8] sm:$0xf]
    %v1157 = vld [vmem:[%s1153 + $0xc] sm:$0xf]
    %v1158 = vld [vmem:[%s1153 + $0x10] sm:$0xf]
    %v1159 = vld [vmem:[%s1153 + $0x14] sm:$0xf]
    %v1160 = vld [vmem:[%s1153 + $0x18] sm:$0xf]
    %v1161 = vld [vmem:[%s1153 + $0x1c] sm:$0xf]
    %vm1162 = vsmask.f32 6400
    %v1163 = vrot.slane %v943, 1
    %v1164 = vrot.slane %v945, 2
    %v1165 = vor.u32 %v1163, %v1164
    %v1166 = vrot.slane %v954, 1
    %v1167 = vrot.slane %v950, 2
    %v1168 = vor.u32 %v1166, %v1167
    %v1169 = vsel %vm1162, %v1165, %v1168
    %v1170 = vrot.slane %v962, 1
    %v1171 = vrot.slane %v958, 2
    %v1172 = vor.u32 %v1170, %v1171
    %v1173 = vsel %vm1162, %v1168, %v1172
    %v1182 = vunpack.c.l.b16 %v1154
    %v1183 = vunpack.c.l.b16 %v1155
    %v1184 = vunpack.c.l.b16 %v1156
    %v1185 = vunpack.c.l.b16 %v1157
    %v1186 = vunpack.c.l.b16 %v1158
    %v1187 = vunpack.c.l.b16 %v1159
    %v1188 = vunpack.c.l.b16 %v1160
    %v1189 = vunpack.c.l.b16 %v1161
    %v1190 = vpack.c.b16 %v1183, %v1182
    %v1191 = vpack.c.b16 %v1185, %v1184
    %v1192 = vpack.c.b16 %v1187, %v1186
    %v1193 = vpack.c.b16 %v1189, %v1188
    %v1199 = vsel %vm784, %v1169, 0
    %v1202 = vsel %vm784, %v1173, 0
    %v1205 = vsel %vm784, %v1172, 0
    %1207 = vmatpush.bf16.msra.mxu0 0
    %1208 = vmatpush.bf16.msra.mxu0 0
    %1209 = vmatpush.bf16.msra.mxu0 0
    %1210 = vmatpush.bf16.msra.mxu0 0
    %1211 = vmatpush.bf16.msra.mxu0 %v1193
    %1212 = vmatpush.bf16.msra.mxu0 %v1192
    %1213 = vmatpush.bf16.msra.mxu0 %v1191
    %1214 = vmatpush.bf16.msra.mxu0 %v1190
    %1215 = vmatmul.bf16.gmra.mxu0 %v1199
    %v1216 = vpop.f32.mrf.mxu0
    %v1217 = vadd.f32 0.0, %v1216
    %v1218 = vpop.f32.mrf.mxu0
    %v1219 = vadd.f32 0.0, %v1218
    %1220 = vmatmul.bf16.gmra.mxu0 %v1202
    %v1221 = vpop.f32.mrf.mxu0
    %v1222 = vadd.f32 0.0, %v1221
    %v1223 = vpop.f32.mrf.mxu0
    %v1224 = vadd.f32 0.0, %v1223
    %1225 = vmatmul.bf16.gmra.mxu0 %v1205
    %v1226 = vpop.f32.mrf.mxu0
    %v1227 = vadd.f32 0.0, %v1226
    %v1228 = vpop.f32.mrf.mxu0
    %1229 = vdwg.mxu0
    %v1230 = vadd.f32 %v1148, %v1217
    %v1231 = vadd.f32 %v1149, %v1219
    %v1232 = vadd.f32 %v1150, %v1222
    %v1233 = vadd.f32 %v1151, %v1224
    %v1234 = vadd.f32 %v1152, %v1227
    %s1235 = scalar_lea.vmem [#allocation10], 128
    %v1236 = vld [vmem:[%s1235] sm:$0xf]
    %v1237 = vld [vmem:[%s1235 + $0x4] sm:$0xf]
    %v1238 = vld [vmem:[%s1235 + $0x8] sm:$0xf]
    %v1239 = vld [vmem:[%s1235 + $0xc] sm:$0xf]
    %v1240 = vld [vmem:[%s1235 + $0x10] sm:$0xf]
    %v1241 = vld [vmem:[%s1235 + $0x14] sm:$0xf]
    %v1242 = vld [vmem:[%s1235 + $0x18] sm:$0xf]
    %v1243 = vld [vmem:[%s1235 + $0x1c] sm:$0xf]
    %vm1244 = vcmask 1045504
    %v1245 = vrot.slane %v921, 2
    %v1246 = vrot.slane %v922, 2
    %v1247 = vsel %vm1244, %v1245, %v1246
    %v1248 = vrot.slane %v923, 2
    %v1249 = vsel %vm1244, %v1246, %v1248
    %v1258 = vunpack.c.l.b16 %v1236
    %v1259 = vunpack.c.l.b16 %v1237
    %v1260 = vunpack.c.l.b16 %v1238
    %v1261 = vunpack.c.l.b16 %v1239
    %v1262 = vunpack.c.l.b16 %v1240
    %v1263 = vunpack.c.l.b16 %v1241
    %v1264 = vunpack.c.l.b16 %v1242
    %v1265 = vunpack.c.l.b16 %v1243
    %v1266 = vpack.c.b16 %v1259, %v1258
    %v1267 = vpack.c.b16 %v1261, %v1260
    %v1268 = vpack.c.b16 %v1263, %v1262
    %v1269 = vpack.c.b16 %v1265, %v1264
    %v1275 = vsel %vm784, %v1247, 0
    %v1278 = vsel %vm784, %v1249, 0
    %v1281 = vsel %vm784, %v1248, 0
    %1283 = vmatpush.bf16.msra.mxu0 0
    %1284 = vmatpush.bf16.msra.mxu0 0
    %1285 = vmatpush.bf16.msra.mxu0 0
    %1286 = vmatpush.bf16.msra.mxu0 0
    %1287 = vmatpush.bf16.msra.mxu0 %v1269
    %1288 = vmatpush.bf16.msra.mxu0 %v1268
    %1289 = vmatpush.bf16.msra.mxu0 %v1267
    %1290 = vmatpush.bf16.msra.mxu0 %v1266
    %1291 = vmatmul.bf16.gmra.mxu0 %v1275
    %v1292 = vpop.f32.mrf.mxu0
    %v1293 = vadd.f32 0.0, %v1292
    %v1294 = vpop.f32.mrf.mxu0
    %v1295 = vadd.f32 0.0, %v1294
    %1296 = vmatmul.bf16.gmra.mxu0 %v1278
    %v1297 = vpop.f32.mrf.mxu0
    %v1298 = vadd.f32 0.0, %v1297
    %v1299 = vpop.f32.mrf.mxu0
    %v1300 = vadd.f32 0.0, %v1299
    %1301 = vmatmul.bf16.gmra.mxu0 %v1281
    %v1302 = vpop.f32.mrf.mxu0
    %v1303 = vadd.f32 0.0, %v1302
    %v1304 = vpop.f32.mrf.mxu0
    %1305 = vdwg.mxu0
    %v1306 = vadd.f32 %v1230, %v1293
    %v1307 = vadd.f32 %v1231, %v1295
    %v1308 = vadd.f32 %v1232, %v1298
    %v1309 = vadd.f32 %v1233, %v1300
    %v1310 = vadd.f32 %v1234, %v1303
    %v1312 = vperm.slane %v920, 0
    %v1314 = vadd.f32 %v1306, %v1312
    %v1315 = vadd.f32 %v1307, %v1312
    %v1316 = vadd.f32 %v1308, %v1312
    %v1317 = vadd.f32 %v1309, %v1312
    %v1318 = vadd.f32 %v1310, %v1312
    %vm1319 = vcmp.ge.f32.partialorder %v1314, 0.0
    %vm1320 = vcmp.ge.f32.partialorder %v1315, 0.0
    %vm1321 = vcmp.ge.f32.partialorder %v1316, 0.0
    %vm1322 = vcmp.ge.f32.partialorder %v1317, 0.0
    %vm1323 = vcmp.ge.f32.partialorder %v1318, 0.0
    %v1324 = vmul.f32 %v1314, 0.01
    %v1325 = vmul.f32 %v1315, 0.01
    %v1326 = vmul.f32 %v1316, 0.01
    %v1327 = vmul.f32 %v1317, 0.01
    %v1328 = vmul.f32 %v1318, 0.01
    %v1329 = vsel %vm1319, %v1314, %v1324
    %v1330 = vsel %vm1320, %v1315, %v1325
    %v1331 = vsel %vm1321, %v1316, %v1326
    %v1332 = vsel %vm1322, %v1317, %v1327
    %v1333 = vsel %vm1323, %v1318, %v1328
    %v1334 = vpack.c.bf16 %v916, %v915
    %v1335 = vpack.c.bf16 %v918, %v917
    %v1336 = vpack.c.bf16 %v919, %v919
    %v1338 = vshrl.u32 %v1334, 16
    %v1340 = vshll.u32 %v1334, 16
    %v1342 = vrot.slane %v1340, 1
    %v1343 = vor.u32 %v1338, %v1342
    %v1345 = vshll.u32 %v1335, 16
    %v1347 = vrot.slane %v1345, 1
    %v1348 = vsel %vm941, %v1343, %v1347
    %v1349 = vshrl.u32 %v1335, 16
    %v1351 = vor.u32 %v1349, %v1347
    %v1353 = vshll.u32 %v1336, 16
    %v1355 = vrot.slane %v1353, 1
    %v1356 = vsel %vm941, %v1351, %v1355
    %v1357 = vshrl.u32 %v1336, 16
    %v1359 = vor.u32 %v1357, %v1355
    %v1361 = vsel %vm784, %v1348, 0
    %v1364 = vsel %vm784, %v1356, 0
    %v1367 = vsel %vm784, %v1359, 0
    %1369 = vmatpush.bf16.msra.mxu0 0
    %1370 = vmatpush.bf16.msra.mxu0 0
    %1371 = vmatpush.bf16.msra.mxu0 0
    %1372 = vmatpush.bf16.msra.mxu0 0
    %1373 = vmatpush.bf16.msra.mxu0 %v984
    %1374 = vmatpush.bf16.msra.mxu0 %v983
    %1375 = vmatpush.bf16.msra.mxu0 %v982
    %1376 = vmatpush.bf16.msra.mxu0 %v981
    %1377 = vmatmul.bf16.gmra.mxu0 %v1361
    %v1378 = vpop.f32.mrf.mxu0
    %v1379 = vadd.f32 0.0, %v1378
    %v1380 = vpop.f32.mrf.mxu0
    %v1381 = vadd.f32 0.0, %v1380
    %1382 = vmatmul.bf16.gmra.mxu0 %v1364
    %v1383 = vpop.f32.mrf.mxu0
    %v1384 = vadd.f32 0.0, %v1383
    %v1385 = vpop.f32.mrf.mxu0
    %v1386 = vadd.f32 0.0, %v1385
    %1387 = vmatmul.bf16.gmra.mxu0 %v1367
    %v1388 = vpop.f32.mrf.mxu0
    %v1389 = vadd.f32 0.0, %v1388
    %v1390 = vpop.f32.mrf.mxu0
    %1391 = vdwg.mxu0
    %v1392 = vsel %vm784, %v1334, 0
    %v1394 = vsel %vm784, %v1335, 0
    %v1396 = vsel %vm784, %v1336, 0
    %1398 = vmatpush.bf16.msra.mxu0 0
    %1399 = vmatpush.bf16.msra.mxu0 0
    %1400 = vmatpush.bf16.msra.mxu0 0
    %1401 = vmatpush.bf16.msra.mxu0 0
    %1402 = vmatpush.bf16.msra.mxu0 %v1040
    %1403 = vmatpush.bf16.msra.mxu0 %v1039
    %1404 = vmatpush.bf16.msra.mxu0 %v1038
    %1405 = vmatpush.bf16.msra.mxu0 %v1037
    %1406 = vmatmul.bf16.gmra.mxu0 %v1392
    %v1407 = vpop.f32.mrf.mxu0
    %v1408 = vadd.f32 %v1379, %v1407
    %v1409 = vpop.f32.mrf.mxu0
    %v1410 = vadd.f32 %v1381, %v1409
    %1411 = vmatmul.bf16.gmra.mxu0 %v1394
    %v1412 = vpop.f32.mrf.mxu0
    %v1413 = vadd.f32 %v1384, %v1412
    %v1414 = vpop.f32.mrf.mxu0
    %v1415 = vadd.f32 %v1386, %v1414
    %1416 = vmatmul.bf16.gmra.mxu0 %v1396
    %v1417 = vpop.f32.mrf.mxu0
    %v1418 = vadd.f32 %v1389, %v1417
    %v1419 = vpop.f32.mrf.mxu0
    %1420 = vdwg.mxu0
    %v1424 = vrot.slane %v1334, 1
    %v1425 = vrot.slane %v1335, 1
    %v1426 = vsel %vm1086, %v1424, %v1425
    %v1427 = vrot.slane %v1336, 1
    %v1428 = vsel %vm1086, %v1425, %v1427
    %v1430 = vsel %vm784, %v1426, 0
    %v1433 = vsel %vm784, %v1428, 0
    %v1436 = vsel %vm784, %v1427, 0
    %1438 = vmatpush.bf16.msra.mxu0 0
    %1439 = vmatpush.bf16.msra.mxu0 0
    %1440 = vmatpush.bf16.msra.mxu0 0
    %1441 = vmatpush.bf16.msra.mxu0 0
    %1442 = vmatpush.bf16.msra.mxu0 %v1111
    %1443 = vmatpush.bf16.msra.mxu0 %v1110
    %1444 = vmatpush.bf16.msra.mxu0 %v1109
    %1445 = vmatpush.bf16.msra.mxu0 %v1108
    %1446 = vmatmul.bf16.gmra.mxu0 %v1430
    %v1447 = vpop.f32.mrf.mxu0
    %v1448 = vadd.f32 0.0, %v1447
    %v1449 = vpop.f32.mrf.mxu0
    %v1450 = vadd.f32 0.0, %v1449
    %1451 = vmatmul.bf16.gmra.mxu0 %v1433
    %v1452 = vpop.f32.mrf.mxu0
    %v1453 = vadd.f32 0.0, %v1452
    %v1454 = vpop.f32.mrf.mxu0
    %v1455 = vadd.f32 0.0, %v1454
    %1456 = vmatmul.bf16.gmra.mxu0 %v1436
    %v1457 = vpop.f32.mrf.mxu0
    %v1458 = vadd.f32 0.0, %v1457
    %v1459 = vpop.f32.mrf.mxu0
    %1460 = vdwg.mxu0
    %v1461 = vadd.f32 %v1408, %v1448
    %v1462 = vadd.f32 %v1410, %v1450
    %v1463 = vadd.f32 %v1413, %v1453
    %v1464 = vadd.f32 %v1415, %v1455
    %v1465 = vadd.f32 %v1418, %v1458
    %v1466 = vrot.slane %v1338, 1
    %v1467 = vrot.slane %v1340, 2
    %v1468 = vor.u32 %v1466, %v1467
    %v1469 = vrot.slane %v1349, 1
    %v1470 = vrot.slane %v1345, 2
    %v1471 = vor.u32 %v1469, %v1470
    %v1472 = vsel %vm1162, %v1468, %v1471
    %v1473 = vrot.slane %v1357, 1
    %v1474 = vrot.slane %v1353, 2
    %v1475 = vor.u32 %v1473, %v1474
    %v1476 = vsel %vm1162, %v1471, %v1475
    %v1478 = vsel %vm784, %v1472, 0
    %v1481 = vsel %vm784, %v1476, 0
    %v1484 = vsel %vm784, %v1475, 0
    %1486 = vmatpush.bf16.msra.mxu0 0
    %1487 = vmatpush.bf16.msra.mxu0 0
    %1488 = vmatpush.bf16.msra.mxu0 0
    %1489 = vmatpush.bf16.msra.mxu0 0
    %1490 = vmatpush.bf16.msra.mxu0 %v1193
    %1491 = vmatpush.bf16.msra.mxu0 %v1192
    %1492 = vmatpush.bf16.msra.mxu0 %v1191
    %1493 = vmatpush.bf16.msra.mxu0 %v1190
    %1494 = vmatmul.bf16.gmra.mxu0 %v1478
    %v1495 = vpop.f32.mrf.mxu0
    %v1496 = vadd.f32 0.0, %v1495
    %v1497 = vpop.f32.mrf.mxu0
    %v1498 = vadd.f32 0.0, %v1497
    %1499 = vmatmul.bf16.gmra.mxu0 %v1481
    %v1500 = vpop.f32.mrf.mxu0
    %v1501 = vadd.f32 0.0, %v1500
    %v1502 = vpop.f32.mrf.mxu0
    %v1503 = vadd.f32 0.0, %v1502
    %1504 = vmatmul.bf16.gmra.mxu0 %v1484
    %v1505 = vpop.f32.mrf.mxu0
    %v1506 = vadd.f32 0.0, %v1505
    %v1507 = vpop.f32.mrf.mxu0
    %1508 = vdwg.mxu0
    %v1509 = vadd.f32 %v1461, %v1496
    %v1510 = vadd.f32 %v1462, %v1498
    %v1511 = vadd.f32 %v1463, %v1501
    %v1512 = vadd.f32 %v1464, %v1503
    %v1513 = vadd.f32 %v1465, %v1506
    %v1514 = vrot.slane %v1334, 2
    %v1515 = vrot.slane %v1335, 2
    %v1516 = vsel %vm1244, %v1514, %v1515
    %v1517 = vrot.slane %v1336, 2
    %v1518 = vsel %vm1244, %v1515, %v1517
    %v1520 = vsel %vm784, %v1516, 0
    %v1523 = vsel %vm784, %v1518, 0
    %v1526 = vsel %vm784, %v1517, 0
    %1528 = vmatpush.bf16.msra.mxu0 0
    %1529 = vmatpush.bf16.msra.mxu0 0
    %1530 = vmatpush.bf16.msra.mxu0 0
    %1531 = vmatpush.bf16.msra.mxu0 0
    %1532 = vmatpush.bf16.msra.mxu0 %v1269
    %1533 = vmatpush.bf16.msra.mxu0 %v1268
    %1534 = vmatpush.bf16.msra.mxu0 %v1267
    %1535 = vmatpush.bf16.msra.mxu0 %v1266
    %1536 = vmatmul.bf16.gmra.mxu0 %v1520
    %v1537 = vpop.f32.mrf.mxu0
    %v1538 = vadd.f32 0.0, %v1537
    %v1539 = vpop.f32.mrf.mxu0
    %v1540 = vadd.f32 0.0, %v1539
    %1541 = vmatmul.bf16.gmra.mxu0 %v1523
    %v1542 = vpop.f32.mrf.mxu0
    %v1543 = vadd.f32 0.0, %v1542
    %v1544 = vpop.f32.mrf.mxu0
    %v1545 = vadd.f32 0.0, %v1544
    %1546 = vmatmul.bf16.gmra.mxu0 %v1526
    %v1547 = vpop.f32.mrf.mxu0
    %v1548 = vadd.f32 0.0, %v1547
    %v1549 = vpop.f32.mrf.mxu0
    %1550 = vdwg.mxu0
    %v1551 = vadd.f32 %v1509, %v1538
    %v1552 = vadd.f32 %v1510, %v1540
    %v1553 = vadd.f32 %v1511, %v1543
    %v1554 = vadd.f32 %v1512, %v1545
    %v1555 = vadd.f32 %v1513, %v1548
    %v1556 = vadd.f32 %v1551, %v1312
    %v1557 = vadd.f32 %v1552, %v1312
    %v1558 = vadd.f32 %v1553, %v1312
    %v1559 = vadd.f32 %v1554, %v1312
    %v1560 = vadd.f32 %v1555, %v1312
    %vm1561 = vcmp.ge.f32.partialorder %v1556, 0.0
    %vm1562 = vcmp.ge.f32.partialorder %v1557, 0.0
    %vm1563 = vcmp.ge.f32.partialorder %v1558, 0.0
    %vm1564 = vcmp.ge.f32.partialorder %v1559, 0.0
    %vm1565 = vcmp.ge.f32.partialorder %v1560, 0.0
    %v1566 = vmul.f32 %v1556, 0.01
    %v1567 = vmul.f32 %v1557, 0.01
    %v1568 = vmul.f32 %v1558, 0.01
    %v1569 = vmul.f32 %v1559, 0.01
    %v1570 = vmul.f32 %v1560, 0.01
    %v1571 = vsel %vm1561, %v1556, %v1566
    %v1572 = vsel %vm1562, %v1557, %v1567
    %v1573 = vsel %vm1563, %v1558, %v1568
    %v1574 = vsel %vm1564, %v1559, %v1569
    %v1575 = vsel %vm1565, %v1560, %v1570
    %v1576 = vsel %vm784, %v1329, 0.0
    %v1577 = vsel %vm784, %v1330, 0.0
    %v1578 = vadd.f32 %v1576, %v1577
    %v1579 = vsel %vm784, %v1331, 0.0
    %v1580 = vadd.f32 %v1578, %v1579
    %v1581 = vsel %vm784, %v1332, 0.0
    %v1582 = vadd.f32 %v1580, %v1581
    %vm1583 = vcmask 519168
    %v1584 = vsel %vm1583, %v1333, 0.0
    %v1585 = vadd.f32 %v1582, %v1584
    %v1586 = vrot.slane %v1585, 4
    %v1587 = vadd.f32 %v1585, %v1586
    %v1588 = vrot.slane %v1587, 2
    %v1589 = vadd.f32 %v1587, %v1588
    %v1590 = vrot.slane %v1589, 1
    %v1591 = vadd.f32 %v1589, %v1590
    %v1592 = vmul.f32 %v1329, %v1329
    %v1593 = vmul.f32 %v1330, %v1330
    %v1594 = vmul.f32 %v1331, %v1331
    %v1595 = vmul.f32 %v1332, %v1332
    %v1596 = vmul.f32 %v1333, %v1333
    %v1597 = vsel %vm784, %v1592, 0.0
    %v1598 = vsel %vm784, %v1593, 0.0
    %v1599 = vadd.f32 %v1597, %v1598
    %v1600 = vsel %vm784, %v1594, 0.0
    %v1601 = vadd.f32 %v1599, %v1600
    %v1602 = vsel %vm784, %v1595, 0.0
    %v1603 = vadd.f32 %v1601, %v1602
    %v1604 = vsel %vm1583, %v1596, 0.0
    %v1605 = vadd.f32 %v1603, %v1604
    %v1606 = vrot.slane %v1605, 4
    %v1607 = vadd.f32 %v1605, %v1606
    %v1608 = vrot.slane %v1607, 2
    %v1609 = vadd.f32 %v1607, %v1608
    %v1610 = vrot.slane %v1609, 1
    %v1611 = vadd.f32 %v1609, %v1610
    %v1612 = vsel %vm784, %v1571, 0.0
    %v1613 = vsel %vm784, %v1572, 0.0
    %v1614 = vadd.f32 %v1612, %v1613
    %v1615 = vsel %vm784, %v1573, 0.0
    %v1616 = vadd.f32 %v1614, %v1615
    %v1617 = vsel %vm784, %v1574, 0.0
    %v1618 = vadd.f32 %v1616, %v1617
    %v1619 = vsel %vm1583, %v1575, 0.0
    %v1620 = vadd.f32 %v1618, %v1619
    %v1621 = vrot.slane %v1620, 4
    %v1622 = vadd.f32 %v1620, %v1621
    %v1623 = vrot.slane %v1622, 2
    %v1624 = vadd.f32 %v1622, %v1623
    %v1625 = vrot.slane %v1624, 1
    %v1626 = vadd.f32 %v1624, %v1625
    %v1627 = vadd.f32 %v1591, %v1626
    %v1628 = vmul.f32 %v1571, %v1571
    %v1629 = vmul.f32 %v1572, %v1572
    %v1630 = vmul.f32 %v1573, %v1573
    %v1631 = vmul.f32 %v1574, %v1574
    %v1632 = vmul.f32 %v1575, %v1575
    %v1633 = vsel %vm784, %v1628, 0.0
    %v1634 = vsel %vm784, %v1629, 0.0
    %v1635 = vadd.f32 %v1633, %v1634
    %v1636 = vsel %vm784, %v1630, 0.0
    %v1637 = vadd.f32 %v1635, %v1636
    %v1638 = vsel %vm784, %v1631, 0.0
    %v1639 = vadd.f32 %v1637, %v1638
    %v1640 = vsel %vm1583, %v1632, 0.0
    %v1641 = vadd.f32 %v1639, %v1640
    %v1642 = vrot.slane %v1641, 4
    %v1643 = vadd.f32 %v1641, %v1642
    %v1644 = vrot.slane %v1643, 2
    %v1645 = vadd.f32 %v1643, %v1644
    %v1646 = vrot.slane %v1645, 1
    %v1647 = vadd.f32 %v1645, %v1646
    %v1648 = vadd.f32 %v1611, %v1647
    %v1649 = vmul.f32 %v1627, 0.013888889
    %v1650 = vmul.f32 %v1648, 0.013888889
    %v1651 = vmul.f32 %v1649, %v1649
    %v1652 = vsub.f32 %v1650, %v1651
    %v1653 = vadd.f32 %v1652, 1e-05
    %v1654 = vrsqrt.pop %v1653
    %v1655 = vmul.f32 %v1654, %v1653
    %v1656 = vmul.f32 %v1655, %v1654
    %v1657 = vmul.f32 0.5, %v1656
    %v1658 = vsub.f32 1.5, %v1657
    %v1659 = vmul.f32 %v1654, %v1658
    %vm1660 = vweird.f32 %v1653
    %vm1661 = vweird.f32 %v1654
    %vm1662 = vmor %vm1660, %vm1661
    %v1663 = vsel %vm1662, %v1654, %v1659
    %v1664 = vsub.f32 %v1329, %v1649
    %v1665 = vsub.f32 %v1330, %v1649
    %v1666 = vsub.f32 %v1331, %v1649
    %v1667 = vsub.f32 %v1332, %v1649
    %v1668 = vsub.f32 %v1333, %v1649
    %v1669 = vmul.f32 %v1664, %v1663
    %v1670 = vmul.f32 %v1665, %v1663
    %v1671 = vmul.f32 %v1666, %v1663
    %v1672 = vmul.f32 %v1667, %v1663
    %v1673 = vmul.f32 %v1668, %v1663
    %v1674 = vld [vmem:[#allocation13] sm:$0x1]
    %v1676 = vperm.slane %v1674, 0
    %v1678 = vmul.f32 %v1669, %v1676
    %v1679 = vmul.f32 %v1670, %v1676
    %v1680 = vmul.f32 %v1671, %v1676
    %v1681 = vmul.f32 %v1672, %v1676
    %v1682 = vmul.f32 %v1673, %v1676
    %v1683 = vld [vmem:[#allocation14] sm:$0x1]
    %v1685 = vperm.slane %v1683, 0
    %v1687 = vadd.f32 %v1678, %v1685
    %v1688 = vadd.f32 %v1679, %v1685
    %v1689 = vadd.f32 %v1680, %v1685
    %v1690 = vadd.f32 %v1681, %v1685
    %v1691 = vadd.f32 %v1682, %v1685
    %v1692 = vsub.f32 %v1571, %v1649
    %v1693 = vsub.f32 %v1572, %v1649
    %v1694 = vsub.f32 %v1573, %v1649
    %v1695 = vsub.f32 %v1574, %v1649
    %v1696 = vsub.f32 %v1575, %v1649
    %v1697 = vmul.f32 %v1692, %v1663
    %v1698 = vmul.f32 %v1693, %v1663
    %v1699 = vmul.f32 %v1694, %v1663
    %v1700 = vmul.f32 %v1695, %v1663
    %v1701 = vmul.f32 %v1696, %v1663
    %v1702 = vmul.f32 %v1697, %v1676
    %v1703 = vmul.f32 %v1698, %v1676
    %v1704 = vmul.f32 %v1699, %v1676
    %v1705 = vmul.f32 %v1700, %v1676
    %v1706 = vmul.f32 %v1701, %v1676
    %v1707 = vadd.f32 %v1702, %v1685
    %v1708 = vadd.f32 %v1703, %v1685
    %v1709 = vadd.f32 %v1704, %v1685
    %v1710 = vadd.f32 %v1705, %v1685
    %v1711 = vadd.f32 %v1706, %v1685
    %v1712 = vld [vmem:[#allocation17] sm:$0x1]
    %v1713 = vlaneseq
    %v1714 = vshrl.u32 %v1713, 7
    %v1715 = vadd.s32 %v1714, 8
    %v1716 = vlaneseq
    %v1717 = vand.u32 %v1716, 127
    %v1718 = vmul.u32 %v1714, 2
    %v1719 = vmul.u32 %v1715, 2
    %vm1720 = vcmp.eq.s32.totalorder %v1717, %v1718
    %vm1721 = vcmp.eq.s32.totalorder %v1717, %v1719
    %v1722 = vsel %vm1720, 1.0, 0.0
    %v1723 = vsel %vm1721, 1.0, 0.0
    %v1724 = vpack.c.bf16 %v1688, %v1687
    %v1725 = vpack.c.bf16 %v1690, %v1689
    %v1726 = vld [vmem:[#allocation16] sm:$0xf]
    %v1727 = vld [vmem:[#allocation16 + $0x4] sm:$0xf]
    %v1728 = vld [vmem:[#allocation16 + $0x8] sm:$0xf]
    %v1729 = vld [vmem:[#allocation16 + $0xc] sm:$0xf]
    %v1730 = vld [vmem:[#allocation16 + $0x10] sm:$0xf]
    %v1731 = vld [vmem:[#allocation16 + $0x14] sm:$0xf]
    %v1732 = vld [vmem:[#allocation16 + $0x18] sm:$0xf]
    %v1733 = vld [vmem:[#allocation16 + $0x1c] sm:$0xf]
    %v1734 = vpack.c.bf16 %v1691, %v1691
    %s1735 = scalar_lea.vmem [#allocation16], 32
    %v1736 = vld [vmem:[%s1735] sm:$0xf]
    %v1737 = vld [vmem:[%s1735 + $0x4] sm:$0xf]
    %v1738 = vld [vmem:[%s1735 + $0x8] sm:$0xf]
    %v1739 = vld [vmem:[%s1735 + $0xc] sm:$0xf]
    %v1740 = vld [vmem:[%s1735 + $0x10] sm:$0xf]
    %v1741 = vld [vmem:[%s1735 + $0x14] sm:$0xf]
    %v1742 = vld [vmem:[%s1735 + $0x18] sm:$0xf]
    %v1743 = vld [vmem:[%s1735 + $0x1c] sm:$0xf]
    %v1745 = vshrl.u32 %v1724, 16
    %v1747 = vshll.u32 %v1724, 16
    %v1749 = vrot.slane %v1747, 1
    %v1750 = vor.u32 %v1745, %v1749
    %v1752 = vshll.u32 %v1725, 16
    %v1754 = vrot.slane %v1752, 1
    %v1755 = vsel %vm941, %v1750, %v1754
    %v1756 = vshrl.u32 %v1725, 16
    %v1758 = vor.u32 %v1756, %v1754
    %v1760 = vshll.u32 %v1734, 16
    %v1762 = vrot.slane %v1760, 1
    %v1763 = vsel %vm941, %v1758, %v1762
    %v1772 = vunpack.c.l.b16 %v1736
    %v1773 = vunpack.c.l.b16 %v1737
    %v1774 = vunpack.c.l.b16 %v1738
    %v1775 = vunpack.c.l.b16 %v1739
    %v1776 = vunpack.c.l.b16 %v1740
    %v1777 = vunpack.c.l.b16 %v1741
    %v1778 = vunpack.c.l.b16 %v1742
    %v1779 = vunpack.c.l.b16 %v1743
    %v1780 = vpack.c.b16 %v1773, %v1772
    %v1781 = vpack.c.b16 %v1775, %v1774
    %v1782 = vpack.c.b16 %v1777, %v1776
    %v1783 = vpack.c.b16 %v1779, %v1778
    %v1789 = vsel %vm784, %v1755, 0
    %v1792 = vsel %vm784, %v1763, 0
    %1794 = vmatpush.bf16.msra.mxu0 0
    %1795 = vmatpush.bf16.msra.mxu0 0
    %1796 = vmatpush.bf16.msra.mxu0 0
    %1797 = vmatpush.bf16.msra.mxu0 0
    %1798 = vmatpush.bf16.msra.mxu0 %v1783
    %1799 = vmatpush.bf16.msra.mxu0 %v1782
    %1800 = vmatpush.bf16.msra.mxu0 %v1781
    %1801 = vmatpush.bf16.msra.mxu0 %v1780
    %1802 = vmatmul.bf16.gmra.mxu0 %v1789
    %v1803 = vpop.f32.mrf.mxu0
    %v1804 = vadd.f32 0.0, %v1803
    %v1805 = vpop.f32.mrf.mxu0
    %v1806 = vadd.f32 0.0, %v1805
    %1807 = vmatmul.bf16.gmra.mxu0 %v1792
    %v1808 = vpop.f32.mrf.mxu0
    %v1809 = vadd.f32 0.0, %v1808
    %v1810 = vpop.f32.mrf.mxu0
    %v1811 = vadd.f32 0.0, %v1810
    %1812 = vdwg.mxu0
    %v1821 = vunpack.c.l.b16 %v1726
    %v1822 = vunpack.c.l.b16 %v1727
    %v1823 = vunpack.c.l.b16 %v1728
    %v1824 = vunpack.c.l.b16 %v1729
    %v1825 = vunpack.c.l.b16 %v1730
    %v1826 = vunpack.c.l.b16 %v1731
    %v1827 = vunpack.c.l.b16 %v1732
    %v1828 = vunpack.c.l.b16 %v1733
    %v1829 = vpack.c.b16 %v1822, %v1821
    %v1830 = vpack.c.b16 %v1824, %v1823
    %v1831 = vpack.c.b16 %v1826, %v1825
    %v1832 = vpack.c.b16 %v1828, %v1827
    %v1837 = vsel %vm784, %v1724, 0
    %v1839 = vsel %vm784, %v1725, 0
    %1841 = vmatpush.bf16.msra.mxu0 0
    %1842 = vmatpush.bf16.msra.mxu0 0
    %1843 = vmatpush.bf16.msra.mxu0 0
    %1844 = vmatpush.bf16.msra.mxu0 0
    %1845 = vmatpush.bf16.msra.mxu0 %v1832
    %1846 = vmatpush.bf16.msra.mxu0 %v1831
    %1847 = vmatpush.bf16.msra.mxu0 %v1830
    %1848 = vmatpush.bf16.msra.mxu0 %v1829
    %1849 = vmatmul.bf16.gmra.mxu0 %v1837
    %v1850 = vpop.f32.mrf.mxu0
    %v1851 = vadd.f32 %v1804, %v1850
    %v1852 = vpop.f32.mrf.mxu0
    %v1853 = vadd.f32 %v1806, %v1852
    %1854 = vmatmul.bf16.gmra.mxu0 %v1839
    %v1855 = vpop.f32.mrf.mxu0
    %v1856 = vadd.f32 %v1809, %v1855
    %v1857 = vpop.f32.mrf.mxu0
    %v1858 = vadd.f32 %v1811, %v1857
    %1859 = vdwg.mxu0
    %s1860 = scalar_lea.vmem [#allocation16], 64
    %v1861 = vld [vmem:[%s1860] sm:$0xf]
    %v1862 = vld [vmem:[%s1860 + $0x4] sm:$0xf]
    %v1863 = vld [vmem:[%s1860 + $0x8] sm:$0xf]
    %v1864 = vld [vmem:[%s1860 + $0xc] sm:$0xf]
    %v1865 = vld [vmem:[%s1860 + $0x10] sm:$0xf]
    %v1866 = vld [vmem:[%s1860 + $0x14] sm:$0xf]
    %v1867 = vld [vmem:[%s1860 + $0x18] sm:$0xf]
    %v1868 = vld [vmem:[%s1860 + $0x1c] sm:$0xf]
    %v1872 = vrot.slane %v1724, 1
    %v1873 = vrot.slane %v1725, 1
    %v1874 = vsel %vm1086, %v1872, %v1873
    %v1875 = vrot.slane %v1734, 1
    %v1876 = vsel %vm1086, %v1873, %v1875
    %v1885 = vunpack.c.l.b16 %v1861
    %v1886 = vunpack.c.l.b16 %v1862
    %v1887 = vunpack.c.l.b16 %v1863
    %v1888 = vunpack.c.l.b16 %v1864
    %v1889 = vunpack.c.l.b16 %v1865
    %v1890 = vunpack.c.l.b16 %v1866
    %v1891 = vunpack.c.l.b16 %v1867
    %v1892 = vunpack.c.l.b16 %v1868
    %v1893 = vpack.c.b16 %v1886, %v1885
    %v1894 = vpack.c.b16 %v1888, %v1887
    %v1895 = vpack.c.b16 %v1890, %v1889
    %v1896 = vpack.c.b16 %v1892, %v1891
    %v1902 = vsel %vm784, %v1874, 0
    %v1905 = vsel %vm784, %v1876, 0
    %1907 = vmatpush.bf16.msra.mxu0 0
    %1908 = vmatpush.bf16.msra.mxu0 0
    %1909 = vmatpush.bf16.msra.mxu0 0
    %1910 = vmatpush.bf16.msra.mxu0 0
    %1911 = vmatpush.bf16.msra.mxu0 %v1896
    %1912 = vmatpush.bf16.msra.mxu0 %v1895
    %1913 = vmatpush.bf16.msra.mxu0 %v1894
    %1914 = vmatpush.bf16.msra.mxu0 %v1893
    %1915 = vmatmul.bf16.gmra.mxu0 %v1902
    %v1916 = vpop.f32.mrf.mxu0
    %v1917 = vadd.f32 0.0, %v1916
    %v1918 = vpop.f32.mrf.mxu0
    %v1919 = vadd.f32 0.0, %v1918
    %1920 = vmatmul.bf16.gmra.mxu0 %v1905
    %v1921 = vpop.f32.mrf.mxu0
    %v1922 = vadd.f32 0.0, %v1921
    %v1923 = vpop.f32.mrf.mxu0
    %v1924 = vadd.f32 0.0, %v1923
    %1925 = vdwg.mxu0
    %v1926 = vadd.f32 %v1851, %v1917
    %v1927 = vadd.f32 %v1853, %v1919
    %v1928 = vadd.f32 %v1856, %v1922
    %v1929 = vadd.f32 %v1858, %v1924
    %s1930 = scalar_lea.vmem [#allocation16], 96
    %v1931 = vld [vmem:[%s1930] sm:$0xf]
    %v1932 = vld [vmem:[%s1930 + $0x4] sm:$0xf]
    %v1933 = vld [vmem:[%s1930 + $0x8] sm:$0xf]
    %v1934 = vld [vmem:[%s1930 + $0xc] sm:$0xf]
    %v1935 = vld [vmem:[%s1930 + $0x10] sm:$0xf]
    %v1936 = vld [vmem:[%s1930 + $0x14] sm:$0xf]
    %v1937 = vld [vmem:[%s1930 + $0x18] sm:$0xf]
    %v1938 = vld [vmem:[%s1930 + $0x1c] sm:$0xf]
    %v1939 = vrot.slane %v1745, 1
    %v1940 = vrot.slane %v1747, 2
    %v1941 = vor.u32 %v1939, %v1940
    %v1942 = vrot.slane %v1756, 1
    %v1943 = vrot.slane %v1752, 2
    %v1944 = vor.u32 %v1942, %v1943
    %v1945 = vsel %vm1162, %v1941, %v1944
    %v1946 = vshrl.u32 %v1734, 16
    %v1948 = vrot.slane %v1946, 1
    %v1949 = vrot.slane %v1760, 2
    %v1950 = vor.u32 %v1948, %v1949
    %v1951 = vsel %vm1162, %v1944, %v1950
    %v1960 = vunpack.c.l.b16 %v1931
    %v1961 = vunpack.c.l.b16 %v1932
    %v1962 = vunpack.c.l.b16 %v1933
    %v1963 = vunpack.c.l.b16 %v1934
    %v1964 = vunpack.c.l.b16 %v1935
    %v1965 = vunpack.c.l.b16 %v1936
    %v1966 = vunpack.c.l.b16 %v1937
    %v1967 = vunpack.c.l.b16 %v1938
    %v1968 = vpack.c.b16 %v1961, %v1960
    %v1969 = vpack.c.b16 %v1963, %v1962
    %v1970 = vpack.c.b16 %v1965, %v1964
    %v1971 = vpack.c.b16 %v1967, %v1966
    %v1977 = vsel %vm784, %v1945, 0
    %v1980 = vsel %vm784, %v1951, 0
    %1982 = vmatpush.bf16.msra.mxu0 0
    %1983 = vmatpush.bf16.msra.mxu0 0
    %1984 = vmatpush.bf16.msra.mxu0 0
    %1985 = vmatpush.bf16.msra.mxu0 0
    %1986 = vmatpush.bf16.msra.mxu0 %v1971
    %1987 = vmatpush.bf16.msra.mxu0 %v1970
    %1988 = vmatpush.bf16.msra.mxu0 %v1969
    %1989 = vmatpush.bf16.msra.mxu0 %v1968
    %1990 = vmatmul.bf16.gmra.mxu0 %v1977
    %v1991 = vpop.f32.mrf.mxu0
    %v1992 = vadd.f32 0.0, %v1991
    %v1993 = vpop.f32.mrf.mxu0
    %v1994 = vadd.f32 0.0, %v1993
    %1995 = vmatmul.bf16.gmra.mxu0 %v1980
    %v1996 = vpop.f32.mrf.mxu0
    %v1997 = vadd.f32 0.0, %v1996
    %v1998 = vpop.f32.mrf.mxu0
    %v1999 = vadd.f32 0.0, %v1998
    %2000 = vdwg.mxu0
    %v2001 = vadd.f32 %v1926, %v1992
    %v2002 = vadd.f32 %v1927, %v1994
    %v2003 = vadd.f32 %v1928, %v1997
    %v2004 = vadd.f32 %v1929, %v1999
    %s2005 = scalar_lea.vmem [#allocation16], 128
    %v2006 = vld [vmem:[%s2005] sm:$0xf]
    %v2007 = vld [vmem:[%s2005 + $0x4] sm:$0xf]
    %v2008 = vld [vmem:[%s2005 + $0x8] sm:$0xf]
    %v2009 = vld [vmem:[%s2005 + $0xc] sm:$0xf]
    %v2010 = vld [vmem:[%s2005 + $0x10] sm:$0xf]
    %v2011 = vld [vmem:[%s2005 + $0x14] sm:$0xf]
    %v2012 = vld [vmem:[%s2005 + $0x18] sm:$0xf]
    %v2013 = vld [vmem:[%s2005 + $0x1c] sm:$0xf]
    %v2014 = vrot.slane %v1724, 2
    %v2015 = vrot.slane %v1725, 2
    %v2016 = vsel %vm1244, %v2014, %v2015
    %v2017 = vrot.slane %v1734, 2
    %v2018 = vsel %vm1244, %v2015, %v2017
    %v2027 = vunpack.c.l.b16 %v2006
    %v2028 = vunpack.c.l.b16 %v2007
    %v2029 = vunpack.c.l.b16 %v2008
    %v2030 = vunpack.c.l.b16 %v2009
    %v2031 = vunpack.c.l.b16 %v2010
    %v2032 = vunpack.c.l.b16 %v2011
    %v2033 = vunpack.c.l.b16 %v2012
    %v2034 = vunpack.c.l.b16 %v2013
    %v2035 = vpack.c.b16 %v2028, %v2027
    %v2036 = vpack.c.b16 %v2030, %v2029
    %v2037 = vpack.c.b16 %v2032, %v2031
    %v2038 = vpack.c.b16 %v2034, %v2033
    %v2044 = vsel %vm784, %v2016, 0
    %v2047 = vsel %vm784, %v2018, 0
    %2049 = vmatpush.bf16.msra.mxu0 0
    %2050 = vmatpush.bf16.msra.mxu0 0
    %2051 = vmatpush.bf16.msra.mxu0 0
    %2052 = vmatpush.bf16.msra.mxu0 0
    %2053 = vmatpush.bf16.msra.mxu0 %v2038
    %2054 = vmatpush.bf16.msra.mxu0 %v2037
    %2055 = vmatpush.bf16.msra.mxu0 %v2036
    %2056 = vmatpush.bf16.msra.mxu0 %v2035
    %2057 = vmatmul.bf16.gmra.mxu0 %v2044
    %v2058 = vpop.f32.mrf.mxu0
    %v2059 = vadd.f32 0.0, %v2058
    %v2060 = vpop.f32.mrf.mxu0
    %v2061 = vadd.f32 0.0, %v2060
    %2062 = vmatmul.bf16.gmra.mxu0 %v2047
    %v2063 = vpop.f32.mrf.mxu0
    %v2064 = vadd.f32 0.0, %v2063
    %v2065 = vpop.f32.mrf.mxu0
    %v2066 = vadd.f32 0.0, %v2065
    %2067 = vdwg.mxu0
    %v2068 = vadd.f32 %v2001, %v2059
    %v2069 = vadd.f32 %v2002, %v2061
    %v2070 = vadd.f32 %v2003, %v2064
    %v2071 = vadd.f32 %v2004, %v2066
    %v2073 = vperm.slane %v1712, 0
    %vm2075 = vcmask 261120
    %v2077 = vsel %vm2075, %v1722, 0
    %v2080 = vsel %vm2075, %v1723, 0
    %2082 = vmatpush.msra.mxu0 0.0
    %2083 = vmatpush.msra.mxu0 0.0
    %2084 = vmatpush.msra.mxu0 0.0
    %2085 = vmatpush.msra.mxu0 0.0
    %2086 = vmatpush.msra.mxu0 0.0
    %2087 = vmatpush.msra.mxu0 0.0
    %2088 = vmatpush.msra.mxu0 0.0
    %2089 = vmatpush.msra.mxu0 0.0
    %2090 = vmatpush.msra.mxu0 0.0
    %2091 = vmatpush.msra.mxu0 0.0
    %2092 = vmatpush.msra.mxu0 0.0
    %2093 = vmatpush.msra.mxu0 0.0
    %2094 = vmatpush.msra.mxu0 %v2071
    %2095 = vmatpush.msra.mxu0 %v2070
    %2096 = vmatpush.msra.mxu0 %v2069
    %2097 = vmatpush.msra.mxu0 %v2068
    %2098 = vmatmul.f32.gmra.mxu0 %v2077
    %v2099 = vpop.f32.mrf.mxu0
    %v2100 = vadd.f32 %v2073, %v2099
    %2101 = vmatmul.f32.gmra.mxu0 %v2080
    %v2102 = vpop.f32.mrf.mxu0
    %v2103 = vadd.f32 %v2073, %v2102
    %2104 = vdwg.mxu0
    %vm2105 = vcmp.ge.f32.partialorder %v2100, 0.0
    %vm2106 = vcmp.ge.f32.partialorder %v2103, 0.0
    %v2107 = vmul.f32 %v2100, 0.01
    %v2108 = vmul.f32 %v2103, 0.01
    %v2109 = vsel %vm2105, %v2100, %v2107
    %v2110 = vsel %vm2106, %v2103, %v2108
    %v2111 = vpack.c.bf16 %v1708, %v1707
    %v2112 = vpack.c.bf16 %v1710, %v1709
    %v2113 = vpack.c.bf16 %v1711, %v1711
    %v2115 = vshrl.u32 %v2111, 16
    %v2117 = vshll.u32 %v2111, 16
    %v2119 = vrot.slane %v2117, 1
    %v2120 = vor.u32 %v2115, %v2119
    %v2122 = vshll.u32 %v2112, 16
    %v2124 = vrot.slane %v2122, 1
    %v2125 = vsel %vm941, %v2120, %v2124
    %v2126 = vshrl.u32 %v2112, 16
    %v2128 = vor.u32 %v2126, %v2124
    %v2130 = vshll.u32 %v2113, 16
    %v2132 = vrot.slane %v2130, 1
    %v2133 = vsel %vm941, %v2128, %v2132
    %v2135 = vsel %vm784, %v2125, 0
    %v2138 = vsel %vm784, %v2133, 0
    %2140 = vmatpush.bf16.msra.mxu0 0
    %2141 = vmatpush.bf16.msra.mxu0 0
    %2142 = vmatpush.bf16.msra.mxu0 0
    %2143 = vmatpush.bf16.msra.mxu0 0
    %2144 = vmatpush.bf16.msra.mxu0 %v1783
    %2145 = vmatpush.bf16.msra.mxu0 %v1782
    %2146 = vmatpush.bf16.msra.mxu0 %v1781
    %2147 = vmatpush.bf16.msra.mxu0 %v1780
    %2148 = vmatmul.bf16.gmra.mxu0 %v2135
    %v2149 = vpop.f32.mrf.mxu0
    %v2150 = vadd.f32 0.0, %v2149
    %v2151 = vpop.f32.mrf.mxu0
    %v2152 = vadd.f32 0.0, %v2151
    %2153 = vmatmul.bf16.gmra.mxu0 %v2138
    %v2154 = vpop.f32.mrf.mxu0
    %v2155 = vadd.f32 0.0, %v2154
    %v2156 = vpop.f32.mrf.mxu0
    %v2157 = vadd.f32 0.0, %v2156
    %2158 = vdwg.mxu0
    %v2159 = vsel %vm784, %v2111, 0
    %v2161 = vsel %vm784, %v2112, 0
    %2163 = vmatpush.bf16.msra.mxu0 0
    %2164 = vmatpush.bf16.msra.mxu0 0
    %2165 = vmatpush.bf16.msra.mxu0 0
    %2166 = vmatpush.bf16.msra.mxu0 0
    %2167 = vmatpush.bf16.msra.mxu0 %v1832
    %2168 = vmatpush.bf16.msra.mxu0 %v1831
    %2169 = vmatpush.bf16.msra.mxu0 %v1830
    %2170 = vmatpush.bf16.msra.mxu0 %v1829
    %2171 = vmatmul.bf16.gmra.mxu0 %v2159
    %v2172 = vpop.f32.mrf.mxu0
    %v2173 = vadd.f32 %v2150, %v2172
    %v2174 = vpop.f32.mrf.mxu0
    %v2175 = vadd.f32 %v2152, %v2174
    %2176 = vmatmul.bf16.gmra.mxu0 %v2161
    %v2177 = vpop.f32.mrf.mxu0
    %v2178 = vadd.f32 %v2155, %v2177
    %v2179 = vpop.f32.mrf.mxu0
    %v2180 = vadd.f32 %v2157, %v2179
    %2181 = vdwg.mxu0
    %v2185 = vrot.slane %v2111, 1
    %v2186 = vrot.slane %v2112, 1
    %v2187 = vsel %vm1086, %v2185, %v2186
    %v2188 = vrot.slane %v2113, 1
    %v2189 = vsel %vm1086, %v2186, %v2188
    %v2191 = vsel %vm784, %v2187, 0
    %v2194 = vsel %vm784, %v2189, 0
    %2196 = vmatpush.bf16.msra.mxu0 0
    %2197 = vmatpush.bf16.msra.mxu0 0
    %2198 = vmatpush.bf16.msra.mxu0 0
    %2199 = vmatpush.bf16.msra.mxu0 0
    %2200 = vmatpush.bf16.msra.mxu0 %v1896
    %2201 = vmatpush.bf16.msra.mxu0 %v1895
    %2202 = vmatpush.bf16.msra.mxu0 %v1894
    %2203 = vmatpush.bf16.msra.mxu0 %v1893
    %2204 = vmatmul.bf16.gmra.mxu0 %v2191
    %v2205 = vpop.f32.mrf.mxu0
    %v2206 = vadd.f32 0.0, %v2205
    %v2207 = vpop.f32.mrf.mxu0
    %v2208 = vadd.f32 0.0, %v2207
    %2209 = vmatmul.bf16.gmra.mxu0 %v2194
    %v2210 = vpop.f32.mrf.mxu0
    %v2211 = vadd.f32 0.0, %v2210
    %v2212 = vpop.f32.mrf.mxu0
    %v2213 = vadd.f32 0.0, %v2212
    %2214 = vdwg.mxu0
    %v2215 = vadd.f32 %v2173, %v2206
    %v2216 = vadd.f32 %v2175, %v2208
    %v2217 = vadd.f32 %v2178, %v2211
    %v2218 = vadd.f32 %v2180, %v2213
    %v2219 = vrot.slane %v2115, 1
    %v2220 = vrot.slane %v2117, 2
    %v2221 = vor.u32 %v2219, %v2220
    %v2222 = vrot.slane %v2126, 1
    %v2223 = vrot.slane %v2122, 2
    %v2224 = vor.u32 %v2222, %v2223
    %v2225 = vsel %vm1162, %v2221, %v2224
    %v2226 = vshrl.u32 %v2113, 16
    %v2228 = vrot.slane %v2226, 1
    %v2229 = vrot.slane %v2130, 2
    %v2230 = vor.u32 %v2228, %v2229
    %v2231 = vsel %vm1162, %v2224, %v2230
    %v2233 = vsel %vm784, %v2225, 0
    %v2236 = vsel %vm784, %v2231, 0
    %2238 = vmatpush.bf16.msra.mxu0 0
    %2239 = vmatpush.bf16.msra.mxu0 0
    %2240 = vmatpush.bf16.msra.mxu0 0
    %2241 = vmatpush.bf16.msra.mxu0 0
    %2242 = vmatpush.bf16.msra.mxu0 %v1971
    %2243 = vmatpush.bf16.msra.mxu0 %v1970
    %2244 = vmatpush.bf16.msra.mxu0 %v1969
    %2245 = vmatpush.bf16.msra.mxu0 %v1968
    %2246 = vmatmul.bf16.gmra.mxu0 %v2233
    %v2247 = vpop.f32.mrf.mxu0
    %v2248 = vadd.f32 0.0, %v2247
    %v2249 = vpop.f32.mrf.mxu0
    %v2250 = vadd.f32 0.0, %v2249
    %2251 = vmatmul.bf16.gmra.mxu0 %v2236
    %v2252 = vpop.f32.mrf.mxu0
    %v2253 = vadd.f32 0.0, %v2252
    %v2254 = vpop.f32.mrf.mxu0
    %v2255 = vadd.f32 0.0, %v2254
    %2256 = vdwg.mxu0
    %v2257 = vadd.f32 %v2215, %v2248
    %v2258 = vadd.f32 %v2216, %v2250
    %v2259 = vadd.f32 %v2217, %v2253
    %v2260 = vadd.f32 %v2218, %v2255
    %v2261 = vrot.slane %v2111, 2
    %v2262 = vrot.slane %v2112, 2
    %v2263 = vsel %vm1244, %v2261, %v2262
    %v2264 = vrot.slane %v2113, 2
    %v2265 = vsel %vm1244, %v2262, %v2264
    %v2267 = vsel %vm784, %v2263, 0
    %v2270 = vsel %vm784, %v2265, 0
    %2272 = vmatpush.bf16.msra.mxu0 0
    %2273 = vmatpush.bf16.msra.mxu0 0
    %2274 = vmatpush.bf16.msra.mxu0 0
    %2275 = vmatpush.bf16.msra.mxu0 0
    %2276 = vmatpush.bf16.msra.mxu0 %v2038
    %2277 = vmatpush.bf16.msra.mxu0 %v2037
    %2278 = vmatpush.bf16.msra.mxu0 %v2036
    %2279 = vmatpush.bf16.msra.mxu0 %v2035
    %2280 = vmatmul.bf16.gmra.mxu0 %v2267
    %v2281 = vpop.f32.mrf.mxu0
    %v2282 = vadd.f32 0.0, %v2281
    %v2283 = vpop.f32.mrf.mxu0
    %v2284 = vadd.f32 0.0, %v2283
    %2285 = vmatmul.bf16.gmra.mxu0 %v2270
    %v2286 = vpop.f32.mrf.mxu0
    %v2287 = vadd.f32 0.0, %v2286
    %v2288 = vpop.f32.mrf.mxu0
    %v2289 = vadd.f32 0.0, %v2288
    %2290 = vdwg.mxu0
    %v2291 = vadd.f32 %v2257, %v2282
    %v2292 = vadd.f32 %v2258, %v2284
    %v2293 = vadd.f32 %v2259, %v2287
    %v2294 = vadd.f32 %v2260, %v2289
    %2295 = vmatpush.msra.mxu0 0.0
    %2296 = vmatpush.msra.mxu0 0.0
    %2297 = vmatpush.msra.mxu0 0.0
    %2298 = vmatpush.msra.mxu0 0.0
    %2299 = vmatpush.msra.mxu0 0.0
    %2300 = vmatpush.msra.mxu0 0.0
    %2301 = vmatpush.msra.mxu0 0.0
    %2302 = vmatpush.msra.mxu0 0.0
    %2303 = vmatpush.msra.mxu0 0.0
    %2304 = vmatpush.msra.mxu0 0.0
    %2305 = vmatpush.msra.mxu0 0.0
    %2306 = vmatpush.msra.mxu0 0.0
    %2307 = vmatpush.msra.mxu0 %v2294
    %2308 = vmatpush.msra.mxu0 %v2293
    %2309 = vmatpush.msra.mxu0 %v2292
    %2310 = vmatpush.msra.mxu0 %v2291
    %2311 = vmatmul.f32.gmra.mxu0 %v2077
    %v2312 = vpop.f32.mrf.mxu0
    %v2313 = vadd.f32 %v2073, %v2312
    %2314 = vmatmul.f32.gmra.mxu0 %v2080
    %v2315 = vpop.f32.mrf.mxu0
    %v2316 = vadd.f32 %v2073, %v2315
    %2317 = vdwg.mxu0
    %vm2318 = vcmp.ge.f32.partialorder %v2313, 0.0
    %vm2319 = vcmp.ge.f32.partialorder %v2316, 0.0
    %v2320 = vmul.f32 %v2313, 0.01
    %v2321 = vmul.f32 %v2316, 0.01
    %v2322 = vsel %vm2318, %v2313, %v2320
    %v2323 = vsel %vm2319, %v2316, %v2321
    %v2324 = vadd.f32 %v2109, %v2110
    %v2325 = vrot.slane %v2324, 4
    %v2326 = vadd.f32 %v2324, %v2325
    %v2327 = vrot.slane %v2326, 2
    %v2328 = vadd.f32 %v2326, %v2327
    %v2329 = vrot.slane %v2328, 1
    %v2330 = vadd.f32 %v2328, %v2329
    %v2331 = vmul.f32 %v2109, %v2109
    %v2332 = vmul.f32 %v2110, %v2110
    %v2333 = vadd.f32 %v2331, %v2332
    %v2334 = vrot.slane %v2333, 4
    %v2335 = vadd.f32 %v2333, %v2334
    %v2336 = vrot.slane %v2335, 2
    %v2337 = vadd.f32 %v2335, %v2336
    %v2338 = vrot.slane %v2337, 1
    %v2339 = vadd.f32 %v2337, %v2338
    %v2340 = vadd.f32 %v2322, %v2323
    %v2341 = vrot.slane %v2340, 4
    %v2342 = vadd.f32 %v2340, %v2341
    %v2343 = vrot.slane %v2342, 2
    %v2344 = vadd.f32 %v2342, %v2343
    %v2345 = vrot.slane %v2344, 1
    %v2346 = vadd.f32 %v2344, %v2345
    %v2347 = vadd.f32 %v2330, %v2346
    %v2348 = vmul.f32 %v2322, %v2322
    %v2349 = vmul.f32 %v2323, %v2323
    %v2350 = vadd.f32 %v2348, %v2349
    %v2351 = vrot.slane %v2350, 4
    %v2352 = vadd.f32 %v2350, %v2351
    %v2353 = vrot.slane %v2352, 2
    %v2354 = vadd.f32 %v2352, %v2353
    %v2355 = vrot.slane %v2354, 1
    %v2356 = vadd.f32 %v2354, %v2355
    %v2357 = vadd.f32 %v2339, %v2356
    %v2358 = vmul.f32 %v2347, 0.03125
    %v2359 = vmul.f32 %v2357, 0.03125
    %v2360 = vmul.f32 %v2358, %v2358
    %v2361 = vsub.f32 %v2359, %v2360
    %v2362 = vadd.f32 %v2361, 1e-05
    %v2363 = vrsqrt.pop %v2362
    %v2364 = vmul.f32 %v2363, %v2362
    %v2365 = vmul.f32 %v2364, %v2363
    %v2366 = vmul.f32 0.5, %v2365
    %v2367 = vsub.f32 1.5, %v2366
    %v2368 = vmul.f32 %v2363, %v2367
    %vm2369 = vweird.f32 %v2362
    %vm2370 = vweird.f32 %v2363
    %vm2371 = vmor %vm2369, %vm2370
    %v2372 = vsel %vm2371, %v2363, %v2368
    %v2373 = vsub.f32 %v2109, %v2358
    %v2374 = vsub.f32 %v2110, %v2358
    %v2375 = vmul.f32 %v2373, %v2372
    %v2376 = vmul.f32 %v2374, %v2372
    %v2377 = vld [vmem:[#allocation19] sm:$0x1]
    %v2379 = vperm.slane %v2377, 0
    %v2381 = vmul.f32 %v2375, %v2379
    %v2382 = vmul.f32 %v2376, %v2379
    %v2383 = vld [vmem:[#allocation20] sm:$0x1]
    %v2385 = vperm.slane %v2383, 0
    %v2387 = vadd.f32 %v2381, %v2385
    %v2388 = vadd.f32 %v2382, %v2385
    %v2389 = vsub.f32 %v2322, %v2358
    %v2390 = vsub.f32 %v2323, %v2358
    %v2391 = vmul.f32 %v2389, %v2372
    %v2392 = vmul.f32 %v2390, %v2372
    %v2393 = vmul.f32 %v2391, %v2379
    %v2394 = vmul.f32 %v2392, %v2379
    %v2395 = vadd.f32 %v2393, %v2385
    %v2396 = vadd.f32 %v2394, %v2385
    %v2398 = vrot.slane %v2395, 7
    %vm2400 = vcmask 1040384
    %v2401 = vsel %vm2400, %v2387, %v2398
    %v2402 = vpack.c.bf16 %v2401, %v2401
    %v2403 = vld [vmem:[#allocation22] sm:$0xff]
    %v2404 = vld [vmem:[#allocation22 + $0x8] sm:$0xff]
    %v2405 = vld [vmem:[#allocation22 + $0x10] sm:$0xff]
    %v2406 = vld [vmem:[#allocation22 + $0x18] sm:$0xff]
    %v2407 = vld [vmem:[#allocation22 + $0x20] sm:$0xff]
    %v2408 = vld [vmem:[#allocation22 + $0x28] sm:$0xff]
    %v2409 = vld [vmem:[#allocation22 + $0x30] sm:$0xff]
    %v2410 = vld [vmem:[#allocation22 + $0x38] sm:$0xff]
    %v2411 = vld [vmem:[#allocation22 + $0x40] sm:$0xff]
    %v2412 = vld [vmem:[#allocation22 + $0x48] sm:$0xff]
    %v2413 = vld [vmem:[#allocation22 + $0x50] sm:$0xff]
    %v2414 = vld [vmem:[#allocation22 + $0x58] sm:$0xff]
    %v2415 = vld [vmem:[#allocation22 + $0x60] sm:$0xff]
    %v2416 = vld [vmem:[#allocation22 + $0x68] sm:$0xff]
    %v2417 = vld [vmem:[#allocation22 + $0x70] sm:$0xff]
    %v2418 = vld [vmem:[#allocation22 + $0x78] sm:$0xff]
    %v2419 = vld [vmem:[#allocation22 + $0x80] sm:$0xff]
    %v2420 = vld [vmem:[#allocation22 + $0x88] sm:$0xff]
    %v2421 = vld [vmem:[#allocation22 + $0x90] sm:$0xff]
    %v2422 = vld [vmem:[#allocation22 + $0x98] sm:$0xff]
    %v2423 = vld [vmem:[#allocation22 + $0xa0] sm:$0xff]
    %v2424 = vld [vmem:[#allocation22 + $0xa8] sm:$0xff]
    %v2425 = vld [vmem:[#allocation22 + $0xb0] sm:$0xff]
    %v2426 = vld [vmem:[#allocation22 + $0xb8] sm:$0xff]
    %v2427 = vld [vmem:[#allocation22 + $0xc0] sm:$0xff]
    %v2428 = vld [vmem:[#allocation22 + $0xc8] sm:$0xff]
    %v2429 = vld [vmem:[#allocation22 + $0xd0] sm:$0xff]
    %v2430 = vld [vmem:[#allocation22 + $0xd8] sm:$0xff]
    %v2431 = vld [vmem:[#allocation22 + $0xe0] sm:$0xff]
    %v2432 = vld [vmem:[#allocation22 + $0xe8] sm:$0xff]
    %v2433 = vld [vmem:[#allocation22 + $0xf0] sm:$0xff]
    %v2434 = vld [vmem:[#allocation22 + $0xf8] sm:$0xff]
    %v2435 = vld [vmem:[#allocation22 + $0x100] sm:$0xff]
    %v2436 = vld [vmem:[#allocation22 + $0x108] sm:$0xff]
    %v2437 = vld [vmem:[#allocation22 + $0x110] sm:$0xff]
    %v2438 = vld [vmem:[#allocation22 + $0x118] sm:$0xff]
    %v2439 = vld [vmem:[#allocation22 + $0x120] sm:$0xff]
    %v2440 = vld [vmem:[#allocation22 + $0x128] sm:$0xff]
    %v2441 = vld [vmem:[#allocation22 + $0x130] sm:$0xff]
    %v2442 = vld [vmem:[#allocation22 + $0x138] sm:$0xff]
    %v2443 = vld [vmem:[#allocation22 + $0x140] sm:$0xff]
    %v2444 = vld [vmem:[#allocation22 + $0x148] sm:$0xff]
    %v2445 = vld [vmem:[#allocation22 + $0x150] sm:$0xff]
    %v2446 = vld [vmem:[#allocation22 + $0x158] sm:$0xff]
    %v2447 = vld [vmem:[#allocation22 + $0x160] sm:$0xff]
    %v2448 = vld [vmem:[#allocation22 + $0x168] sm:$0xff]
    %v2449 = vld [vmem:[#allocation22 + $0x170] sm:$0xff]
    %v2450 = vld [vmem:[#allocation22 + $0x178] sm:$0xff]
    %v2451 = vld [vmem:[#allocation22 + $0x180] sm:$0xff]
    %v2452 = vld [vmem:[#allocation22 + $0x188] sm:$0xff]
    %v2453 = vld [vmem:[#allocation22 + $0x190] sm:$0xff]
    %v2454 = vld [vmem:[#allocation22 + $0x198] sm:$0xff]
    %v2455 = vld [vmem:[#allocation22 + $0x1a0] sm:$0xff]
    %v2456 = vld [vmem:[#allocation22 + $0x1a8] sm:$0xff]
    %v2457 = vld [vmem:[#allocation22 + $0x1b0] sm:$0xff]
    %v2458 = vld [vmem:[#allocation22 + $0x1b8] sm:$0xff]
    %v2459 = vld [vmem:[#allocation22 + $0x1c0] sm:$0xff]
    %v2460 = vld [vmem:[#allocation22 + $0x1c8] sm:$0xff]
    %v2461 = vld [vmem:[#allocation22 + $0x1d0] sm:$0xff]
    %v2462 = vld [vmem:[#allocation22 + $0x1d8] sm:$0xff]
    %v2463 = vld [vmem:[#allocation22 + $0x1e0] sm:$0xff]
    %v2464 = vld [vmem:[#allocation22 + $0x1e8] sm:$0xff]
    %v2465 = vld [vmem:[#allocation22 + $0x1f0] sm:$0xff]
    %v2466 = vld [vmem:[#allocation22 + $0x1f8] sm:$0xff]
    %v2468 = vrot.slane %v2387, 1
    %v2470 = vsel %vm2400, %v2468, %v2395
    %v2471 = vpack.c.bf16 %v2470, %v2470
    %s2472 = scalar_lea.vmem [#allocation22], 512
    %v2473 = vld [vmem:[%s2472] sm:$0xff]
    %v2474 = vld [vmem:[%s2472 + $0x8] sm:$0xff]
    %v2475 = vld [vmem:[%s2472 + $0x10] sm:$0xff]
    %v2476 = vld [vmem:[%s2472 + $0x18] sm:$0xff]
    %v2477 = vld [vmem:[%s2472 + $0x20] sm:$0xff]
    %v2478 = vld [vmem:[%s2472 + $0x28] sm:$0xff]
    %v2479 = vld [vmem:[%s2472 + $0x30] sm:$0xff]
    %v2480 = vld [vmem:[%s2472 + $0x38] sm:$0xff]
    %v2481 = vld [vmem:[%s2472 + $0x40] sm:$0xff]
    %v2482 = vld [vmem:[%s2472 + $0x48] sm:$0xff]
    %v2483 = vld [vmem:[%s2472 + $0x50] sm:$0xff]
    %v2484 = vld [vmem:[%s2472 + $0x58] sm:$0xff]
    %v2485 = vld [vmem:[%s2472 + $0x60] sm:$0xff]
    %v2486 = vld [vmem:[%s2472 + $0x68] sm:$0xff]
    %v2487 = vld [vmem:[%s2472 + $0x70] sm:$0xff]
    %v2488 = vld [vmem:[%s2472 + $0x78] sm:$0xff]
    %v2489 = vld [vmem:[%s2472 + $0x80] sm:$0xff]
    %v2490 = vld [vmem:[%s2472 + $0x88] sm:$0xff]
    %v2491 = vld [vmem:[%s2472 + $0x90] sm:$0xff]
    %v2492 = vld [vmem:[%s2472 + $0x98] sm:$0xff]
    %v2493 = vld [vmem:[%s2472 + $0xa0] sm:$0xff]
    %v2494 = vld [vmem:[%s2472 + $0xa8] sm:$0xff]
    %v2495 = vld [vmem:[%s2472 + $0xb0] sm:$0xff]
    %v2496 = vld [vmem:[%s2472 + $0xb8] sm:$0xff]
    %v2497 = vld [vmem:[%s2472 + $0xc0] sm:$0xff]
    %v2498 = vld [vmem:[%s2472 + $0xc8] sm:$0xff]
    %v2499 = vld [vmem:[%s2472 + $0xd0] sm:$0xff]
    %v2500 = vld [vmem:[%s2472 + $0xd8] sm:$0xff]
    %v2501 = vld [vmem:[%s2472 + $0xe0] sm:$0xff]
    %v2502 = vld [vmem:[%s2472 + $0xe8] sm:$0xff]
    %v2503 = vld [vmem:[%s2472 + $0xf0] sm:$0xff]
    %v2504 = vld [vmem:[%s2472 + $0xf8] sm:$0xff]
    %v2505 = vld [vmem:[%s2472 + $0x100] sm:$0xff]
    %v2506 = vld [vmem:[%s2472 + $0x108] sm:$0xff]
    %v2507 = vld [vmem:[%s2472 + $0x110] sm:$0xff]
    %v2508 = vld [vmem:[%s2472 + $0x118] sm:$0xff]
    %v2509 = vld [vmem:[%s2472 + $0x120] sm:$0xff]
    %v2510 = vld [vmem:[%s2472 + $0x128] sm:$0xff]
    %v2511 = vld [vmem:[%s2472 + $0x130] sm:$0xff]
    %v2512 = vld [vmem:[%s2472 + $0x138] sm:$0xff]
    %v2513 = vld [vmem:[%s2472 + $0x140] sm:$0xff]
    %v2514 = vld [vmem:[%s2472 + $0x148] sm:$0xff]
    %v2515 = vld [vmem:[%s2472 + $0x150] sm:$0xff]
    %v2516 = vld [vmem:[%s2472 + $0x158] sm:$0xff]
    %v2517 = vld [vmem:[%s2472 + $0x160] sm:$0xff]
    %v2518 = vld [vmem:[%s2472 + $0x168] sm:$0xff]
    %v2519 = vld [vmem:[%s2472 + $0x170] sm:$0xff]
    %v2520 = vld [vmem:[%s2472 + $0x178] sm:$0xff]
    %v2521 = vld [vmem:[%s2472 + $0x180] sm:$0xff]
    %v2522 = vld [vmem:[%s2472 + $0x188] sm:$0xff]
    %v2523 = vld [vmem:[%s2472 + $0x190] sm:$0xff]
    %v2524 = vld [vmem:[%s2472 + $0x198] sm:$0xff]
    %v2525 = vld [vmem:[%s2472 + $0x1a0] sm:$0xff]
    %v2526 = vld [vmem:[%s2472 + $0x1a8] sm:$0xff]
    %v2527 = vld [vmem:[%s2472 + $0x1b0] sm:$0xff]
    %v2528 = vld [vmem:[%s2472 + $0x1b8] sm:$0xff]
    %v2529 = vld [vmem:[%s2472 + $0x1c0] sm:$0xff]
    %v2530 = vld [vmem:[%s2472 + $0x1c8] sm:$0xff]
    %v2531 = vld [vmem:[%s2472 + $0x1d0] sm:$0xff]
    %v2532 = vld [vmem:[%s2472 + $0x1d8] sm:$0xff]
    %v2533 = vld [vmem:[%s2472 + $0x1e0] sm:$0xff]
    %v2534 = vld [vmem:[%s2472 + $0x1e8] sm:$0xff]
    %v2535 = vld [vmem:[%s2472 + $0x1f0] sm:$0xff]
    %v2536 = vld [vmem:[%s2472 + $0x1f8] sm:$0xff]
    %v2601 = vunpack.c.l.b16 %v2473
    %v2602 = vunpack.c.h.b16 %v2473
    %v2603 = vunpack.c.l.b16 %v2474
    %v2604 = vunpack.c.h.b16 %v2474
    %v2605 = vunpack.c.l.b16 %v2475
    %v2606 = vunpack.c.h.b16 %v2475
    %v2607 = vunpack.c.l.b16 %v2476
    %v2608 = vunpack.c.h.b16 %v2476
    %v2609 = vunpack.c.l.b16 %v2477
    %v2610 = vunpack.c.h.b16 %v2477
    %v2611 = vunpack.c.l.b16 %v2478
    %v2612 = vunpack.c.h.b16 %v2478
    %v2613 = vunpack.c.l.b16 %v2479
    %v2614 = vunpack.c.h.b16 %v2479
    %v2615 = vunpack.c.l.b16 %v2480
    %v2616 = vunpack.c.h.b16 %v2480
    %v2617 = vunpack.c.l.b16 %v2481
    %v2618 = vunpack.c.h.b16 %v2481
    %v2619 = vunpack.c.l.b16 %v2482
    %v2620 = vunpack.c.h.b16 %v2482
    %v2621 = vunpack.c.l.b16 %v2483
    %v2622 = vunpack.c.h.b16 %v2483
    %v2623 = vunpack.c.l.b16 %v2484
    %v2624 = vunpack.c.h.b16 %v2484
    %v2625 = vunpack.c.l.b16 %v2485
    %v2626 = vunpack.c.h.b16 %v2485
    %v2627 = vunpack.c.l.b16 %v2486
    %v2628 = vunpack.c.h.b16 %v2486
    %v2629 = vunpack.c.l.b16 %v2487
    %v2630 = vunpack.c.h.b16 %v2487
    %v2631 = vunpack.c.l.b16 %v2488
    %v2632 = vunpack.c.h.b16 %v2488
    %v2633 = vunpack.c.l.b16 %v2489
    %v2634 = vunpack.c.h.b16 %v2489
    %v2635 = vunpack.c.l.b16 %v2490
    %v2636 = vunpack.c.h.b16 %v2490
    %v2637 = vunpack.c.l.b16 %v2491
    %v2638 = vunpack.c.h.b16 %v2491
    %v2639 = vunpack.c.l.b16 %v2492
    %v2640 = vunpack.c.h.b16 %v2492
    %v2641 = vunpack.c.l.b16 %v2493
    %v2642 = vunpack.c.h.b16 %v2493
    %v2643 = vunpack.c.l.b16 %v2494
    %v2644 = vunpack.c.h.b16 %v2494
    %v2645 = vunpack.c.l.b16 %v2495
    %v2646 = vunpack.c.h.b16 %v2495
    %v2647 = vunpack.c.l.b16 %v2496
    %v2648 = vunpack.c.h.b16 %v2496
    %v2649 = vunpack.c.l.b16 %v2497
    %v2650 = vunpack.c.h.b16 %v2497
    %v2651 = vunpack.c.l.b16 %v2498
    %v2652 = vunpack.c.h.b16 %v2498
    %v2653 = vunpack.c.l.b16 %v2499
    %v2654 = vunpack.c.h.b16 %v2499
    %v2655 = vunpack.c.l.b16 %v2500
    %v2656 = vunpack.c.h.b16 %v2500
    %v2657 = vunpack.c.l.b16 %v2501
    %v2658 = vunpack.c.h.b16 %v2501
    %v2659 = vunpack.c.l.b16 %v2502
    %v2660 = vunpack.c.h.b16 %v2502
    %v2661 = vunpack.c.l.b16 %v2503
    %v2662 = vunpack.c.h.b16 %v2503
    %v2663 = vunpack.c.l.b16 %v2504
    %v2664 = vunpack.c.h.b16 %v2504
    %v2665 = vunpack.c.l.b16 %v2505
    %v2666 = vunpack.c.h.b16 %v2505
    %v2667 = vunpack.c.l.b16 %v2506
    %v2668 = vunpack.c.h.b16 %v2506
    %v2669 = vunpack.c.l.b16 %v2507
    %v2670 = vunpack.c.h.b16 %v2507
    %v2671 = vunpack.c.l.b16 %v2508
    %v2672 = vunpack.c.h.b16 %v2508
    %v2673 = vunpack.c.l.b16 %v2509
    %v2674 = vunpack.c.h.b16 %v2509
    %v2675 = vunpack.c.l.b16 %v2510
    %v2676 = vunpack.c.h.b16 %v2510
    %v2677 = vunpack.c.l.b16 %v2511
    %v2678 = vunpack.c.h.b16 %v2511
    %v2679 = vunpack.c.l.b16 %v2512
    %v2680 = vunpack.c.h.b16 %v2512
    %v2681 = vunpack.c.l.b16 %v2513
    %v2682 = vunpack.c.h.b16 %v2513
    %v2683 = vunpack.c.l.b16 %v2514
    %v2684 = vunpack.c.h.b16 %v2514
    %v2685 = vunpack.c.l.b16 %v2515
    %v2686 = vunpack.c.h.b16 %v2515
    %v2687 = vunpack.c.l.b16 %v2516
    %v2688 = vunpack.c.h.b16 %v2516
    %v2689 = vunpack.c.l.b16 %v2517
    %v2690 = vunpack.c.h.b16 %v2517
    %v2691 = vunpack.c.l.b16 %v2518
    %v2692 = vunpack.c.h.b16 %v2518
    %v2693 = vunpack.c.l.b16 %v2519
    %v2694 = vunpack.c.h.b16 %v2519
    %v2695 = vunpack.c.l.b16 %v2520
    %v2696 = vunpack.c.h.b16 %v2520
    %v2697 = vunpack.c.l.b16 %v2521
    %v2698 = vunpack.c.h.b16 %v2521
    %v2699 = vunpack.c.l.b16 %v2522
    %v2700 = vunpack.c.h.b16 %v2522
    %v2701 = vunpack.c.l.b16 %v2523
    %v2702 = vunpack.c.h.b16 %v2523
    %v2703 = vunpack.c.l.b16 %v2524
    %v2704 = vunpack.c.h.b16 %v2524
    %v2705 = vunpack.c.l.b16 %v2525
    %v2706 = vunpack.c.h.b16 %v2525
    %v2707 = vunpack.c.l.b16 %v2526
    %v2708 = vunpack.c.h.b16 %v2526
    %v2709 = vunpack.c.l.b16 %v2527
    %v2710 = vunpack.c.h.b16 %v2527
    %v2711 = vunpack.c.l.b16 %v2528
    %v2712 = vunpack.c.h.b16 %v2528
    %v2713 = vunpack.c.l.b16 %v2529
    %v2714 = vunpack.c.h.b16 %v2529
    %v2715 = vunpack.c.l.b16 %v2530
    %v2716 = vunpack.c.h.b16 %v2530
    %v2717 = vunpack.c.l.b16 %v2531
    %v2718 = vunpack.c.h.b16 %v2531
    %v2719 = vunpack.c.l.b16 %v2532
    %v2720 = vunpack.c.h.b16 %v2532
    %v2721 = vunpack.c.l.b16 %v2533
    %v2722 = vunpack.c.h.b16 %v2533
    %v2723 = vunpack.c.l.b16 %v2534
    %v2724 = vunpack.c.h.b16 %v2534
    %v2725 = vunpack.c.l.b16 %v2535
    %v2726 = vunpack.c.h.b16 %v2535
    %v2727 = vunpack.c.l.b16 %v2536
    %v2728 = vunpack.c.h.b16 %v2536
    %v2729 = vpack.c.b16 %v2609, %v2601
    %v2730 = vpack.c.b16 %v2610, %v2602
    %v2731 = vpack.c.b16 %v2611, %v2603
    %v2732 = vpack.c.b16 %v2612, %v2604
    %v2733 = vpack.c.b16 %v2613, %v2605
    %v2734 = vpack.c.b16 %v2614, %v2606
    %v2735 = vpack.c.b16 %v2615, %v2607
    %v2736 = vpack.c.b16 %v2616, %v2608
    %v2737 = vpack.c.b16 %v2625, %v2617
    %v2738 = vpack.c.b16 %v2626, %v2618
    %v2739 = vpack.c.b16 %v2627, %v2619
    %v2740 = vpack.c.b16 %v2628, %v2620
    %v2741 = vpack.c.b16 %v2629, %v2621
    %v2742 = vpack.c.b16 %v2630, %v2622
    %v2743 = vpack.c.b16 %v2631, %v2623
    %v2744 = vpack.c.b16 %v2632, %v2624
    %v2745 = vpack.c.b16 %v2641, %v2633
    %v2746 = vpack.c.b16 %v2642, %v2634
    %v2747 = vpack.c.b16 %v2643, %v2635
    %v2748 = vpack.c.b16 %v2644, %v2636
    %v2749 = vpack.c.b16 %v2645, %v2637
    %v2750 = vpack.c.b16 %v2646, %v2638
    %v2751 = vpack.c.b16 %v2647, %v2639
    %v2752 = vpack.c.b16 %v2648, %v2640
    %v2753 = vpack.c.b16 %v2657, %v2649
    %v2754 = vpack.c.b16 %v2658, %v2650
    %v2755 = vpack.c.b16 %v2659, %v2651
    %v2756 = vpack.c.b16 %v2660, %v2652
    %v2757 = vpack.c.b16 %v2661, %v2653
    %v2758 = vpack.c.b16 %v2662, %v2654
    %v2759 = vpack.c.b16 %v2663, %v2655
    %v2760 = vpack.c.b16 %v2664, %v2656
    %v2761 = vpack.c.b16 %v2673, %v2665
    %v2762 = vpack.c.b16 %v2674, %v2666
    %v2763 = vpack.c.b16 %v2675, %v2667
    %v2764 = vpack.c.b16 %v2676, %v2668
    %v2765 = vpack.c.b16 %v2677, %v2669
    %v2766 = vpack.c.b16 %v2678, %v2670
    %v2767 = vpack.c.b16 %v2679, %v2671
    %v2768 = vpack.c.b16 %v2680, %v2672
    %v2769 = vpack.c.b16 %v2689, %v2681
    %v2770 = vpack.c.b16 %v2690, %v2682
    %v2771 = vpack.c.b16 %v2691, %v2683
    %v2772 = vpack.c.b16 %v2692, %v2684
    %v2773 = vpack.c.b16 %v2693, %v2685
    %v2774 = vpack.c.b16 %v2694, %v2686
    %v2775 = vpack.c.b16 %v2695, %v2687
    %v2776 = vpack.c.b16 %v2696, %v2688
    %v2777 = vpack.c.b16 %v2705, %v2697
    %v2778 = vpack.c.b16 %v2706, %v2698
    %v2779 = vpack.c.b16 %v2707, %v2699
    %v2780 = vpack.c.b16 %v2708, %v2700
    %v2781 = vpack.c.b16 %v2709, %v2701
    %v2782 = vpack.c.b16 %v2710, %v2702
    %v2783 = vpack.c.b16 %v2711, %v2703
    %v2784 = vpack.c.b16 %v2712, %v2704
    %v2785 = vpack.c.b16 %v2721, %v2713
    %v2786 = vpack.c.b16 %v2722, %v2714
    %v2787 = vpack.c.b16 %v2723, %v2715
    %v2788 = vpack.c.b16 %v2724, %v2716
    %v2789 = vpack.c.b16 %v2725, %v2717
    %v2790 = vpack.c.b16 %v2726, %v2718
    %v2791 = vpack.c.b16 %v2727, %v2719
    %v2792 = vpack.c.b16 %v2728, %v2720
    %2857 = vmatpush.bf16.msra.mxu0 %v2785
    %2858 = vmatpush.bf16.msra.mxu0 %v2777
    %2859 = vmatpush.bf16.msra.mxu0 %v2769
    %2860 = vmatpush.bf16.msra.mxu0 %v2761
    %2861 = vmatpush.bf16.msra.mxu0 %v2753
    %2862 = vmatpush.bf16.msra.mxu0 %v2745
    %2863 = vmatpush.bf16.msra.mxu0 %v2737
    %2864 = vmatpush.bf16.msra.mxu0 %v2729
    %2865 = vmatmul.bf16.gmra.mxu0 %v2471
    %v2866 = vpop.f32.mrf.mxu0
    %v2867 = vadd.f32 0.0, %v2866
    %v2868 = vpop.f32.mrf.mxu0
    %2869 = vdwg.mxu0
    %2870 = vmatpush.bf16.msra.mxu0 %v2786
    %2871 = vmatpush.bf16.msra.mxu0 %v2778
    %2872 = vmatpush.bf16.msra.mxu0 %v2770
    %2873 = vmatpush.bf16.msra.mxu0 %v2762
    %2874 = vmatpush.bf16.msra.mxu0 %v2754
    %2875 = vmatpush.bf16.msra.mxu0 %v2746
    %2876 = vmatpush.bf16.msra.mxu0 %v2738
    %2877 = vmatpush.bf16.msra.mxu0 %v2730
    %2878 = vmatmul.bf16.gmra.mxu0 %v2471
    %v2879 = vpop.f32.mrf.mxu0
    %v2880 = vadd.f32 0.0, %v2879
    %v2881 = vpop.f32.mrf.mxu0
    %2882 = vdwg.mxu0
    %2883 = vmatpush.bf16.msra.mxu0 %v2787
    %2884 = vmatpush.bf16.msra.mxu0 %v2779
    %2885 = vmatpush.bf16.msra.mxu0 %v2771
    %2886 = vmatpush.bf16.msra.mxu0 %v2763
    %2887 = vmatpush.bf16.msra.mxu0 %v2755
    %2888 = vmatpush.bf16.msra.mxu0 %v2747
    %2889 = vmatpush.bf16.msra.mxu0 %v2739
    %2890 = vmatpush.bf16.msra.mxu0 %v2731
    %2891 = vmatmul.bf16.gmra.mxu0 %v2471
    %v2892 = vpop.f32.mrf.mxu0
    %v2893 = vadd.f32 0.0, %v2892
    %v2894 = vpop.f32.mrf.mxu0
    %2895 = vdwg.mxu0
    %2896 = vmatpush.bf16.msra.mxu0 %v2788
    %2897 = vmatpush.bf16.msra.mxu0 %v2780
    %2898 = vmatpush.bf16.msra.mxu0 %v2772
    %2899 = vmatpush.bf16.msra.mxu0 %v2764
    %2900 = vmatpush.bf16.msra.mxu0 %v2756
    %2901 = vmatpush.bf16.msra.mxu0 %v2748
    %2902 = vmatpush.bf16.msra.mxu0 %v2740
    %2903 = vmatpush.bf16.msra.mxu0 %v2732
    %2904 = vmatmul.bf16.gmra.mxu0 %v2471
    %v2905 = vpop.f32.mrf.mxu0
    %v2906 = vadd.f32 0.0, %v2905
    %v2907 = vpop.f32.mrf.mxu0
    %2908 = vdwg.mxu0
    %2909 = vmatpush.bf16.msra.mxu0 %v2789
    %2910 = vmatpush.bf16.msra.mxu0 %v2781
    %2911 = vmatpush.bf16.msra.mxu0 %v2773
    %2912 = vmatpush.bf16.msra.mxu0 %v2765
    %2913 = vmatpush.bf16.msra.mxu0 %v2757
    %2914 = vmatpush.bf16.msra.mxu0 %v2749
    %2915 = vmatpush.bf16.msra.mxu0 %v2741
    %2916 = vmatpush.bf16.msra.mxu0 %v2733
    %2917 = vmatmul.bf16.gmra.mxu0 %v2471
    %v2918 = vpop.f32.mrf.mxu0
    %v2919 = vadd.f32 0.0, %v2918
    %v2920 = vpop.f32.mrf.mxu0
    %2921 = vdwg.mxu0
    %2922 = vmatpush.bf16.msra.mxu0 %v2790
    %2923 = vmatpush.bf16.msra.mxu0 %v2782
    %2924 = vmatpush.bf16.msra.mxu0 %v2774
    %2925 = vmatpush.bf16.msra.mxu0 %v2766
    %2926 = vmatpush.bf16.msra.mxu0 %v2758
    %2927 = vmatpush.bf16.msra.mxu0 %v2750
    %2928 = vmatpush.bf16.msra.mxu0 %v2742
    %2929 = vmatpush.bf16.msra.mxu0 %v2734
    %2930 = vmatmul.bf16.gmra.mxu0 %v2471
    %v2931 = vpop.f32.mrf.mxu0
    %v2932 = vadd.f32 0.0, %v2931
    %v2933 = vpop.f32.mrf.mxu0
    %2934 = vdwg.mxu0
    %2935 = vmatpush.bf16.msra.mxu0 %v2791
    %2936 = vmatpush.bf16.msra.mxu0 %v2783
    %2937 = vmatpush.bf16.msra.mxu0 %v2775
    %2938 = vmatpush.bf16.msra.mxu0 %v2767
    %2939 = vmatpush.bf16.msra.mxu0 %v2759
    %2940 = vmatpush.bf16.msra.mxu0 %v2751
    %2941 = vmatpush.bf16.msra.mxu0 %v2743
    %2942 = vmatpush.bf16.msra.mxu0 %v2735
    %2943 = vmatmul.bf16.gmra.mxu0 %v2471
    %v2944 = vpop.f32.mrf.mxu0
    %v2945 = vadd.f32 0.0, %v2944
    %v2946 = vpop.f32.mrf.mxu0
    %2947 = vdwg.mxu0
    %2948 = vmatpush.bf16.msra.mxu0 %v2792
    %2949 = vmatpush.bf16.msra.mxu0 %v2784
    %2950 = vmatpush.bf16.msra.mxu0 %v2776
    %2951 = vmatpush.bf16.msra.mxu0 %v2768
    %2952 = vmatpush.bf16.msra.mxu0 %v2760
    %2953 = vmatpush.bf16.msra.mxu0 %v2752
    %2954 = vmatpush.bf16.msra.mxu0 %v2744
    %2955 = vmatpush.bf16.msra.mxu0 %v2736
    %2956 = vmatmul.bf16.gmra.mxu0 %v2471
    %v2957 = vpop.f32.mrf.mxu0
    %v2958 = vadd.f32 0.0, %v2957
    %v2959 = vpop.f32.mrf.mxu0
    %2960 = vdwg.mxu0
    %v3025 = vunpack.c.l.b16 %v2403
    %v3026 = vunpack.c.h.b16 %v2403
    %v3027 = vunpack.c.l.b16 %v2404
    %v3028 = vunpack.c.h.b16 %v2404
    %v3029 = vunpack.c.l.b16 %v2405
    %v3030 = vunpack.c.h.b16 %v2405
    %v3031 = vunpack.c.l.b16 %v2406
    %v3032 = vunpack.c.h.b16 %v2406
    %v3033 = vunpack.c.l.b16 %v2407
    %v3034 = vunpack.c.h.b16 %v2407
    %v3035 = vunpack.c.l.b16 %v2408
    %v3036 = vunpack.c.h.b16 %v2408
    %v3037 = vunpack.c.l.b16 %v2409
    %v3038 = vunpack.c.h.b16 %v2409
    %v3039 = vunpack.c.l.b16 %v2410
    %v3040 = vunpack.c.h.b16 %v2410
    %v3041 = vunpack.c.l.b16 %v2411
    %v3042 = vunpack.c.h.b16 %v2411
    %v3043 = vunpack.c.l.b16 %v2412
    %v3044 = vunpack.c.h.b16 %v2412
    %v3045 = vunpack.c.l.b16 %v2413
    %v3046 = vunpack.c.h.b16 %v2413
    %v3047 = vunpack.c.l.b16 %v2414
    %v3048 = vunpack.c.h.b16 %v2414
    %v3049 = vunpack.c.l.b16 %v2415
    %v3050 = vunpack.c.h.b16 %v2415
    %v3051 = vunpack.c.l.b16 %v2416
    %v3052 = vunpack.c.h.b16 %v2416
    %v3053 = vunpack.c.l.b16 %v2417
    %v3054 = vunpack.c.h.b16 %v2417
    %v3055 = vunpack.c.l.b16 %v2418
    %v3056 = vunpack.c.h.b16 %v2418
    %v3057 = vunpack.c.l.b16 %v2419
    %v3058 = vunpack.c.h.b16 %v2419
    %v3059 = vunpack.c.l.b16 %v2420
    %v3060 = vunpack.c.h.b16 %v2420
    %v3061 = vunpack.c.l.b16 %v2421
    %v3062 = vunpack.c.h.b16 %v2421
    %v3063 = vunpack.c.l.b16 %v2422
    %v3064 = vunpack.c.h.b16 %v2422
    %v3065 = vunpack.c.l.b16 %v2423
    %v3066 = vunpack.c.h.b16 %v2423
    %v3067 = vunpack.c.l.b16 %v2424
    %v3068 = vunpack.c.h.b16 %v2424
    %v3069 = vunpack.c.l.b16 %v2425
    %v3070 = vunpack.c.h.b16 %v2425
    %v3071 = vunpack.c.l.b16 %v2426
    %v3072 = vunpack.c.h.b16 %v2426
    %v3073 = vunpack.c.l.b16 %v2427
    %v3074 = vunpack.c.h.b16 %v2427
    %v3075 = vunpack.c.l.b16 %v2428
    %v3076 = vunpack.c.h.b16 %v2428
    %v3077 = vunpack.c.l.b16 %v2429
    %v3078 = vunpack.c.h.b16 %v2429
    %v3079 = vunpack.c.l.b16 %v2430
    %v3080 = vunpack.c.h.b16 %v2430
    %v3081 = vunpack.c.l.b16 %v2431
    %v3082 = vunpack.c.h.b16 %v2431
    %v3083 = vunpack.c.l.b16 %v2432
    %v3084 = vunpack.c.h.b16 %v2432
    %v3085 = vunpack.c.l.b16 %v2433
    %v3086 = vunpack.c.h.b16 %v2433
    %v3087 = vunpack.c.l.b16 %v2434
    %v3088 = vunpack.c.h.b16 %v2434
    %v3089 = vunpack.c.l.b16 %v2435
    %v3090 = vunpack.c.h.b16 %v2435
    %v3091 = vunpack.c.l.b16 %v2436
    %v3092 = vunpack.c.h.b16 %v2436
    %v3093 = vunpack.c.l.b16 %v2437
    %v3094 = vunpack.c.h.b16 %v2437
    %v3095 = vunpack.c.l.b16 %v2438
    %v3096 = vunpack.c.h.b16 %v2438
    %v3097 = vunpack.c.l.b16 %v2439
    %v3098 = vunpack.c.h.b16 %v2439
    %v3099 = vunpack.c.l.b16 %v2440
    %v3100 = vunpack.c.h.b16 %v2440
    %v3101 = vunpack.c.l.b16 %v2441
    %v3102 = vunpack.c.h.b16 %v2441
    %v3103 = vunpack.c.l.b16 %v2442
    %v3104 = vunpack.c.h.b16 %v2442
    %v3105 = vunpack.c.l.b16 %v2443
    %v3106 = vunpack.c.h.b16 %v2443
    %v3107 = vunpack.c.l.b16 %v2444
    %v3108 = vunpack.c.h.b16 %v2444
    %v3109 = vunpack.c.l.b16 %v2445
    %v3110 = vunpack.c.h.b16 %v2445
    %v3111 = vunpack.c.l.b16 %v2446
    %v3112 = vunpack.c.h.b16 %v2446
    %v3113 = vunpack.c.l.b16 %v2447
    %v3114 = vunpack.c.h.b16 %v2447
    %v3115 = vunpack.c.l.b16 %v2448
    %v3116 = vunpack.c.h.b16 %v2448
    %v3117 = vunpack.c.l.b16 %v2449
    %v3118 = vunpack.c.h.b16 %v2449
    %v3119 = vunpack.c.l.b16 %v2450
    %v3120 = vunpack.c.h.b16 %v2450
    %v3121 = vunpack.c.l.b16 %v2451
    %v3122 = vunpack.c.h.b16 %v2451
    %v3123 = vunpack.c.l.b16 %v2452
    %v3124 = vunpack.c.h.b16 %v2452
    %v3125 = vunpack.c.l.b16 %v2453
    %v3126 = vunpack.c.h.b16 %v2453
    %v3127 = vunpack.c.l.b16 %v2454
    %v3128 = vunpack.c.h.b16 %v2454
    %v3129 = vunpack.c.l.b16 %v2455
    %v3130 = vunpack.c.h.b16 %v2455
    %v3131 = vunpack.c.l.b16 %v2456
    %v3132 = vunpack.c.h.b16 %v2456
    %v3133 = vunpack.c.l.b16 %v2457
    %v3134 = vunpack.c.h.b16 %v2457
    %v3135 = vunpack.c.l.b16 %v2458
    %v3136 = vunpack.c.h.b16 %v2458
    %v3137 = vunpack.c.l.b16 %v2459
    %v3138 = vunpack.c.h.b16 %v2459
    %v3139 = vunpack.c.l.b16 %v2460
    %v3140 = vunpack.c.h.b16 %v2460
    %v3141 = vunpack.c.l.b16 %v2461
    %v3142 = vunpack.c.h.b16 %v2461
    %v3143 = vunpack.c.l.b16 %v2462
    %v3144 = vunpack.c.h.b16 %v2462
    %v3145 = vunpack.c.l.b16 %v2463
    %v3146 = vunpack.c.h.b16 %v2463
    %v3147 = vunpack.c.l.b16 %v2464
    %v3148 = vunpack.c.h.b16 %v2464
    %v3149 = vunpack.c.l.b16 %v2465
    %v3150 = vunpack.c.h.b16 %v2465
    %v3151 = vunpack.c.l.b16 %v2466
    %v3152 = vunpack.c.h.b16 %v2466
    %v3153 = vpack.c.b16 %v3033, %v3025
    %v3154 = vpack.c.b16 %v3034, %v3026
    %v3155 = vpack.c.b16 %v3035, %v3027
    %v3156 = vpack.c.b16 %v3036, %v3028
    %v3157 = vpack.c.b16 %v3037, %v3029
    %v3158 = vpack.c.b16 %v3038, %v3030
    %v3159 = vpack.c.b16 %v3039, %v3031
    %v3160 = vpack.c.b16 %v3040, %v3032
    %v3161 = vpack.c.b16 %v3049, %v3041
    %v3162 = vpack.c.b16 %v3050, %v3042
    %v3163 = vpack.c.b16 %v3051, %v3043
    %v3164 = vpack.c.b16 %v3052, %v3044
    %v3165 = vpack.c.b16 %v3053, %v3045
    %v3166 = vpack.c.b16 %v3054, %v3046
    %v3167 = vpack.c.b16 %v3055, %v3047
    %v3168 = vpack.c.b16 %v3056, %v3048
    %v3169 = vpack.c.b16 %v3065, %v3057
    %v3170 = vpack.c.b16 %v3066, %v3058
    %v3171 = vpack.c.b16 %v3067, %v3059
    %v3172 = vpack.c.b16 %v3068, %v3060
    %v3173 = vpack.c.b16 %v3069, %v3061
    %v3174 = vpack.c.b16 %v3070, %v3062
    %v3175 = vpack.c.b16 %v3071, %v3063
    %v3176 = vpack.c.b16 %v3072, %v3064
    %v3177 = vpack.c.b16 %v3081, %v3073
    %v3178 = vpack.c.b16 %v3082, %v3074
    %v3179 = vpack.c.b16 %v3083, %v3075
    %v3180 = vpack.c.b16 %v3084, %v3076
    %v3181 = vpack.c.b16 %v3085, %v3077
    %v3182 = vpack.c.b16 %v3086, %v3078
    %v3183 = vpack.c.b16 %v3087, %v3079
    %v3184 = vpack.c.b16 %v3088, %v3080
    %v3185 = vpack.c.b16 %v3097, %v3089
    %v3186 = vpack.c.b16 %v3098, %v3090
    %v3187 = vpack.c.b16 %v3099, %v3091
    %v3188 = vpack.c.b16 %v3100, %v3092
    %v3189 = vpack.c.b16 %v3101, %v3093
    %v3190 = vpack.c.b16 %v3102, %v3094
    %v3191 = vpack.c.b16 %v3103, %v3095
    %v3192 = vpack.c.b16 %v3104, %v3096
    %v3193 = vpack.c.b16 %v3113, %v3105
    %v3194 = vpack.c.b16 %v3114, %v3106
    %v3195 = vpack.c.b16 %v3115, %v3107
    %v3196 = vpack.c.b16 %v3116, %v3108
    %v3197 = vpack.c.b16 %v3117, %v3109
    %v3198 = vpack.c.b16 %v3118, %v3110
    %v3199 = vpack.c.b16 %v3119, %v3111
    %v3200 = vpack.c.b16 %v3120, %v3112
    %v3201 = vpack.c.b16 %v3129, %v3121
    %v3202 = vpack.c.b16 %v3130, %v3122
    %v3203 = vpack.c.b16 %v3131, %v3123
    %v3204 = vpack.c.b16 %v3132, %v3124
    %v3205 = vpack.c.b16 %v3133, %v3125
    %v3206 = vpack.c.b16 %v3134, %v3126
    %v3207 = vpack.c.b16 %v3135, %v3127
    %v3208 = vpack.c.b16 %v3136, %v3128
    %v3209 = vpack.c.b16 %v3145, %v3137
    %v3210 = vpack.c.b16 %v3146, %v3138
    %v3211 = vpack.c.b16 %v3147, %v3139
    %v3212 = vpack.c.b16 %v3148, %v3140
    %v3213 = vpack.c.b16 %v3149, %v3141
    %v3214 = vpack.c.b16 %v3150, %v3142
    %v3215 = vpack.c.b16 %v3151, %v3143
    %v3216 = vpack.c.b16 %v3152, %v3144
    %3281 = vmatpush.bf16.msra.mxu0 %v3209
    %3282 = vmatpush.bf16.msra.mxu0 %v3201
    %3283 = vmatpush.bf16.msra.mxu0 %v3193
    %3284 = vmatpush.bf16.msra.mxu0 %v3185
    %3285 = vmatpush.bf16.msra.mxu0 %v3177
    %3286 = vmatpush.bf16.msra.mxu0 %v3169
    %3287 = vmatpush.bf16.msra.mxu0 %v3161
    %3288 = vmatpush.bf16.msra.mxu0 %v3153
    %3289 = vmatmul.bf16.gmra.mxu0 %v2402
    %v3290 = vpop.f32.mrf.mxu0
    %v3291 = vadd.f32 %v2867, %v3290
    %v3292 = vpop.f32.mrf.mxu0
    %3293 = vdwg.mxu0
    %3294 = vmatpush.bf16.msra.mxu0 %v3210
    %3295 = vmatpush.bf16.msra.mxu0 %v3202
    %3296 = vmatpush.bf16.msra.mxu0 %v3194
    %3297 = vmatpush.bf16.msra.mxu0 %v3186
    %3298 = vmatpush.bf16.msra.mxu0 %v3178
    %3299 = vmatpush.bf16.msra.mxu0 %v3170
    %3300 = vmatpush.bf16.msra.mxu0 %v3162
    %3301 = vmatpush.bf16.msra.mxu0 %v3154
    %3302 = vmatmul.bf16.gmra.mxu0 %v2402
    %v3303 = vpop.f32.mrf.mxu0
    %v3304 = vadd.f32 %v2880, %v3303
    %v3305 = vpop.f32.mrf.mxu0
    %3306 = vdwg.mxu0
    %3307 = vmatpush.bf16.msra.mxu0 %v3211
    %3308 = vmatpush.bf16.msra.mxu0 %v3203
    %3309 = vmatpush.bf16.msra.mxu0 %v3195
    %3310 = vmatpush.bf16.msra.mxu0 %v3187
    %3311 = vmatpush.bf16.msra.mxu0 %v3179
    %3312 = vmatpush.bf16.msra.mxu0 %v3171
    %3313 = vmatpush.bf16.msra.mxu0 %v3163
    %3314 = vmatpush.bf16.msra.mxu0 %v3155
    %3315 = vmatmul.bf16.gmra.mxu0 %v2402
    %v3316 = vpop.f32.mrf.mxu0
    %v3317 = vadd.f32 %v2893, %v3316
    %v3318 = vpop.f32.mrf.mxu0
    %3319 = vdwg.mxu0
    %3320 = vmatpush.bf16.msra.mxu0 %v3212
    %3321 = vmatpush.bf16.msra.mxu0 %v3204
    %3322 = vmatpush.bf16.msra.mxu0 %v3196
    %3323 = vmatpush.bf16.msra.mxu0 %v3188
    %3324 = vmatpush.bf16.msra.mxu0 %v3180
    %3325 = vmatpush.bf16.msra.mxu0 %v3172
    %3326 = vmatpush.bf16.msra.mxu0 %v3164
    %3327 = vmatpush.bf16.msra.mxu0 %v3156
    %3328 = vmatmul.bf16.gmra.mxu0 %v2402
    %v3329 = vpop.f32.mrf.mxu0
    %v3330 = vadd.f32 %v2906, %v3329
    %v3331 = vpop.f32.mrf.mxu0
    %3332 = vdwg.mxu0
    %3333 = vmatpush.bf16.msra.mxu0 %v3213
    %3334 = vmatpush.bf16.msra.mxu0 %v3205
    %3335 = vmatpush.bf16.msra.mxu0 %v3197
    %3336 = vmatpush.bf16.msra.mxu0 %v3189
    %3337 = vmatpush.bf16.msra.mxu0 %v3181
    %3338 = vmatpush.bf16.msra.mxu0 %v3173
    %3339 = vmatpush.bf16.msra.mxu0 %v3165
    %3340 = vmatpush.bf16.msra.mxu0 %v3157
    %3341 = vmatmul.bf16.gmra.mxu0 %v2402
    %v3342 = vpop.f32.mrf.mxu0
    %v3343 = vadd.f32 %v2919, %v3342
    %v3344 = vpop.f32.mrf.mxu0
    %3345 = vdwg.mxu0
    %3346 = vmatpush.bf16.msra.mxu0 %v3214
    %3347 = vmatpush.bf16.msra.mxu0 %v3206
    %3348 = vmatpush.bf16.msra.mxu0 %v3198
    %3349 = vmatpush.bf16.msra.mxu0 %v3190
    %3350 = vmatpush.bf16.msra.mxu0 %v3182
    %3351 = vmatpush.bf16.msra.mxu0 %v3174
    %3352 = vmatpush.bf16.msra.mxu0 %v3166
    %3353 = vmatpush.bf16.msra.mxu0 %v3158
    %3354 = vmatmul.bf16.gmra.mxu0 %v2402
    %v3355 = vpop.f32.mrf.mxu0
    %v3356 = vadd.f32 %v2932, %v3355
    %v3357 = vpop.f32.mrf.mxu0
    %3358 = vdwg.mxu0
    %3359 = vmatpush.bf16.msra.mxu0 %v3215
    %3360 = vmatpush.bf16.msra.mxu0 %v3207
    %3361 = vmatpush.bf16.msra.mxu0 %v3199
    %3362 = vmatpush.bf16.msra.mxu0 %v3191
    %3363 = vmatpush.bf16.msra.mxu0 %v3183
    %3364 = vmatpush.bf16.msra.mxu0 %v3175
    %3365 = vmatpush.bf16.msra.mxu0 %v3167
    %3366 = vmatpush.bf16.msra.mxu0 %v3159
    %3367 = vmatmul.bf16.gmra.mxu0 %v2402
    %v3368 = vpop.f32.mrf.mxu0
    %v3369 = vadd.f32 %v2945, %v3368
    %v3370 = vpop.f32.mrf.mxu0
    %3371 = vdwg.mxu0
    %3372 = vmatpush.bf16.msra.mxu0 %v3216
    %3373 = vmatpush.bf16.msra.mxu0 %v3208
    %3374 = vmatpush.bf16.msra.mxu0 %v3200
    %3375 = vmatpush.bf16.msra.mxu0 %v3192
    %3376 = vmatpush.bf16.msra.mxu0 %v3184
    %3377 = vmatpush.bf16.msra.mxu0 %v3176
    %3378 = vmatpush.bf16.msra.mxu0 %v3168
    %3379 = vmatpush.bf16.msra.mxu0 %v3160
    %3380 = vmatmul.bf16.gmra.mxu0 %v2402
    %v3381 = vpop.f32.mrf.mxu0
    %v3382 = vadd.f32 %v2958, %v3381
    %v3383 = vpop.f32.mrf.mxu0
    %3384 = vdwg.mxu0
    %v3385 = vrot.slane %v2387, 2
    %v3387 = vrot.slane %v2395, 1
    %v3389 = vsel %vm2400, %v3385, %v3387
    %v3390 = vpack.c.bf16 %v3389, %v3389
    %s3391 = scalar_lea.vmem [#allocation22], 1024
    %v3392 = vld [vmem:[%s3391] sm:$0xff]
    %v3393 = vld [vmem:[%s3391 + $0x8] sm:$0xff]
    %v3394 = vld [vmem:[%s3391 + $0x10] sm:$0xff]
    %v3395 = vld [vmem:[%s3391 + $0x18] sm:$0xff]
    %v3396 = vld [vmem:[%s3391 + $0x20] sm:$0xff]
    %v3397 = vld [vmem:[%s3391 + $0x28] sm:$0xff]
    %v3398 = vld [vmem:[%s3391 + $0x30] sm:$0xff]
    %v3399 = vld [vmem:[%s3391 + $0x38] sm:$0xff]
    %v3400 = vld [vmem:[%s3391 + $0x40] sm:$0xff]
    %v3401 = vld [vmem:[%s3391 + $0x48] sm:$0xff]
    %v3402 = vld [vmem:[%s3391 + $0x50] sm:$0xff]
    %v3403 = vld [vmem:[%s3391 + $0x58] sm:$0xff]
    %v3404 = vld [vmem:[%s3391 + $0x60] sm:$0xff]
    %v3405 = vld [vmem:[%s3391 + $0x68] sm:$0xff]
    %v3406 = vld [vmem:[%s3391 + $0x70] sm:$0xff]
    %v3407 = vld [vmem:[%s3391 + $0x78] sm:$0xff]
    %v3408 = vld [vmem:[%s3391 + $0x80] sm:$0xff]
    %v3409 = vld [vmem:[%s3391 + $0x88] sm:$0xff]
    %v3410 = vld [vmem:[%s3391 + $0x90] sm:$0xff]
    %v3411 = vld [vmem:[%s3391 + $0x98] sm:$0xff]
    %v3412 = vld [vmem:[%s3391 + $0xa0] sm:$0xff]
    %v3413 = vld [vmem:[%s3391 + $0xa8] sm:$0xff]
    %v3414 = vld [vmem:[%s3391 + $0xb0] sm:$0xff]
    %v3415 = vld [vmem:[%s3391 + $0xb8] sm:$0xff]
    %v3416 = vld [vmem:[%s3391 + $0xc0] sm:$0xff]
    %v3417 = vld [vmem:[%s3391 + $0xc8] sm:$0xff]
    %v3418 = vld [vmem:[%s3391 + $0xd0] sm:$0xff]
    %v3419 = vld [vmem:[%s3391 + $0xd8] sm:$0xff]
    %v3420 = vld [vmem:[%s3391 + $0xe0] sm:$0xff]
    %v3421 = vld [vmem:[%s3391 + $0xe8] sm:$0xff]
    %v3422 = vld [vmem:[%s3391 + $0xf0] sm:$0xff]
    %v3423 = vld [vmem:[%s3391 + $0xf8] sm:$0xff]
    %v3424 = vld [vmem:[%s3391 + $0x100] sm:$0xff]
    %v3425 = vld [vmem:[%s3391 + $0x108] sm:$0xff]
    %v3426 = vld [vmem:[%s3391 + $0x110] sm:$0xff]
    %v3427 = vld [vmem:[%s3391 + $0x118] sm:$0xff]
    %v3428 = vld [vmem:[%s3391 + $0x120] sm:$0xff]
    %v3429 = vld [vmem:[%s3391 + $0x128] sm:$0xff]
    %v3430 = vld [vmem:[%s3391 + $0x130] sm:$0xff]
    %v3431 = vld [vmem:[%s3391 + $0x138] sm:$0xff]
    %v3432 = vld [vmem:[%s3391 + $0x140] sm:$0xff]
    %v3433 = vld [vmem:[%s3391 + $0x148] sm:$0xff]
    %v3434 = vld [vmem:[%s3391 + $0x150] sm:$0xff]
    %v3435 = vld [vmem:[%s3391 + $0x158] sm:$0xff]
    %v3436 = vld [vmem:[%s3391 + $0x160] sm:$0xff]
    %v3437 = vld [vmem:[%s3391 + $0x168] sm:$0xff]
    %v3438 = vld [vmem:[%s3391 + $0x170] sm:$0xff]
    %v3439 = vld [vmem:[%s3391 + $0x178] sm:$0xff]
    %v3440 = vld [vmem:[%s3391 + $0x180] sm:$0xff]
    %v3441 = vld [vmem:[%s3391 + $0x188] sm:$0xff]
    %v3442 = vld [vmem:[%s3391 + $0x190] sm:$0xff]
    %v3443 = vld [vmem:[%s3391 + $0x198] sm:$0xff]
    %v3444 = vld [vmem:[%s3391 + $0x1a0] sm:$0xff]
    %v3445 = vld [vmem:[%s3391 + $0x1a8] sm:$0xff]
    %v3446 = vld [vmem:[%s3391 + $0x1b0] sm:$0xff]
    %v3447 = vld [vmem:[%s3391 + $0x1b8] sm:$0xff]
    %v3448 = vld [vmem:[%s3391 + $0x1c0] sm:$0xff]
    %v3449 = vld [vmem:[%s3391 + $0x1c8] sm:$0xff]
    %v3450 = vld [vmem:[%s3391 + $0x1d0] sm:$0xff]
    %v3451 = vld [vmem:[%s3391 + $0x1d8] sm:$0xff]
    %v3452 = vld [vmem:[%s3391 + $0x1e0] sm:$0xff]
    %v3453 = vld [vmem:[%s3391 + $0x1e8] sm:$0xff]
    %v3454 = vld [vmem:[%s3391 + $0x1f0] sm:$0xff]
    %v3455 = vld [vmem:[%s3391 + $0x1f8] sm:$0xff]
    %v3520 = vunpack.c.l.b16 %v3392
    %v3521 = vunpack.c.h.b16 %v3392
    %v3522 = vunpack.c.l.b16 %v3393
    %v3523 = vunpack.c.h.b16 %v3393
    %v3524 = vunpack.c.l.b16 %v3394
    %v3525 = vunpack.c.h.b16 %v3394
    %v3526 = vunpack.c.l.b16 %v3395
    %v3527 = vunpack.c.h.b16 %v3395
    %v3528 = vunpack.c.l.b16 %v3396
    %v3529 = vunpack.c.h.b16 %v3396
    %v3530 = vunpack.c.l.b16 %v3397
    %v3531 = vunpack.c.h.b16 %v3397
    %v3532 = vunpack.c.l.b16 %v3398
    %v3533 = vunpack.c.h.b16 %v3398
    %v3534 = vunpack.c.l.b16 %v3399
    %v3535 = vunpack.c.h.b16 %v3399
    %v3536 = vunpack.c.l.b16 %v3400
    %v3537 = vunpack.c.h.b16 %v3400
    %v3538 = vunpack.c.l.b16 %v3401
    %v3539 = vunpack.c.h.b16 %v3401
    %v3540 = vunpack.c.l.b16 %v3402
    %v3541 = vunpack.c.h.b16 %v3402
    %v3542 = vunpack.c.l.b16 %v3403
    %v3543 = vunpack.c.h.b16 %v3403
    %v3544 = vunpack.c.l.b16 %v3404
    %v3545 = vunpack.c.h.b16 %v3404
    %v3546 = vunpack.c.l.b16 %v3405
    %v3547 = vunpack.c.h.b16 %v3405
    %v3548 = vunpack.c.l.b16 %v3406
    %v3549 = vunpack.c.h.b16 %v3406
    %v3550 = vunpack.c.l.b16 %v3407
    %v3551 = vunpack.c.h.b16 %v3407
    %v3552 = vunpack.c.l.b16 %v3408
    %v3553 = vunpack.c.h.b16 %v3408
    %v3554 = vunpack.c.l.b16 %v3409
    %v3555 = vunpack.c.h.b16 %v3409
    %v3556 = vunpack.c.l.b16 %v3410
    %v3557 = vunpack.c.h.b16 %v3410
    %v3558 = vunpack.c.l.b16 %v3411
    %v3559 = vunpack.c.h.b16 %v3411
    %v3560 = vunpack.c.l.b16 %v3412
    %v3561 = vunpack.c.h.b16 %v3412
    %v3562 = vunpack.c.l.b16 %v3413
    %v3563 = vunpack.c.h.b16 %v3413
    %v3564 = vunpack.c.l.b16 %v3414
    %v3565 = vunpack.c.h.b16 %v3414
    %v3566 = vunpack.c.l.b16 %v3415
    %v3567 = vunpack.c.h.b16 %v3415
    %v3568 = vunpack.c.l.b16 %v3416
    %v3569 = vunpack.c.h.b16 %v3416
    %v3570 = vunpack.c.l.b16 %v3417
    %v3571 = vunpack.c.h.b16 %v3417
    %v3572 = vunpack.c.l.b16 %v3418
    %v3573 = vunpack.c.h.b16 %v3418
    %v3574 = vunpack.c.l.b16 %v3419
    %v3575 = vunpack.c.h.b16 %v3419
    %v3576 = vunpack.c.l.b16 %v3420
    %v3577 = vunpack.c.h.b16 %v3420
    %v3578 = vunpack.c.l.b16 %v3421
    %v3579 = vunpack.c.h.b16 %v3421
    %v3580 = vunpack.c.l.b16 %v3422
    %v3581 = vunpack.c.h.b16 %v3422
    %v3582 = vunpack.c.l.b16 %v3423
    %v3583 = vunpack.c.h.b16 %v3423
    %v3584 = vunpack.c.l.b16 %v3424
    %v3585 = vunpack.c.h.b16 %v3424
    %v3586 = vunpack.c.l.b16 %v3425
    %v3587 = vunpack.c.h.b16 %v3425
    %v3588 = vunpack.c.l.b16 %v3426
    %v3589 = vunpack.c.h.b16 %v3426
    %v3590 = vunpack.c.l.b16 %v3427
    %v3591 = vunpack.c.h.b16 %v3427
    %v3592 = vunpack.c.l.b16 %v3428
    %v3593 = vunpack.c.h.b16 %v3428
    %v3594 = vunpack.c.l.b16 %v3429
    %v3595 = vunpack.c.h.b16 %v3429
    %v3596 = vunpack.c.l.b16 %v3430
    %v3597 = vunpack.c.h.b16 %v3430
    %v3598 = vunpack.c.l.b16 %v3431
    %v3599 = vunpack.c.h.b16 %v3431
    %v3600 = vunpack.c.l.b16 %v3432
    %v3601 = vunpack.c.h.b16 %v3432
    %v3602 = vunpack.c.l.b16 %v3433
    %v3603 = vunpack.c.h.b16 %v3433
    %v3604 = vunpack.c.l.b16 %v3434
    %v3605 = vunpack.c.h.b16 %v3434
    %v3606 = vunpack.c.l.b16 %v3435
    %v3607 = vunpack.c.h.b16 %v3435
    %v3608 = vunpack.c.l.b16 %v3436
    %v3609 = vunpack.c.h.b16 %v3436
    %v3610 = vunpack.c.l.b16 %v3437
    %v3611 = vunpack.c.h.b16 %v3437
    %v3612 = vunpack.c.l.b16 %v3438
    %v3613 = vunpack.c.h.b16 %v3438
    %v3614 = vunpack.c.l.b16 %v3439
    %v3615 = vunpack.c.h.b16 %v3439
    %v3616 = vunpack.c.l.b16 %v3440
    %v3617 = vunpack.c.h.b16 %v3440
    %v3618 = vunpack.c.l.b16 %v3441
    %v3619 = vunpack.c.h.b16 %v3441
    %v3620 = vunpack.c.l.b16 %v3442
    %v3621 = vunpack.c.h.b16 %v3442
    %v3622 = vunpack.c.l.b16 %v3443
    %v3623 = vunpack.c.h.b16 %v3443
    %v3624 = vunpack.c.l.b16 %v3444
    %v3625 = vunpack.c.h.b16 %v3444
    %v3626 = vunpack.c.l.b16 %v3445
    %v3627 = vunpack.c.h.b16 %v3445
    %v3628 = vunpack.c.l.b16 %v3446
    %v3629 = vunpack.c.h.b16 %v3446
    %v3630 = vunpack.c.l.b16 %v3447
    %v3631 = vunpack.c.h.b16 %v3447
    %v3632 = vunpack.c.l.b16 %v3448
    %v3633 = vunpack.c.h.b16 %v3448
    %v3634 = vunpack.c.l.b16 %v3449
    %v3635 = vunpack.c.h.b16 %v3449
    %v3636 = vunpack.c.l.b16 %v3450
    %v3637 = vunpack.c.h.b16 %v3450
    %v3638 = vunpack.c.l.b16 %v3451
    %v3639 = vunpack.c.h.b16 %v3451
    %v3640 = vunpack.c.l.b16 %v3452
    %v3641 = vunpack.c.h.b16 %v3452
    %v3642 = vunpack.c.l.b16 %v3453
    %v3643 = vunpack.c.h.b16 %v3453
    %v3644 = vunpack.c.l.b16 %v3454
    %v3645 = vunpack.c.h.b16 %v3454
    %v3646 = vunpack.c.l.b16 %v3455
    %v3647 = vunpack.c.h.b16 %v3455
    %v3648 = vpack.c.b16 %v3528, %v3520
    %v3649 = vpack.c.b16 %v3529, %v3521
    %v3650 = vpack.c.b16 %v3530, %v3522
    %v3651 = vpack.c.b16 %v3531, %v3523
    %v3652 = vpack.c.b16 %v3532, %v3524
    %v3653 = vpack.c.b16 %v3533, %v3525
    %v3654 = vpack.c.b16 %v3534, %v3526
    %v3655 = vpack.c.b16 %v3535, %v3527
    %v3656 = vpack.c.b16 %v3544, %v3536
    %v3657 = vpack.c.b16 %v3545, %v3537
    %v3658 = vpack.c.b16 %v3546, %v3538
    %v3659 = vpack.c.b16 %v3547, %v3539
    %v3660 = vpack.c.b16 %v3548, %v3540
    %v3661 = vpack.c.b16 %v3549, %v3541
    %v3662 = vpack.c.b16 %v3550, %v3542
    %v3663 = vpack.c.b16 %v3551, %v3543
    %v3664 = vpack.c.b16 %v3560, %v3552
    %v3665 = vpack.c.b16 %v3561, %v3553
    %v3666 = vpack.c.b16 %v3562, %v3554
    %v3667 = vpack.c.b16 %v3563, %v3555
    %v3668 = vpack.c.b16 %v3564, %v3556
    %v3669 = vpack.c.b16 %v3565, %v3557
    %v3670 = vpack.c.b16 %v3566, %v3558
    %v3671 = vpack.c.b16 %v3567, %v3559
    %v3672 = vpack.c.b16 %v3576, %v3568
    %v3673 = vpack.c.b16 %v3577, %v3569
    %v3674 = vpack.c.b16 %v3578, %v3570
    %v3675 = vpack.c.b16 %v3579, %v3571
    %v3676 = vpack.c.b16 %v3580, %v3572
    %v3677 = vpack.c.b16 %v3581, %v3573
    %v3678 = vpack.c.b16 %v3582, %v3574
    %v3679 = vpack.c.b16 %v3583, %v3575
    %v3680 = vpack.c.b16 %v3592, %v3584
    %v3681 = vpack.c.b16 %v3593, %v3585
    %v3682 = vpack.c.b16 %v3594, %v3586
    %v3683 = vpack.c.b16 %v3595, %v3587
    %v3684 = vpack.c.b16 %v3596, %v3588
    %v3685 = vpack.c.b16 %v3597, %v3589
    %v3686 = vpack.c.b16 %v3598, %v3590
    %v3687 = vpack.c.b16 %v3599, %v3591
    %v3688 = vpack.c.b16 %v3608, %v3600
    %v3689 = vpack.c.b16 %v3609, %v3601
    %v3690 = vpack.c.b16 %v3610, %v3602
    %v3691 = vpack.c.b16 %v3611, %v3603
    %v3692 = vpack.c.b16 %v3612, %v3604
    %v3693 = vpack.c.b16 %v3613, %v3605
    %v3694 = vpack.c.b16 %v3614, %v3606
    %v3695 = vpack.c.b16 %v3615, %v3607
    %v3696 = vpack.c.b16 %v3624, %v3616
    %v3697 = vpack.c.b16 %v3625, %v3617
    %v3698 = vpack.c.b16 %v3626, %v3618
    %v3699 = vpack.c.b16 %v3627, %v3619
    %v3700 = vpack.c.b16 %v3628, %v3620
    %v3701 = vpack.c.b16 %v3629, %v3621
    %v3702 = vpack.c.b16 %v3630, %v3622
    %v3703 = vpack.c.b16 %v3631, %v3623
    %v3704 = vpack.c.b16 %v3640, %v3632
    %v3705 = vpack.c.b16 %v3641, %v3633
    %v3706 = vpack.c.b16 %v3642, %v3634
    %v3707 = vpack.c.b16 %v3643, %v3635
    %v3708 = vpack.c.b16 %v3644, %v3636
    %v3709 = vpack.c.b16 %v3645, %v3637
    %v3710 = vpack.c.b16 %v3646, %v3638
    %v3711 = vpack.c.b16 %v3647, %v3639
    %3776 = vmatpush.bf16.msra.mxu0 %v3704
    %3777 = vmatpush.bf16.msra.mxu0 %v3696
    %3778 = vmatpush.bf16.msra.mxu0 %v3688
    %3779 = vmatpush.bf16.msra.mxu0 %v3680
    %3780 = vmatpush.bf16.msra.mxu0 %v3672
    %3781 = vmatpush.bf16.msra.mxu0 %v3664
    %3782 = vmatpush.bf16.msra.mxu0 %v3656
    %3783 = vmatpush.bf16.msra.mxu0 %v3648
    %3784 = vmatmul.bf16.gmra.mxu0 %v3390
    %v3785 = vpop.f32.mrf.mxu0
    %v3786 = vadd.f32 0.0, %v3785
    %v3787 = vpop.f32.mrf.mxu0
    %3788 = vdwg.mxu0
    %3789 = vmatpush.bf16.msra.mxu0 %v3705
    %3790 = vmatpush.bf16.msra.mxu0 %v3697
    %3791 = vmatpush.bf16.msra.mxu0 %v3689
    %3792 = vmatpush.bf16.msra.mxu0 %v3681
    %3793 = vmatpush.bf16.msra.mxu0 %v3673
    %3794 = vmatpush.bf16.msra.mxu0 %v3665
    %3795 = vmatpush.bf16.msra.mxu0 %v3657
    %3796 = vmatpush.bf16.msra.mxu0 %v3649
    %3797 = vmatmul.bf16.gmra.mxu0 %v3390
    %v3798 = vpop.f32.mrf.mxu0
    %v3799 = vadd.f32 0.0, %v3798
    %v3800 = vpop.f32.mrf.mxu0
    %3801 = vdwg.mxu0
    %3802 = vmatpush.bf16.msra.mxu0 %v3706
    %3803 = vmatpush.bf16.msra.mxu0 %v3698
    %3804 = vmatpush.bf16.msra.mxu0 %v3690
    %3805 = vmatpush.bf16.msra.mxu0 %v3682
    %3806 = vmatpush.bf16.msra.mxu0 %v3674
    %3807 = vmatpush.bf16.msra.mxu0 %v3666
    %3808 = vmatpush.bf16.msra.mxu0 %v3658
    %3809 = vmatpush.bf16.msra.mxu0 %v3650
    %3810 = vmatmul.bf16.gmra.mxu0 %v3390
    %v3811 = vpop.f32.mrf.mxu0
    %v3812 = vadd.f32 0.0, %v3811
    %v3813 = vpop.f32.mrf.mxu0
    %3814 = vdwg.mxu0
    %3815 = vmatpush.bf16.msra.mxu0 %v3707
    %3816 = vmatpush.bf16.msra.mxu0 %v3699
    %3817 = vmatpush.bf16.msra.mxu0 %v3691
    %3818 = vmatpush.bf16.msra.mxu0 %v3683
    %3819 = vmatpush.bf16.msra.mxu0 %v3675
    %3820 = vmatpush.bf16.msra.mxu0 %v3667
    %3821 = vmatpush.bf16.msra.mxu0 %v3659
    %3822 = vmatpush.bf16.msra.mxu0 %v3651
    %3823 = vmatmul.bf16.gmra.mxu0 %v3390
    %v3824 = vpop.f32.mrf.mxu0
    %v3825 = vadd.f32 0.0, %v3824
    %v3826 = vpop.f32.mrf.mxu0
    %3827 = vdwg.mxu0
    %3828 = vmatpush.bf16.msra.mxu0 %v3708
    %3829 = vmatpush.bf16.msra.mxu0 %v3700
    %3830 = vmatpush.bf16.msra.mxu0 %v3692
    %3831 = vmatpush.bf16.msra.mxu0 %v3684
    %3832 = vmatpush.bf16.msra.mxu0 %v3676
    %3833 = vmatpush.bf16.msra.mxu0 %v3668
    %3834 = vmatpush.bf16.msra.mxu0 %v3660
    %3835 = vmatpush.bf16.msra.mxu0 %v3652
    %3836 = vmatmul.bf16.gmra.mxu0 %v3390
    %v3837 = vpop.f32.mrf.mxu0
    %v3838 = vadd.f32 0.0, %v3837
    %v3839 = vpop.f32.mrf.mxu0
    %3840 = vdwg.mxu0
    %3841 = vmatpush.bf16.msra.mxu0 %v3709
    %3842 = vmatpush.bf16.msra.mxu0 %v3701
    %3843 = vmatpush.bf16.msra.mxu0 %v3693
    %3844 = vmatpush.bf16.msra.mxu0 %v3685
    %3845 = vmatpush.bf16.msra.mxu0 %v3677
    %3846 = vmatpush.bf16.msra.mxu0 %v3669
    %3847 = vmatpush.bf16.msra.mxu0 %v3661
    %3848 = vmatpush.bf16.msra.mxu0 %v3653
    %3849 = vmatmul.bf16.gmra.mxu0 %v3390
    %v3850 = vpop.f32.mrf.mxu0
    %v3851 = vadd.f32 0.0, %v3850
    %v3852 = vpop.f32.mrf.mxu0
    %3853 = vdwg.mxu0
    %3854 = vmatpush.bf16.msra.mxu0 %v3710
    %3855 = vmatpush.bf16.msra.mxu0 %v3702
    %3856 = vmatpush.bf16.msra.mxu0 %v3694
    %3857 = vmatpush.bf16.msra.mxu0 %v3686
    %3858 = vmatpush.bf16.msra.mxu0 %v3678
    %3859 = vmatpush.bf16.msra.mxu0 %v3670
    %3860 = vmatpush.bf16.msra.mxu0 %v3662
    %3861 = vmatpush.bf16.msra.mxu0 %v3654
    %3862 = vmatmul.bf16.gmra.mxu0 %v3390
    %v3863 = vpop.f32.mrf.mxu0
    %v3864 = vadd.f32 0.0, %v3863
    %v3865 = vpop.f32.mrf.mxu0
    %3866 = vdwg.mxu0
    %3867 = vmatpush.bf16.msra.mxu0 %v3711
    %3868 = vmatpush.bf16.msra.mxu0 %v3703
    %3869 = vmatpush.bf16.msra.mxu0 %v3695
    %3870 = vmatpush.bf16.msra.mxu0 %v3687
    %3871 = vmatpush.bf16.msra.mxu0 %v3679
    %3872 = vmatpush.bf16.msra.mxu0 %v3671
    %3873 = vmatpush.bf16.msra.mxu0 %v3663
    %3874 = vmatpush.bf16.msra.mxu0 %v3655
    %3875 = vmatmul.bf16.gmra.mxu0 %v3390
    %v3876 = vpop.f32.mrf.mxu0
    %v3877 = vadd.f32 0.0, %v3876
    %v3878 = vpop.f32.mrf.mxu0
    %3879 = vdwg.mxu0
    %v3880 = vadd.f32 %v3291, %v3786
    %v3881 = vadd.f32 %v3304, %v3799
    %v3882 = vadd.f32 %v3317, %v3812
    %v3883 = vadd.f32 %v3330, %v3825
    %v3884 = vadd.f32 %v3343, %v3838
    %v3885 = vadd.f32 %v3356, %v3851
    %v3886 = vadd.f32 %v3369, %v3864
    %v3887 = vadd.f32 %v3382, %v3877
    %v3888 = vrot.slane %v2387, 3
    %v3890 = vrot.slane %v2395, 2
    %v3892 = vsel %vm2400, %v3888, %v3890
    %v3893 = vpack.c.bf16 %v3892, %v3892
    %s3894 = scalar_lea.vmem [#allocation22], 1536
    %v3895 = vld [vmem:[%s3894] sm:$0xff]
    %v3896 = vld [vmem:[%s3894 + $0x8] sm:$0xff]
    %v3897 = vld [vmem:[%s3894 + $0x10] sm:$0xff]
    %v3898 = vld [vmem:[%s3894 + $0x18] sm:$0xff]
    %v3899 = vld [vmem:[%s3894 + $0x20] sm:$0xff]
    %v3900 = vld [vmem:[%s3894 + $0x28] sm:$0xff]
    %v3901 = vld [vmem:[%s3894 + $0x30] sm:$0xff]
    %v3902 = vld [vmem:[%s3894 + $0x38] sm:$0xff]
    %v3903 = vld [vmem:[%s3894 + $0x40] sm:$0xff]
    %v3904 = vld [vmem:[%s3894 + $0x48] sm:$0xff]
    %v3905 = vld [vmem:[%s3894 + $0x50] sm:$0xff]
    %v3906 = vld [vmem:[%s3894 + $0x58] sm:$0xff]
    %v3907 = vld [vmem:[%s3894 + $0x60] sm:$0xff]
    %v3908 = vld [vmem:[%s3894 + $0x68] sm:$0xff]
    %v3909 = vld [vmem:[%s3894 + $0x70] sm:$0xff]
    %v3910 = vld [vmem:[%s3894 + $0x78] sm:$0xff]
    %v3911 = vld [vmem:[%s3894 + $0x80] sm:$0xff]
    %v3912 = vld [vmem:[%s3894 + $0x88] sm:$0xff]
    %v3913 = vld [vmem:[%s3894 + $0x90] sm:$0xff]
    %v3914 = vld [vmem:[%s3894 + $0x98] sm:$0xff]
    %v3915 = vld [vmem:[%s3894 + $0xa0] sm:$0xff]
    %v3916 = vld [vmem:[%s3894 + $0xa8] sm:$0xff]
    %v3917 = vld [vmem:[%s3894 + $0xb0] sm:$0xff]
    %v3918 = vld [vmem:[%s3894 + $0xb8] sm:$0xff]
    %v3919 = vld [vmem:[%s3894 + $0xc0] sm:$0xff]
    %v3920 = vld [vmem:[%s3894 + $0xc8] sm:$0xff]
    %v3921 = vld [vmem:[%s3894 + $0xd0] sm:$0xff]
    %v3922 = vld [vmem:[%s3894 + $0xd8] sm:$0xff]
    %v3923 = vld [vmem:[%s3894 + $0xe0] sm:$0xff]
    %v3924 = vld [vmem:[%s3894 + $0xe8] sm:$0xff]
    %v3925 = vld [vmem:[%s3894 + $0xf0] sm:$0xff]
    %v3926 = vld [vmem:[%s3894 + $0xf8] sm:$0xff]
    %v3927 = vld [vmem:[%s3894 + $0x100] sm:$0xff]
    %v3928 = vld [vmem:[%s3894 + $0x108] sm:$0xff]
    %v3929 = vld [vmem:[%s3894 + $0x110] sm:$0xff]
    %v3930 = vld [vmem:[%s3894 + $0x118] sm:$0xff]
    %v3931 = vld [vmem:[%s3894 + $0x120] sm:$0xff]
    %v3932 = vld [vmem:[%s3894 + $0x128] sm:$0xff]
    %v3933 = vld [vmem:[%s3894 + $0x130] sm:$0xff]
    %v3934 = vld [vmem:[%s3894 + $0x138] sm:$0xff]
    %v3935 = vld [vmem:[%s3894 + $0x140] sm:$0xff]
    %v3936 = vld [vmem:[%s3894 + $0x148] sm:$0xff]
    %v3937 = vld [vmem:[%s3894 + $0x150] sm:$0xff]
    %v3938 = vld [vmem:[%s3894 + $0x158] sm:$0xff]
    %v3939 = vld [vmem:[%s3894 + $0x160] sm:$0xff]
    %v3940 = vld [vmem:[%s3894 + $0x168] sm:$0xff]
    %v3941 = vld [vmem:[%s3894 + $0x170] sm:$0xff]
    %v3942 = vld [vmem:[%s3894 + $0x178] sm:$0xff]
    %v3943 = vld [vmem:[%s3894 + $0x180] sm:$0xff]
    %v3944 = vld [vmem:[%s3894 + $0x188] sm:$0xff]
    %v3945 = vld [vmem:[%s3894 + $0x190] sm:$0xff]
    %v3946 = vld [vmem:[%s3894 + $0x198] sm:$0xff]
    %v3947 = vld [vmem:[%s3894 + $0x1a0] sm:$0xff]
    %v3948 = vld [vmem:[%s3894 + $0x1a8] sm:$0xff]
    %v3949 = vld [vmem:[%s3894 + $0x1b0] sm:$0xff]
    %v3950 = vld [vmem:[%s3894 + $0x1b8] sm:$0xff]
    %v3951 = vld [vmem:[%s3894 + $0x1c0] sm:$0xff]
    %v3952 = vld [vmem:[%s3894 + $0x1c8] sm:$0xff]
    %v3953 = vld [vmem:[%s3894 + $0x1d0] sm:$0xff]
    %v3954 = vld [vmem:[%s3894 + $0x1d8] sm:$0xff]
    %v3955 = vld [vmem:[%s3894 + $0x1e0] sm:$0xff]
    %v3956 = vld [vmem:[%s3894 + $0x1e8] sm:$0xff]
    %v3957 = vld [vmem:[%s3894 + $0x1f0] sm:$0xff]
    %v3958 = vld [vmem:[%s3894 + $0x1f8] sm:$0xff]
    %v4023 = vunpack.c.l.b16 %v3895
    %v4024 = vunpack.c.h.b16 %v3895
    %v4025 = vunpack.c.l.b16 %v3896
    %v4026 = vunpack.c.h.b16 %v3896
    %v4027 = vunpack.c.l.b16 %v3897
    %v4028 = vunpack.c.h.b16 %v3897
    %v4029 = vunpack.c.l.b16 %v3898
    %v4030 = vunpack.c.h.b16 %v3898
    %v4031 = vunpack.c.l.b16 %v3899
    %v4032 = vunpack.c.h.b16 %v3899
    %v4033 = vunpack.c.l.b16 %v3900
    %v4034 = vunpack.c.h.b16 %v3900
    %v4035 = vunpack.c.l.b16 %v3901
    %v4036 = vunpack.c.h.b16 %v3901
    %v4037 = vunpack.c.l.b16 %v3902
    %v4038 = vunpack.c.h.b16 %v3902
    %v4039 = vunpack.c.l.b16 %v3903
    %v4040 = vunpack.c.h.b16 %v3903
    %v4041 = vunpack.c.l.b16 %v3904
    %v4042 = vunpack.c.h.b16 %v3904
    %v4043 = vunpack.c.l.b16 %v3905
    %v4044 = vunpack.c.h.b16 %v3905
    %v4045 = vunpack.c.l.b16 %v3906
    %v4046 = vunpack.c.h.b16 %v3906
    %v4047 = vunpack.c.l.b16 %v3907
    %v4048 = vunpack.c.h.b16 %v3907
    %v4049 = vunpack.c.l.b16 %v3908
    %v4050 = vunpack.c.h.b16 %v3908
    %v4051 = vunpack.c.l.b16 %v3909
    %v4052 = vunpack.c.h.b16 %v3909
    %v4053 = vunpack.c.l.b16 %v3910
    %v4054 = vunpack.c.h.b16 %v3910
    %v4055 = vunpack.c.l.b16 %v3911
    %v4056 = vunpack.c.h.b16 %v3911
    %v4057 = vunpack.c.l.b16 %v3912
    %v4058 = vunpack.c.h.b16 %v3912
    %v4059 = vunpack.c.l.b16 %v3913
    %v4060 = vunpack.c.h.b16 %v3913
    %v4061 = vunpack.c.l.b16 %v3914
    %v4062 = vunpack.c.h.b16 %v3914
    %v4063 = vunpack.c.l.b16 %v3915
    %v4064 = vunpack.c.h.b16 %v3915
    %v4065 = vunpack.c.l.b16 %v3916
    %v4066 = vunpack.c.h.b16 %v3916
    %v4067 = vunpack.c.l.b16 %v3917
    %v4068 = vunpack.c.h.b16 %v3917
    %v4069 = vunpack.c.l.b16 %v3918
    %v4070 = vunpack.c.h.b16 %v3918
    %v4071 = vunpack.c.l.b16 %v3919
    %v4072 = vunpack.c.h.b16 %v3919
    %v4073 = vunpack.c.l.b16 %v3920
    %v4074 = vunpack.c.h.b16 %v3920
    %v4075 = vunpack.c.l.b16 %v3921
    %v4076 = vunpack.c.h.b16 %v3921
    %v4077 = vunpack.c.l.b16 %v3922
    %v4078 = vunpack.c.h.b16 %v3922
    %v4079 = vunpack.c.l.b16 %v3923
    %v4080 = vunpack.c.h.b16 %v3923
    %v4081 = vunpack.c.l.b16 %v3924
    %v4082 = vunpack.c.h.b16 %v3924
    %v4083 = vunpack.c.l.b16 %v3925
    %v4084 = vunpack.c.h.b16 %v3925
    %v4085 = vunpack.c.l.b16 %v3926
    %v4086 = vunpack.c.h.b16 %v3926
    %v4087 = vunpack.c.l.b16 %v3927
    %v4088 = vunpack.c.h.b16 %v3927
    %v4089 = vunpack.c.l.b16 %v3928
    %v4090 = vunpack.c.h.b16 %v3928
    %v4091 = vunpack.c.l.b16 %v3929
    %v4092 = vunpack.c.h.b16 %v3929
    %v4093 = vunpack.c.l.b16 %v3930
    %v4094 = vunpack.c.h.b16 %v3930
    %v4095 = vunpack.c.l.b16 %v3931
    %v4096 = vunpack.c.h.b16 %v3931
    %v4097 = vunpack.c.l.b16 %v3932
    %v4098 = vunpack.c.h.b16 %v3932
    %v4099 = vunpack.c.l.b16 %v3933
    %v4100 = vunpack.c.h.b16 %v3933
    %v4101 = vunpack.c.l.b16 %v3934
    %v4102 = vunpack.c.h.b16 %v3934
    %v4103 = vunpack.c.l.b16 %v3935
    %v4104 = vunpack.c.h.b16 %v3935
    %v4105 = vunpack.c.l.b16 %v3936
    %v4106 = vunpack.c.h.b16 %v3936
    %v4107 = vunpack.c.l.b16 %v3937
    %v4108 = vunpack.c.h.b16 %v3937
    %v4109 = vunpack.c.l.b16 %v3938
    %v4110 = vunpack.c.h.b16 %v3938
    %v4111 = vunpack.c.l.b16 %v3939
    %v4112 = vunpack.c.h.b16 %v3939
    %v4113 = vunpack.c.l.b16 %v3940
    %v4114 = vunpack.c.h.b16 %v3940
    %v4115 = vunpack.c.l.b16 %v3941
    %v4116 = vunpack.c.h.b16 %v3941
    %v4117 = vunpack.c.l.b16 %v3942
    %v4118 = vunpack.c.h.b16 %v3942
    %v4119 = vunpack.c.l.b16 %v3943
    %v4120 = vunpack.c.h.b16 %v3943
    %v4121 = vunpack.c.l.b16 %v3944
    %v4122 = vunpack.c.h.b16 %v3944
    %v4123 = vunpack.c.l.b16 %v3945
    %v4124 = vunpack.c.h.b16 %v3945
    %v4125 = vunpack.c.l.b16 %v3946
    %v4126 = vunpack.c.h.b16 %v3946
    %v4127 = vunpack.c.l.b16 %v3947
    %v4128 = vunpack.c.h.b16 %v3947
    %v4129 = vunpack.c.l.b16 %v3948
    %v4130 = vunpack.c.h.b16 %v3948
    %v4131 = vunpack.c.l.b16 %v3949
    %v4132 = vunpack.c.h.b16 %v3949
    %v4133 = vunpack.c.l.b16 %v3950
    %v4134 = vunpack.c.h.b16 %v3950
    %v4135 = vunpack.c.l.b16 %v3951
    %v4136 = vunpack.c.h.b16 %v3951
    %v4137 = vunpack.c.l.b16 %v3952
    %v4138 = vunpack.c.h.b16 %v3952
    %v4139 = vunpack.c.l.b16 %v3953
    %v4140 = vunpack.c.h.b16 %v3953
    %v4141 = vunpack.c.l.b16 %v3954
    %v4142 = vunpack.c.h.b16 %v3954
    %v4143 = vunpack.c.l.b16 %v3955
    %v4144 = vunpack.c.h.b16 %v3955
    %v4145 = vunpack.c.l.b16 %v3956
    %v4146 = vunpack.c.h.b16 %v3956
    %v4147 = vunpack.c.l.b16 %v3957
    %v4148 = vunpack.c.h.b16 %v3957
    %v4149 = vunpack.c.l.b16 %v3958
    %v4150 = vunpack.c.h.b16 %v3958
    %v4151 = vpack.c.b16 %v4031, %v4023
    %v4152 = vpack.c.b16 %v4032, %v4024
    %v4153 = vpack.c.b16 %v4033, %v4025
    %v4154 = vpack.c.b16 %v4034, %v4026
    %v4155 = vpack.c.b16 %v4035, %v4027
    %v4156 = vpack.c.b16 %v4036, %v4028
    %v4157 = vpack.c.b16 %v4037, %v4029
    %v4158 = vpack.c.b16 %v4038, %v4030
    %v4159 = vpack.c.b16 %v4047, %v4039
    %v4160 = vpack.c.b16 %v4048, %v4040
    %v4161 = vpack.c.b16 %v4049, %v4041
    %v4162 = vpack.c.b16 %v4050, %v4042
    %v4163 = vpack.c.b16 %v4051, %v4043
    %v4164 = vpack.c.b16 %v4052, %v4044
    %v4165 = vpack.c.b16 %v4053, %v4045
    %v4166 = vpack.c.b16 %v4054, %v4046
    %v4167 = vpack.c.b16 %v4063, %v4055
    %v4168 = vpack.c.b16 %v4064, %v4056
    %v4169 = vpack.c.b16 %v4065, %v4057
    %v4170 = vpack.c.b16 %v4066, %v4058
    %v4171 = vpack.c.b16 %v4067, %v4059
    %v4172 = vpack.c.b16 %v4068, %v4060
    %v4173 = vpack.c.b16 %v4069, %v4061
    %v4174 = vpack.c.b16 %v4070, %v4062
    %v4175 = vpack.c.b16 %v4079, %v4071
    %v4176 = vpack.c.b16 %v4080, %v4072
    %v4177 = vpack.c.b16 %v4081, %v4073
    %v4178 = vpack.c.b16 %v4082, %v4074
    %v4179 = vpack.c.b16 %v4083, %v4075
    %v4180 = vpack.c.b16 %v4084, %v4076
    %v4181 = vpack.c.b16 %v4085, %v4077
    %v4182 = vpack.c.b16 %v4086, %v4078
    %v4183 = vpack.c.b16 %v4095, %v4087
    %v4184 = vpack.c.b16 %v4096, %v4088
    %v4185 = vpack.c.b16 %v4097, %v4089
    %v4186 = vpack.c.b16 %v4098, %v4090
    %v4187 = vpack.c.b16 %v4099, %v4091
    %v4188 = vpack.c.b16 %v4100, %v4092
    %v4189 = vpack.c.b16 %v4101, %v4093
    %v4190 = vpack.c.b16 %v4102, %v4094
    %v4191 = vpack.c.b16 %v4111, %v4103
    %v4192 = vpack.c.b16 %v4112, %v4104
    %v4193 = vpack.c.b16 %v4113, %v4105
    %v4194 = vpack.c.b16 %v4114, %v4106
    %v4195 = vpack.c.b16 %v4115, %v4107
    %v4196 = vpack.c.b16 %v4116, %v4108
    %v4197 = vpack.c.b16 %v4117, %v4109
    %v4198 = vpack.c.b16 %v4118, %v4110
    %v4199 = vpack.c.b16 %v4127, %v4119
    %v4200 = vpack.c.b16 %v4128, %v4120
    %v4201 = vpack.c.b16 %v4129, %v4121
    %v4202 = vpack.c.b16 %v4130, %v4122
    %v4203 = vpack.c.b16 %v4131, %v4123
    %v4204 = vpack.c.b16 %v4132, %v4124
    %v4205 = vpack.c.b16 %v4133, %v4125
    %v4206 = vpack.c.b16 %v4134, %v4126
    %v4207 = vpack.c.b16 %v4143, %v4135
    %v4208 = vpack.c.b16 %v4144, %v4136
    %v4209 = vpack.c.b16 %v4145, %v4137
    %v4210 = vpack.c.b16 %v4146, %v4138
    %v4211 = vpack.c.b16 %v4147, %v4139
    %v4212 = vpack.c.b16 %v4148, %v4140
    %v4213 = vpack.c.b16 %v4149, %v4141
    %v4214 = vpack.c.b16 %v4150, %v4142
    %4279 = vmatpush.bf16.msra.mxu0 %v4207
    %4280 = vmatpush.bf16.msra.mxu0 %v4199
    %4281 = vmatpush.bf16.msra.mxu0 %v4191
    %4282 = vmatpush.bf16.msra.mxu0 %v4183
    %4283 = vmatpush.bf16.msra.mxu0 %v4175
    %4284 = vmatpush.bf16.msra.mxu0 %v4167
    %4285 = vmatpush.bf16.msra.mxu0 %v4159
    %4286 = vmatpush.bf16.msra.mxu0 %v4151
    %4287 = vmatmul.bf16.gmra.mxu0 %v3893
    %v4288 = vpop.f32.mrf.mxu0
    %v4289 = vadd.f32 0.0, %v4288
    %v4290 = vpop.f32.mrf.mxu0
    %4291 = vdwg.mxu0
    %4292 = vmatpush.bf16.msra.mxu0 %v4208
    %4293 = vmatpush.bf16.msra.mxu0 %v4200
    %4294 = vmatpush.bf16.msra.mxu0 %v4192
    %4295 = vmatpush.bf16.msra.mxu0 %v4184
    %4296 = vmatpush.bf16.msra.mxu0 %v4176
    %4297 = vmatpush.bf16.msra.mxu0 %v4168
    %4298 = vmatpush.bf16.msra.mxu0 %v4160
    %4299 = vmatpush.bf16.msra.mxu0 %v4152
    %4300 = vmatmul.bf16.gmra.mxu0 %v3893
    %v4301 = vpop.f32.mrf.mxu0
    %v4302 = vadd.f32 0.0, %v4301
    %v4303 = vpop.f32.mrf.mxu0
    %4304 = vdwg.mxu0
    %4305 = vmatpush.bf16.msra.mxu0 %v4209
    %4306 = vmatpush.bf16.msra.mxu0 %v4201
    %4307 = vmatpush.bf16.msra.mxu0 %v4193
    %4308 = vmatpush.bf16.msra.mxu0 %v4185
    %4309 = vmatpush.bf16.msra.mxu0 %v4177
    %4310 = vmatpush.bf16.msra.mxu0 %v4169
    %4311 = vmatpush.bf16.msra.mxu0 %v4161
    %4312 = vmatpush.bf16.msra.mxu0 %v4153
    %4313 = vmatmul.bf16.gmra.mxu0 %v3893
    %v4314 = vpop.f32.mrf.mxu0
    %v4315 = vadd.f32 0.0, %v4314
    %v4316 = vpop.f32.mrf.mxu0
    %4317 = vdwg.mxu0
    %4318 = vmatpush.bf16.msra.mxu0 %v4210
    %4319 = vmatpush.bf16.msra.mxu0 %v4202
    %4320 = vmatpush.bf16.msra.mxu0 %v4194
    %4321 = vmatpush.bf16.msra.mxu0 %v4186
    %4322 = vmatpush.bf16.msra.mxu0 %v4178
    %4323 = vmatpush.bf16.msra.mxu0 %v4170
    %4324 = vmatpush.bf16.msra.mxu0 %v4162
    %4325 = vmatpush.bf16.msra.mxu0 %v4154
    %4326 = vmatmul.bf16.gmra.mxu0 %v3893
    %v4327 = vpop.f32.mrf.mxu0
    %v4328 = vadd.f32 0.0, %v4327
    %v4329 = vpop.f32.mrf.mxu0
    %4330 = vdwg.mxu0
    %4331 = vmatpush.bf16.msra.mxu0 %v4211
    %4332 = vmatpush.bf16.msra.mxu0 %v4203
    %4333 = vmatpush.bf16.msra.mxu0 %v4195
    %4334 = vmatpush.bf16.msra.mxu0 %v4187
    %4335 = vmatpush.bf16.msra.mxu0 %v4179
    %4336 = vmatpush.bf16.msra.mxu0 %v4171
    %4337 = vmatpush.bf16.msra.mxu0 %v4163
    %4338 = vmatpush.bf16.msra.mxu0 %v4155
    %4339 = vmatmul.bf16.gmra.mxu0 %v3893
    %v4340 = vpop.f32.mrf.mxu0
    %v4341 = vadd.f32 0.0, %v4340
    %v4342 = vpop.f32.mrf.mxu0
    %4343 = vdwg.mxu0
    %4344 = vmatpush.bf16.msra.mxu0 %v4212
    %4345 = vmatpush.bf16.msra.mxu0 %v4204
    %4346 = vmatpush.bf16.msra.mxu0 %v4196
    %4347 = vmatpush.bf16.msra.mxu0 %v4188
    %4348 = vmatpush.bf16.msra.mxu0 %v4180
    %4349 = vmatpush.bf16.msra.mxu0 %v4172
    %4350 = vmatpush.bf16.msra.mxu0 %v4164
    %4351 = vmatpush.bf16.msra.mxu0 %v4156
    %4352 = vmatmul.bf16.gmra.mxu0 %v3893
    %v4353 = vpop.f32.mrf.mxu0
    %v4354 = vadd.f32 0.0, %v4353
    %v4355 = vpop.f32.mrf.mxu0
    %4356 = vdwg.mxu0
    %4357 = vmatpush.bf16.msra.mxu0 %v4213
    %4358 = vmatpush.bf16.msra.mxu0 %v4205
    %4359 = vmatpush.bf16.msra.mxu0 %v4197
    %4360 = vmatpush.bf16.msra.mxu0 %v4189
    %4361 = vmatpush.bf16.msra.mxu0 %v4181
    %4362 = vmatpush.bf16.msra.mxu0 %v4173
    %4363 = vmatpush.bf16.msra.mxu0 %v4165
    %4364 = vmatpush.bf16.msra.mxu0 %v4157
    %4365 = vmatmul.bf16.gmra.mxu0 %v3893
    %v4366 = vpop.f32.mrf.mxu0
    %v4367 = vadd.f32 0.0, %v4366
    %v4368 = vpop.f32.mrf.mxu0
    %4369 = vdwg.mxu0
    %4370 = vmatpush.bf16.msra.mxu0 %v4214
    %4371 = vmatpush.bf16.msra.mxu0 %v4206
    %4372 = vmatpush.bf16.msra.mxu0 %v4198
    %4373 = vmatpush.bf16.msra.mxu0 %v4190
    %4374 = vmatpush.bf16.msra.mxu0 %v4182
    %4375 = vmatpush.bf16.msra.mxu0 %v4174
    %4376 = vmatpush.bf16.msra.mxu0 %v4166
    %4377 = vmatpush.bf16.msra.mxu0 %v4158
    %4378 = vmatmul.bf16.gmra.mxu0 %v3893
    %v4379 = vpop.f32.mrf.mxu0
    %v4380 = vadd.f32 0.0, %v4379
    %v4381 = vpop.f32.mrf.mxu0
    %4382 = vdwg.mxu0
    %v4383 = vadd.f32 %v3880, %v4289
    %v4384 = vadd.f32 %v3881, %v4302
    %v4385 = vadd.f32 %v3882, %v4315
    %v4386 = vadd.f32 %v3883, %v4328
    %v4387 = vadd.f32 %v3884, %v4341
    %v4388 = vadd.f32 %v3885, %v4354
    %v4389 = vadd.f32 %v3886, %v4367
    %v4390 = vadd.f32 %v3887, %v4380
    %v4391 = vrot.slane %v2387, 4
    %v4393 = vrot.slane %v2395, 3
    %v4395 = vsel %vm2400, %v4391, %v4393
    %v4396 = vpack.c.bf16 %v4395, %v4395
    %s4397 = scalar_lea.vmem [#allocation22], 2048
    %v4398 = vld [vmem:[%s4397] sm:$0xff]
    %v4399 = vld [vmem:[%s4397 + $0x8] sm:$0xff]
    %v4400 = vld [vmem:[%s4397 + $0x10] sm:$0xff]
    %v4401 = vld [vmem:[%s4397 + $0x18] sm:$0xff]
    %v4402 = vld [vmem:[%s4397 + $0x20] sm:$0xff]
    %v4403 = vld [vmem:[%s4397 + $0x28] sm:$0xff]
    %v4404 = vld [vmem:[%s4397 + $0x30] sm:$0xff]
    %v4405 = vld [vmem:[%s4397 + $0x38] sm:$0xff]
    %v4406 = vld [vmem:[%s4397 + $0x40] sm:$0xff]
    %v4407 = vld [vmem:[%s4397 + $0x48] sm:$0xff]
    %v4408 = vld [vmem:[%s4397 + $0x50] sm:$0xff]
    %v4409 = vld [vmem:[%s4397 + $0x58] sm:$0xff]
    %v4410 = vld [vmem:[%s4397 + $0x60] sm:$0xff]
    %v4411 = vld [vmem:[%s4397 + $0x68] sm:$0xff]
    %v4412 = vld [vmem:[%s4397 + $0x70] sm:$0xff]
    %v4413 = vld [vmem:[%s4397 + $0x78] sm:$0xff]
    %v4414 = vld [vmem:[%s4397 + $0x80] sm:$0xff]
    %v4415 = vld [vmem:[%s4397 + $0x88] sm:$0xff]
    %v4416 = vld [vmem:[%s4397 + $0x90] sm:$0xff]
    %v4417 = vld [vmem:[%s4397 + $0x98] sm:$0xff]
    %v4418 = vld [vmem:[%s4397 + $0xa0] sm:$0xff]
    %v4419 = vld [vmem:[%s4397 + $0xa8] sm:$0xff]
    %v4420 = vld [vmem:[%s4397 + $0xb0] sm:$0xff]
    %v4421 = vld [vmem:[%s4397 + $0xb8] sm:$0xff]
    %v4422 = vld [vmem:[%s4397 + $0xc0] sm:$0xff]
    %v4423 = vld [vmem:[%s4397 + $0xc8] sm:$0xff]
    %v4424 = vld [vmem:[%s4397 + $0xd0] sm:$0xff]
    %v4425 = vld [vmem:[%s4397 + $0xd8] sm:$0xff]
    %v4426 = vld [vmem:[%s4397 + $0xe0] sm:$0xff]
    %v4427 = vld [vmem:[%s4397 + $0xe8] sm:$0xff]
    %v4428 = vld [vmem:[%s4397 + $0xf0] sm:$0xff]
    %v4429 = vld [vmem:[%s4397 + $0xf8] sm:$0xff]
    %v4430 = vld [vmem:[%s4397 + $0x100] sm:$0xff]
    %v4431 = vld [vmem:[%s4397 + $0x108] sm:$0xff]
    %v4432 = vld [vmem:[%s4397 + $0x110] sm:$0xff]
    %v4433 = vld [vmem:[%s4397 + $0x118] sm:$0xff]
    %v4434 = vld [vmem:[%s4397 + $0x120] sm:$0xff]
    %v4435 = vld [vmem:[%s4397 + $0x128] sm:$0xff]
    %v4436 = vld [vmem:[%s4397 + $0x130] sm:$0xff]
    %v4437 = vld [vmem:[%s4397 + $0x138] sm:$0xff]
    %v4438 = vld [vmem:[%s4397 + $0x140] sm:$0xff]
    %v4439 = vld [vmem:[%s4397 + $0x148] sm:$0xff]
    %v4440 = vld [vmem:[%s4397 + $0x150] sm:$0xff]
    %v4441 = vld [vmem:[%s4397 + $0x158] sm:$0xff]
    %v4442 = vld [vmem:[%s4397 + $0x160] sm:$0xff]
    %v4443 = vld [vmem:[%s4397 + $0x168] sm:$0xff]
    %v4444 = vld [vmem:[%s4397 + $0x170] sm:$0xff]
    %v4445 = vld [vmem:[%s4397 + $0x178] sm:$0xff]
    %v4446 = vld [vmem:[%s4397 + $0x180] sm:$0xff]
    %v4447 = vld [vmem:[%s4397 + $0x188] sm:$0xff]
    %v4448 = vld [vmem:[%s4397 + $0x190] sm:$0xff]
    %v4449 = vld [vmem:[%s4397 + $0x198] sm:$0xff]
    %v4450 = vld [vmem:[%s4397 + $0x1a0] sm:$0xff]
    %v4451 = vld [vmem:[%s4397 + $0x1a8] sm:$0xff]
    %v4452 = vld [vmem:[%s4397 + $0x1b0] sm:$0xff]
    %v4453 = vld [vmem:[%s4397 + $0x1b8] sm:$0xff]
    %v4454 = vld [vmem:[%s4397 + $0x1c0] sm:$0xff]
    %v4455 = vld [vmem:[%s4397 + $0x1c8] sm:$0xff]
    %v4456 = vld [vmem:[%s4397 + $0x1d0] sm:$0xff]
    %v4457 = vld [vmem:[%s4397 + $0x1d8] sm:$0xff]
    %v4458 = vld [vmem:[%s4397 + $0x1e0] sm:$0xff]
    %v4459 = vld [vmem:[%s4397 + $0x1e8] sm:$0xff]
    %v4460 = vld [vmem:[%s4397 + $0x1f0] sm:$0xff]
    %v4461 = vld [vmem:[%s4397 + $0x1f8] sm:$0xff]
    %v4526 = vunpack.c.l.b16 %v4398
    %v4527 = vunpack.c.h.b16 %v4398
    %v4528 = vunpack.c.l.b16 %v4399
    %v4529 = vunpack.c.h.b16 %v4399
    %v4530 = vunpack.c.l.b16 %v4400
    %v4531 = vunpack.c.h.b16 %v4400
    %v4532 = vunpack.c.l.b16 %v4401
    %v4533 = vunpack.c.h.b16 %v4401
    %v4534 = vunpack.c.l.b16 %v4402
    %v4535 = vunpack.c.h.b16 %v4402
    %v4536 = vunpack.c.l.b16 %v4403
    %v4537 = vunpack.c.h.b16 %v4403
    %v4538 = vunpack.c.l.b16 %v4404
    %v4539 = vunpack.c.h.b16 %v4404
    %v4540 = vunpack.c.l.b16 %v4405
    %v4541 = vunpack.c.h.b16 %v4405
    %v4542 = vunpack.c.l.b16 %v4406
    %v4543 = vunpack.c.h.b16 %v4406
    %v4544 = vunpack.c.l.b16 %v4407
    %v4545 = vunpack.c.h.b16 %v4407
    %v4546 = vunpack.c.l.b16 %v4408
    %v4547 = vunpack.c.h.b16 %v4408
    %v4548 = vunpack.c.l.b16 %v4409
    %v4549 = vunpack.c.h.b16 %v4409
    %v4550 = vunpack.c.l.b16 %v4410
    %v4551 = vunpack.c.h.b16 %v4410
    %v4552 = vunpack.c.l.b16 %v4411
    %v4553 = vunpack.c.h.b16 %v4411
    %v4554 = vunpack.c.l.b16 %v4412
    %v4555 = vunpack.c.h.b16 %v4412
    %v4556 = vunpack.c.l.b16 %v4413
    %v4557 = vunpack.c.h.b16 %v4413
    %v4558 = vunpack.c.l.b16 %v4414
    %v4559 = vunpack.c.h.b16 %v4414
    %v4560 = vunpack.c.l.b16 %v4415
    %v4561 = vunpack.c.h.b16 %v4415
    %v4562 = vunpack.c.l.b16 %v4416
    %v4563 = vunpack.c.h.b16 %v4416
    %v4564 = vunpack.c.l.b16 %v4417
    %v4565 = vunpack.c.h.b16 %v4417
    %v4566 = vunpack.c.l.b16 %v4418
    %v4567 = vunpack.c.h.b16 %v4418
    %v4568 = vunpack.c.l.b16 %v4419
    %v4569 = vunpack.c.h.b16 %v4419
    %v4570 = vunpack.c.l.b16 %v4420
    %v4571 = vunpack.c.h.b16 %v4420
    %v4572 = vunpack.c.l.b16 %v4421
    %v4573 = vunpack.c.h.b16 %v4421
    %v4574 = vunpack.c.l.b16 %v4422
    %v4575 = vunpack.c.h.b16 %v4422
    %v4576 = vunpack.c.l.b16 %v4423
    %v4577 = vunpack.c.h.b16 %v4423
    %v4578 = vunpack.c.l.b16 %v4424
    %v4579 = vunpack.c.h.b16 %v4424
    %v4580 = vunpack.c.l.b16 %v4425
    %v4581 = vunpack.c.h.b16 %v4425
    %v4582 = vunpack.c.l.b16 %v4426
    %v4583 = vunpack.c.h.b16 %v4426
    %v4584 = vunpack.c.l.b16 %v4427
    %v4585 = vunpack.c.h.b16 %v4427
    %v4586 = vunpack.c.l.b16 %v4428
    %v4587 = vunpack.c.h.b16 %v4428
    %v4588 = vunpack.c.l.b16 %v4429
    %v4589 = vunpack.c.h.b16 %v4429
    %v4590 = vunpack.c.l.b16 %v4430
    %v4591 = vunpack.c.h.b16 %v4430
    %v4592 = vunpack.c.l.b16 %v4431
    %v4593 = vunpack.c.h.b16 %v4431
    %v4594 = vunpack.c.l.b16 %v4432
    %v4595 = vunpack.c.h.b16 %v4432
    %v4596 = vunpack.c.l.b16 %v4433
    %v4597 = vunpack.c.h.b16 %v4433
    %v4598 = vunpack.c.l.b16 %v4434
    %v4599 = vunpack.c.h.b16 %v4434
    %v4600 = vunpack.c.l.b16 %v4435
    %v4601 = vunpack.c.h.b16 %v4435
    %v4602 = vunpack.c.l.b16 %v4436
    %v4603 = vunpack.c.h.b16 %v4436
    %v4604 = vunpack.c.l.b16 %v4437
    %v4605 = vunpack.c.h.b16 %v4437
    %v4606 = vunpack.c.l.b16 %v4438
    %v4607 = vunpack.c.h.b16 %v4438
    %v4608 = vunpack.c.l.b16 %v4439
    %v4609 = vunpack.c.h.b16 %v4439
    %v4610 = vunpack.c.l.b16 %v4440
    %v4611 = vunpack.c.h.b16 %v4440
    %v4612 = vunpack.c.l.b16 %v4441
    %v4613 = vunpack.c.h.b16 %v4441
    %v4614 = vunpack.c.l.b16 %v4442
    %v4615 = vunpack.c.h.b16 %v4442
    %v4616 = vunpack.c.l.b16 %v4443
    %v4617 = vunpack.c.h.b16 %v4443
    %v4618 = vunpack.c.l.b16 %v4444
    %v4619 = vunpack.c.h.b16 %v4444
    %v4620 = vunpack.c.l.b16 %v4445
    %v4621 = vunpack.c.h.b16 %v4445
    %v4622 = vunpack.c.l.b16 %v4446
    %v4623 = vunpack.c.h.b16 %v4446
    %v4624 = vunpack.c.l.b16 %v4447
    %v4625 = vunpack.c.h.b16 %v4447
    %v4626 = vunpack.c.l.b16 %v4448
    %v4627 = vunpack.c.h.b16 %v4448
    %v4628 = vunpack.c.l.b16 %v4449
    %v4629 = vunpack.c.h.b16 %v4449
    %v4630 = vunpack.c.l.b16 %v4450
    %v4631 = vunpack.c.h.b16 %v4450
    %v4632 = vunpack.c.l.b16 %v4451
    %v4633 = vunpack.c.h.b16 %v4451
    %v4634 = vunpack.c.l.b16 %v4452
    %v4635 = vunpack.c.h.b16 %v4452
    %v4636 = vunpack.c.l.b16 %v4453
    %v4637 = vunpack.c.h.b16 %v4453
    %v4638 = vunpack.c.l.b16 %v4454
    %v4639 = vunpack.c.h.b16 %v4454
    %v4640 = vunpack.c.l.b16 %v4455
    %v4641 = vunpack.c.h.b16 %v4455
    %v4642 = vunpack.c.l.b16 %v4456
    %v4643 = vunpack.c.h.b16 %v4456
    %v4644 = vunpack.c.l.b16 %v4457
    %v4645 = vunpack.c.h.b16 %v4457
    %v4646 = vunpack.c.l.b16 %v4458
    %v4647 = vunpack.c.h.b16 %v4458
    %v4648 = vunpack.c.l.b16 %v4459
    %v4649 = vunpack.c.h.b16 %v4459
    %v4650 = vunpack.c.l.b16 %v4460
    %v4651 = vunpack.c.h.b16 %v4460
    %v4652 = vunpack.c.l.b16 %v4461
    %v4653 = vunpack.c.h.b16 %v4461
    %v4654 = vpack.c.b16 %v4534, %v4526
    %v4655 = vpack.c.b16 %v4535, %v4527
    %v4656 = vpack.c.b16 %v4536, %v4528
    %v4657 = vpack.c.b16 %v4537, %v4529
    %v4658 = vpack.c.b16 %v4538, %v4530
    %v4659 = vpack.c.b16 %v4539, %v4531
    %v4660 = vpack.c.b16 %v4540, %v4532
    %v4661 = vpack.c.b16 %v4541, %v4533
    %v4662 = vpack.c.b16 %v4550, %v4542
    %v4663 = vpack.c.b16 %v4551, %v4543
    %v4664 = vpack.c.b16 %v4552, %v4544
    %v4665 = vpack.c.b16 %v4553, %v4545
    %v4666 = vpack.c.b16 %v4554, %v4546
    %v4667 = vpack.c.b16 %v4555, %v4547
    %v4668 = vpack.c.b16 %v4556, %v4548
    %v4669 = vpack.c.b16 %v4557, %v4549
    %v4670 = vpack.c.b16 %v4566, %v4558
    %v4671 = vpack.c.b16 %v4567, %v4559
    %v4672 = vpack.c.b16 %v4568, %v4560
    %v4673 = vpack.c.b16 %v4569, %v4561
    %v4674 = vpack.c.b16 %v4570, %v4562
    %v4675 = vpack.c.b16 %v4571, %v4563
    %v4676 = vpack.c.b16 %v4572, %v4564
    %v4677 = vpack.c.b16 %v4573, %v4565
    %v4678 = vpack.c.b16 %v4582, %v4574
    %v4679 = vpack.c.b16 %v4583, %v4575
    %v4680 = vpack.c.b16 %v4584, %v4576
    %v4681 = vpack.c.b16 %v4585, %v4577
    %v4682 = vpack.c.b16 %v4586, %v4578
    %v4683 = vpack.c.b16 %v4587, %v4579
    %v4684 = vpack.c.b16 %v4588, %v4580
    %v4685 = vpack.c.b16 %v4589, %v4581
    %v4686 = vpack.c.b16 %v4598, %v4590
    %v4687 = vpack.c.b16 %v4599, %v4591
    %v4688 = vpack.c.b16 %v4600, %v4592
    %v4689 = vpack.c.b16 %v4601, %v4593
    %v4690 = vpack.c.b16 %v4602, %v4594
    %v4691 = vpack.c.b16 %v4603, %v4595
    %v4692 = vpack.c.b16 %v4604, %v4596
    %v4693 = vpack.c.b16 %v4605, %v4597
    %v4694 = vpack.c.b16 %v4614, %v4606
    %v4695 = vpack.c.b16 %v4615, %v4607
    %v4696 = vpack.c.b16 %v4616, %v4608
    %v4697 = vpack.c.b16 %v4617, %v4609
    %v4698 = vpack.c.b16 %v4618, %v4610
    %v4699 = vpack.c.b16 %v4619, %v4611
    %v4700 = vpack.c.b16 %v4620, %v4612
    %v4701 = vpack.c.b16 %v4621, %v4613
    %v4702 = vpack.c.b16 %v4630, %v4622
    %v4703 = vpack.c.b16 %v4631, %v4623
    %v4704 = vpack.c.b16 %v4632, %v4624
    %v4705 = vpack.c.b16 %v4633, %v4625
    %v4706 = vpack.c.b16 %v4634, %v4626
    %v4707 = vpack.c.b16 %v4635, %v4627
    %v4708 = vpack.c.b16 %v4636, %v4628
    %v4709 = vpack.c.b16 %v4637, %v4629
    %v4710 = vpack.c.b16 %v4646, %v4638
    %v4711 = vpack.c.b16 %v4647, %v4639
    %v4712 = vpack.c.b16 %v4648, %v4640
    %v4713 = vpack.c.b16 %v4649, %v4641
    %v4714 = vpack.c.b16 %v4650, %v4642
    %v4715 = vpack.c.b16 %v4651, %v4643
    %v4716 = vpack.c.b16 %v4652, %v4644
    %v4717 = vpack.c.b16 %v4653, %v4645
    %4782 = vmatpush.bf16.msra.mxu0 %v4710
    %4783 = vmatpush.bf16.msra.mxu0 %v4702
    %4784 = vmatpush.bf16.msra.mxu0 %v4694
    %4785 = vmatpush.bf16.msra.mxu0 %v4686
    %4786 = vmatpush.bf16.msra.mxu0 %v4678
    %4787 = vmatpush.bf16.msra.mxu0 %v4670
    %4788 = vmatpush.bf16.msra.mxu0 %v4662
    %4789 = vmatpush.bf16.msra.mxu0 %v4654
    %4790 = vmatmul.bf16.gmra.mxu0 %v4396
    %v4791 = vpop.f32.mrf.mxu0
    %v4792 = vadd.f32 0.0, %v4791
    %v4793 = vpop.f32.mrf.mxu0
    %4794 = vdwg.mxu0
    %4795 = vmatpush.bf16.msra.mxu0 %v4711
    %4796 = vmatpush.bf16.msra.mxu0 %v4703
    %4797 = vmatpush.bf16.msra.mxu0 %v4695
    %4798 = vmatpush.bf16.msra.mxu0 %v4687
    %4799 = vmatpush.bf16.msra.mxu0 %v4679
    %4800 = vmatpush.bf16.msra.mxu0 %v4671
    %4801 = vmatpush.bf16.msra.mxu0 %v4663
    %4802 = vmatpush.bf16.msra.mxu0 %v4655
    %4803 = vmatmul.bf16.gmra.mxu0 %v4396
    %v4804 = vpop.f32.mrf.mxu0
    %v4805 = vadd.f32 0.0, %v4804
    %v4806 = vpop.f32.mrf.mxu0
    %4807 = vdwg.mxu0
    %4808 = vmatpush.bf16.msra.mxu0 %v4712
    %4809 = vmatpush.bf16.msra.mxu0 %v4704
    %4810 = vmatpush.bf16.msra.mxu0 %v4696
    %4811 = vmatpush.bf16.msra.mxu0 %v4688
    %4812 = vmatpush.bf16.msra.mxu0 %v4680
    %4813 = vmatpush.bf16.msra.mxu0 %v4672
    %4814 = vmatpush.bf16.msra.mxu0 %v4664
    %4815 = vmatpush.bf16.msra.mxu0 %v4656
    %4816 = vmatmul.bf16.gmra.mxu0 %v4396
    %v4817 = vpop.f32.mrf.mxu0
    %v4818 = vadd.f32 0.0, %v4817
    %v4819 = vpop.f32.mrf.mxu0
    %4820 = vdwg.mxu0
    %4821 = vmatpush.bf16.msra.mxu0 %v4713
    %4822 = vmatpush.bf16.msra.mxu0 %v4705
    %4823 = vmatpush.bf16.msra.mxu0 %v4697
    %4824 = vmatpush.bf16.msra.mxu0 %v4689
    %4825 = vmatpush.bf16.msra.mxu0 %v4681
    %4826 = vmatpush.bf16.msra.mxu0 %v4673
    %4827 = vmatpush.bf16.msra.mxu0 %v4665
    %4828 = vmatpush.bf16.msra.mxu0 %v4657
    %4829 = vmatmul.bf16.gmra.mxu0 %v4396
    %v4830 = vpop.f32.mrf.mxu0
    %v4831 = vadd.f32 0.0, %v4830
    %v4832 = vpop.f32.mrf.mxu0
    %4833 = vdwg.mxu0
    %4834 = vmatpush.bf16.msra.mxu0 %v4714
    %4835 = vmatpush.bf16.msra.mxu0 %v4706
    %4836 = vmatpush.bf16.msra.mxu0 %v4698
    %4837 = vmatpush.bf16.msra.mxu0 %v4690
    %4838 = vmatpush.bf16.msra.mxu0 %v4682
    %4839 = vmatpush.bf16.msra.mxu0 %v4674
    %4840 = vmatpush.bf16.msra.mxu0 %v4666
    %4841 = vmatpush.bf16.msra.mxu0 %v4658
    %4842 = vmatmul.bf16.gmra.mxu0 %v4396
    %v4843 = vpop.f32.mrf.mxu0
    %v4844 = vadd.f32 0.0, %v4843
    %v4845 = vpop.f32.mrf.mxu0
    %4846 = vdwg.mxu0
    %4847 = vmatpush.bf16.msra.mxu0 %v4715
    %4848 = vmatpush.bf16.msra.mxu0 %v4707
    %4849 = vmatpush.bf16.msra.mxu0 %v4699
    %4850 = vmatpush.bf16.msra.mxu0 %v4691
    %4851 = vmatpush.bf16.msra.mxu0 %v4683
    %4852 = vmatpush.bf16.msra.mxu0 %v4675
    %4853 = vmatpush.bf16.msra.mxu0 %v4667
    %4854 = vmatpush.bf16.msra.mxu0 %v4659
    %4855 = vmatmul.bf16.gmra.mxu0 %v4396
    %v4856 = vpop.f32.mrf.mxu0
    %v4857 = vadd.f32 0.0, %v4856
    %v4858 = vpop.f32.mrf.mxu0
    %4859 = vdwg.mxu0
    %4860 = vmatpush.bf16.msra.mxu0 %v4716
    %4861 = vmatpush.bf16.msra.mxu0 %v4708
    %4862 = vmatpush.bf16.msra.mxu0 %v4700
    %4863 = vmatpush.bf16.msra.mxu0 %v4692
    %4864 = vmatpush.bf16.msra.mxu0 %v4684
    %4865 = vmatpush.bf16.msra.mxu0 %v4676
    %4866 = vmatpush.bf16.msra.mxu0 %v4668
    %4867 = vmatpush.bf16.msra.mxu0 %v4660
    %4868 = vmatmul.bf16.gmra.mxu0 %v4396
    %v4869 = vpop.f32.mrf.mxu0
    %v4870 = vadd.f32 0.0, %v4869
    %v4871 = vpop.f32.mrf.mxu0
    %4872 = vdwg.mxu0
    %4873 = vmatpush.bf16.msra.mxu0 %v4717
    %4874 = vmatpush.bf16.msra.mxu0 %v4709
    %4875 = vmatpush.bf16.msra.mxu0 %v4701
    %4876 = vmatpush.bf16.msra.mxu0 %v4693
    %4877 = vmatpush.bf16.msra.mxu0 %v4685
    %4878 = vmatpush.bf16.msra.mxu0 %v4677
    %4879 = vmatpush.bf16.msra.mxu0 %v4669
    %4880 = vmatpush.bf16.msra.mxu0 %v4661
    %4881 = vmatmul.bf16.gmra.mxu0 %v4396
    %v4882 = vpop.f32.mrf.mxu0
    %v4883 = vadd.f32 0.0, %v4882
    %v4884 = vpop.f32.mrf.mxu0
    %4885 = vdwg.mxu0
    %v4886 = vadd.f32 %v4383, %v4792
    %v4887 = vadd.f32 %v4384, %v4805
    %v4888 = vadd.f32 %v4385, %v4818
    %v4889 = vadd.f32 %v4386, %v4831
    %v4890 = vadd.f32 %v4387, %v4844
    %v4891 = vadd.f32 %v4388, %v4857
    %v4892 = vadd.f32 %v4389, %v4870
    %v4893 = vadd.f32 %v4390, %v4883
    %v4894 = vrot.slane %v2387, 5
    %v4896 = vrot.slane %v2395, 4
    %v4898 = vsel %vm2400, %v4894, %v4896
    %v4899 = vpack.c.bf16 %v4898, %v4898
    %s4900 = scalar_lea.vmem [#allocation22], 2560
    %v4901 = vld [vmem:[%s4900] sm:$0xff]
    %v4902 = vld [vmem:[%s4900 + $0x8] sm:$0xff]
    %v4903 = vld [vmem:[%s4900 + $0x10] sm:$0xff]
    %v4904 = vld [vmem:[%s4900 + $0x18] sm:$0xff]
    %v4905 = vld [vmem:[%s4900 + $0x20] sm:$0xff]
    %v4906 = vld [vmem:[%s4900 + $0x28] sm:$0xff]
    %v4907 = vld [vmem:[%s4900 + $0x30] sm:$0xff]
    %v4908 = vld [vmem:[%s4900 + $0x38] sm:$0xff]
    %v4909 = vld [vmem:[%s4900 + $0x40] sm:$0xff]
    %v4910 = vld [vmem:[%s4900 + $0x48] sm:$0xff]
    %v4911 = vld [vmem:[%s4900 + $0x50] sm:$0xff]
    %v4912 = vld [vmem:[%s4900 + $0x58] sm:$0xff]
    %v4913 = vld [vmem:[%s4900 + $0x60] sm:$0xff]
    %v4914 = vld [vmem:[%s4900 + $0x68] sm:$0xff]
    %v4915 = vld [vmem:[%s4900 + $0x70] sm:$0xff]
    %v4916 = vld [vmem:[%s4900 + $0x78] sm:$0xff]
    %v4917 = vld [vmem:[%s4900 + $0x80] sm:$0xff]
    %v4918 = vld [vmem:[%s4900 + $0x88] sm:$0xff]
    %v4919 = vld [vmem:[%s4900 + $0x90] sm:$0xff]
    %v4920 = vld [vmem:[%s4900 + $0x98] sm:$0xff]
    %v4921 = vld [vmem:[%s4900 + $0xa0] sm:$0xff]
    %v4922 = vld [vmem:[%s4900 + $0xa8] sm:$0xff]
    %v4923 = vld [vmem:[%s4900 + $0xb0] sm:$0xff]
    %v4924 = vld [vmem:[%s4900 + $0xb8] sm:$0xff]
    %v4925 = vld [vmem:[%s4900 + $0xc0] sm:$0xff]
    %v4926 = vld [vmem:[%s4900 + $0xc8] sm:$0xff]
    %v4927 = vld [vmem:[%s4900 + $0xd0] sm:$0xff]
    %v4928 = vld [vmem:[%s4900 + $0xd8] sm:$0xff]
    %v4929 = vld [vmem:[%s4900 + $0xe0] sm:$0xff]
    %v4930 = vld [vmem:[%s4900 + $0xe8] sm:$0xff]
    %v4931 = vld [vmem:[%s4900 + $0xf0] sm:$0xff]
    %v4932 = vld [vmem:[%s4900 + $0xf8] sm:$0xff]
    %v4933 = vld [vmem:[%s4900 + $0x100] sm:$0xff]
    %v4934 = vld [vmem:[%s4900 + $0x108] sm:$0xff]
    %v4935 = vld [vmem:[%s4900 + $0x110] sm:$0xff]
    %v4936 = vld [vmem:[%s4900 + $0x118] sm:$0xff]
    %v4937 = vld [vmem:[%s4900 + $0x120] sm:$0xff]
    %v4938 = vld [vmem:[%s4900 + $0x128] sm:$0xff]
    %v4939 = vld [vmem:[%s4900 + $0x130] sm:$0xff]
    %v4940 = vld [vmem:[%s4900 + $0x138] sm:$0xff]
    %v4941 = vld [vmem:[%s4900 + $0x140] sm:$0xff]
    %v4942 = vld [vmem:[%s4900 + $0x148] sm:$0xff]
    %v4943 = vld [vmem:[%s4900 + $0x150] sm:$0xff]
    %v4944 = vld [vmem:[%s4900 + $0x158] sm:$0xff]
    %v4945 = vld [vmem:[%s4900 + $0x160] sm:$0xff]
    %v4946 = vld [vmem:[%s4900 + $0x168] sm:$0xff]
    %v4947 = vld [vmem:[%s4900 + $0x170] sm:$0xff]
    %v4948 = vld [vmem:[%s4900 + $0x178] sm:$0xff]
    %v4949 = vld [vmem:[%s4900 + $0x180] sm:$0xff]
    %v4950 = vld [vmem:[%s4900 + $0x188] sm:$0xff]
    %v4951 = vld [vmem:[%s4900 + $0x190] sm:$0xff]
    %v4952 = vld [vmem:[%s4900 + $0x198] sm:$0xff]
    %v4953 = vld [vmem:[%s4900 + $0x1a0] sm:$0xff]
    %v4954 = vld [vmem:[%s4900 + $0x1a8] sm:$0xff]
    %v4955 = vld [vmem:[%s4900 + $0x1b0] sm:$0xff]
    %v4956 = vld [vmem:[%s4900 + $0x1b8] sm:$0xff]
    %v4957 = vld [vmem:[%s4900 + $0x1c0] sm:$0xff]
    %v4958 = vld [vmem:[%s4900 + $0x1c8] sm:$0xff]
    %v4959 = vld [vmem:[%s4900 + $0x1d0] sm:$0xff]
    %v4960 = vld [vmem:[%s4900 + $0x1d8] sm:$0xff]
    %v4961 = vld [vmem:[%s4900 + $0x1e0] sm:$0xff]
    %v4962 = vld [vmem:[%s4900 + $0x1e8] sm:$0xff]
    %v4963 = vld [vmem:[%s4900 + $0x1f0] sm:$0xff]
    %v4964 = vld [vmem:[%s4900 + $0x1f8] sm:$0xff]
    %v5029 = vunpack.c.l.b16 %v4901
    %v5030 = vunpack.c.h.b16 %v4901
    %v5031 = vunpack.c.l.b16 %v4902
    %v5032 = vunpack.c.h.b16 %v4902
    %v5033 = vunpack.c.l.b16 %v4903
    %v5034 = vunpack.c.h.b16 %v4903
    %v5035 = vunpack.c.l.b16 %v4904
    %v5036 = vunpack.c.h.b16 %v4904
    %v5037 = vunpack.c.l.b16 %v4905
    %v5038 = vunpack.c.h.b16 %v4905
    %v5039 = vunpack.c.l.b16 %v4906
    %v5040 = vunpack.c.h.b16 %v4906
    %v5041 = vunpack.c.l.b16 %v4907
    %v5042 = vunpack.c.h.b16 %v4907
    %v5043 = vunpack.c.l.b16 %v4908
    %v5044 = vunpack.c.h.b16 %v4908
    %v5045 = vunpack.c.l.b16 %v4909
    %v5046 = vunpack.c.h.b16 %v4909
    %v5047 = vunpack.c.l.b16 %v4910
    %v5048 = vunpack.c.h.b16 %v4910
    %v5049 = vunpack.c.l.b16 %v4911
    %v5050 = vunpack.c.h.b16 %v4911
    %v5051 = vunpack.c.l.b16 %v4912
    %v5052 = vunpack.c.h.b16 %v4912
    %v5053 = vunpack.c.l.b16 %v4913
    %v5054 = vunpack.c.h.b16 %v4913
    %v5055 = vunpack.c.l.b16 %v4914
    %v5056 = vunpack.c.h.b16 %v4914
    %v5057 = vunpack.c.l.b16 %v4915
    %v5058 = vunpack.c.h.b16 %v4915
    %v5059 = vunpack.c.l.b16 %v4916
    %v5060 = vunpack.c.h.b16 %v4916
    %v5061 = vunpack.c.l.b16 %v4917
    %v5062 = vunpack.c.h.b16 %v4917
    %v5063 = vunpack.c.l.b16 %v4918
    %v5064 = vunpack.c.h.b16 %v4918
    %v5065 = vunpack.c.l.b16 %v4919
    %v5066 = vunpack.c.h.b16 %v4919
    %v5067 = vunpack.c.l.b16 %v4920
    %v5068 = vunpack.c.h.b16 %v4920
    %v5069 = vunpack.c.l.b16 %v4921
    %v5070 = vunpack.c.h.b16 %v4921
    %v5071 = vunpack.c.l.b16 %v4922
    %v5072 = vunpack.c.h.b16 %v4922
    %v5073 = vunpack.c.l.b16 %v4923
    %v5074 = vunpack.c.h.b16 %v4923
    %v5075 = vunpack.c.l.b16 %v4924
    %v5076 = vunpack.c.h.b16 %v4924
    %v5077 = vunpack.c.l.b16 %v4925
    %v5078 = vunpack.c.h.b16 %v4925
    %v5079 = vunpack.c.l.b16 %v4926
    %v5080 = vunpack.c.h.b16 %v4926
    %v5081 = vunpack.c.l.b16 %v4927
    %v5082 = vunpack.c.h.b16 %v4927
    %v5083 = vunpack.c.l.b16 %v4928
    %v5084 = vunpack.c.h.b16 %v4928
    %v5085 = vunpack.c.l.b16 %v4929
    %v5086 = vunpack.c.h.b16 %v4929
    %v5087 = vunpack.c.l.b16 %v4930
    %v5088 = vunpack.c.h.b16 %v4930
    %v5089 = vunpack.c.l.b16 %v4931
    %v5090 = vunpack.c.h.b16 %v4931
    %v5091 = vunpack.c.l.b16 %v4932
    %v5092 = vunpack.c.h.b16 %v4932
    %v5093 = vunpack.c.l.b16 %v4933
    %v5094 = vunpack.c.h.b16 %v4933
    %v5095 = vunpack.c.l.b16 %v4934
    %v5096 = vunpack.c.h.b16 %v4934
    %v5097 = vunpack.c.l.b16 %v4935
    %v5098 = vunpack.c.h.b16 %v4935
    %v5099 = vunpack.c.l.b16 %v4936
    %v5100 = vunpack.c.h.b16 %v4936
    %v5101 = vunpack.c.l.b16 %v4937
    %v5102 = vunpack.c.h.b16 %v4937
    %v5103 = vunpack.c.l.b16 %v4938
    %v5104 = vunpack.c.h.b16 %v4938
    %v5105 = vunpack.c.l.b16 %v4939
    %v5106 = vunpack.c.h.b16 %v4939
    %v5107 = vunpack.c.l.b16 %v4940
    %v5108 = vunpack.c.h.b16 %v4940
    %v5109 = vunpack.c.l.b16 %v4941
    %v5110 = vunpack.c.h.b16 %v4941
    %v5111 = vunpack.c.l.b16 %v4942
    %v5112 = vunpack.c.h.b16 %v4942
    %v5113 = vunpack.c.l.b16 %v4943
    %v5114 = vunpack.c.h.b16 %v4943
    %v5115 = vunpack.c.l.b16 %v4944
    %v5116 = vunpack.c.h.b16 %v4944
    %v5117 = vunpack.c.l.b16 %v4945
    %v5118 = vunpack.c.h.b16 %v4945
    %v5119 = vunpack.c.l.b16 %v4946
    %v5120 = vunpack.c.h.b16 %v4946
    %v5121 = vunpack.c.l.b16 %v4947
    %v5122 = vunpack.c.h.b16 %v4947
    %v5123 = vunpack.c.l.b16 %v4948
    %v5124 = vunpack.c.h.b16 %v4948
    %v5125 = vunpack.c.l.b16 %v4949
    %v5126 = vunpack.c.h.b16 %v4949
    %v5127 = vunpack.c.l.b16 %v4950
    %v5128 = vunpack.c.h.b16 %v4950
    %v5129 = vunpack.c.l.b16 %v4951
    %v5130 = vunpack.c.h.b16 %v4951
    %v5131 = vunpack.c.l.b16 %v4952
    %v5132 = vunpack.c.h.b16 %v4952
    %v5133 = vunpack.c.l.b16 %v4953
    %v5134 = vunpack.c.h.b16 %v4953
    %v5135 = vunpack.c.l.b16 %v4954
    %v5136 = vunpack.c.h.b16 %v4954
    %v5137 = vunpack.c.l.b16 %v4955
    %v5138 = vunpack.c.h.b16 %v4955
    %v5139 = vunpack.c.l.b16 %v4956
    %v5140 = vunpack.c.h.b16 %v4956
    %v5141 = vunpack.c.l.b16 %v4957
    %v5142 = vunpack.c.h.b16 %v4957
    %v5143 = vunpack.c.l.b16 %v4958
    %v5144 = vunpack.c.h.b16 %v4958
    %v5145 = vunpack.c.l.b16 %v4959
    %v5146 = vunpack.c.h.b16 %v4959
    %v5147 = vunpack.c.l.b16 %v4960
    %v5148 = vunpack.c.h.b16 %v4960
    %v5149 = vunpack.c.l.b16 %v4961
    %v5150 = vunpack.c.h.b16 %v4961
    %v5151 = vunpack.c.l.b16 %v4962
    %v5152 = vunpack.c.h.b16 %v4962
    %v5153 = vunpack.c.l.b16 %v4963
    %v5154 = vunpack.c.h.b16 %v4963
    %v5155 = vunpack.c.l.b16 %v4964
    %v5156 = vunpack.c.h.b16 %v4964
    %v5157 = vpack.c.b16 %v5037, %v5029
    %v5158 = vpack.c.b16 %v5038, %v5030
    %v5159 = vpack.c.b16 %v5039, %v5031
    %v5160 = vpack.c.b16 %v5040, %v5032
    %v5161 = vpack.c.b16 %v5041, %v5033
    %v5162 = vpack.c.b16 %v5042, %v5034
    %v5163 = vpack.c.b16 %v5043, %v5035
    %v5164 = vpack.c.b16 %v5044, %v5036
    %v5165 = vpack.c.b16 %v5053, %v5045
    %v5166 = vpack.c.b16 %v5054, %v5046
    %v5167 = vpack.c.b16 %v5055, %v5047
    %v5168 = vpack.c.b16 %v5056, %v5048
    %v5169 = vpack.c.b16 %v5057, %v5049
    %v5170 = vpack.c.b16 %v5058, %v5050
    %v5171 = vpack.c.b16 %v5059, %v5051
    %v5172 = vpack.c.b16 %v5060, %v5052
    %v5173 = vpack.c.b16 %v5069, %v5061
    %v5174 = vpack.c.b16 %v5070, %v5062
    %v5175 = vpack.c.b16 %v5071, %v5063
    %v5176 = vpack.c.b16 %v5072, %v5064
    %v5177 = vpack.c.b16 %v5073, %v5065
    %v5178 = vpack.c.b16 %v5074, %v5066
    %v5179 = vpack.c.b16 %v5075, %v5067
    %v5180 = vpack.c.b16 %v5076, %v5068
    %v5181 = vpack.c.b16 %v5085, %v5077
    %v5182 = vpack.c.b16 %v5086, %v5078
    %v5183 = vpack.c.b16 %v5087, %v5079
    %v5184 = vpack.c.b16 %v5088, %v5080
    %v5185 = vpack.c.b16 %v5089, %v5081
    %v5186 = vpack.c.b16 %v5090, %v5082
    %v5187 = vpack.c.b16 %v5091, %v5083
    %v5188 = vpack.c.b16 %v5092, %v5084
    %v5189 = vpack.c.b16 %v5101, %v5093
    %v5190 = vpack.c.b16 %v5102, %v5094
    %v5191 = vpack.c.b16 %v5103, %v5095
    %v5192 = vpack.c.b16 %v5104, %v5096
    %v5193 = vpack.c.b16 %v5105, %v5097
    %v5194 = vpack.c.b16 %v5106, %v5098
    %v5195 = vpack.c.b16 %v5107, %v5099
    %v5196 = vpack.c.b16 %v5108, %v5100
    %v5197 = vpack.c.b16 %v5117, %v5109
    %v5198 = vpack.c.b16 %v5118, %v5110
    %v5199 = vpack.c.b16 %v5119, %v5111
    %v5200 = vpack.c.b16 %v5120, %v5112
    %v5201 = vpack.c.b16 %v5121, %v5113
    %v5202 = vpack.c.b16 %v5122, %v5114
    %v5203 = vpack.c.b16 %v5123, %v5115
    %v5204 = vpack.c.b16 %v5124, %v5116
    %v5205 = vpack.c.b16 %v5133, %v5125
    %v5206 = vpack.c.b16 %v5134, %v5126
    %v5207 = vpack.c.b16 %v5135, %v5127
    %v5208 = vpack.c.b16 %v5136, %v5128
    %v5209 = vpack.c.b16 %v5137, %v5129
    %v5210 = vpack.c.b16 %v5138, %v5130
    %v5211 = vpack.c.b16 %v5139, %v5131
    %v5212 = vpack.c.b16 %v5140, %v5132
    %v5213 = vpack.c.b16 %v5149, %v5141
    %v5214 = vpack.c.b16 %v5150, %v5142
    %v5215 = vpack.c.b16 %v5151, %v5143
    %v5216 = vpack.c.b16 %v5152, %v5144
    %v5217 = vpack.c.b16 %v5153, %v5145
    %v5218 = vpack.c.b16 %v5154, %v5146
    %v5219 = vpack.c.b16 %v5155, %v5147
    %v5220 = vpack.c.b16 %v5156, %v5148
    %5285 = vmatpush.bf16.msra.mxu0 %v5213
    %5286 = vmatpush.bf16.msra.mxu0 %v5205
    %5287 = vmatpush.bf16.msra.mxu0 %v5197
    %5288 = vmatpush.bf16.msra.mxu0 %v5189
    %5289 = vmatpush.bf16.msra.mxu0 %v5181
    %5290 = vmatpush.bf16.msra.mxu0 %v5173
    %5291 = vmatpush.bf16.msra.mxu0 %v5165
    %5292 = vmatpush.bf16.msra.mxu0 %v5157
    %5293 = vmatmul.bf16.gmra.mxu0 %v4899
    %v5294 = vpop.f32.mrf.mxu0
    %v5295 = vadd.f32 0.0, %v5294
    %v5296 = vpop.f32.mrf.mxu0
    %5297 = vdwg.mxu0
    %5298 = vmatpush.bf16.msra.mxu0 %v5214
    %5299 = vmatpush.bf16.msra.mxu0 %v5206
    %5300 = vmatpush.bf16.msra.mxu0 %v5198
    %5301 = vmatpush.bf16.msra.mxu0 %v5190
    %5302 = vmatpush.bf16.msra.mxu0 %v5182
    %5303 = vmatpush.bf16.msra.mxu0 %v5174
    %5304 = vmatpush.bf16.msra.mxu0 %v5166
    %5305 = vmatpush.bf16.msra.mxu0 %v5158
    %5306 = vmatmul.bf16.gmra.mxu0 %v4899
    %v5307 = vpop.f32.mrf.mxu0
    %v5308 = vadd.f32 0.0, %v5307
    %v5309 = vpop.f32.mrf.mxu0
    %5310 = vdwg.mxu0
    %5311 = vmatpush.bf16.msra.mxu0 %v5215
    %5312 = vmatpush.bf16.msra.mxu0 %v5207
    %5313 = vmatpush.bf16.msra.mxu0 %v5199
    %5314 = vmatpush.bf16.msra.mxu0 %v5191
    %5315 = vmatpush.bf16.msra.mxu0 %v5183
    %5316 = vmatpush.bf16.msra.mxu0 %v5175
    %5317 = vmatpush.bf16.msra.mxu0 %v5167
    %5318 = vmatpush.bf16.msra.mxu0 %v5159
    %5319 = vmatmul.bf16.gmra.mxu0 %v4899
    %v5320 = vpop.f32.mrf.mxu0
    %v5321 = vadd.f32 0.0, %v5320
    %v5322 = vpop.f32.mrf.mxu0
    %5323 = vdwg.mxu0
    %5324 = vmatpush.bf16.msra.mxu0 %v5216
    %5325 = vmatpush.bf16.msra.mxu0 %v5208
    %5326 = vmatpush.bf16.msra.mxu0 %v5200
    %5327 = vmatpush.bf16.msra.mxu0 %v5192
    %5328 = vmatpush.bf16.msra.mxu0 %v5184
    %5329 = vmatpush.bf16.msra.mxu0 %v5176
    %5330 = vmatpush.bf16.msra.mxu0 %v5168
    %5331 = vmatpush.bf16.msra.mxu0 %v5160
    %5332 = vmatmul.bf16.gmra.mxu0 %v4899
    %v5333 = vpop.f32.mrf.mxu0
    %v5334 = vadd.f32 0.0, %v5333
    %v5335 = vpop.f32.mrf.mxu0
    %5336 = vdwg.mxu0
    %5337 = vmatpush.bf16.msra.mxu0 %v5217
    %5338 = vmatpush.bf16.msra.mxu0 %v5209
    %5339 = vmatpush.bf16.msra.mxu0 %v5201
    %5340 = vmatpush.bf16.msra.mxu0 %v5193
    %5341 = vmatpush.bf16.msra.mxu0 %v5185
    %5342 = vmatpush.bf16.msra.mxu0 %v5177
    %5343 = vmatpush.bf16.msra.mxu0 %v5169
    %5344 = vmatpush.bf16.msra.mxu0 %v5161
    %5345 = vmatmul.bf16.gmra.mxu0 %v4899
    %v5346 = vpop.f32.mrf.mxu0
    %v5347 = vadd.f32 0.0, %v5346
    %v5348 = vpop.f32.mrf.mxu0
    %5349 = vdwg.mxu0
    %5350 = vmatpush.bf16.msra.mxu0 %v5218
    %5351 = vmatpush.bf16.msra.mxu0 %v5210
    %5352 = vmatpush.bf16.msra.mxu0 %v5202
    %5353 = vmatpush.bf16.msra.mxu0 %v5194
    %5354 = vmatpush.bf16.msra.mxu0 %v5186
    %5355 = vmatpush.bf16.msra.mxu0 %v5178
    %5356 = vmatpush.bf16.msra.mxu0 %v5170
    %5357 = vmatpush.bf16.msra.mxu0 %v5162
    %5358 = vmatmul.bf16.gmra.mxu0 %v4899
    %v5359 = vpop.f32.mrf.mxu0
    %v5360 = vadd.f32 0.0, %v5359
    %v5361 = vpop.f32.mrf.mxu0
    %5362 = vdwg.mxu0
    %5363 = vmatpush.bf16.msra.mxu0 %v5219
    %5364 = vmatpush.bf16.msra.mxu0 %v5211
    %5365 = vmatpush.bf16.msra.mxu0 %v5203
    %5366 = vmatpush.bf16.msra.mxu0 %v5195
    %5367 = vmatpush.bf16.msra.mxu0 %v5187
    %5368 = vmatpush.bf16.msra.mxu0 %v5179
    %5369 = vmatpush.bf16.msra.mxu0 %v5171
    %5370 = vmatpush.bf16.msra.mxu0 %v5163
    %5371 = vmatmul.bf16.gmra.mxu0 %v4899
    %v5372 = vpop.f32.mrf.mxu0
    %v5373 = vadd.f32 0.0, %v5372
    %v5374 = vpop.f32.mrf.mxu0
    %5375 = vdwg.mxu0
    %5376 = vmatpush.bf16.msra.mxu0 %v5220
    %5377 = vmatpush.bf16.msra.mxu0 %v5212
    %5378 = vmatpush.bf16.msra.mxu0 %v5204
    %5379 = vmatpush.bf16.msra.mxu0 %v5196
    %5380 = vmatpush.bf16.msra.mxu0 %v5188
    %5381 = vmatpush.bf16.msra.mxu0 %v5180
    %5382 = vmatpush.bf16.msra.mxu0 %v5172
    %5383 = vmatpush.bf16.msra.mxu0 %v5164
    %5384 = vmatmul.bf16.gmra.mxu0 %v4899
    %v5385 = vpop.f32.mrf.mxu0
    %v5386 = vadd.f32 0.0, %v5385
    %v5387 = vpop.f32.mrf.mxu0
    %5388 = vdwg.mxu0
    %v5389 = vadd.f32 %v4886, %v5295
    %v5390 = vadd.f32 %v4887, %v5308
    %v5391 = vadd.f32 %v4888, %v5321
    %v5392 = vadd.f32 %v4889, %v5334
    %v5393 = vadd.f32 %v4890, %v5347
    %v5394 = vadd.f32 %v4891, %v5360
    %v5395 = vadd.f32 %v4892, %v5373
    %v5396 = vadd.f32 %v4893, %v5386
    %v5397 = vrot.slane %v2387, 6
    %v5399 = vrot.slane %v2395, 5
    %v5401 = vsel %vm2400, %v5397, %v5399
    %v5402 = vpack.c.bf16 %v5401, %v5401
    %s5403 = scalar_lea.vmem [#allocation22], 3072
    %v5404 = vld [vmem:[%s5403] sm:$0xff]
    %v5405 = vld [vmem:[%s5403 + $0x8] sm:$0xff]
    %v5406 = vld [vmem:[%s5403 + $0x10] sm:$0xff]
    %v5407 = vld [vmem:[%s5403 + $0x18] sm:$0xff]
    %v5408 = vld [vmem:[%s5403 + $0x20] sm:$0xff]
    %v5409 = vld [vmem:[%s5403 + $0x28] sm:$0xff]
    %v5410 = vld [vmem:[%s5403 + $0x30] sm:$0xff]
    %v5411 = vld [vmem:[%s5403 + $0x38] sm:$0xff]
    %v5412 = vld [vmem:[%s5403 + $0x40] sm:$0xff]
    %v5413 = vld [vmem:[%s5403 + $0x48] sm:$0xff]
    %v5414 = vld [vmem:[%s5403 + $0x50] sm:$0xff]
    %v5415 = vld [vmem:[%s5403 + $0x58] sm:$0xff]
    %v5416 = vld [vmem:[%s5403 + $0x60] sm:$0xff]
    %v5417 = vld [vmem:[%s5403 + $0x68] sm:$0xff]
    %v5418 = vld [vmem:[%s5403 + $0x70] sm:$0xff]
    %v5419 = vld [vmem:[%s5403 + $0x78] sm:$0xff]
    %v5420 = vld [vmem:[%s5403 + $0x80] sm:$0xff]
    %v5421 = vld [vmem:[%s5403 + $0x88] sm:$0xff]
    %v5422 = vld [vmem:[%s5403 + $0x90] sm:$0xff]
    %v5423 = vld [vmem:[%s5403 + $0x98] sm:$0xff]
    %v5424 = vld [vmem:[%s5403 + $0xa0] sm:$0xff]
    %v5425 = vld [vmem:[%s5403 + $0xa8] sm:$0xff]
    %v5426 = vld [vmem:[%s5403 + $0xb0] sm:$0xff]
    %v5427 = vld [vmem:[%s5403 + $0xb8] sm:$0xff]
    %v5428 = vld [vmem:[%s5403 + $0xc0] sm:$0xff]
    %v5429 = vld [vmem:[%s5403 + $0xc8] sm:$0xff]
    %v5430 = vld [vmem:[%s5403 + $0xd0] sm:$0xff]
    %v5431 = vld [vmem:[%s5403 + $0xd8] sm:$0xff]
    %v5432 = vld [vmem:[%s5403 + $0xe0] sm:$0xff]
    %v5433 = vld [vmem:[%s5403 + $0xe8] sm:$0xff]
    %v5434 = vld [vmem:[%s5403 + $0xf0] sm:$0xff]
    %v5435 = vld [vmem:[%s5403 + $0xf8] sm:$0xff]
    %v5436 = vld [vmem:[%s5403 + $0x100] sm:$0xff]
    %v5437 = vld [vmem:[%s5403 + $0x108] sm:$0xff]
    %v5438 = vld [vmem:[%s5403 + $0x110] sm:$0xff]
    %v5439 = vld [vmem:[%s5403 + $0x118] sm:$0xff]
    %v5440 = vld [vmem:[%s5403 + $0x120] sm:$0xff]
    %v5441 = vld [vmem:[%s5403 + $0x128] sm:$0xff]
    %v5442 = vld [vmem:[%s5403 + $0x130] sm:$0xff]
    %v5443 = vld [vmem:[%s5403 + $0x138] sm:$0xff]
    %v5444 = vld [vmem:[%s5403 + $0x140] sm:$0xff]
    %v5445 = vld [vmem:[%s5403 + $0x148] sm:$0xff]
    %v5446 = vld [vmem:[%s5403 + $0x150] sm:$0xff]
    %v5447 = vld [vmem:[%s5403 + $0x158] sm:$0xff]
    %v5448 = vld [vmem:[%s5403 + $0x160] sm:$0xff]
    %v5449 = vld [vmem:[%s5403 + $0x168] sm:$0xff]
    %v5450 = vld [vmem:[%s5403 + $0x170] sm:$0xff]
    %v5451 = vld [vmem:[%s5403 + $0x178] sm:$0xff]
    %v5452 = vld [vmem:[%s5403 + $0x180] sm:$0xff]
    %v5453 = vld [vmem:[%s5403 + $0x188] sm:$0xff]
    %v5454 = vld [vmem:[%s5403 + $0x190] sm:$0xff]
    %v5455 = vld [vmem:[%s5403 + $0x198] sm:$0xff]
    %v5456 = vld [vmem:[%s5403 + $0x1a0] sm:$0xff]
    %v5457 = vld [vmem:[%s5403 + $0x1a8] sm:$0xff]
    %v5458 = vld [vmem:[%s5403 + $0x1b0] sm:$0xff]
    %v5459 = vld [vmem:[%s5403 + $0x1b8] sm:$0xff]
    %v5460 = vld [vmem:[%s5403 + $0x1c0] sm:$0xff]
    %v5461 = vld [vmem:[%s5403 + $0x1c8] sm:$0xff]
    %v5462 = vld [vmem:[%s5403 + $0x1d0] sm:$0xff]
    %v5463 = vld [vmem:[%s5403 + $0x1d8] sm:$0xff]
    %v5464 = vld [vmem:[%s5403 + $0x1e0] sm:$0xff]
    %v5465 = vld [vmem:[%s5403 + $0x1e8] sm:$0xff]
    %v5466 = vld [vmem:[%s5403 + $0x1f0] sm:$0xff]
    %v5467 = vld [vmem:[%s5403 + $0x1f8] sm:$0xff]
    %v5532 = vunpack.c.l.b16 %v5404
    %v5533 = vunpack.c.h.b16 %v5404
    %v5534 = vunpack.c.l.b16 %v5405
    %v5535 = vunpack.c.h.b16 %v5405
    %v5536 = vunpack.c.l.b16 %v5406
    %v5537 = vunpack.c.h.b16 %v5406
    %v5538 = vunpack.c.l.b16 %v5407
    %v5539 = vunpack.c.h.b16 %v5407
    %v5540 = vunpack.c.l.b16 %v5408
    %v5541 = vunpack.c.h.b16 %v5408
    %v5542 = vunpack.c.l.b16 %v5409
    %v5543 = vunpack.c.h.b16 %v5409
    %v5544 = vunpack.c.l.b16 %v5410
    %v5545 = vunpack.c.h.b16 %v5410
    %v5546 = vunpack.c.l.b16 %v5411
    %v5547 = vunpack.c.h.b16 %v5411
    %v5548 = vunpack.c.l.b16 %v5412
    %v5549 = vunpack.c.h.b16 %v5412
    %v5550 = vunpack.c.l.b16 %v5413
    %v5551 = vunpack.c.h.b16 %v5413
    %v5552 = vunpack.c.l.b16 %v5414
    %v5553 = vunpack.c.h.b16 %v5414
    %v5554 = vunpack.c.l.b16 %v5415
    %v5555 = vunpack.c.h.b16 %v5415
    %v5556 = vunpack.c.l.b16 %v5416
    %v5557 = vunpack.c.h.b16 %v5416
    %v5558 = vunpack.c.l.b16 %v5417
    %v5559 = vunpack.c.h.b16 %v5417
    %v5560 = vunpack.c.l.b16 %v5418
    %v5561 = vunpack.c.h.b16 %v5418
    %v5562 = vunpack.c.l.b16 %v5419
    %v5563 = vunpack.c.h.b16 %v5419
    %v5564 = vunpack.c.l.b16 %v5420
    %v5565 = vunpack.c.h.b16 %v5420
    %v5566 = vunpack.c.l.b16 %v5421
    %v5567 = vunpack.c.h.b16 %v5421
    %v5568 = vunpack.c.l.b16 %v5422
    %v5569 = vunpack.c.h.b16 %v5422
    %v5570 = vunpack.c.l.b16 %v5423
    %v5571 = vunpack.c.h.b16 %v5423
    %v5572 = vunpack.c.l.b16 %v5424
    %v5573 = vunpack.c.h.b16 %v5424
    %v5574 = vunpack.c.l.b16 %v5425
    %v5575 = vunpack.c.h.b16 %v5425
    %v5576 = vunpack.c.l.b16 %v5426
    %v5577 = vunpack.c.h.b16 %v5426
    %v5578 = vunpack.c.l.b16 %v5427
    %v5579 = vunpack.c.h.b16 %v5427
    %v5580 = vunpack.c.l.b16 %v5428
    %v5581 = vunpack.c.h.b16 %v5428
    %v5582 = vunpack.c.l.b16 %v5429
    %v5583 = vunpack.c.h.b16 %v5429
    %v5584 = vunpack.c.l.b16 %v5430
    %v5585 = vunpack.c.h.b16 %v5430
    %v5586 = vunpack.c.l.b16 %v5431
    %v5587 = vunpack.c.h.b16 %v5431
    %v5588 = vunpack.c.l.b16 %v5432
    %v5589 = vunpack.c.h.b16 %v5432
    %v5590 = vunpack.c.l.b16 %v5433
    %v5591 = vunpack.c.h.b16 %v5433
    %v5592 = vunpack.c.l.b16 %v5434
    %v5593 = vunpack.c.h.b16 %v5434
    %v5594 = vunpack.c.l.b16 %v5435
    %v5595 = vunpack.c.h.b16 %v5435
    %v5596 = vunpack.c.l.b16 %v5436
    %v5597 = vunpack.c.h.b16 %v5436
    %v5598 = vunpack.c.l.b16 %v5437
    %v5599 = vunpack.c.h.b16 %v5437
    %v5600 = vunpack.c.l.b16 %v5438
    %v5601 = vunpack.c.h.b16 %v5438
    %v5602 = vunpack.c.l.b16 %v5439
    %v5603 = vunpack.c.h.b16 %v5439
    %v5604 = vunpack.c.l.b16 %v5440
    %v5605 = vunpack.c.h.b16 %v5440
    %v5606 = vunpack.c.l.b16 %v5441
    %v5607 = vunpack.c.h.b16 %v5441
    %v5608 = vunpack.c.l.b16 %v5442
    %v5609 = vunpack.c.h.b16 %v5442
    %v5610 = vunpack.c.l.b16 %v5443
    %v5611 = vunpack.c.h.b16 %v5443
    %v5612 = vunpack.c.l.b16 %v5444
    %v5613 = vunpack.c.h.b16 %v5444
    %v5614 = vunpack.c.l.b16 %v5445
    %v5615 = vunpack.c.h.b16 %v5445
    %v5616 = vunpack.c.l.b16 %v5446
    %v5617 = vunpack.c.h.b16 %v5446
    %v5618 = vunpack.c.l.b16 %v5447
    %v5619 = vunpack.c.h.b16 %v5447
    %v5620 = vunpack.c.l.b16 %v5448
    %v5621 = vunpack.c.h.b16 %v5448
    %v5622 = vunpack.c.l.b16 %v5449
    %v5623 = vunpack.c.h.b16 %v5449
    %v5624 = vunpack.c.l.b16 %v5450
    %v5625 = vunpack.c.h.b16 %v5450
    %v5626 = vunpack.c.l.b16 %v5451
    %v5627 = vunpack.c.h.b16 %v5451
    %v5628 = vunpack.c.l.b16 %v5452
    %v5629 = vunpack.c.h.b16 %v5452
    %v5630 = vunpack.c.l.b16 %v5453
    %v5631 = vunpack.c.h.b16 %v5453
    %v5632 = vunpack.c.l.b16 %v5454
    %v5633 = vunpack.c.h.b16 %v5454
    %v5634 = vunpack.c.l.b16 %v5455
    %v5635 = vunpack.c.h.b16 %v5455
    %v5636 = vunpack.c.l.b16 %v5456
    %v5637 = vunpack.c.h.b16 %v5456
    %v5638 = vunpack.c.l.b16 %v5457
    %v5639 = vunpack.c.h.b16 %v5457
    %v5640 = vunpack.c.l.b16 %v5458
    %v5641 = vunpack.c.h.b16 %v5458
    %v5642 = vunpack.c.l.b16 %v5459
    %v5643 = vunpack.c.h.b16 %v5459
    %v5644 = vunpack.c.l.b16 %v5460
    %v5645 = vunpack.c.h.b16 %v5460
    %v5646 = vunpack.c.l.b16 %v5461
    %v5647 = vunpack.c.h.b16 %v5461
    %v5648 = vunpack.c.l.b16 %v5462
    %v5649 = vunpack.c.h.b16 %v5462
    %v5650 = vunpack.c.l.b16 %v5463
    %v5651 = vunpack.c.h.b16 %v5463
    %v5652 = vunpack.c.l.b16 %v5464
    %v5653 = vunpack.c.h.b16 %v5464
    %v5654 = vunpack.c.l.b16 %v5465
    %v5655 = vunpack.c.h.b16 %v5465
    %v5656 = vunpack.c.l.b16 %v5466
    %v5657 = vunpack.c.h.b16 %v5466
    %v5658 = vunpack.c.l.b16 %v5467
    %v5659 = vunpack.c.h.b16 %v5467
    %v5660 = vpack.c.b16 %v5540, %v5532
    %v5661 = vpack.c.b16 %v5541, %v5533
    %v5662 = vpack.c.b16 %v5542, %v5534
    %v5663 = vpack.c.b16 %v5543, %v5535
    %v5664 = vpack.c.b16 %v5544, %v5536
    %v5665 = vpack.c.b16 %v5545, %v5537
    %v5666 = vpack.c.b16 %v5546, %v5538
    %v5667 = vpack.c.b16 %v5547, %v5539
    %v5668 = vpack.c.b16 %v5556, %v5548
    %v5669 = vpack.c.b16 %v5557, %v5549
    %v5670 = vpack.c.b16 %v5558, %v5550
    %v5671 = vpack.c.b16 %v5559, %v5551
    %v5672 = vpack.c.b16 %v5560, %v5552
    %v5673 = vpack.c.b16 %v5561, %v5553
    %v5674 = vpack.c.b16 %v5562, %v5554
    %v5675 = vpack.c.b16 %v5563, %v5555
    %v5676 = vpack.c.b16 %v5572, %v5564
    %v5677 = vpack.c.b16 %v5573, %v5565
    %v5678 = vpack.c.b16 %v5574, %v5566
    %v5679 = vpack.c.b16 %v5575, %v5567
    %v5680 = vpack.c.b16 %v5576, %v5568
    %v5681 = vpack.c.b16 %v5577, %v5569
    %v5682 = vpack.c.b16 %v5578, %v5570
    %v5683 = vpack.c.b16 %v5579, %v5571
    %v5684 = vpack.c.b16 %v5588, %v5580
    %v5685 = vpack.c.b16 %v5589, %v5581
    %v5686 = vpack.c.b16 %v5590, %v5582
    %v5687 = vpack.c.b16 %v5591, %v5583
    %v5688 = vpack.c.b16 %v5592, %v5584
    %v5689 = vpack.c.b16 %v5593, %v5585
    %v5690 = vpack.c.b16 %v5594, %v5586
    %v5691 = vpack.c.b16 %v5595, %v5587
    %v5692 = vpack.c.b16 %v5604, %v5596
    %v5693 = vpack.c.b16 %v5605, %v5597
    %v5694 = vpack.c.b16 %v5606, %v5598
    %v5695 = vpack.c.b16 %v5607, %v5599
    %v5696 = vpack.c.b16 %v5608, %v5600
    %v5697 = vpack.c.b16 %v5609, %v5601
    %v5698 = vpack.c.b16 %v5610, %v5602
    %v5699 = vpack.c.b16 %v5611, %v5603
    %v5700 = vpack.c.b16 %v5620, %v5612
    %v5701 = vpack.c.b16 %v5621, %v5613
    %v5702 = vpack.c.b16 %v5622, %v5614
    %v5703 = vpack.c.b16 %v5623, %v5615
    %v5704 = vpack.c.b16 %v5624, %v5616
    %v5705 = vpack.c.b16 %v5625, %v5617
    %v5706 = vpack.c.b16 %v5626, %v5618
    %v5707 = vpack.c.b16 %v5627, %v5619
    %v5708 = vpack.c.b16 %v5636, %v5628
    %v5709 = vpack.c.b16 %v5637, %v5629
    %v5710 = vpack.c.b16 %v5638, %v5630
    %v5711 = vpack.c.b16 %v5639, %v5631
    %v5712 = vpack.c.b16 %v5640, %v5632
    %v5713 = vpack.c.b16 %v5641, %v5633
    %v5714 = vpack.c.b16 %v5642, %v5634
    %v5715 = vpack.c.b16 %v5643, %v5635
    %v5716 = vpack.c.b16 %v5652, %v5644
    %v5717 = vpack.c.b16 %v5653, %v5645
    %v5718 = vpack.c.b16 %v5654, %v5646
    %v5719 = vpack.c.b16 %v5655, %v5647
    %v5720 = vpack.c.b16 %v5656, %v5648
    %v5721 = vpack.c.b16 %v5657, %v5649
    %v5722 = vpack.c.b16 %v5658, %v5650
    %v5723 = vpack.c.b16 %v5659, %v5651
    %5788 = vmatpush.bf16.msra.mxu0 %v5716
    %5789 = vmatpush.bf16.msra.mxu0 %v5708
    %5790 = vmatpush.bf16.msra.mxu0 %v5700
    %5791 = vmatpush.bf16.msra.mxu0 %v5692
    %5792 = vmatpush.bf16.msra.mxu0 %v5684
    %5793 = vmatpush.bf16.msra.mxu0 %v5676
    %5794 = vmatpush.bf16.msra.mxu0 %v5668
    %5795 = vmatpush.bf16.msra.mxu0 %v5660
    %5796 = vmatmul.bf16.gmra.mxu0 %v5402
    %v5797 = vpop.f32.mrf.mxu0
    %v5798 = vadd.f32 0.0, %v5797
    %v5799 = vpop.f32.mrf.mxu0
    %5800 = vdwg.mxu0
    %5801 = vmatpush.bf16.msra.mxu0 %v5717
    %5802 = vmatpush.bf16.msra.mxu0 %v5709
    %5803 = vmatpush.bf16.msra.mxu0 %v5701
    %5804 = vmatpush.bf16.msra.mxu0 %v5693
    %5805 = vmatpush.bf16.msra.mxu0 %v5685
    %5806 = vmatpush.bf16.msra.mxu0 %v5677
    %5807 = vmatpush.bf16.msra.mxu0 %v5669
    %5808 = vmatpush.bf16.msra.mxu0 %v5661
    %5809 = vmatmul.bf16.gmra.mxu0 %v5402
    %v5810 = vpop.f32.mrf.mxu0
    %v5811 = vadd.f32 0.0, %v5810
    %v5812 = vpop.f32.mrf.mxu0
    %5813 = vdwg.mxu0
    %5814 = vmatpush.bf16.msra.mxu0 %v5718
    %5815 = vmatpush.bf16.msra.mxu0 %v5710
    %5816 = vmatpush.bf16.msra.mxu0 %v5702
    %5817 = vmatpush.bf16.msra.mxu0 %v5694
    %5818 = vmatpush.bf16.msra.mxu0 %v5686
    %5819 = vmatpush.bf16.msra.mxu0 %v5678
    %5820 = vmatpush.bf16.msra.mxu0 %v5670
    %5821 = vmatpush.bf16.msra.mxu0 %v5662
    %5822 = vmatmul.bf16.gmra.mxu0 %v5402
    %v5823 = vpop.f32.mrf.mxu0
    %v5824 = vadd.f32 0.0, %v5823
    %v5825 = vpop.f32.mrf.mxu0
    %5826 = vdwg.mxu0
    %5827 = vmatpush.bf16.msra.mxu0 %v5719
    %5828 = vmatpush.bf16.msra.mxu0 %v5711
    %5829 = vmatpush.bf16.msra.mxu0 %v5703
    %5830 = vmatpush.bf16.msra.mxu0 %v5695
    %5831 = vmatpush.bf16.msra.mxu0 %v5687
    %5832 = vmatpush.bf16.msra.mxu0 %v5679
    %5833 = vmatpush.bf16.msra.mxu0 %v5671
    %5834 = vmatpush.bf16.msra.mxu0 %v5663
    %5835 = vmatmul.bf16.gmra.mxu0 %v5402
    %v5836 = vpop.f32.mrf.mxu0
    %v5837 = vadd.f32 0.0, %v5836
    %v5838 = vpop.f32.mrf.mxu0
    %5839 = vdwg.mxu0
    %5840 = vmatpush.bf16.msra.mxu0 %v5720
    %5841 = vmatpush.bf16.msra.mxu0 %v5712
    %5842 = vmatpush.bf16.msra.mxu0 %v5704
    %5843 = vmatpush.bf16.msra.mxu0 %v5696
    %5844 = vmatpush.bf16.msra.mxu0 %v5688
    %5845 = vmatpush.bf16.msra.mxu0 %v5680
    %5846 = vmatpush.bf16.msra.mxu0 %v5672
    %5847 = vmatpush.bf16.msra.mxu0 %v5664
    %5848 = vmatmul.bf16.gmra.mxu0 %v5402
    %v5849 = vpop.f32.mrf.mxu0
    %v5850 = vadd.f32 0.0, %v5849
    %v5851 = vpop.f32.mrf.mxu0
    %5852 = vdwg.mxu0
    %5853 = vmatpush.bf16.msra.mxu0 %v5721
    %5854 = vmatpush.bf16.msra.mxu0 %v5713
    %5855 = vmatpush.bf16.msra.mxu0 %v5705
    %5856 = vmatpush.bf16.msra.mxu0 %v5697
    %5857 = vmatpush.bf16.msra.mxu0 %v5689
    %5858 = vmatpush.bf16.msra.mxu0 %v5681
    %5859 = vmatpush.bf16.msra.mxu0 %v5673
    %5860 = vmatpush.bf16.msra.mxu0 %v5665
    %5861 = vmatmul.bf16.gmra.mxu0 %v5402
    %v5862 = vpop.f32.mrf.mxu0
    %v5863 = vadd.f32 0.0, %v5862
    %v5864 = vpop.f32.mrf.mxu0
    %5865 = vdwg.mxu0
    %5866 = vmatpush.bf16.msra.mxu0 %v5722
    %5867 = vmatpush.bf16.msra.mxu0 %v5714
    %5868 = vmatpush.bf16.msra.mxu0 %v5706
    %5869 = vmatpush.bf16.msra.mxu0 %v5698
    %5870 = vmatpush.bf16.msra.mxu0 %v5690
    %5871 = vmatpush.bf16.msra.mxu0 %v5682
    %5872 = vmatpush.bf16.msra.mxu0 %v5674
    %5873 = vmatpush.bf16.msra.mxu0 %v5666
    %5874 = vmatmul.bf16.gmra.mxu0 %v5402
    %v5875 = vpop.f32.mrf.mxu0
    %v5876 = vadd.f32 0.0, %v5875
    %v5877 = vpop.f32.mrf.mxu0
    %5878 = vdwg.mxu0
    %5879 = vmatpush.bf16.msra.mxu0 %v5723
    %5880 = vmatpush.bf16.msra.mxu0 %v5715
    %5881 = vmatpush.bf16.msra.mxu0 %v5707
    %5882 = vmatpush.bf16.msra.mxu0 %v5699
    %5883 = vmatpush.bf16.msra.mxu0 %v5691
    %5884 = vmatpush.bf16.msra.mxu0 %v5683
    %5885 = vmatpush.bf16.msra.mxu0 %v5675
    %5886 = vmatpush.bf16.msra.mxu0 %v5667
    %5887 = vmatmul.bf16.gmra.mxu0 %v5402
    %v5888 = vpop.f32.mrf.mxu0
    %v5889 = vadd.f32 0.0, %v5888
    %v5890 = vpop.f32.mrf.mxu0
    %5891 = vdwg.mxu0
    %v5892 = vadd.f32 %v5389, %v5798
    %v5893 = vadd.f32 %v5390, %v5811
    %v5894 = vadd.f32 %v5391, %v5824
    %v5895 = vadd.f32 %v5392, %v5837
    %v5896 = vadd.f32 %v5393, %v5850
    %v5897 = vadd.f32 %v5394, %v5863
    %v5898 = vadd.f32 %v5395, %v5876
    %v5899 = vadd.f32 %v5396, %v5889
    %v5900 = vrot.slane %v2387, 7
    %v5902 = vrot.slane %v2395, 6
    %v5904 = vsel %vm2400, %v5900, %v5902
    %v5905 = vpack.c.bf16 %v5904, %v5904
    %s5906 = scalar_lea.vmem [#allocation22], 3584
    %v5907 = vld [vmem:[%s5906] sm:$0xff]
    %v5908 = vld [vmem:[%s5906 + $0x8] sm:$0xff]
    %v5909 = vld [vmem:[%s5906 + $0x10] sm:$0xff]
    %v5910 = vld [vmem:[%s5906 + $0x18] sm:$0xff]
    %v5911 = vld [vmem:[%s5906 + $0x20] sm:$0xff]
    %v5912 = vld [vmem:[%s5906 + $0x28] sm:$0xff]
    %v5913 = vld [vmem:[%s5906 + $0x30] sm:$0xff]
    %v5914 = vld [vmem:[%s5906 + $0x38] sm:$0xff]
    %v5915 = vld [vmem:[%s5906 + $0x40] sm:$0xff]
    %v5916 = vld [vmem:[%s5906 + $0x48] sm:$0xff]
    %v5917 = vld [vmem:[%s5906 + $0x50] sm:$0xff]
    %v5918 = vld [vmem:[%s5906 + $0x58] sm:$0xff]
    %v5919 = vld [vmem:[%s5906 + $0x60] sm:$0xff]
    %v5920 = vld [vmem:[%s5906 + $0x68] sm:$0xff]
    %v5921 = vld [vmem:[%s5906 + $0x70] sm:$0xff]
    %v5922 = vld [vmem:[%s5906 + $0x78] sm:$0xff]
    %v5923 = vld [vmem:[%s5906 + $0x80] sm:$0xff]
    %v5924 = vld [vmem:[%s5906 + $0x88] sm:$0xff]
    %v5925 = vld [vmem:[%s5906 + $0x90] sm:$0xff]
    %v5926 = vld [vmem:[%s5906 + $0x98] sm:$0xff]
    %v5927 = vld [vmem:[%s5906 + $0xa0] sm:$0xff]
    %v5928 = vld [vmem:[%s5906 + $0xa8] sm:$0xff]
    %v5929 = vld [vmem:[%s5906 + $0xb0] sm:$0xff]
    %v5930 = vld [vmem:[%s5906 + $0xb8] sm:$0xff]
    %v5931 = vld [vmem:[%s5906 + $0xc0] sm:$0xff]
    %v5932 = vld [vmem:[%s5906 + $0xc8] sm:$0xff]
    %v5933 = vld [vmem:[%s5906 + $0xd0] sm:$0xff]
    %v5934 = vld [vmem:[%s5906 + $0xd8] sm:$0xff]
    %v5935 = vld [vmem:[%s5906 + $0xe0] sm:$0xff]
    %v5936 = vld [vmem:[%s5906 + $0xe8] sm:$0xff]
    %v5937 = vld [vmem:[%s5906 + $0xf0] sm:$0xff]
    %v5938 = vld [vmem:[%s5906 + $0xf8] sm:$0xff]
    %v5939 = vld [vmem:[%s5906 + $0x100] sm:$0xff]
    %v5940 = vld [vmem:[%s5906 + $0x108] sm:$0xff]
    %v5941 = vld [vmem:[%s5906 + $0x110] sm:$0xff]
    %v5942 = vld [vmem:[%s5906 + $0x118] sm:$0xff]
    %v5943 = vld [vmem:[%s5906 + $0x120] sm:$0xff]
    %v5944 = vld [vmem:[%s5906 + $0x128] sm:$0xff]
    %v5945 = vld [vmem:[%s5906 + $0x130] sm:$0xff]
    %v5946 = vld [vmem:[%s5906 + $0x138] sm:$0xff]
    %v5947 = vld [vmem:[%s5906 + $0x140] sm:$0xff]
    %v5948 = vld [vmem:[%s5906 + $0x148] sm:$0xff]
    %v5949 = vld [vmem:[%s5906 + $0x150] sm:$0xff]
    %v5950 = vld [vmem:[%s5906 + $0x158] sm:$0xff]
    %v5951 = vld [vmem:[%s5906 + $0x160] sm:$0xff]
    %v5952 = vld [vmem:[%s5906 + $0x168] sm:$0xff]
    %v5953 = vld [vmem:[%s5906 + $0x170] sm:$0xff]
    %v5954 = vld [vmem:[%s5906 + $0x178] sm:$0xff]
    %v5955 = vld [vmem:[%s5906 + $0x180] sm:$0xff]
    %v5956 = vld [vmem:[%s5906 + $0x188] sm:$0xff]
    %v5957 = vld [vmem:[%s5906 + $0x190] sm:$0xff]
    %v5958 = vld [vmem:[%s5906 + $0x198] sm:$0xff]
    %v5959 = vld [vmem:[%s5906 + $0x1a0] sm:$0xff]
    %v5960 = vld [vmem:[%s5906 + $0x1a8] sm:$0xff]
    %v5961 = vld [vmem:[%s5906 + $0x1b0] sm:$0xff]
    %v5962 = vld [vmem:[%s5906 + $0x1b8] sm:$0xff]
    %v5963 = vld [vmem:[%s5906 + $0x1c0] sm:$0xff]
    %v5964 = vld [vmem:[%s5906 + $0x1c8] sm:$0xff]
    %v5965 = vld [vmem:[%s5906 + $0x1d0] sm:$0xff]
    %v5966 = vld [vmem:[%s5906 + $0x1d8] sm:$0xff]
    %v5967 = vld [vmem:[%s5906 + $0x1e0] sm:$0xff]
    %v5968 = vld [vmem:[%s5906 + $0x1e8] sm:$0xff]
    %v5969 = vld [vmem:[%s5906 + $0x1f0] sm:$0xff]
    %v5970 = vld [vmem:[%s5906 + $0x1f8] sm:$0xff]
    %v6035 = vunpack.c.l.b16 %v5907
    %v6036 = vunpack.c.h.b16 %v5907
    %v6037 = vunpack.c.l.b16 %v5908
    %v6038 = vunpack.c.h.b16 %v5908
    %v6039 = vunpack.c.l.b16 %v5909
    %v6040 = vunpack.c.h.b16 %v5909
    %v6041 = vunpack.c.l.b16 %v5910
    %v6042 = vunpack.c.h.b16 %v5910
    %v6043 = vunpack.c.l.b16 %v5911
    %v6044 = vunpack.c.h.b16 %v5911
    %v6045 = vunpack.c.l.b16 %v5912
    %v6046 = vunpack.c.h.b16 %v5912
    %v6047 = vunpack.c.l.b16 %v5913
    %v6048 = vunpack.c.h.b16 %v5913
    %v6049 = vunpack.c.l.b16 %v5914
    %v6050 = vunpack.c.h.b16 %v5914
    %v6051 = vunpack.c.l.b16 %v5915
    %v6052 = vunpack.c.h.b16 %v5915
    %v6053 = vunpack.c.l.b16 %v5916
    %v6054 = vunpack.c.h.b16 %v5916
    %v6055 = vunpack.c.l.b16 %v5917
    %v6056 = vunpack.c.h.b16 %v5917
    %v6057 = vunpack.c.l.b16 %v5918
    %v6058 = vunpack.c.h.b16 %v5918
    %v6059 = vunpack.c.l.b16 %v5919
    %v6060 = vunpack.c.h.b16 %v5919
    %v6061 = vunpack.c.l.b16 %v5920
    %v6062 = vunpack.c.h.b16 %v5920
    %v6063 = vunpack.c.l.b16 %v5921
    %v6064 = vunpack.c.h.b16 %v5921
    %v6065 = vunpack.c.l.b16 %v5922
    %v6066 = vunpack.c.h.b16 %v5922
    %v6067 = vunpack.c.l.b16 %v5923
    %v6068 = vunpack.c.h.b16 %v5923
    %v6069 = vunpack.c.l.b16 %v5924
    %v6070 = vunpack.c.h.b16 %v5924
    %v6071 = vunpack.c.l.b16 %v5925
    %v6072 = vunpack.c.h.b16 %v5925
    %v6073 = vunpack.c.l.b16 %v5926
    %v6074 = vunpack.c.h.b16 %v5926
    %v6075 = vunpack.c.l.b16 %v5927
    %v6076 = vunpack.c.h.b16 %v5927
    %v6077 = vunpack.c.l.b16 %v5928
    %v6078 = vunpack.c.h.b16 %v5928
    %v6079 = vunpack.c.l.b16 %v5929
    %v6080 = vunpack.c.h.b16 %v5929
    %v6081 = vunpack.c.l.b16 %v5930
    %v6082 = vunpack.c.h.b16 %v5930
    %v6083 = vunpack.c.l.b16 %v5931
    %v6084 = vunpack.c.h.b16 %v5931
    %v6085 = vunpack.c.l.b16 %v5932
    %v6086 = vunpack.c.h.b16 %v5932
    %v6087 = vunpack.c.l.b16 %v5933
    %v6088 = vunpack.c.h.b16 %v5933
    %v6089 = vunpack.c.l.b16 %v5934
    %v6090 = vunpack.c.h.b16 %v5934
    %v6091 = vunpack.c.l.b16 %v5935
    %v6092 = vunpack.c.h.b16 %v5935
    %v6093 = vunpack.c.l.b16 %v5936
    %v6094 = vunpack.c.h.b16 %v5936
    %v6095 = vunpack.c.l.b16 %v5937
    %v6096 = vunpack.c.h.b16 %v5937
    %v6097 = vunpack.c.l.b16 %v5938
    %v6098 = vunpack.c.h.b16 %v5938
    %v6099 = vunpack.c.l.b16 %v5939
    %v6100 = vunpack.c.h.b16 %v5939
    %v6101 = vunpack.c.l.b16 %v5940
    %v6102 = vunpack.c.h.b16 %v5940
    %v6103 = vunpack.c.l.b16 %v5941
    %v6104 = vunpack.c.h.b16 %v5941
    %v6105 = vunpack.c.l.b16 %v5942
    %v6106 = vunpack.c.h.b16 %v5942
    %v6107 = vunpack.c.l.b16 %v5943
    %v6108 = vunpack.c.h.b16 %v5943
    %v6109 = vunpack.c.l.b16 %v5944
    %v6110 = vunpack.c.h.b16 %v5944
    %v6111 = vunpack.c.l.b16 %v5945
    %v6112 = vunpack.c.h.b16 %v5945
    %v6113 = vunpack.c.l.b16 %v5946
    %v6114 = vunpack.c.h.b16 %v5946
    %v6115 = vunpack.c.l.b16 %v5947
    %v6116 = vunpack.c.h.b16 %v5947
    %v6117 = vunpack.c.l.b16 %v5948
    %v6118 = vunpack.c.h.b16 %v5948
    %v6119 = vunpack.c.l.b16 %v5949
    %v6120 = vunpack.c.h.b16 %v5949
    %v6121 = vunpack.c.l.b16 %v5950
    %v6122 = vunpack.c.h.b16 %v5950
    %v6123 = vunpack.c.l.b16 %v5951
    %v6124 = vunpack.c.h.b16 %v5951
    %v6125 = vunpack.c.l.b16 %v5952
    %v6126 = vunpack.c.h.b16 %v5952
    %v6127 = vunpack.c.l.b16 %v5953
    %v6128 = vunpack.c.h.b16 %v5953
    %v6129 = vunpack.c.l.b16 %v5954
    %v6130 = vunpack.c.h.b16 %v5954
    %v6131 = vunpack.c.l.b16 %v5955
    %v6132 = vunpack.c.h.b16 %v5955
    %v6133 = vunpack.c.l.b16 %v5956
    %v6134 = vunpack.c.h.b16 %v5956
    %v6135 = vunpack.c.l.b16 %v5957
    %v6136 = vunpack.c.h.b16 %v5957
    %v6137 = vunpack.c.l.b16 %v5958
    %v6138 = vunpack.c.h.b16 %v5958
    %v6139 = vunpack.c.l.b16 %v5959
    %v6140 = vunpack.c.h.b16 %v5959
    %v6141 = vunpack.c.l.b16 %v5960
    %v6142 = vunpack.c.h.b16 %v5960
    %v6143 = vunpack.c.l.b16 %v5961
    %v6144 = vunpack.c.h.b16 %v5961
    %v6145 = vunpack.c.l.b16 %v5962
    %v6146 = vunpack.c.h.b16 %v5962
    %v6147 = vunpack.c.l.b16 %v5963
    %v6148 = vunpack.c.h.b16 %v5963
    %v6149 = vunpack.c.l.b16 %v5964
    %v6150 = vunpack.c.h.b16 %v5964
    %v6151 = vunpack.c.l.b16 %v5965
    %v6152 = vunpack.c.h.b16 %v5965
    %v6153 = vunpack.c.l.b16 %v5966
    %v6154 = vunpack.c.h.b16 %v5966
    %v6155 = vunpack.c.l.b16 %v5967
    %v6156 = vunpack.c.h.b16 %v5967
    %v6157 = vunpack.c.l.b16 %v5968
    %v6158 = vunpack.c.h.b16 %v5968
    %v6159 = vunpack.c.l.b16 %v5969
    %v6160 = vunpack.c.h.b16 %v5969
    %v6161 = vunpack.c.l.b16 %v5970
    %v6162 = vunpack.c.h.b16 %v5970
    %v6163 = vpack.c.b16 %v6043, %v6035
    %v6164 = vpack.c.b16 %v6044, %v6036
    %v6165 = vpack.c.b16 %v6045, %v6037
    %v6166 = vpack.c.b16 %v6046, %v6038
    %v6167 = vpack.c.b16 %v6047, %v6039
    %v6168 = vpack.c.b16 %v6048, %v6040
    %v6169 = vpack.c.b16 %v6049, %v6041
    %v6170 = vpack.c.b16 %v6050, %v6042
    %v6171 = vpack.c.b16 %v6059, %v6051
    %v6172 = vpack.c.b16 %v6060, %v6052
    %v6173 = vpack.c.b16 %v6061, %v6053
    %v6174 = vpack.c.b16 %v6062, %v6054
    %v6175 = vpack.c.b16 %v6063, %v6055
    %v6176 = vpack.c.b16 %v6064, %v6056
    %v6177 = vpack.c.b16 %v6065, %v6057
    %v6178 = vpack.c.b16 %v6066, %v6058
    %v6179 = vpack.c.b16 %v6075, %v6067
    %v6180 = vpack.c.b16 %v6076, %v6068
    %v6181 = vpack.c.b16 %v6077, %v6069
    %v6182 = vpack.c.b16 %v6078, %v6070
    %v6183 = vpack.c.b16 %v6079, %v6071
    %v6184 = vpack.c.b16 %v6080, %v6072
    %v6185 = vpack.c.b16 %v6081, %v6073
    %v6186 = vpack.c.b16 %v6082, %v6074
    %v6187 = vpack.c.b16 %v6091, %v6083
    %v6188 = vpack.c.b16 %v6092, %v6084
    %v6189 = vpack.c.b16 %v6093, %v6085
    %v6190 = vpack.c.b16 %v6094, %v6086
    %v6191 = vpack.c.b16 %v6095, %v6087
    %v6192 = vpack.c.b16 %v6096, %v6088
    %v6193 = vpack.c.b16 %v6097, %v6089
    %v6194 = vpack.c.b16 %v6098, %v6090
    %v6195 = vpack.c.b16 %v6107, %v6099
    %v6196 = vpack.c.b16 %v6108, %v6100
    %v6197 = vpack.c.b16 %v6109, %v6101
    %v6198 = vpack.c.b16 %v6110, %v6102
    %v6199 = vpack.c.b16 %v6111, %v6103
    %v6200 = vpack.c.b16 %v6112, %v6104
    %v6201 = vpack.c.b16 %v6113, %v6105
    %v6202 = vpack.c.b16 %v6114, %v6106
    %v6203 = vpack.c.b16 %v6123, %v6115
    %v6204 = vpack.c.b16 %v6124, %v6116
    %v6205 = vpack.c.b16 %v6125, %v6117
    %v6206 = vpack.c.b16 %v6126, %v6118
    %v6207 = vpack.c.b16 %v6127, %v6119
    %v6208 = vpack.c.b16 %v6128, %v6120
    %v6209 = vpack.c.b16 %v6129, %v6121
    %v6210 = vpack.c.b16 %v6130, %v6122
    %v6211 = vpack.c.b16 %v6139, %v6131
    %v6212 = vpack.c.b16 %v6140, %v6132
    %v6213 = vpack.c.b16 %v6141, %v6133
    %v6214 = vpack.c.b16 %v6142, %v6134
    %v6215 = vpack.c.b16 %v6143, %v6135
    %v6216 = vpack.c.b16 %v6144, %v6136
    %v6217 = vpack.c.b16 %v6145, %v6137
    %v6218 = vpack.c.b16 %v6146, %v6138
    %v6219 = vpack.c.b16 %v6155, %v6147
    %v6220 = vpack.c.b16 %v6156, %v6148
    %v6221 = vpack.c.b16 %v6157, %v6149
    %v6222 = vpack.c.b16 %v6158, %v6150
    %v6223 = vpack.c.b16 %v6159, %v6151
    %v6224 = vpack.c.b16 %v6160, %v6152
    %v6225 = vpack.c.b16 %v6161, %v6153
    %v6226 = vpack.c.b16 %v6162, %v6154
    %6291 = vmatpush.bf16.msra.mxu0 %v6219
    %6292 = vmatpush.bf16.msra.mxu0 %v6211
    %6293 = vmatpush.bf16.msra.mxu0 %v6203
    %6294 = vmatpush.bf16.msra.mxu0 %v6195
    %6295 = vmatpush.bf16.msra.mxu0 %v6187
    %6296 = vmatpush.bf16.msra.mxu0 %v6179
    %6297 = vmatpush.bf16.msra.mxu0 %v6171
    %6298 = vmatpush.bf16.msra.mxu0 %v6163
    %6299 = vmatmul.bf16.gmra.mxu0 %v5905
    %v6300 = vpop.f32.mrf.mxu0
    %v6301 = vadd.f32 0.0, %v6300
    %v6302 = vpop.f32.mrf.mxu0
    %6303 = vdwg.mxu0
    %6304 = vmatpush.bf16.msra.mxu0 %v6220
    %6305 = vmatpush.bf16.msra.mxu0 %v6212
    %6306 = vmatpush.bf16.msra.mxu0 %v6204
    %6307 = vmatpush.bf16.msra.mxu0 %v6196
    %6308 = vmatpush.bf16.msra.mxu0 %v6188
    %6309 = vmatpush.bf16.msra.mxu0 %v6180
    %6310 = vmatpush.bf16.msra.mxu0 %v6172
    %6311 = vmatpush.bf16.msra.mxu0 %v6164
    %6312 = vmatmul.bf16.gmra.mxu0 %v5905
    %v6313 = vpop.f32.mrf.mxu0
    %v6314 = vadd.f32 0.0, %v6313
    %v6315 = vpop.f32.mrf.mxu0
    %6316 = vdwg.mxu0
    %6317 = vmatpush.bf16.msra.mxu0 %v6221
    %6318 = vmatpush.bf16.msra.mxu0 %v6213
    %6319 = vmatpush.bf16.msra.mxu0 %v6205
    %6320 = vmatpush.bf16.msra.mxu0 %v6197
    %6321 = vmatpush.bf16.msra.mxu0 %v6189
    %6322 = vmatpush.bf16.msra.mxu0 %v6181
    %6323 = vmatpush.bf16.msra.mxu0 %v6173
    %6324 = vmatpush.bf16.msra.mxu0 %v6165
    %6325 = vmatmul.bf16.gmra.mxu0 %v5905
    %v6326 = vpop.f32.mrf.mxu0
    %v6327 = vadd.f32 0.0, %v6326
    %v6328 = vpop.f32.mrf.mxu0
    %6329 = vdwg.mxu0
    %6330 = vmatpush.bf16.msra.mxu0 %v6222
    %6331 = vmatpush.bf16.msra.mxu0 %v6214
    %6332 = vmatpush.bf16.msra.mxu0 %v6206
    %6333 = vmatpush.bf16.msra.mxu0 %v6198
    %6334 = vmatpush.bf16.msra.mxu0 %v6190
    %6335 = vmatpush.bf16.msra.mxu0 %v6182
    %6336 = vmatpush.bf16.msra.mxu0 %v6174
    %6337 = vmatpush.bf16.msra.mxu0 %v6166
    %6338 = vmatmul.bf16.gmra.mxu0 %v5905
    %v6339 = vpop.f32.mrf.mxu0
    %v6340 = vadd.f32 0.0, %v6339
    %v6341 = vpop.f32.mrf.mxu0
    %6342 = vdwg.mxu0
    %6343 = vmatpush.bf16.msra.mxu0 %v6223
    %6344 = vmatpush.bf16.msra.mxu0 %v6215
    %6345 = vmatpush.bf16.msra.mxu0 %v6207
    %6346 = vmatpush.bf16.msra.mxu0 %v6199
    %6347 = vmatpush.bf16.msra.mxu0 %v6191
    %6348 = vmatpush.bf16.msra.mxu0 %v6183
    %6349 = vmatpush.bf16.msra.mxu0 %v6175
    %6350 = vmatpush.bf16.msra.mxu0 %v6167
    %6351 = vmatmul.bf16.gmra.mxu0 %v5905
    %v6352 = vpop.f32.mrf.mxu0
    %v6353 = vadd.f32 0.0, %v6352
    %v6354 = vpop.f32.mrf.mxu0
    %6355 = vdwg.mxu0
    %6356 = vmatpush.bf16.msra.mxu0 %v6224
    %6357 = vmatpush.bf16.msra.mxu0 %v6216
    %6358 = vmatpush.bf16.msra.mxu0 %v6208
    %6359 = vmatpush.bf16.msra.mxu0 %v6200
    %6360 = vmatpush.bf16.msra.mxu0 %v6192
    %6361 = vmatpush.bf16.msra.mxu0 %v6184
    %6362 = vmatpush.bf16.msra.mxu0 %v6176
    %6363 = vmatpush.bf16.msra.mxu0 %v6168
    %6364 = vmatmul.bf16.gmra.mxu0 %v5905
    %v6365 = vpop.f32.mrf.mxu0
    %v6366 = vadd.f32 0.0, %v6365
    %v6367 = vpop.f32.mrf.mxu0
    %6368 = vdwg.mxu0
    %6369 = vmatpush.bf16.msra.mxu0 %v6225
    %6370 = vmatpush.bf16.msra.mxu0 %v6217
    %6371 = vmatpush.bf16.msra.mxu0 %v6209
    %6372 = vmatpush.bf16.msra.mxu0 %v6201
    %6373 = vmatpush.bf16.msra.mxu0 %v6193
    %6374 = vmatpush.bf16.msra.mxu0 %v6185
    %6375 = vmatpush.bf16.msra.mxu0 %v6177
    %6376 = vmatpush.bf16.msra.mxu0 %v6169
    %6377 = vmatmul.bf16.gmra.mxu0 %v5905
    %v6378 = vpop.f32.mrf.mxu0
    %v6379 = vadd.f32 0.0, %v6378
    %v6380 = vpop.f32.mrf.mxu0
    %6381 = vdwg.mxu0
    %6382 = vmatpush.bf16.msra.mxu0 %v6226
    %6383 = vmatpush.bf16.msra.mxu0 %v6218
    %6384 = vmatpush.bf16.msra.mxu0 %v6210
    %6385 = vmatpush.bf16.msra.mxu0 %v6202
    %6386 = vmatpush.bf16.msra.mxu0 %v6194
    %6387 = vmatpush.bf16.msra.mxu0 %v6186
    %6388 = vmatpush.bf16.msra.mxu0 %v6178
    %6389 = vmatpush.bf16.msra.mxu0 %v6170
    %6390 = vmatmul.bf16.gmra.mxu0 %v5905
    %v6391 = vpop.f32.mrf.mxu0
    %v6392 = vadd.f32 0.0, %v6391
    %v6393 = vpop.f32.mrf.mxu0
    %6394 = vdwg.mxu0
    %v6395 = vadd.f32 %v5892, %v6301
    %v6396 = vadd.f32 %v5893, %v6314
    %v6397 = vadd.f32 %v5894, %v6327
    %v6398 = vadd.f32 %v5895, %v6340
    %v6399 = vadd.f32 %v5896, %v6353
    %v6400 = vadd.f32 %v5897, %v6366
    %v6401 = vadd.f32 %v5898, %v6379
    %v6402 = vadd.f32 %v5899, %v6392
    %v6404 = vrot.slane %v2396, 7
    %v6406 = vsel %vm2400, %v2388, %v6404
    %v6407 = vpack.c.bf16 %v6406, %v6406
    %s6408 = scalar_lea.vmem [#allocation22], 4096
    %v6409 = vld [vmem:[%s6408] sm:$0xff]
    %v6410 = vld [vmem:[%s6408 + $0x8] sm:$0xff]
    %v6411 = vld [vmem:[%s6408 + $0x10] sm:$0xff]
    %v6412 = vld [vmem:[%s6408 + $0x18] sm:$0xff]
    %v6413 = vld [vmem:[%s6408 + $0x20] sm:$0xff]
    %v6414 = vld [vmem:[%s6408 + $0x28] sm:$0xff]
    %v6415 = vld [vmem:[%s6408 + $0x30] sm:$0xff]
    %v6416 = vld [vmem:[%s6408 + $0x38] sm:$0xff]
    %v6417 = vld [vmem:[%s6408 + $0x40] sm:$0xff]
    %v6418 = vld [vmem:[%s6408 + $0x48] sm:$0xff]
    %v6419 = vld [vmem:[%s6408 + $0x50] sm:$0xff]
    %v6420 = vld [vmem:[%s6408 + $0x58] sm:$0xff]
    %v6421 = vld [vmem:[%s6408 + $0x60] sm:$0xff]
    %v6422 = vld [vmem:[%s6408 + $0x68] sm:$0xff]
    %v6423 = vld [vmem:[%s6408 + $0x70] sm:$0xff]
    %v6424 = vld [vmem:[%s6408 + $0x78] sm:$0xff]
    %v6425 = vld [vmem:[%s6408 + $0x80] sm:$0xff]
    %v6426 = vld [vmem:[%s6408 + $0x88] sm:$0xff]
    %v6427 = vld [vmem:[%s6408 + $0x90] sm:$0xff]
    %v6428 = vld [vmem:[%s6408 + $0x98] sm:$0xff]
    %v6429 = vld [vmem:[%s6408 + $0xa0] sm:$0xff]
    %v6430 = vld [vmem:[%s6408 + $0xa8] sm:$0xff]
    %v6431 = vld [vmem:[%s6408 + $0xb0] sm:$0xff]
    %v6432 = vld [vmem:[%s6408 + $0xb8] sm:$0xff]
    %v6433 = vld [vmem:[%s6408 + $0xc0] sm:$0xff]
    %v6434 = vld [vmem:[%s6408 + $0xc8] sm:$0xff]
    %v6435 = vld [vmem:[%s6408 + $0xd0] sm:$0xff]
    %v6436 = vld [vmem:[%s6408 + $0xd8] sm:$0xff]
    %v6437 = vld [vmem:[%s6408 + $0xe0] sm:$0xff]
    %v6438 = vld [vmem:[%s6408 + $0xe8] sm:$0xff]
    %v6439 = vld [vmem:[%s6408 + $0xf0] sm:$0xff]
    %v6440 = vld [vmem:[%s6408 + $0xf8] sm:$0xff]
    %v6441 = vld [vmem:[%s6408 + $0x100] sm:$0xff]
    %v6442 = vld [vmem:[%s6408 + $0x108] sm:$0xff]
    %v6443 = vld [vmem:[%s6408 + $0x110] sm:$0xff]
    %v6444 = vld [vmem:[%s6408 + $0x118] sm:$0xff]
    %v6445 = vld [vmem:[%s6408 + $0x120] sm:$0xff]
    %v6446 = vld [vmem:[%s6408 + $0x128] sm:$0xff]
    %v6447 = vld [vmem:[%s6408 + $0x130] sm:$0xff]
    %v6448 = vld [vmem:[%s6408 + $0x138] sm:$0xff]
    %v6449 = vld [vmem:[%s6408 + $0x140] sm:$0xff]
    %v6450 = vld [vmem:[%s6408 + $0x148] sm:$0xff]
    %v6451 = vld [vmem:[%s6408 + $0x150] sm:$0xff]
    %v6452 = vld [vmem:[%s6408 + $0x158] sm:$0xff]
    %v6453 = vld [vmem:[%s6408 + $0x160] sm:$0xff]
    %v6454 = vld [vmem:[%s6408 + $0x168] sm:$0xff]
    %v6455 = vld [vmem:[%s6408 + $0x170] sm:$0xff]
    %v6456 = vld [vmem:[%s6408 + $0x178] sm:$0xff]
    %v6457 = vld [vmem:[%s6408 + $0x180] sm:$0xff]
    %v6458 = vld [vmem:[%s6408 + $0x188] sm:$0xff]
    %v6459 = vld [vmem:[%s6408 + $0x190] sm:$0xff]
    %v6460 = vld [vmem:[%s6408 + $0x198] sm:$0xff]
    %v6461 = vld [vmem:[%s6408 + $0x1a0] sm:$0xff]
    %v6462 = vld [vmem:[%s6408 + $0x1a8] sm:$0xff]
    %v6463 = vld [vmem:[%s6408 + $0x1b0] sm:$0xff]
    %v6464 = vld [vmem:[%s6408 + $0x1b8] sm:$0xff]
    %v6465 = vld [vmem:[%s6408 + $0x1c0] sm:$0xff]
    %v6466 = vld [vmem:[%s6408 + $0x1c8] sm:$0xff]
    %v6467 = vld [vmem:[%s6408 + $0x1d0] sm:$0xff]
    %v6468 = vld [vmem:[%s6408 + $0x1d8] sm:$0xff]
    %v6469 = vld [vmem:[%s6408 + $0x1e0] sm:$0xff]
    %v6470 = vld [vmem:[%s6408 + $0x1e8] sm:$0xff]
    %v6471 = vld [vmem:[%s6408 + $0x1f0] sm:$0xff]
    %v6472 = vld [vmem:[%s6408 + $0x1f8] sm:$0xff]
    %v6537 = vunpack.c.l.b16 %v6409
    %v6538 = vunpack.c.h.b16 %v6409
    %v6539 = vunpack.c.l.b16 %v6410
    %v6540 = vunpack.c.h.b16 %v6410
    %v6541 = vunpack.c.l.b16 %v6411
    %v6542 = vunpack.c.h.b16 %v6411
    %v6543 = vunpack.c.l.b16 %v6412
    %v6544 = vunpack.c.h.b16 %v6412
    %v6545 = vunpack.c.l.b16 %v6413
    %v6546 = vunpack.c.h.b16 %v6413
    %v6547 = vunpack.c.l.b16 %v6414
    %v6548 = vunpack.c.h.b16 %v6414
    %v6549 = vunpack.c.l.b16 %v6415
    %v6550 = vunpack.c.h.b16 %v6415
    %v6551 = vunpack.c.l.b16 %v6416
    %v6552 = vunpack.c.h.b16 %v6416
    %v6553 = vunpack.c.l.b16 %v6417
    %v6554 = vunpack.c.h.b16 %v6417
    %v6555 = vunpack.c.l.b16 %v6418
    %v6556 = vunpack.c.h.b16 %v6418
    %v6557 = vunpack.c.l.b16 %v6419
    %v6558 = vunpack.c.h.b16 %v6419
    %v6559 = vunpack.c.l.b16 %v6420
    %v6560 = vunpack.c.h.b16 %v6420
    %v6561 = vunpack.c.l.b16 %v6421
    %v6562 = vunpack.c.h.b16 %v6421
    %v6563 = vunpack.c.l.b16 %v6422
    %v6564 = vunpack.c.h.b16 %v6422
    %v6565 = vunpack.c.l.b16 %v6423
    %v6566 = vunpack.c.h.b16 %v6423
    %v6567 = vunpack.c.l.b16 %v6424
    %v6568 = vunpack.c.h.b16 %v6424
    %v6569 = vunpack.c.l.b16 %v6425
    %v6570 = vunpack.c.h.b16 %v6425
    %v6571 = vunpack.c.l.b16 %v6426
    %v6572 = vunpack.c.h.b16 %v6426
    %v6573 = vunpack.c.l.b16 %v6427
    %v6574 = vunpack.c.h.b16 %v6427
    %v6575 = vunpack.c.l.b16 %v6428
    %v6576 = vunpack.c.h.b16 %v6428
    %v6577 = vunpack.c.l.b16 %v6429
    %v6578 = vunpack.c.h.b16 %v6429
    %v6579 = vunpack.c.l.b16 %v6430
    %v6580 = vunpack.c.h.b16 %v6430
    %v6581 = vunpack.c.l.b16 %v6431
    %v6582 = vunpack.c.h.b16 %v6431
    %v6583 = vunpack.c.l.b16 %v6432
    %v6584 = vunpack.c.h.b16 %v6432
    %v6585 = vunpack.c.l.b16 %v6433
    %v6586 = vunpack.c.h.b16 %v6433
    %v6587 = vunpack.c.l.b16 %v6434
    %v6588 = vunpack.c.h.b16 %v6434
    %v6589 = vunpack.c.l.b16 %v6435
    %v6590 = vunpack.c.h.b16 %v6435
    %v6591 = vunpack.c.l.b16 %v6436
    %v6592 = vunpack.c.h.b16 %v6436
    %v6593 = vunpack.c.l.b16 %v6437
    %v6594 = vunpack.c.h.b16 %v6437
    %v6595 = vunpack.c.l.b16 %v6438
    %v6596 = vunpack.c.h.b16 %v6438
    %v6597 = vunpack.c.l.b16 %v6439
    %v6598 = vunpack.c.h.b16 %v6439
    %v6599 = vunpack.c.l.b16 %v6440
    %v6600 = vunpack.c.h.b16 %v6440
    %v6601 = vunpack.c.l.b16 %v6441
    %v6602 = vunpack.c.h.b16 %v6441
    %v6603 = vunpack.c.l.b16 %v6442
    %v6604 = vunpack.c.h.b16 %v6442
    %v6605 = vunpack.c.l.b16 %v6443
    %v6606 = vunpack.c.h.b16 %v6443
    %v6607 = vunpack.c.l.b16 %v6444
    %v6608 = vunpack.c.h.b16 %v6444
    %v6609 = vunpack.c.l.b16 %v6445
    %v6610 = vunpack.c.h.b16 %v6445
    %v6611 = vunpack.c.l.b16 %v6446
    %v6612 = vunpack.c.h.b16 %v6446
    %v6613 = vunpack.c.l.b16 %v6447
    %v6614 = vunpack.c.h.b16 %v6447
    %v6615 = vunpack.c.l.b16 %v6448
    %v6616 = vunpack.c.h.b16 %v6448
    %v6617 = vunpack.c.l.b16 %v6449
    %v6618 = vunpack.c.h.b16 %v6449
    %v6619 = vunpack.c.l.b16 %v6450
    %v6620 = vunpack.c.h.b16 %v6450
    %v6621 = vunpack.c.l.b16 %v6451
    %v6622 = vunpack.c.h.b16 %v6451
    %v6623 = vunpack.c.l.b16 %v6452
    %v6624 = vunpack.c.h.b16 %v6452
    %v6625 = vunpack.c.l.b16 %v6453
    %v6626 = vunpack.c.h.b16 %v6453
    %v6627 = vunpack.c.l.b16 %v6454
    %v6628 = vunpack.c.h.b16 %v6454
    %v6629 = vunpack.c.l.b16 %v6455
    %v6630 = vunpack.c.h.b16 %v6455
    %v6631 = vunpack.c.l.b16 %v6456
    %v6632 = vunpack.c.h.b16 %v6456
    %v6633 = vunpack.c.l.b16 %v6457
    %v6634 = vunpack.c.h.b16 %v6457
    %v6635 = vunpack.c.l.b16 %v6458
    %v6636 = vunpack.c.h.b16 %v6458
    %v6637 = vunpack.c.l.b16 %v6459
    %v6638 = vunpack.c.h.b16 %v6459
    %v6639 = vunpack.c.l.b16 %v6460
    %v6640 = vunpack.c.h.b16 %v6460
    %v6641 = vunpack.c.l.b16 %v6461
    %v6642 = vunpack.c.h.b16 %v6461
    %v6643 = vunpack.c.l.b16 %v6462
    %v6644 = vunpack.c.h.b16 %v6462
    %v6645 = vunpack.c.l.b16 %v6463
    %v6646 = vunpack.c.h.b16 %v6463
    %v6647 = vunpack.c.l.b16 %v6464
    %v6648 = vunpack.c.h.b16 %v6464
    %v6649 = vunpack.c.l.b16 %v6465
    %v6650 = vunpack.c.h.b16 %v6465
    %v6651 = vunpack.c.l.b16 %v6466
    %v6652 = vunpack.c.h.b16 %v6466
    %v6653 = vunpack.c.l.b16 %v6467
    %v6654 = vunpack.c.h.b16 %v6467
    %v6655 = vunpack.c.l.b16 %v6468
    %v6656 = vunpack.c.h.b16 %v6468
    %v6657 = vunpack.c.l.b16 %v6469
    %v6658 = vunpack.c.h.b16 %v6469
    %v6659 = vunpack.c.l.b16 %v6470
    %v6660 = vunpack.c.h.b16 %v6470
    %v6661 = vunpack.c.l.b16 %v6471
    %v6662 = vunpack.c.h.b16 %v6471
    %v6663 = vunpack.c.l.b16 %v6472
    %v6664 = vunpack.c.h.b16 %v6472
    %v6665 = vpack.c.b16 %v6545, %v6537
    %v6666 = vpack.c.b16 %v6546, %v6538
    %v6667 = vpack.c.b16 %v6547, %v6539
    %v6668 = vpack.c.b16 %v6548, %v6540
    %v6669 = vpack.c.b16 %v6549, %v6541
    %v6670 = vpack.c.b16 %v6550, %v6542
    %v6671 = vpack.c.b16 %v6551, %v6543
    %v6672 = vpack.c.b16 %v6552, %v6544
    %v6673 = vpack.c.b16 %v6561, %v6553
    %v6674 = vpack.c.b16 %v6562, %v6554
    %v6675 = vpack.c.b16 %v6563, %v6555
    %v6676 = vpack.c.b16 %v6564, %v6556
    %v6677 = vpack.c.b16 %v6565, %v6557
    %v6678 = vpack.c.b16 %v6566, %v6558
    %v6679 = vpack.c.b16 %v6567, %v6559
    %v6680 = vpack.c.b16 %v6568, %v6560
    %v6681 = vpack.c.b16 %v6577, %v6569
    %v6682 = vpack.c.b16 %v6578, %v6570
    %v6683 = vpack.c.b16 %v6579, %v6571
    %v6684 = vpack.c.b16 %v6580, %v6572
    %v6685 = vpack.c.b16 %v6581, %v6573
    %v6686 = vpack.c.b16 %v6582, %v6574
    %v6687 = vpack.c.b16 %v6583, %v6575
    %v6688 = vpack.c.b16 %v6584, %v6576
    %v6689 = vpack.c.b16 %v6593, %v6585
    %v6690 = vpack.c.b16 %v6594, %v6586
    %v6691 = vpack.c.b16 %v6595, %v6587
    %v6692 = vpack.c.b16 %v6596, %v6588
    %v6693 = vpack.c.b16 %v6597, %v6589
    %v6694 = vpack.c.b16 %v6598, %v6590
    %v6695 = vpack.c.b16 %v6599, %v6591
    %v6696 = vpack.c.b16 %v6600, %v6592
    %v6697 = vpack.c.b16 %v6609, %v6601
    %v6698 = vpack.c.b16 %v6610, %v6602
    %v6699 = vpack.c.b16 %v6611, %v6603
    %v6700 = vpack.c.b16 %v6612, %v6604
    %v6701 = vpack.c.b16 %v6613, %v6605
    %v6702 = vpack.c.b16 %v6614, %v6606
    %v6703 = vpack.c.b16 %v6615, %v6607
    %v6704 = vpack.c.b16 %v6616, %v6608
    %v6705 = vpack.c.b16 %v6625, %v6617
    %v6706 = vpack.c.b16 %v6626, %v6618
    %v6707 = vpack.c.b16 %v6627, %v6619
    %v6708 = vpack.c.b16 %v6628, %v6620
    %v6709 = vpack.c.b16 %v6629, %v6621
    %v6710 = vpack.c.b16 %v6630, %v6622
    %v6711 = vpack.c.b16 %v6631, %v6623
    %v6712 = vpack.c.b16 %v6632, %v6624
    %v6713 = vpack.c.b16 %v6641, %v6633
    %v6714 = vpack.c.b16 %v6642, %v6634
    %v6715 = vpack.c.b16 %v6643, %v6635
    %v6716 = vpack.c.b16 %v6644, %v6636
    %v6717 = vpack.c.b16 %v6645, %v6637
    %v6718 = vpack.c.b16 %v6646, %v6638
    %v6719 = vpack.c.b16 %v6647, %v6639
    %v6720 = vpack.c.b16 %v6648, %v6640
    %v6721 = vpack.c.b16 %v6657, %v6649
    %v6722 = vpack.c.b16 %v6658, %v6650
    %v6723 = vpack.c.b16 %v6659, %v6651
    %v6724 = vpack.c.b16 %v6660, %v6652
    %v6725 = vpack.c.b16 %v6661, %v6653
    %v6726 = vpack.c.b16 %v6662, %v6654
    %v6727 = vpack.c.b16 %v6663, %v6655
    %v6728 = vpack.c.b16 %v6664, %v6656
    %6793 = vmatpush.bf16.msra.mxu0 %v6721
    %6794 = vmatpush.bf16.msra.mxu0 %v6713
    %6795 = vmatpush.bf16.msra.mxu0 %v6705
    %6796 = vmatpush.bf16.msra.mxu0 %v6697
    %6797 = vmatpush.bf16.msra.mxu0 %v6689
    %6798 = vmatpush.bf16.msra.mxu0 %v6681
    %6799 = vmatpush.bf16.msra.mxu0 %v6673
    %6800 = vmatpush.bf16.msra.mxu0 %v6665
    %6801 = vmatmul.bf16.gmra.mxu0 %v6407
    %v6802 = vpop.f32.mrf.mxu0
    %v6803 = vadd.f32 0.0, %v6802
    %v6804 = vpop.f32.mrf.mxu0
    %6805 = vdwg.mxu0
    %6806 = vmatpush.bf16.msra.mxu0 %v6722
    %6807 = vmatpush.bf16.msra.mxu0 %v6714
    %6808 = vmatpush.bf16.msra.mxu0 %v6706
    %6809 = vmatpush.bf16.msra.mxu0 %v6698
    %6810 = vmatpush.bf16.msra.mxu0 %v6690
    %6811 = vmatpush.bf16.msra.mxu0 %v6682
    %6812 = vmatpush.bf16.msra.mxu0 %v6674
    %6813 = vmatpush.bf16.msra.mxu0 %v6666
    %6814 = vmatmul.bf16.gmra.mxu0 %v6407
    %v6815 = vpop.f32.mrf.mxu0
    %v6816 = vadd.f32 0.0, %v6815
    %v6817 = vpop.f32.mrf.mxu0
    %6818 = vdwg.mxu0
    %6819 = vmatpush.bf16.msra.mxu0 %v6723
    %6820 = vmatpush.bf16.msra.mxu0 %v6715
    %6821 = vmatpush.bf16.msra.mxu0 %v6707
    %6822 = vmatpush.bf16.msra.mxu0 %v6699
    %6823 = vmatpush.bf16.msra.mxu0 %v6691
    %6824 = vmatpush.bf16.msra.mxu0 %v6683
    %6825 = vmatpush.bf16.msra.mxu0 %v6675
    %6826 = vmatpush.bf16.msra.mxu0 %v6667
    %6827 = vmatmul.bf16.gmra.mxu0 %v6407
    %v6828 = vpop.f32.mrf.mxu0
    %v6829 = vadd.f32 0.0, %v6828
    %v6830 = vpop.f32.mrf.mxu0
    %6831 = vdwg.mxu0
    %6832 = vmatpush.bf16.msra.mxu0 %v6724
    %6833 = vmatpush.bf16.msra.mxu0 %v6716
    %6834 = vmatpush.bf16.msra.mxu0 %v6708
    %6835 = vmatpush.bf16.msra.mxu0 %v6700
    %6836 = vmatpush.bf16.msra.mxu0 %v6692
    %6837 = vmatpush.bf16.msra.mxu0 %v6684
    %6838 = vmatpush.bf16.msra.mxu0 %v6676
    %6839 = vmatpush.bf16.msra.mxu0 %v6668
    %6840 = vmatmul.bf16.gmra.mxu0 %v6407
    %v6841 = vpop.f32.mrf.mxu0
    %v6842 = vadd.f32 0.0, %v6841
    %v6843 = vpop.f32.mrf.mxu0
    %6844 = vdwg.mxu0
    %6845 = vmatpush.bf16.msra.mxu0 %v6725
    %6846 = vmatpush.bf16.msra.mxu0 %v6717
    %6847 = vmatpush.bf16.msra.mxu0 %v6709
    %6848 = vmatpush.bf16.msra.mxu0 %v6701
    %6849 = vmatpush.bf16.msra.mxu0 %v6693
    %6850 = vmatpush.bf16.msra.mxu0 %v6685
    %6851 = vmatpush.bf16.msra.mxu0 %v6677
    %6852 = vmatpush.bf16.msra.mxu0 %v6669
    %6853 = vmatmul.bf16.gmra.mxu0 %v6407
    %v6854 = vpop.f32.mrf.mxu0
    %v6855 = vadd.f32 0.0, %v6854
    %v6856 = vpop.f32.mrf.mxu0
    %6857 = vdwg.mxu0
    %6858 = vmatpush.bf16.msra.mxu0 %v6726
    %6859 = vmatpush.bf16.msra.mxu0 %v6718
    %6860 = vmatpush.bf16.msra.mxu0 %v6710
    %6861 = vmatpush.bf16.msra.mxu0 %v6702
    %6862 = vmatpush.bf16.msra.mxu0 %v6694
    %6863 = vmatpush.bf16.msra.mxu0 %v6686
    %6864 = vmatpush.bf16.msra.mxu0 %v6678
    %6865 = vmatpush.bf16.msra.mxu0 %v6670
    %6866 = vmatmul.bf16.gmra.mxu0 %v6407
    %v6867 = vpop.f32.mrf.mxu0
    %v6868 = vadd.f32 0.0, %v6867
    %v6869 = vpop.f32.mrf.mxu0
    %6870 = vdwg.mxu0
    %6871 = vmatpush.bf16.msra.mxu0 %v6727
    %6872 = vmatpush.bf16.msra.mxu0 %v6719
    %6873 = vmatpush.bf16.msra.mxu0 %v6711
    %6874 = vmatpush.bf16.msra.mxu0 %v6703
    %6875 = vmatpush.bf16.msra.mxu0 %v6695
    %6876 = vmatpush.bf16.msra.mxu0 %v6687
    %6877 = vmatpush.bf16.msra.mxu0 %v6679
    %6878 = vmatpush.bf16.msra.mxu0 %v6671
    %6879 = vmatmul.bf16.gmra.mxu0 %v6407
    %v6880 = vpop.f32.mrf.mxu0
    %v6881 = vadd.f32 0.0, %v6880
    %v6882 = vpop.f32.mrf.mxu0
    %6883 = vdwg.mxu0
    %6884 = vmatpush.bf16.msra.mxu0 %v6728
    %6885 = vmatpush.bf16.msra.mxu0 %v6720
    %6886 = vmatpush.bf16.msra.mxu0 %v6712
    %6887 = vmatpush.bf16.msra.mxu0 %v6704
    %6888 = vmatpush.bf16.msra.mxu0 %v6696
    %6889 = vmatpush.bf16.msra.mxu0 %v6688
    %6890 = vmatpush.bf16.msra.mxu0 %v6680
    %6891 = vmatpush.bf16.msra.mxu0 %v6672
    %6892 = vmatmul.bf16.gmra.mxu0 %v6407
    %v6893 = vpop.f32.mrf.mxu0
    %v6894 = vadd.f32 0.0, %v6893
    %v6895 = vpop.f32.mrf.mxu0
    %6896 = vdwg.mxu0
    %v6897 = vadd.f32 %v6395, %v6803
    %v6898 = vadd.f32 %v6396, %v6816
    %v6899 = vadd.f32 %v6397, %v6829
    %v6900 = vadd.f32 %v6398, %v6842
    %v6901 = vadd.f32 %v6399, %v6855
    %v6902 = vadd.f32 %v6400, %v6868
    %v6903 = vadd.f32 %v6401, %v6881
    %v6904 = vadd.f32 %v6402, %v6894
    %v6906 = vrot.slane %v2388, 1
    %v6908 = vsel %vm2400, %v6906, %v2396
    %v6909 = vpack.c.bf16 %v6908, %v6908
    %s6910 = scalar_lea.vmem [#allocation22], 4608
    %v6911 = vld [vmem:[%s6910] sm:$0xff]
    %v6912 = vld [vmem:[%s6910 + $0x8] sm:$0xff]
    %v6913 = vld [vmem:[%s6910 + $0x10] sm:$0xff]
    %v6914 = vld [vmem:[%s6910 + $0x18] sm:$0xff]
    %v6915 = vld [vmem:[%s6910 + $0x20] sm:$0xff]
    %v6916 = vld [vmem:[%s6910 + $0x28] sm:$0xff]
    %v6917 = vld [vmem:[%s6910 + $0x30] sm:$0xff]
    %v6918 = vld [vmem:[%s6910 + $0x38] sm:$0xff]
    %v6919 = vld [vmem:[%s6910 + $0x40] sm:$0xff]
    %v6920 = vld [vmem:[%s6910 + $0x48] sm:$0xff]
    %v6921 = vld [vmem:[%s6910 + $0x50] sm:$0xff]
    %v6922 = vld [vmem:[%s6910 + $0x58] sm:$0xff]
    %v6923 = vld [vmem:[%s6910 + $0x60] sm:$0xff]
    %v6924 = vld [vmem:[%s6910 + $0x68] sm:$0xff]
    %v6925 = vld [vmem:[%s6910 + $0x70] sm:$0xff]
    %v6926 = vld [vmem:[%s6910 + $0x78] sm:$0xff]
    %v6927 = vld [vmem:[%s6910 + $0x80] sm:$0xff]
    %v6928 = vld [vmem:[%s6910 + $0x88] sm:$0xff]
    %v6929 = vld [vmem:[%s6910 + $0x90] sm:$0xff]
    %v6930 = vld [vmem:[%s6910 + $0x98] sm:$0xff]
    %v6931 = vld [vmem:[%s6910 + $0xa0] sm:$0xff]
    %v6932 = vld [vmem:[%s6910 + $0xa8] sm:$0xff]
    %v6933 = vld [vmem:[%s6910 + $0xb0] sm:$0xff]
    %v6934 = vld [vmem:[%s6910 + $0xb8] sm:$0xff]
    %v6935 = vld [vmem:[%s6910 + $0xc0] sm:$0xff]
    %v6936 = vld [vmem:[%s6910 + $0xc8] sm:$0xff]
    %v6937 = vld [vmem:[%s6910 + $0xd0] sm:$0xff]
    %v6938 = vld [vmem:[%s6910 + $0xd8] sm:$0xff]
    %v6939 = vld [vmem:[%s6910 + $0xe0] sm:$0xff]
    %v6940 = vld [vmem:[%s6910 + $0xe8] sm:$0xff]
    %v6941 = vld [vmem:[%s6910 + $0xf0] sm:$0xff]
    %v6942 = vld [vmem:[%s6910 + $0xf8] sm:$0xff]
    %v6943 = vld [vmem:[%s6910 + $0x100] sm:$0xff]
    %v6944 = vld [vmem:[%s6910 + $0x108] sm:$0xff]
    %v6945 = vld [vmem:[%s6910 + $0x110] sm:$0xff]
    %v6946 = vld [vmem:[%s6910 + $0x118] sm:$0xff]
    %v6947 = vld [vmem:[%s6910 + $0x120] sm:$0xff]
    %v6948 = vld [vmem:[%s6910 + $0x128] sm:$0xff]
    %v6949 = vld [vmem:[%s6910 + $0x130] sm:$0xff]
    %v6950 = vld [vmem:[%s6910 + $0x138] sm:$0xff]
    %v6951 = vld [vmem:[%s6910 + $0x140] sm:$0xff]
    %v6952 = vld [vmem:[%s6910 + $0x148] sm:$0xff]
    %v6953 = vld [vmem:[%s6910 + $0x150] sm:$0xff]
    %v6954 = vld [vmem:[%s6910 + $0x158] sm:$0xff]
    %v6955 = vld [vmem:[%s6910 + $0x160] sm:$0xff]
    %v6956 = vld [vmem:[%s6910 + $0x168] sm:$0xff]
    %v6957 = vld [vmem:[%s6910 + $0x170] sm:$0xff]
    %v6958 = vld [vmem:[%s6910 + $0x178] sm:$0xff]
    %v6959 = vld [vmem:[%s6910 + $0x180] sm:$0xff]
    %v6960 = vld [vmem:[%s6910 + $0x188] sm:$0xff]
    %v6961 = vld [vmem:[%s6910 + $0x190] sm:$0xff]
    %v6962 = vld [vmem:[%s6910 + $0x198] sm:$0xff]
    %v6963 = vld [vmem:[%s6910 + $0x1a0] sm:$0xff]
    %v6964 = vld [vmem:[%s6910 + $0x1a8] sm:$0xff]
    %v6965 = vld [vmem:[%s6910 + $0x1b0] sm:$0xff]
    %v6966 = vld [vmem:[%s6910 + $0x1b8] sm:$0xff]
    %v6967 = vld [vmem:[%s6910 + $0x1c0] sm:$0xff]
    %v6968 = vld [vmem:[%s6910 + $0x1c8] sm:$0xff]
    %v6969 = vld [vmem:[%s6910 + $0x1d0] sm:$0xff]
    %v6970 = vld [vmem:[%s6910 + $0x1d8] sm:$0xff]
    %v6971 = vld [vmem:[%s6910 + $0x1e0] sm:$0xff]
    %v6972 = vld [vmem:[%s6910 + $0x1e8] sm:$0xff]
    %v6973 = vld [vmem:[%s6910 + $0x1f0] sm:$0xff]
    %v6974 = vld [vmem:[%s6910 + $0x1f8] sm:$0xff]
    %v7039 = vunpack.c.l.b16 %v6911
    %v7040 = vunpack.c.h.b16 %v6911
    %v7041 = vunpack.c.l.b16 %v6912
    %v7042 = vunpack.c.h.b16 %v6912
    %v7043 = vunpack.c.l.b16 %v6913
    %v7044 = vunpack.c.h.b16 %v6913
    %v7045 = vunpack.c.l.b16 %v6914
    %v7046 = vunpack.c.h.b16 %v6914
    %v7047 = vunpack.c.l.b16 %v6915
    %v7048 = vunpack.c.h.b16 %v6915
    %v7049 = vunpack.c.l.b16 %v6916
    %v7050 = vunpack.c.h.b16 %v6916
    %v7051 = vunpack.c.l.b16 %v6917
    %v7052 = vunpack.c.h.b16 %v6917
    %v7053 = vunpack.c.l.b16 %v6918
    %v7054 = vunpack.c.h.b16 %v6918
    %v7055 = vunpack.c.l.b16 %v6919
    %v7056 = vunpack.c.h.b16 %v6919
    %v7057 = vunpack.c.l.b16 %v6920
    %v7058 = vunpack.c.h.b16 %v6920
    %v7059 = vunpack.c.l.b16 %v6921
    %v7060 = vunpack.c.h.b16 %v6921
    %v7061 = vunpack.c.l.b16 %v6922
    %v7062 = vunpack.c.h.b16 %v6922
    %v7063 = vunpack.c.l.b16 %v6923
    %v7064 = vunpack.c.h.b16 %v6923
    %v7065 = vunpack.c.l.b16 %v6924
    %v7066 = vunpack.c.h.b16 %v6924
    %v7067 = vunpack.c.l.b16 %v6925
    %v7068 = vunpack.c.h.b16 %v6925
    %v7069 = vunpack.c.l.b16 %v6926
    %v7070 = vunpack.c.h.b16 %v6926
    %v7071 = vunpack.c.l.b16 %v6927
    %v7072 = vunpack.c.h.b16 %v6927
    %v7073 = vunpack.c.l.b16 %v6928
    %v7074 = vunpack.c.h.b16 %v6928
    %v7075 = vunpack.c.l.b16 %v6929
    %v7076 = vunpack.c.h.b16 %v6929
    %v7077 = vunpack.c.l.b16 %v6930
    %v7078 = vunpack.c.h.b16 %v6930
    %v7079 = vunpack.c.l.b16 %v6931
    %v7080 = vunpack.c.h.b16 %v6931
    %v7081 = vunpack.c.l.b16 %v6932
    %v7082 = vunpack.c.h.b16 %v6932
    %v7083 = vunpack.c.l.b16 %v6933
    %v7084 = vunpack.c.h.b16 %v6933
    %v7085 = vunpack.c.l.b16 %v6934
    %v7086 = vunpack.c.h.b16 %v6934
    %v7087 = vunpack.c.l.b16 %v6935
    %v7088 = vunpack.c.h.b16 %v6935
    %v7089 = vunpack.c.l.b16 %v6936
    %v7090 = vunpack.c.h.b16 %v6936
    %v7091 = vunpack.c.l.b16 %v6937
    %v7092 = vunpack.c.h.b16 %v6937
    %v7093 = vunpack.c.l.b16 %v6938
    %v7094 = vunpack.c.h.b16 %v6938
    %v7095 = vunpack.c.l.b16 %v6939
    %v7096 = vunpack.c.h.b16 %v6939
    %v7097 = vunpack.c.l.b16 %v6940
    %v7098 = vunpack.c.h.b16 %v6940
    %v7099 = vunpack.c.l.b16 %v6941
    %v7100 = vunpack.c.h.b16 %v6941
    %v7101 = vunpack.c.l.b16 %v6942
    %v7102 = vunpack.c.h.b16 %v6942
    %v7103 = vunpack.c.l.b16 %v6943
    %v7104 = vunpack.c.h.b16 %v6943
    %v7105 = vunpack.c.l.b16 %v6944
    %v7106 = vunpack.c.h.b16 %v6944
    %v7107 = vunpack.c.l.b16 %v6945
    %v7108 = vunpack.c.h.b16 %v6945
    %v7109 = vunpack.c.l.b16 %v6946
    %v7110 = vunpack.c.h.b16 %v6946
    %v7111 = vunpack.c.l.b16 %v6947
    %v7112 = vunpack.c.h.b16 %v6947
    %v7113 = vunpack.c.l.b16 %v6948
    %v7114 = vunpack.c.h.b16 %v6948
    %v7115 = vunpack.c.l.b16 %v6949
    %v7116 = vunpack.c.h.b16 %v6949
    %v7117 = vunpack.c.l.b16 %v6950
    %v7118 = vunpack.c.h.b16 %v6950
    %v7119 = vunpack.c.l.b16 %v6951
    %v7120 = vunpack.c.h.b16 %v6951
    %v7121 = vunpack.c.l.b16 %v6952
    %v7122 = vunpack.c.h.b16 %v6952
    %v7123 = vunpack.c.l.b16 %v6953
    %v7124 = vunpack.c.h.b16 %v6953
    %v7125 = vunpack.c.l.b16 %v6954
    %v7126 = vunpack.c.h.b16 %v6954
    %v7127 = vunpack.c.l.b16 %v6955
    %v7128 = vunpack.c.h.b16 %v6955
    %v7129 = vunpack.c.l.b16 %v6956
    %v7130 = vunpack.c.h.b16 %v6956
    %v7131 = vunpack.c.l.b16 %v6957
    %v7132 = vunpack.c.h.b16 %v6957
    %v7133 = vunpack.c.l.b16 %v6958
    %v7134 = vunpack.c.h.b16 %v6958
    %v7135 = vunpack.c.l.b16 %v6959
    %v7136 = vunpack.c.h.b16 %v6959
    %v7137 = vunpack.c.l.b16 %v6960
    %v7138 = vunpack.c.h.b16 %v6960
    %v7139 = vunpack.c.l.b16 %v6961
    %v7140 = vunpack.c.h.b16 %v6961
    %v7141 = vunpack.c.l.b16 %v6962
    %v7142 = vunpack.c.h.b16 %v6962
    %v7143 = vunpack.c.l.b16 %v6963
    %v7144 = vunpack.c.h.b16 %v6963
    %v7145 = vunpack.c.l.b16 %v6964
    %v7146 = vunpack.c.h.b16 %v6964
    %v7147 = vunpack.c.l.b16 %v6965
    %v7148 = vunpack.c.h.b16 %v6965
    %v7149 = vunpack.c.l.b16 %v6966
    %v7150 = vunpack.c.h.b16 %v6966
    %v7151 = vunpack.c.l.b16 %v6967
    %v7152 = vunpack.c.h.b16 %v6967
    %v7153 = vunpack.c.l.b16 %v6968
    %v7154 = vunpack.c.h.b16 %v6968
    %v7155 = vunpack.c.l.b16 %v6969
    %v7156 = vunpack.c.h.b16 %v6969
    %v7157 = vunpack.c.l.b16 %v6970
    %v7158 = vunpack.c.h.b16 %v6970
    %v7159 = vunpack.c.l.b16 %v6971
    %v7160 = vunpack.c.h.b16 %v6971
    %v7161 = vunpack.c.l.b16 %v6972
    %v7162 = vunpack.c.h.b16 %v6972
    %v7163 = vunpack.c.l.b16 %v6973
    %v7164 = vunpack.c.h.b16 %v6973
    %v7165 = vunpack.c.l.b16 %v6974
    %v7166 = vunpack.c.h.b16 %v6974
    %v7167 = vpack.c.b16 %v7047, %v7039
    %v7168 = vpack.c.b16 %v7048, %v7040
    %v7169 = vpack.c.b16 %v7049, %v7041
    %v7170 = vpack.c.b16 %v7050, %v7042
    %v7171 = vpack.c.b16 %v7051, %v7043
    %v7172 = vpack.c.b16 %v7052, %v7044
    %v7173 = vpack.c.b16 %v7053, %v7045
    %v7174 = vpack.c.b16 %v7054, %v7046
    %v7175 = vpack.c.b16 %v7063, %v7055
    %v7176 = vpack.c.b16 %v7064, %v7056
    %v7177 = vpack.c.b16 %v7065, %v7057
    %v7178 = vpack.c.b16 %v7066, %v7058
    %v7179 = vpack.c.b16 %v7067, %v7059
    %v7180 = vpack.c.b16 %v7068, %v7060
    %v7181 = vpack.c.b16 %v7069, %v7061
    %v7182 = vpack.c.b16 %v7070, %v7062
    %v7183 = vpack.c.b16 %v7079, %v7071
    %v7184 = vpack.c.b16 %v7080, %v7072
    %v7185 = vpack.c.b16 %v7081, %v7073
    %v7186 = vpack.c.b16 %v7082, %v7074
    %v7187 = vpack.c.b16 %v7083, %v7075
    %v7188 = vpack.c.b16 %v7084, %v7076
    %v7189 = vpack.c.b16 %v7085, %v7077
    %v7190 = vpack.c.b16 %v7086, %v7078
    %v7191 = vpack.c.b16 %v7095, %v7087
    %v7192 = vpack.c.b16 %v7096, %v7088
    %v7193 = vpack.c.b16 %v7097, %v7089
    %v7194 = vpack.c.b16 %v7098, %v7090
    %v7195 = vpack.c.b16 %v7099, %v7091
    %v7196 = vpack.c.b16 %v7100, %v7092
    %v7197 = vpack.c.b16 %v7101, %v7093
    %v7198 = vpack.c.b16 %v7102, %v7094
    %v7199 = vpack.c.b16 %v7111, %v7103
    %v7200 = vpack.c.b16 %v7112, %v7104
    %v7201 = vpack.c.b16 %v7113, %v7105
    %v7202 = vpack.c.b16 %v7114, %v7106
    %v7203 = vpack.c.b16 %v7115, %v7107
    %v7204 = vpack.c.b16 %v7116, %v7108
    %v7205 = vpack.c.b16 %v7117, %v7109
    %v7206 = vpack.c.b16 %v7118, %v7110
    %v7207 = vpack.c.b16 %v7127, %v7119
    %v7208 = vpack.c.b16 %v7128, %v7120
    %v7209 = vpack.c.b16 %v7129, %v7121
    %v7210 = vpack.c.b16 %v7130, %v7122
    %v7211 = vpack.c.b16 %v7131, %v7123
    %v7212 = vpack.c.b16 %v7132, %v7124
    %v7213 = vpack.c.b16 %v7133, %v7125
    %v7214 = vpack.c.b16 %v7134, %v7126
    %v7215 = vpack.c.b16 %v7143, %v7135
    %v7216 = vpack.c.b16 %v7144, %v7136
    %v7217 = vpack.c.b16 %v7145, %v7137
    %v7218 = vpack.c.b16 %v7146, %v7138
    %v7219 = vpack.c.b16 %v7147, %v7139
    %v7220 = vpack.c.b16 %v7148, %v7140
    %v7221 = vpack.c.b16 %v7149, %v7141
    %v7222 = vpack.c.b16 %v7150, %v7142
    %v7223 = vpack.c.b16 %v7159, %v7151
    %v7224 = vpack.c.b16 %v7160, %v7152
    %v7225 = vpack.c.b16 %v7161, %v7153
    %v7226 = vpack.c.b16 %v7162, %v7154
    %v7227 = vpack.c.b16 %v7163, %v7155
    %v7228 = vpack.c.b16 %v7164, %v7156
    %v7229 = vpack.c.b16 %v7165, %v7157
    %v7230 = vpack.c.b16 %v7166, %v7158
    %7295 = vmatpush.bf16.msra.mxu0 %v7223
    %7296 = vmatpush.bf16.msra.mxu0 %v7215
    %7297 = vmatpush.bf16.msra.mxu0 %v7207
    %7298 = vmatpush.bf16.msra.mxu0 %v7199
    %7299 = vmatpush.bf16.msra.mxu0 %v7191
    %7300 = vmatpush.bf16.msra.mxu0 %v7183
    %7301 = vmatpush.bf16.msra.mxu0 %v7175
    %7302 = vmatpush.bf16.msra.mxu0 %v7167
    %7303 = vmatmul.bf16.gmra.mxu0 %v6909
    %v7304 = vpop.f32.mrf.mxu0
    %v7305 = vadd.f32 0.0, %v7304
    %v7306 = vpop.f32.mrf.mxu0
    %7307 = vdwg.mxu0
    %7308 = vmatpush.bf16.msra.mxu0 %v7224
    %7309 = vmatpush.bf16.msra.mxu0 %v7216
    %7310 = vmatpush.bf16.msra.mxu0 %v7208
    %7311 = vmatpush.bf16.msra.mxu0 %v7200
    %7312 = vmatpush.bf16.msra.mxu0 %v7192
    %7313 = vmatpush.bf16.msra.mxu0 %v7184
    %7314 = vmatpush.bf16.msra.mxu0 %v7176
    %7315 = vmatpush.bf16.msra.mxu0 %v7168
    %7316 = vmatmul.bf16.gmra.mxu0 %v6909
    %v7317 = vpop.f32.mrf.mxu0
    %v7318 = vadd.f32 0.0, %v7317
    %v7319 = vpop.f32.mrf.mxu0
    %7320 = vdwg.mxu0
    %7321 = vmatpush.bf16.msra.mxu0 %v7225
    %7322 = vmatpush.bf16.msra.mxu0 %v7217
    %7323 = vmatpush.bf16.msra.mxu0 %v7209
    %7324 = vmatpush.bf16.msra.mxu0 %v7201
    %7325 = vmatpush.bf16.msra.mxu0 %v7193
    %7326 = vmatpush.bf16.msra.mxu0 %v7185
    %7327 = vmatpush.bf16.msra.mxu0 %v7177
    %7328 = vmatpush.bf16.msra.mxu0 %v7169
    %7329 = vmatmul.bf16.gmra.mxu0 %v6909
    %v7330 = vpop.f32.mrf.mxu0
    %v7331 = vadd.f32 0.0, %v7330
    %v7332 = vpop.f32.mrf.mxu0
    %7333 = vdwg.mxu0
    %7334 = vmatpush.bf16.msra.mxu0 %v7226
    %7335 = vmatpush.bf16.msra.mxu0 %v7218
    %7336 = vmatpush.bf16.msra.mxu0 %v7210
    %7337 = vmatpush.bf16.msra.mxu0 %v7202
    %7338 = vmatpush.bf16.msra.mxu0 %v7194
    %7339 = vmatpush.bf16.msra.mxu0 %v7186
    %7340 = vmatpush.bf16.msra.mxu0 %v7178
    %7341 = vmatpush.bf16.msra.mxu0 %v7170
    %7342 = vmatmul.bf16.gmra.mxu0 %v6909
    %v7343 = vpop.f32.mrf.mxu0
    %v7344 = vadd.f32 0.0, %v7343
    %v7345 = vpop.f32.mrf.mxu0
    %7346 = vdwg.mxu0
    %7347 = vmatpush.bf16.msra.mxu0 %v7227
    %7348 = vmatpush.bf16.msra.mxu0 %v7219
    %7349 = vmatpush.bf16.msra.mxu0 %v7211
    %7350 = vmatpush.bf16.msra.mxu0 %v7203
    %7351 = vmatpush.bf16.msra.mxu0 %v7195
    %7352 = vmatpush.bf16.msra.mxu0 %v7187
    %7353 = vmatpush.bf16.msra.mxu0 %v7179
    %7354 = vmatpush.bf16.msra.mxu0 %v7171
    %7355 = vmatmul.bf16.gmra.mxu0 %v6909
    %v7356 = vpop.f32.mrf.mxu0
    %v7357 = vadd.f32 0.0, %v7356
    %v7358 = vpop.f32.mrf.mxu0
    %7359 = vdwg.mxu0
    %7360 = vmatpush.bf16.msra.mxu0 %v7228
    %7361 = vmatpush.bf16.msra.mxu0 %v7220
    %7362 = vmatpush.bf16.msra.mxu0 %v7212
    %7363 = vmatpush.bf16.msra.mxu0 %v7204
    %7364 = vmatpush.bf16.msra.mxu0 %v7196
    %7365 = vmatpush.bf16.msra.mxu0 %v7188
    %7366 = vmatpush.bf16.msra.mxu0 %v7180
    %7367 = vmatpush.bf16.msra.mxu0 %v7172
    %7368 = vmatmul.bf16.gmra.mxu0 %v6909
    %v7369 = vpop.f32.mrf.mxu0
    %v7370 = vadd.f32 0.0, %v7369
    %v7371 = vpop.f32.mrf.mxu0
    %7372 = vdwg.mxu0
    %7373 = vmatpush.bf16.msra.mxu0 %v7229
    %7374 = vmatpush.bf16.msra.mxu0 %v7221
    %7375 = vmatpush.bf16.msra.mxu0 %v7213
    %7376 = vmatpush.bf16.msra.mxu0 %v7205
    %7377 = vmatpush.bf16.msra.mxu0 %v7197
    %7378 = vmatpush.bf16.msra.mxu0 %v7189
    %7379 = vmatpush.bf16.msra.mxu0 %v7181
    %7380 = vmatpush.bf16.msra.mxu0 %v7173
    %7381 = vmatmul.bf16.gmra.mxu0 %v6909
    %v7382 = vpop.f32.mrf.mxu0
    %v7383 = vadd.f32 0.0, %v7382
    %v7384 = vpop.f32.mrf.mxu0
    %7385 = vdwg.mxu0
    %7386 = vmatpush.bf16.msra.mxu0 %v7230
    %7387 = vmatpush.bf16.msra.mxu0 %v7222
    %7388 = vmatpush.bf16.msra.mxu0 %v7214
    %7389 = vmatpush.bf16.msra.mxu0 %v7206
    %7390 = vmatpush.bf16.msra.mxu0 %v7198
    %7391 = vmatpush.bf16.msra.mxu0 %v7190
    %7392 = vmatpush.bf16.msra.mxu0 %v7182
    %7393 = vmatpush.bf16.msra.mxu0 %v7174
    %7394 = vmatmul.bf16.gmra.mxu0 %v6909
    %v7395 = vpop.f32.mrf.mxu0
    %v7396 = vadd.f32 0.0, %v7395
    %v7397 = vpop.f32.mrf.mxu0
    %7398 = vdwg.mxu0
    %v7399 = vadd.f32 %v6897, %v7305
    %v7400 = vadd.f32 %v6898, %v7318
    %v7401 = vadd.f32 %v6899, %v7331
    %v7402 = vadd.f32 %v6900, %v7344
    %v7403 = vadd.f32 %v6901, %v7357
    %v7404 = vadd.f32 %v6902, %v7370
    %v7405 = vadd.f32 %v6903, %v7383
    %v7406 = vadd.f32 %v6904, %v7396
    %v7407 = vrot.slane %v2388, 2
    %v7409 = vrot.slane %v2396, 1
    %v7411 = vsel %vm2400, %v7407, %v7409
    %v7412 = vpack.c.bf16 %v7411, %v7411
    %s7413 = scalar_lea.vmem [#allocation22], 5120
    %v7414 = vld [vmem:[%s7413] sm:$0xff]
    %v7415 = vld [vmem:[%s7413 + $0x8] sm:$0xff]
    %v7416 = vld [vmem:[%s7413 + $0x10] sm:$0xff]
    %v7417 = vld [vmem:[%s7413 + $0x18] sm:$0xff]
    %v7418 = vld [vmem:[%s7413 + $0x20] sm:$0xff]
    %v7419 = vld [vmem:[%s7413 + $0x28] sm:$0xff]
    %v7420 = vld [vmem:[%s7413 + $0x30] sm:$0xff]
    %v7421 = vld [vmem:[%s7413 + $0x38] sm:$0xff]
    %v7422 = vld [vmem:[%s7413 + $0x40] sm:$0xff]
    %v7423 = vld [vmem:[%s7413 + $0x48] sm:$0xff]
    %v7424 = vld [vmem:[%s7413 + $0x50] sm:$0xff]
    %v7425 = vld [vmem:[%s7413 + $0x58] sm:$0xff]
    %v7426 = vld [vmem:[%s7413 + $0x60] sm:$0xff]
    %v7427 = vld [vmem:[%s7413 + $0x68] sm:$0xff]
    %v7428 = vld [vmem:[%s7413 + $0x70] sm:$0xff]
    %v7429 = vld [vmem:[%s7413 + $0x78] sm:$0xff]
    %v7430 = vld [vmem:[%s7413 + $0x80] sm:$0xff]
    %v7431 = vld [vmem:[%s7413 + $0x88] sm:$0xff]
    %v7432 = vld [vmem:[%s7413 + $0x90] sm:$0xff]
    %v7433 = vld [vmem:[%s7413 + $0x98] sm:$0xff]
    %v7434 = vld [vmem:[%s7413 + $0xa0] sm:$0xff]
    %v7435 = vld [vmem:[%s7413 + $0xa8] sm:$0xff]
    %v7436 = vld [vmem:[%s7413 + $0xb0] sm:$0xff]
    %v7437 = vld [vmem:[%s7413 + $0xb8] sm:$0xff]
    %v7438 = vld [vmem:[%s7413 + $0xc0] sm:$0xff]
    %v7439 = vld [vmem:[%s7413 + $0xc8] sm:$0xff]
    %v7440 = vld [vmem:[%s7413 + $0xd0] sm:$0xff]
    %v7441 = vld [vmem:[%s7413 + $0xd8] sm:$0xff]
    %v7442 = vld [vmem:[%s7413 + $0xe0] sm:$0xff]
    %v7443 = vld [vmem:[%s7413 + $0xe8] sm:$0xff]
    %v7444 = vld [vmem:[%s7413 + $0xf0] sm:$0xff]
    %v7445 = vld [vmem:[%s7413 + $0xf8] sm:$0xff]
    %v7446 = vld [vmem:[%s7413 + $0x100] sm:$0xff]
    %v7447 = vld [vmem:[%s7413 + $0x108] sm:$0xff]
    %v7448 = vld [vmem:[%s7413 + $0x110] sm:$0xff]
    %v7449 = vld [vmem:[%s7413 + $0x118] sm:$0xff]
    %v7450 = vld [vmem:[%s7413 + $0x120] sm:$0xff]
    %v7451 = vld [vmem:[%s7413 + $0x128] sm:$0xff]
    %v7452 = vld [vmem:[%s7413 + $0x130] sm:$0xff]
    %v7453 = vld [vmem:[%s7413 + $0x138] sm:$0xff]
    %v7454 = vld [vmem:[%s7413 + $0x140] sm:$0xff]
    %v7455 = vld [vmem:[%s7413 + $0x148] sm:$0xff]
    %v7456 = vld [vmem:[%s7413 + $0x150] sm:$0xff]
    %v7457 = vld [vmem:[%s7413 + $0x158] sm:$0xff]
    %v7458 = vld [vmem:[%s7413 + $0x160] sm:$0xff]
    %v7459 = vld [vmem:[%s7413 + $0x168] sm:$0xff]
    %v7460 = vld [vmem:[%s7413 + $0x170] sm:$0xff]
    %v7461 = vld [vmem:[%s7413 + $0x178] sm:$0xff]
    %v7462 = vld [vmem:[%s7413 + $0x180] sm:$0xff]
    %v7463 = vld [vmem:[%s7413 + $0x188] sm:$0xff]
    %v7464 = vld [vmem:[%s7413 + $0x190] sm:$0xff]
    %v7465 = vld [vmem:[%s7413 + $0x198] sm:$0xff]
    %v7466 = vld [vmem:[%s7413 + $0x1a0] sm:$0xff]
    %v7467 = vld [vmem:[%s7413 + $0x1a8] sm:$0xff]
    %v7468 = vld [vmem:[%s7413 + $0x1b0] sm:$0xff]
    %v7469 = vld [vmem:[%s7413 + $0x1b8] sm:$0xff]
    %v7470 = vld [vmem:[%s7413 + $0x1c0] sm:$0xff]
    %v7471 = vld [vmem:[%s7413 + $0x1c8] sm:$0xff]
    %v7472 = vld [vmem:[%s7413 + $0x1d0] sm:$0xff]
    %v7473 = vld [vmem:[%s7413 + $0x1d8] sm:$0xff]
    %v7474 = vld [vmem:[%s7413 + $0x1e0] sm:$0xff]
    %v7475 = vld [vmem:[%s7413 + $0x1e8] sm:$0xff]
    %v7476 = vld [vmem:[%s7413 + $0x1f0] sm:$0xff]
    %v7477 = vld [vmem:[%s7413 + $0x1f8] sm:$0xff]
    %v7542 = vunpack.c.l.b16 %v7414
    %v7543 = vunpack.c.h.b16 %v7414
    %v7544 = vunpack.c.l.b16 %v7415
    %v7545 = vunpack.c.h.b16 %v7415
    %v7546 = vunpack.c.l.b16 %v7416
    %v7547 = vunpack.c.h.b16 %v7416
    %v7548 = vunpack.c.l.b16 %v7417
    %v7549 = vunpack.c.h.b16 %v7417
    %v7550 = vunpack.c.l.b16 %v7418
    %v7551 = vunpack.c.h.b16 %v7418
    %v7552 = vunpack.c.l.b16 %v7419
    %v7553 = vunpack.c.h.b16 %v7419
    %v7554 = vunpack.c.l.b16 %v7420
    %v7555 = vunpack.c.h.b16 %v7420
    %v7556 = vunpack.c.l.b16 %v7421
    %v7557 = vunpack.c.h.b16 %v7421
    %v7558 = vunpack.c.l.b16 %v7422
    %v7559 = vunpack.c.h.b16 %v7422
    %v7560 = vunpack.c.l.b16 %v7423
    %v7561 = vunpack.c.h.b16 %v7423
    %v7562 = vunpack.c.l.b16 %v7424
    %v7563 = vunpack.c.h.b16 %v7424
    %v7564 = vunpack.c.l.b16 %v7425
    %v7565 = vunpack.c.h.b16 %v7425
    %v7566 = vunpack.c.l.b16 %v7426
    %v7567 = vunpack.c.h.b16 %v7426
    %v7568 = vunpack.c.l.b16 %v7427
    %v7569 = vunpack.c.h.b16 %v7427
    %v7570 = vunpack.c.l.b16 %v7428
    %v7571 = vunpack.c.h.b16 %v7428
    %v7572 = vunpack.c.l.b16 %v7429
    %v7573 = vunpack.c.h.b16 %v7429
    %v7574 = vunpack.c.l.b16 %v7430
    %v7575 = vunpack.c.h.b16 %v7430
    %v7576 = vunpack.c.l.b16 %v7431
    %v7577 = vunpack.c.h.b16 %v7431
    %v7578 = vunpack.c.l.b16 %v7432
    %v7579 = vunpack.c.h.b16 %v7432
    %v7580 = vunpack.c.l.b16 %v7433
    %v7581 = vunpack.c.h.b16 %v7433
    %v7582 = vunpack.c.l.b16 %v7434
    %v7583 = vunpack.c.h.b16 %v7434
    %v7584 = vunpack.c.l.b16 %v7435
    %v7585 = vunpack.c.h.b16 %v7435
    %v7586 = vunpack.c.l.b16 %v7436
    %v7587 = vunpack.c.h.b16 %v7436
    %v7588 = vunpack.c.l.b16 %v7437
    %v7589 = vunpack.c.h.b16 %v7437
    %v7590 = vunpack.c.l.b16 %v7438
    %v7591 = vunpack.c.h.b16 %v7438
    %v7592 = vunpack.c.l.b16 %v7439
    %v7593 = vunpack.c.h.b16 %v7439
    %v7594 = vunpack.c.l.b16 %v7440
    %v7595 = vunpack.c.h.b16 %v7440
    %v7596 = vunpack.c.l.b16 %v7441
    %v7597 = vunpack.c.h.b16 %v7441
    %v7598 = vunpack.c.l.b16 %v7442
    %v7599 = vunpack.c.h.b16 %v7442
    %v7600 = vunpack.c.l.b16 %v7443
    %v7601 = vunpack.c.h.b16 %v7443
    %v7602 = vunpack.c.l.b16 %v7444
    %v7603 = vunpack.c.h.b16 %v7444
    %v7604 = vunpack.c.l.b16 %v7445
    %v7605 = vunpack.c.h.b16 %v7445
    %v7606 = vunpack.c.l.b16 %v7446
    %v7607 = vunpack.c.h.b16 %v7446
    %v7608 = vunpack.c.l.b16 %v7447
    %v7609 = vunpack.c.h.b16 %v7447
    %v7610 = vunpack.c.l.b16 %v7448
    %v7611 = vunpack.c.h.b16 %v7448
    %v7612 = vunpack.c.l.b16 %v7449
    %v7613 = vunpack.c.h.b16 %v7449
    %v7614 = vunpack.c.l.b16 %v7450
    %v7615 = vunpack.c.h.b16 %v7450
    %v7616 = vunpack.c.l.b16 %v7451
    %v7617 = vunpack.c.h.b16 %v7451
    %v7618 = vunpack.c.l.b16 %v7452
    %v7619 = vunpack.c.h.b16 %v7452
    %v7620 = vunpack.c.l.b16 %v7453
    %v7621 = vunpack.c.h.b16 %v7453
    %v7622 = vunpack.c.l.b16 %v7454
    %v7623 = vunpack.c.h.b16 %v7454
    %v7624 = vunpack.c.l.b16 %v7455
    %v7625 = vunpack.c.h.b16 %v7455
    %v7626 = vunpack.c.l.b16 %v7456
    %v7627 = vunpack.c.h.b16 %v7456
    %v7628 = vunpack.c.l.b16 %v7457
    %v7629 = vunpack.c.h.b16 %v7457
    %v7630 = vunpack.c.l.b16 %v7458
    %v7631 = vunpack.c.h.b16 %v7458
    %v7632 = vunpack.c.l.b16 %v7459
    %v7633 = vunpack.c.h.b16 %v7459
    %v7634 = vunpack.c.l.b16 %v7460
    %v7635 = vunpack.c.h.b16 %v7460
    %v7636 = vunpack.c.l.b16 %v7461
    %v7637 = vunpack.c.h.b16 %v7461
    %v7638 = vunpack.c.l.b16 %v7462
    %v7639 = vunpack.c.h.b16 %v7462
    %v7640 = vunpack.c.l.b16 %v7463
    %v7641 = vunpack.c.h.b16 %v7463
    %v7642 = vunpack.c.l.b16 %v7464
    %v7643 = vunpack.c.h.b16 %v7464
    %v7644 = vunpack.c.l.b16 %v7465
    %v7645 = vunpack.c.h.b16 %v7465
    %v7646 = vunpack.c.l.b16 %v7466
    %v7647 = vunpack.c.h.b16 %v7466
    %v7648 = vunpack.c.l.b16 %v7467
    %v7649 = vunpack.c.h.b16 %v7467
    %v7650 = vunpack.c.l.b16 %v7468
    %v7651 = vunpack.c.h.b16 %v7468
    %v7652 = vunpack.c.l.b16 %v7469
    %v7653 = vunpack.c.h.b16 %v7469
    %v7654 = vunpack.c.l.b16 %v7470
    %v7655 = vunpack.c.h.b16 %v7470
    %v7656 = vunpack.c.l.b16 %v7471
    %v7657 = vunpack.c.h.b16 %v7471
    %v7658 = vunpack.c.l.b16 %v7472
    %v7659 = vunpack.c.h.b16 %v7472
    %v7660 = vunpack.c.l.b16 %v7473
    %v7661 = vunpack.c.h.b16 %v7473
    %v7662 = vunpack.c.l.b16 %v7474
    %v7663 = vunpack.c.h.b16 %v7474
    %v7664 = vunpack.c.l.b16 %v7475
    %v7665 = vunpack.c.h.b16 %v7475
    %v7666 = vunpack.c.l.b16 %v7476
    %v7667 = vunpack.c.h.b16 %v7476
    %v7668 = vunpack.c.l.b16 %v7477
    %v7669 = vunpack.c.h.b16 %v7477
    %v7670 = vpack.c.b16 %v7550, %v7542
    %v7671 = vpack.c.b16 %v7551, %v7543
    %v7672 = vpack.c.b16 %v7552, %v7544
    %v7673 = vpack.c.b16 %v7553, %v7545
    %v7674 = vpack.c.b16 %v7554, %v7546
    %v7675 = vpack.c.b16 %v7555, %v7547
    %v7676 = vpack.c.b16 %v7556, %v7548
    %v7677 = vpack.c.b16 %v7557, %v7549
    %v7678 = vpack.c.b16 %v7566, %v7558
    %v7679 = vpack.c.b16 %v7567, %v7559
    %v7680 = vpack.c.b16 %v7568, %v7560
    %v7681 = vpack.c.b16 %v7569, %v7561
    %v7682 = vpack.c.b16 %v7570, %v7562
    %v7683 = vpack.c.b16 %v7571, %v7563
    %v7684 = vpack.c.b16 %v7572, %v7564
    %v7685 = vpack.c.b16 %v7573, %v7565
    %v7686 = vpack.c.b16 %v7582, %v7574
    %v7687 = vpack.c.b16 %v7583, %v7575
    %v7688 = vpack.c.b16 %v7584, %v7576
    %v7689 = vpack.c.b16 %v7585, %v7577
    %v7690 = vpack.c.b16 %v7586, %v7578
    %v7691 = vpack.c.b16 %v7587, %v7579
    %v7692 = vpack.c.b16 %v7588, %v7580
    %v7693 = vpack.c.b16 %v7589, %v7581
    %v7694 = vpack.c.b16 %v7598, %v7590
    %v7695 = vpack.c.b16 %v7599, %v7591
    %v7696 = vpack.c.b16 %v7600, %v7592
    %v7697 = vpack.c.b16 %v7601, %v7593
    %v7698 = vpack.c.b16 %v7602, %v7594
    %v7699 = vpack.c.b16 %v7603, %v7595
    %v7700 = vpack.c.b16 %v7604, %v7596
    %v7701 = vpack.c.b16 %v7605, %v7597
    %v7702 = vpack.c.b16 %v7614, %v7606
    %v7703 = vpack.c.b16 %v7615, %v7607
    %v7704 = vpack.c.b16 %v7616, %v7608
    %v7705 = vpack.c.b16 %v7617, %v7609
    %v7706 = vpack.c.b16 %v7618, %v7610
    %v7707 = vpack.c.b16 %v7619, %v7611
    %v7708 = vpack.c.b16 %v7620, %v7612
    %v7709 = vpack.c.b16 %v7621, %v7613
    %v7710 = vpack.c.b16 %v7630, %v7622
    %v7711 = vpack.c.b16 %v7631, %v7623
    %v7712 = vpack.c.b16 %v7632, %v7624
    %v7713 = vpack.c.b16 %v7633, %v7625
    %v7714 = vpack.c.b16 %v7634, %v7626
    %v7715 = vpack.c.b16 %v7635, %v7627
    %v7716 = vpack.c.b16 %v7636, %v7628
    %v7717 = vpack.c.b16 %v7637, %v7629
    %v7718 = vpack.c.b16 %v7646, %v7638
    %v7719 = vpack.c.b16 %v7647, %v7639
    %v7720 = vpack.c.b16 %v7648, %v7640
    %v7721 = vpack.c.b16 %v7649, %v7641
    %v7722 = vpack.c.b16 %v7650, %v7642
    %v7723 = vpack.c.b16 %v7651, %v7643
    %v7724 = vpack.c.b16 %v7652, %v7644
    %v7725 = vpack.c.b16 %v7653, %v7645
    %v7726 = vpack.c.b16 %v7662, %v7654
    %v7727 = vpack.c.b16 %v7663, %v7655
    %v7728 = vpack.c.b16 %v7664, %v7656
    %v7729 = vpack.c.b16 %v7665, %v7657
    %v7730 = vpack.c.b16 %v7666, %v7658
    %v7731 = vpack.c.b16 %v7667, %v7659
    %v7732 = vpack.c.b16 %v7668, %v7660
    %v7733 = vpack.c.b16 %v7669, %v7661
    %7798 = vmatpush.bf16.msra.mxu0 %v7726
    %7799 = vmatpush.bf16.msra.mxu0 %v7718
    %7800 = vmatpush.bf16.msra.mxu0 %v7710
    %7801 = vmatpush.bf16.msra.mxu0 %v7702
    %7802 = vmatpush.bf16.msra.mxu0 %v7694
    %7803 = vmatpush.bf16.msra.mxu0 %v7686
    %7804 = vmatpush.bf16.msra.mxu0 %v7678
    %7805 = vmatpush.bf16.msra.mxu0 %v7670
    %7806 = vmatmul.bf16.gmra.mxu0 %v7412
    %v7807 = vpop.f32.mrf.mxu0
    %v7808 = vadd.f32 0.0, %v7807
    %v7809 = vpop.f32.mrf.mxu0
    %7810 = vdwg.mxu0
    %7811 = vmatpush.bf16.msra.mxu0 %v7727
    %7812 = vmatpush.bf16.msra.mxu0 %v7719
    %7813 = vmatpush.bf16.msra.mxu0 %v7711
    %7814 = vmatpush.bf16.msra.mxu0 %v7703
    %7815 = vmatpush.bf16.msra.mxu0 %v7695
    %7816 = vmatpush.bf16.msra.mxu0 %v7687
    %7817 = vmatpush.bf16.msra.mxu0 %v7679
    %7818 = vmatpush.bf16.msra.mxu0 %v7671
    %7819 = vmatmul.bf16.gmra.mxu0 %v7412
    %v7820 = vpop.f32.mrf.mxu0
    %v7821 = vadd.f32 0.0, %v7820
    %v7822 = vpop.f32.mrf.mxu0
    %7823 = vdwg.mxu0
    %7824 = vmatpush.bf16.msra.mxu0 %v7728
    %7825 = vmatpush.bf16.msra.mxu0 %v7720
    %7826 = vmatpush.bf16.msra.mxu0 %v7712
    %7827 = vmatpush.bf16.msra.mxu0 %v7704
    %7828 = vmatpush.bf16.msra.mxu0 %v7696
    %7829 = vmatpush.bf16.msra.mxu0 %v7688
    %7830 = vmatpush.bf16.msra.mxu0 %v7680
    %7831 = vmatpush.bf16.msra.mxu0 %v7672
    %7832 = vmatmul.bf16.gmra.mxu0 %v7412
    %v7833 = vpop.f32.mrf.mxu0
    %v7834 = vadd.f32 0.0, %v7833
    %v7835 = vpop.f32.mrf.mxu0
    %7836 = vdwg.mxu0
    %7837 = vmatpush.bf16.msra.mxu0 %v7729
    %7838 = vmatpush.bf16.msra.mxu0 %v7721
    %7839 = vmatpush.bf16.msra.mxu0 %v7713
    %7840 = vmatpush.bf16.msra.mxu0 %v7705
    %7841 = vmatpush.bf16.msra.mxu0 %v7697
    %7842 = vmatpush.bf16.msra.mxu0 %v7689
    %7843 = vmatpush.bf16.msra.mxu0 %v7681
    %7844 = vmatpush.bf16.msra.mxu0 %v7673
    %7845 = vmatmul.bf16.gmra.mxu0 %v7412
    %v7846 = vpop.f32.mrf.mxu0
    %v7847 = vadd.f32 0.0, %v7846
    %v7848 = vpop.f32.mrf.mxu0
    %7849 = vdwg.mxu0
    %7850 = vmatpush.bf16.msra.mxu0 %v7730
    %7851 = vmatpush.bf16.msra.mxu0 %v7722
    %7852 = vmatpush.bf16.msra.mxu0 %v7714
    %7853 = vmatpush.bf16.msra.mxu0 %v7706
    %7854 = vmatpush.bf16.msra.mxu0 %v7698
    %7855 = vmatpush.bf16.msra.mxu0 %v7690
    %7856 = vmatpush.bf16.msra.mxu0 %v7682
    %7857 = vmatpush.bf16.msra.mxu0 %v7674
    %7858 = vmatmul.bf16.gmra.mxu0 %v7412
    %v7859 = vpop.f32.mrf.mxu0
    %v7860 = vadd.f32 0.0, %v7859
    %v7861 = vpop.f32.mrf.mxu0
    %7862 = vdwg.mxu0
    %7863 = vmatpush.bf16.msra.mxu0 %v7731
    %7864 = vmatpush.bf16.msra.mxu0 %v7723
    %7865 = vmatpush.bf16.msra.mxu0 %v7715
    %7866 = vmatpush.bf16.msra.mxu0 %v7707
    %7867 = vmatpush.bf16.msra.mxu0 %v7699
    %7868 = vmatpush.bf16.msra.mxu0 %v7691
    %7869 = vmatpush.bf16.msra.mxu0 %v7683
    %7870 = vmatpush.bf16.msra.mxu0 %v7675
    %7871 = vmatmul.bf16.gmra.mxu0 %v7412
    %v7872 = vpop.f32.mrf.mxu0
    %v7873 = vadd.f32 0.0, %v7872
    %v7874 = vpop.f32.mrf.mxu0
    %7875 = vdwg.mxu0
    %7876 = vmatpush.bf16.msra.mxu0 %v7732
    %7877 = vmatpush.bf16.msra.mxu0 %v7724
    %7878 = vmatpush.bf16.msra.mxu0 %v7716
    %7879 = vmatpush.bf16.msra.mxu0 %v7708
    %7880 = vmatpush.bf16.msra.mxu0 %v7700
    %7881 = vmatpush.bf16.msra.mxu0 %v7692
    %7882 = vmatpush.bf16.msra.mxu0 %v7684
    %7883 = vmatpush.bf16.msra.mxu0 %v7676
    %7884 = vmatmul.bf16.gmra.mxu0 %v7412
    %v7885 = vpop.f32.mrf.mxu0
    %v7886 = vadd.f32 0.0, %v7885
    %v7887 = vpop.f32.mrf.mxu0
    %7888 = vdwg.mxu0
    %7889 = vmatpush.bf16.msra.mxu0 %v7733
    %7890 = vmatpush.bf16.msra.mxu0 %v7725
    %7891 = vmatpush.bf16.msra.mxu0 %v7717
    %7892 = vmatpush.bf16.msra.mxu0 %v7709
    %7893 = vmatpush.bf16.msra.mxu0 %v7701
    %7894 = vmatpush.bf16.msra.mxu0 %v7693
    %7895 = vmatpush.bf16.msra.mxu0 %v7685
    %7896 = vmatpush.bf16.msra.mxu0 %v7677
    %7897 = vmatmul.bf16.gmra.mxu0 %v7412
    %v7898 = vpop.f32.mrf.mxu0
    %v7899 = vadd.f32 0.0, %v7898
    %v7900 = vpop.f32.mrf.mxu0
    %7901 = vdwg.mxu0
    %v7902 = vadd.f32 %v7399, %v7808
    %v7903 = vadd.f32 %v7400, %v7821
    %v7904 = vadd.f32 %v7401, %v7834
    %v7905 = vadd.f32 %v7402, %v7847
    %v7906 = vadd.f32 %v7403, %v7860
    %v7907 = vadd.f32 %v7404, %v7873
    %v7908 = vadd.f32 %v7405, %v7886
    %v7909 = vadd.f32 %v7406, %v7899
    %v7910 = vrot.slane %v2388, 3
    %v7912 = vrot.slane %v2396, 2
    %v7914 = vsel %vm2400, %v7910, %v7912
    %v7915 = vpack.c.bf16 %v7914, %v7914
    %s7916 = scalar_lea.vmem [#allocation22], 5632
    %v7917 = vld [vmem:[%s7916] sm:$0xff]
    %v7918 = vld [vmem:[%s7916 + $0x8] sm:$0xff]
    %v7919 = vld [vmem:[%s7916 + $0x10] sm:$0xff]
    %v7920 = vld [vmem:[%s7916 + $0x18] sm:$0xff]
    %v7921 = vld [vmem:[%s7916 + $0x20] sm:$0xff]
    %v7922 = vld [vmem:[%s7916 + $0x28] sm:$0xff]
    %v7923 = vld [vmem:[%s7916 + $0x30] sm:$0xff]
    %v7924 = vld [vmem:[%s7916 + $0x38] sm:$0xff]
    %v7925 = vld [vmem:[%s7916 + $0x40] sm:$0xff]
    %v7926 = vld [vmem:[%s7916 + $0x48] sm:$0xff]
    %v7927 = vld [vmem:[%s7916 + $0x50] sm:$0xff]
    %v7928 = vld [vmem:[%s7916 + $0x58] sm:$0xff]
    %v7929 = vld [vmem:[%s7916 + $0x60] sm:$0xff]
    %v7930 = vld [vmem:[%s7916 + $0x68] sm:$0xff]
    %v7931 = vld [vmem:[%s7916 + $0x70] sm:$0xff]
    %v7932 = vld [vmem:[%s7916 + $0x78] sm:$0xff]
    %v7933 = vld [vmem:[%s7916 + $0x80] sm:$0xff]
    %v7934 = vld [vmem:[%s7916 + $0x88] sm:$0xff]
    %v7935 = vld [vmem:[%s7916 + $0x90] sm:$0xff]
    %v7936 = vld [vmem:[%s7916 + $0x98] sm:$0xff]
    %v7937 = vld [vmem:[%s7916 + $0xa0] sm:$0xff]
    %v7938 = vld [vmem:[%s7916 + $0xa8] sm:$0xff]
    %v7939 = vld [vmem:[%s7916 + $0xb0] sm:$0xff]
    %v7940 = vld [vmem:[%s7916 + $0xb8] sm:$0xff]
    %v7941 = vld [vmem:[%s7916 + $0xc0] sm:$0xff]
    %v7942 = vld [vmem:[%s7916 + $0xc8] sm:$0xff]
    %v7943 = vld [vmem:[%s7916 + $0xd0] sm:$0xff]
    %v7944 = vld [vmem:[%s7916 + $0xd8] sm:$0xff]
    %v7945 = vld [vmem:[%s7916 + $0xe0] sm:$0xff]
    %v7946 = vld [vmem:[%s7916 + $0xe8] sm:$0xff]
    %v7947 = vld [vmem:[%s7916 + $0xf0] sm:$0xff]
    %v7948 = vld [vmem:[%s7916 + $0xf8] sm:$0xff]
    %v7949 = vld [vmem:[%s7916 + $0x100] sm:$0xff]
    %v7950 = vld [vmem:[%s7916 + $0x108] sm:$0xff]
    %v7951 = vld [vmem:[%s7916 + $0x110] sm:$0xff]
    %v7952 = vld [vmem:[%s7916 + $0x118] sm:$0xff]
    %v7953 = vld [vmem:[%s7916 + $0x120] sm:$0xff]
    %v7954 = vld [vmem:[%s7916 + $0x128] sm:$0xff]
    %v7955 = vld [vmem:[%s7916 + $0x130] sm:$0xff]
    %v7956 = vld [vmem:[%s7916 + $0x138] sm:$0xff]
    %v7957 = vld [vmem:[%s7916 + $0x140] sm:$0xff]
    %v7958 = vld [vmem:[%s7916 + $0x148] sm:$0xff]
    %v7959 = vld [vmem:[%s7916 + $0x150] sm:$0xff]
    %v7960 = vld [vmem:[%s7916 + $0x158] sm:$0xff]
    %v7961 = vld [vmem:[%s7916 + $0x160] sm:$0xff]
    %v7962 = vld [vmem:[%s7916 + $0x168] sm:$0xff]
    %v7963 = vld [vmem:[%s7916 + $0x170] sm:$0xff]
    %v7964 = vld [vmem:[%s7916 + $0x178] sm:$0xff]
    %v7965 = vld [vmem:[%s7916 + $0x180] sm:$0xff]
    %v7966 = vld [vmem:[%s7916 + $0x188] sm:$0xff]
    %v7967 = vld [vmem:[%s7916 + $0x190] sm:$0xff]
    %v7968 = vld [vmem:[%s7916 + $0x198] sm:$0xff]
    %v7969 = vld [vmem:[%s7916 + $0x1a0] sm:$0xff]
    %v7970 = vld [vmem:[%s7916 + $0x1a8] sm:$0xff]
    %v7971 = vld [vmem:[%s7916 + $0x1b0] sm:$0xff]
    %v7972 = vld [vmem:[%s7916 + $0x1b8] sm:$0xff]
    %v7973 = vld [vmem:[%s7916 + $0x1c0] sm:$0xff]
    %v7974 = vld [vmem:[%s7916 + $0x1c8] sm:$0xff]
    %v7975 = vld [vmem:[%s7916 + $0x1d0] sm:$0xff]
    %v7976 = vld [vmem:[%s7916 + $0x1d8] sm:$0xff]
    %v7977 = vld [vmem:[%s7916 + $0x1e0] sm:$0xff]
    %v7978 = vld [vmem:[%s7916 + $0x1e8] sm:$0xff]
    %v7979 = vld [vmem:[%s7916 + $0x1f0] sm:$0xff]
    %v7980 = vld [vmem:[%s7916 + $0x1f8] sm:$0xff]
    %v8045 = vunpack.c.l.b16 %v7917
    %v8046 = vunpack.c.h.b16 %v7917
    %v8047 = vunpack.c.l.b16 %v7918
    %v8048 = vunpack.c.h.b16 %v7918
    %v8049 = vunpack.c.l.b16 %v7919
    %v8050 = vunpack.c.h.b16 %v7919
    %v8051 = vunpack.c.l.b16 %v7920
    %v8052 = vunpack.c.h.b16 %v7920
    %v8053 = vunpack.c.l.b16 %v7921
    %v8054 = vunpack.c.h.b16 %v7921
    %v8055 = vunpack.c.l.b16 %v7922
    %v8056 = vunpack.c.h.b16 %v7922
    %v8057 = vunpack.c.l.b16 %v7923
    %v8058 = vunpack.c.h.b16 %v7923
    %v8059 = vunpack.c.l.b16 %v7924
    %v8060 = vunpack.c.h.b16 %v7924
    %v8061 = vunpack.c.l.b16 %v7925
    %v8062 = vunpack.c.h.b16 %v7925
    %v8063 = vunpack.c.l.b16 %v7926
    %v8064 = vunpack.c.h.b16 %v7926
    %v8065 = vunpack.c.l.b16 %v7927
    %v8066 = vunpack.c.h.b16 %v7927
    %v8067 = vunpack.c.l.b16 %v7928
    %v8068 = vunpack.c.h.b16 %v7928
    %v8069 = vunpack.c.l.b16 %v7929
    %v8070 = vunpack.c.h.b16 %v7929
    %v8071 = vunpack.c.l.b16 %v7930
    %v8072 = vunpack.c.h.b16 %v7930
    %v8073 = vunpack.c.l.b16 %v7931
    %v8074 = vunpack.c.h.b16 %v7931
    %v8075 = vunpack.c.l.b16 %v7932
    %v8076 = vunpack.c.h.b16 %v7932
    %v8077 = vunpack.c.l.b16 %v7933
    %v8078 = vunpack.c.h.b16 %v7933
    %v8079 = vunpack.c.l.b16 %v7934
    %v8080 = vunpack.c.h.b16 %v7934
    %v8081 = vunpack.c.l.b16 %v7935
    %v8082 = vunpack.c.h.b16 %v7935
    %v8083 = vunpack.c.l.b16 %v7936
    %v8084 = vunpack.c.h.b16 %v7936
    %v8085 = vunpack.c.l.b16 %v7937
    %v8086 = vunpack.c.h.b16 %v7937
    %v8087 = vunpack.c.l.b16 %v7938
    %v8088 = vunpack.c.h.b16 %v7938
    %v8089 = vunpack.c.l.b16 %v7939
    %v8090 = vunpack.c.h.b16 %v7939
    %v8091 = vunpack.c.l.b16 %v7940
    %v8092 = vunpack.c.h.b16 %v7940
    %v8093 = vunpack.c.l.b16 %v7941
    %v8094 = vunpack.c.h.b16 %v7941
    %v8095 = vunpack.c.l.b16 %v7942
    %v8096 = vunpack.c.h.b16 %v7942
    %v8097 = vunpack.c.l.b16 %v7943
    %v8098 = vunpack.c.h.b16 %v7943
    %v8099 = vunpack.c.l.b16 %v7944
    %v8100 = vunpack.c.h.b16 %v7944
    %v8101 = vunpack.c.l.b16 %v7945
    %v8102 = vunpack.c.h.b16 %v7945
    %v8103 = vunpack.c.l.b16 %v7946
    %v8104 = vunpack.c.h.b16 %v7946
    %v8105 = vunpack.c.l.b16 %v7947
    %v8106 = vunpack.c.h.b16 %v7947
    %v8107 = vunpack.c.l.b16 %v7948
    %v8108 = vunpack.c.h.b16 %v7948
    %v8109 = vunpack.c.l.b16 %v7949
    %v8110 = vunpack.c.h.b16 %v7949
    %v8111 = vunpack.c.l.b16 %v7950
    %v8112 = vunpack.c.h.b16 %v7950
    %v8113 = vunpack.c.l.b16 %v7951
    %v8114 = vunpack.c.h.b16 %v7951
    %v8115 = vunpack.c.l.b16 %v7952
    %v8116 = vunpack.c.h.b16 %v7952
    %v8117 = vunpack.c.l.b16 %v7953
    %v8118 = vunpack.c.h.b16 %v7953
    %v8119 = vunpack.c.l.b16 %v7954
    %v8120 = vunpack.c.h.b16 %v7954
    %v8121 = vunpack.c.l.b16 %v7955
    %v8122 = vunpack.c.h.b16 %v7955
    %v8123 = vunpack.c.l.b16 %v7956
    %v8124 = vunpack.c.h.b16 %v7956
    %v8125 = vunpack.c.l.b16 %v7957
    %v8126 = vunpack.c.h.b16 %v7957
    %v8127 = vunpack.c.l.b16 %v7958
    %v8128 = vunpack.c.h.b16 %v7958
    %v8129 = vunpack.c.l.b16 %v7959
    %v8130 = vunpack.c.h.b16 %v7959
    %v8131 = vunpack.c.l.b16 %v7960
    %v8132 = vunpack.c.h.b16 %v7960
    %v8133 = vunpack.c.l.b16 %v7961
    %v8134 = vunpack.c.h.b16 %v7961
    %v8135 = vunpack.c.l.b16 %v7962
    %v8136 = vunpack.c.h.b16 %v7962
    %v8137 = vunpack.c.l.b16 %v7963
    %v8138 = vunpack.c.h.b16 %v7963
    %v8139 = vunpack.c.l.b16 %v7964
    %v8140 = vunpack.c.h.b16 %v7964
    %v8141 = vunpack.c.l.b16 %v7965
    %v8142 = vunpack.c.h.b16 %v7965
    %v8143 = vunpack.c.l.b16 %v7966
    %v8144 = vunpack.c.h.b16 %v7966
    %v8145 = vunpack.c.l.b16 %v7967
    %v8146 = vunpack.c.h.b16 %v7967
    %v8147 = vunpack.c.l.b16 %v7968
    %v8148 = vunpack.c.h.b16 %v7968
    %v8149 = vunpack.c.l.b16 %v7969
    %v8150 = vunpack.c.h.b16 %v7969
    %v8151 = vunpack.c.l.b16 %v7970
    %v8152 = vunpack.c.h.b16 %v7970
    %v8153 = vunpack.c.l.b16 %v7971
    %v8154 = vunpack.c.h.b16 %v7971
    %v8155 = vunpack.c.l.b16 %v7972
    %v8156 = vunpack.c.h.b16 %v7972
    %v8157 = vunpack.c.l.b16 %v7973
    %v8158 = vunpack.c.h.b16 %v7973
    %v8159 = vunpack.c.l.b16 %v7974
    %v8160 = vunpack.c.h.b16 %v7974
    %v8161 = vunpack.c.l.b16 %v7975
    %v8162 = vunpack.c.h.b16 %v7975
    %v8163 = vunpack.c.l.b16 %v7976
    %v8164 = vunpack.c.h.b16 %v7976
    %v8165 = vunpack.c.l.b16 %v7977
    %v8166 = vunpack.c.h.b16 %v7977
    %v8167 = vunpack.c.l.b16 %v7978
    %v8168 = vunpack.c.h.b16 %v7978
    %v8169 = vunpack.c.l.b16 %v7979
    %v8170 = vunpack.c.h.b16 %v7979
    %v8171 = vunpack.c.l.b16 %v7980
    %v8172 = vunpack.c.h.b16 %v7980
    %v8173 = vpack.c.b16 %v8053, %v8045
    %v8174 = vpack.c.b16 %v8054, %v8046
    %v8175 = vpack.c.b16 %v8055, %v8047
    %v8176 = vpack.c.b16 %v8056, %v8048
    %v8177 = vpack.c.b16 %v8057, %v8049
    %v8178 = vpack.c.b16 %v8058, %v8050
    %v8179 = vpack.c.b16 %v8059, %v8051
    %v8180 = vpack.c.b16 %v8060, %v8052
    %v8181 = vpack.c.b16 %v8069, %v8061
    %v8182 = vpack.c.b16 %v8070, %v8062
    %v8183 = vpack.c.b16 %v8071, %v8063
    %v8184 = vpack.c.b16 %v8072, %v8064
    %v8185 = vpack.c.b16 %v8073, %v8065
    %v8186 = vpack.c.b16 %v8074, %v8066
    %v8187 = vpack.c.b16 %v8075, %v8067
    %v8188 = vpack.c.b16 %v8076, %v8068
    %v8189 = vpack.c.b16 %v8085, %v8077
    %v8190 = vpack.c.b16 %v8086, %v8078
    %v8191 = vpack.c.b16 %v8087, %v8079
    %v8192 = vpack.c.b16 %v8088, %v8080
    %v8193 = vpack.c.b16 %v8089, %v8081
    %v8194 = vpack.c.b16 %v8090, %v8082
    %v8195 = vpack.c.b16 %v8091, %v8083
    %v8196 = vpack.c.b16 %v8092, %v8084
    %v8197 = vpack.c.b16 %v8101, %v8093
    %v8198 = vpack.c.b16 %v8102, %v8094
    %v8199 = vpack.c.b16 %v8103, %v8095
    %v8200 = vpack.c.b16 %v8104, %v8096
    %v8201 = vpack.c.b16 %v8105, %v8097
    %v8202 = vpack.c.b16 %v8106, %v8098
    %v8203 = vpack.c.b16 %v8107, %v8099
    %v8204 = vpack.c.b16 %v8108, %v8100
    %v8205 = vpack.c.b16 %v8117, %v8109
    %v8206 = vpack.c.b16 %v8118, %v8110
    %v8207 = vpack.c.b16 %v8119, %v8111
    %v8208 = vpack.c.b16 %v8120, %v8112
    %v8209 = vpack.c.b16 %v8121, %v8113
    %v8210 = vpack.c.b16 %v8122, %v8114
    %v8211 = vpack.c.b16 %v8123, %v8115
    %v8212 = vpack.c.b16 %v8124, %v8116
    %v8213 = vpack.c.b16 %v8133, %v8125
    %v8214 = vpack.c.b16 %v8134, %v8126
    %v8215 = vpack.c.b16 %v8135, %v8127
    %v8216 = vpack.c.b16 %v8136, %v8128
    %v8217 = vpack.c.b16 %v8137, %v8129
    %v8218 = vpack.c.b16 %v8138, %v8130
    %v8219 = vpack.c.b16 %v8139, %v8131
    %v8220 = vpack.c.b16 %v8140, %v8132
    %v8221 = vpack.c.b16 %v8149, %v8141
    %v8222 = vpack.c.b16 %v8150, %v8142
    %v8223 = vpack.c.b16 %v8151, %v8143
    %v8224 = vpack.c.b16 %v8152, %v8144
    %v8225 = vpack.c.b16 %v8153, %v8145
    %v8226 = vpack.c.b16 %v8154, %v8146
    %v8227 = vpack.c.b16 %v8155, %v8147
    %v8228 = vpack.c.b16 %v8156, %v8148
    %v8229 = vpack.c.b16 %v8165, %v8157
    %v8230 = vpack.c.b16 %v8166, %v8158
    %v8231 = vpack.c.b16 %v8167, %v8159
    %v8232 = vpack.c.b16 %v8168, %v8160
    %v8233 = vpack.c.b16 %v8169, %v8161
    %v8234 = vpack.c.b16 %v8170, %v8162
    %v8235 = vpack.c.b16 %v8171, %v8163
    %v8236 = vpack.c.b16 %v8172, %v8164
    %8301 = vmatpush.bf16.msra.mxu0 %v8229
    %8302 = vmatpush.bf16.msra.mxu0 %v8221
    %8303 = vmatpush.bf16.msra.mxu0 %v8213
    %8304 = vmatpush.bf16.msra.mxu0 %v8205
    %8305 = vmatpush.bf16.msra.mxu0 %v8197
    %8306 = vmatpush.bf16.msra.mxu0 %v8189
    %8307 = vmatpush.bf16.msra.mxu0 %v8181
    %8308 = vmatpush.bf16.msra.mxu0 %v8173
    %8309 = vmatmul.bf16.gmra.mxu0 %v7915
    %v8310 = vpop.f32.mrf.mxu0
    %v8311 = vadd.f32 0.0, %v8310
    %v8312 = vpop.f32.mrf.mxu0
    %8313 = vdwg.mxu0
    %8314 = vmatpush.bf16.msra.mxu0 %v8230
    %8315 = vmatpush.bf16.msra.mxu0 %v8222
    %8316 = vmatpush.bf16.msra.mxu0 %v8214
    %8317 = vmatpush.bf16.msra.mxu0 %v8206
    %8318 = vmatpush.bf16.msra.mxu0 %v8198
    %8319 = vmatpush.bf16.msra.mxu0 %v8190
    %8320 = vmatpush.bf16.msra.mxu0 %v8182
    %8321 = vmatpush.bf16.msra.mxu0 %v8174
    %8322 = vmatmul.bf16.gmra.mxu0 %v7915
    %v8323 = vpop.f32.mrf.mxu0
    %v8324 = vadd.f32 0.0, %v8323
    %v8325 = vpop.f32.mrf.mxu0
    %8326 = vdwg.mxu0
    %8327 = vmatpush.bf16.msra.mxu0 %v8231
    %8328 = vmatpush.bf16.msra.mxu0 %v8223
    %8329 = vmatpush.bf16.msra.mxu0 %v8215
    %8330 = vmatpush.bf16.msra.mxu0 %v8207
    %8331 = vmatpush.bf16.msra.mxu0 %v8199
    %8332 = vmatpush.bf16.msra.mxu0 %v8191
    %8333 = vmatpush.bf16.msra.mxu0 %v8183
    %8334 = vmatpush.bf16.msra.mxu0 %v8175
    %8335 = vmatmul.bf16.gmra.mxu0 %v7915
    %v8336 = vpop.f32.mrf.mxu0
    %v8337 = vadd.f32 0.0, %v8336
    %v8338 = vpop.f32.mrf.mxu0
    %8339 = vdwg.mxu0
    %8340 = vmatpush.bf16.msra.mxu0 %v8232
    %8341 = vmatpush.bf16.msra.mxu0 %v8224
    %8342 = vmatpush.bf16.msra.mxu0 %v8216
    %8343 = vmatpush.bf16.msra.mxu0 %v8208
    %8344 = vmatpush.bf16.msra.mxu0 %v8200
    %8345 = vmatpush.bf16.msra.mxu0 %v8192
    %8346 = vmatpush.bf16.msra.mxu0 %v8184
    %8347 = vmatpush.bf16.msra.mxu0 %v8176
    %8348 = vmatmul.bf16.gmra.mxu0 %v7915
    %v8349 = vpop.f32.mrf.mxu0
    %v8350 = vadd.f32 0.0, %v8349
    %v8351 = vpop.f32.mrf.mxu0
    %8352 = vdwg.mxu0
    %8353 = vmatpush.bf16.msra.mxu0 %v8233
    %8354 = vmatpush.bf16.msra.mxu0 %v8225
    %8355 = vmatpush.bf16.msra.mxu0 %v8217
    %8356 = vmatpush.bf16.msra.mxu0 %v8209
    %8357 = vmatpush.bf16.msra.mxu0 %v8201
    %8358 = vmatpush.bf16.msra.mxu0 %v8193
    %8359 = vmatpush.bf16.msra.mxu0 %v8185
    %8360 = vmatpush.bf16.msra.mxu0 %v8177
    %8361 = vmatmul.bf16.gmra.mxu0 %v7915
    %v8362 = vpop.f32.mrf.mxu0
    %v8363 = vadd.f32 0.0, %v8362
    %v8364 = vpop.f32.mrf.mxu0
    %8365 = vdwg.mxu0
    %8366 = vmatpush.bf16.msra.mxu0 %v8234
    %8367 = vmatpush.bf16.msra.mxu0 %v8226
    %8368 = vmatpush.bf16.msra.mxu0 %v8218
    %8369 = vmatpush.bf16.msra.mxu0 %v8210
    %8370 = vmatpush.bf16.msra.mxu0 %v8202
    %8371 = vmatpush.bf16.msra.mxu0 %v8194
    %8372 = vmatpush.bf16.msra.mxu0 %v8186
    %8373 = vmatpush.bf16.msra.mxu0 %v8178
    %8374 = vmatmul.bf16.gmra.mxu0 %v7915
    %v8375 = vpop.f32.mrf.mxu0
    %v8376 = vadd.f32 0.0, %v8375
    %v8377 = vpop.f32.mrf.mxu0
    %8378 = vdwg.mxu0
    %8379 = vmatpush.bf16.msra.mxu0 %v8235
    %8380 = vmatpush.bf16.msra.mxu0 %v8227
    %8381 = vmatpush.bf16.msra.mxu0 %v8219
    %8382 = vmatpush.bf16.msra.mxu0 %v8211
    %8383 = vmatpush.bf16.msra.mxu0 %v8203
    %8384 = vmatpush.bf16.msra.mxu0 %v8195
    %8385 = vmatpush.bf16.msra.mxu0 %v8187
    %8386 = vmatpush.bf16.msra.mxu0 %v8179
    %8387 = vmatmul.bf16.gmra.mxu0 %v7915
    %v8388 = vpop.f32.mrf.mxu0
    %v8389 = vadd.f32 0.0, %v8388
    %v8390 = vpop.f32.mrf.mxu0
    %8391 = vdwg.mxu0
    %8392 = vmatpush.bf16.msra.mxu0 %v8236
    %8393 = vmatpush.bf16.msra.mxu0 %v8228
    %8394 = vmatpush.bf16.msra.mxu0 %v8220
    %8395 = vmatpush.bf16.msra.mxu0 %v8212
    %8396 = vmatpush.bf16.msra.mxu0 %v8204
    %8397 = vmatpush.bf16.msra.mxu0 %v8196
    %8398 = vmatpush.bf16.msra.mxu0 %v8188
    %8399 = vmatpush.bf16.msra.mxu0 %v8180
    %8400 = vmatmul.bf16.gmra.mxu0 %v7915
    %v8401 = vpop.f32.mrf.mxu0
    %v8402 = vadd.f32 0.0, %v8401
    %v8403 = vpop.f32.mrf.mxu0
    %8404 = vdwg.mxu0
    %v8405 = vadd.f32 %v7902, %v8311
    %v8406 = vadd.f32 %v7903, %v8324
    %v8407 = vadd.f32 %v7904, %v8337
    %v8408 = vadd.f32 %v7905, %v8350
    %v8409 = vadd.f32 %v7906, %v8363
    %v8410 = vadd.f32 %v7907, %v8376
    %v8411 = vadd.f32 %v7908, %v8389
    %v8412 = vadd.f32 %v7909, %v8402
    %v8413 = vrot.slane %v2388, 4
    %v8415 = vrot.slane %v2396, 3
    %v8417 = vsel %vm2400, %v8413, %v8415
    %v8418 = vpack.c.bf16 %v8417, %v8417
    %s8419 = scalar_lea.vmem [#allocation22], 6144
    %v8420 = vld [vmem:[%s8419] sm:$0xff]
    %v8421 = vld [vmem:[%s8419 + $0x8] sm:$0xff]
    %v8422 = vld [vmem:[%s8419 + $0x10] sm:$0xff]
    %v8423 = vld [vmem:[%s8419 + $0x18] sm:$0xff]
    %v8424 = vld [vmem:[%s8419 + $0x20] sm:$0xff]
    %v8425 = vld [vmem:[%s8419 + $0x28] sm:$0xff]
    %v8426 = vld [vmem:[%s8419 + $0x30] sm:$0xff]
    %v8427 = vld [vmem:[%s8419 + $0x38] sm:$0xff]
    %v8428 = vld [vmem:[%s8419 + $0x40] sm:$0xff]
    %v8429 = vld [vmem:[%s8419 + $0x48] sm:$0xff]
    %v8430 = vld [vmem:[%s8419 + $0x50] sm:$0xff]
    %v8431 = vld [vmem:[%s8419 + $0x58] sm:$0xff]
    %v8432 = vld [vmem:[%s8419 + $0x60] sm:$0xff]
    %v8433 = vld [vmem:[%s8419 + $0x68] sm:$0xff]
    %v8434 = vld [vmem:[%s8419 + $0x70] sm:$0xff]
    %v8435 = vld [vmem:[%s8419 + $0x78] sm:$0xff]
    %v8436 = vld [vmem:[%s8419 + $0x80] sm:$0xff]
    %v8437 = vld [vmem:[%s8419 + $0x88] sm:$0xff]
    %v8438 = vld [vmem:[%s8419 + $0x90] sm:$0xff]
    %v8439 = vld [vmem:[%s8419 + $0x98] sm:$0xff]
    %v8440 = vld [vmem:[%s8419 + $0xa0] sm:$0xff]
    %v8441 = vld [vmem:[%s8419 + $0xa8] sm:$0xff]
    %v8442 = vld [vmem:[%s8419 + $0xb0] sm:$0xff]
    %v8443 = vld [vmem:[%s8419 + $0xb8] sm:$0xff]
    %v8444 = vld [vmem:[%s8419 + $0xc0] sm:$0xff]
    %v8445 = vld [vmem:[%s8419 + $0xc8] sm:$0xff]
    %v8446 = vld [vmem:[%s8419 + $0xd0] sm:$0xff]
    %v8447 = vld [vmem:[%s8419 + $0xd8] sm:$0xff]
    %v8448 = vld [vmem:[%s8419 + $0xe0] sm:$0xff]
    %v8449 = vld [vmem:[%s8419 + $0xe8] sm:$0xff]
    %v8450 = vld [vmem:[%s8419 + $0xf0] sm:$0xff]
    %v8451 = vld [vmem:[%s8419 + $0xf8] sm:$0xff]
    %v8452 = vld [vmem:[%s8419 + $0x100] sm:$0xff]
    %v8453 = vld [vmem:[%s8419 + $0x108] sm:$0xff]
    %v8454 = vld [vmem:[%s8419 + $0x110] sm:$0xff]
    %v8455 = vld [vmem:[%s8419 + $0x118] sm:$0xff]
    %v8456 = vld [vmem:[%s8419 + $0x120] sm:$0xff]
    %v8457 = vld [vmem:[%s8419 + $0x128] sm:$0xff]
    %v8458 = vld [vmem:[%s8419 + $0x130] sm:$0xff]
    %v8459 = vld [vmem:[%s8419 + $0x138] sm:$0xff]
    %v8460 = vld [vmem:[%s8419 + $0x140] sm:$0xff]
    %v8461 = vld [vmem:[%s8419 + $0x148] sm:$0xff]
    %v8462 = vld [vmem:[%s8419 + $0x150] sm:$0xff]
    %v8463 = vld [vmem:[%s8419 + $0x158] sm:$0xff]
    %v8464 = vld [vmem:[%s8419 + $0x160] sm:$0xff]
    %v8465 = vld [vmem:[%s8419 + $0x168] sm:$0xff]
    %v8466 = vld [vmem:[%s8419 + $0x170] sm:$0xff]
    %v8467 = vld [vmem:[%s8419 + $0x178] sm:$0xff]
    %v8468 = vld [vmem:[%s8419 + $0x180] sm:$0xff]
    %v8469 = vld [vmem:[%s8419 + $0x188] sm:$0xff]
    %v8470 = vld [vmem:[%s8419 + $0x190] sm:$0xff]
    %v8471 = vld [vmem:[%s8419 + $0x198] sm:$0xff]
    %v8472 = vld [vmem:[%s8419 + $0x1a0] sm:$0xff]
    %v8473 = vld [vmem:[%s8419 + $0x1a8] sm:$0xff]
    %v8474 = vld [vmem:[%s8419 + $0x1b0] sm:$0xff]
    %v8475 = vld [vmem:[%s8419 + $0x1b8] sm:$0xff]
    %v8476 = vld [vmem:[%s8419 + $0x1c0] sm:$0xff]
    %v8477 = vld [vmem:[%s8419 + $0x1c8] sm:$0xff]
    %v8478 = vld [vmem:[%s8419 + $0x1d0] sm:$0xff]
    %v8479 = vld [vmem:[%s8419 + $0x1d8] sm:$0xff]
    %v8480 = vld [vmem:[%s8419 + $0x1e0] sm:$0xff]
    %v8481 = vld [vmem:[%s8419 + $0x1e8] sm:$0xff]
    %v8482 = vld [vmem:[%s8419 + $0x1f0] sm:$0xff]
    %v8483 = vld [vmem:[%s8419 + $0x1f8] sm:$0xff]
    %v8548 = vunpack.c.l.b16 %v8420
    %v8549 = vunpack.c.h.b16 %v8420
    %v8550 = vunpack.c.l.b16 %v8421
    %v8551 = vunpack.c.h.b16 %v8421
    %v8552 = vunpack.c.l.b16 %v8422
    %v8553 = vunpack.c.h.b16 %v8422
    %v8554 = vunpack.c.l.b16 %v8423
    %v8555 = vunpack.c.h.b16 %v8423
    %v8556 = vunpack.c.l.b16 %v8424
    %v8557 = vunpack.c.h.b16 %v8424
    %v8558 = vunpack.c.l.b16 %v8425
    %v8559 = vunpack.c.h.b16 %v8425
    %v8560 = vunpack.c.l.b16 %v8426
    %v8561 = vunpack.c.h.b16 %v8426
    %v8562 = vunpack.c.l.b16 %v8427
    %v8563 = vunpack.c.h.b16 %v8427
    %v8564 = vunpack.c.l.b16 %v8428
    %v8565 = vunpack.c.h.b16 %v8428
    %v8566 = vunpack.c.l.b16 %v8429
    %v8567 = vunpack.c.h.b16 %v8429
    %v8568 = vunpack.c.l.b16 %v8430
    %v8569 = vunpack.c.h.b16 %v8430
    %v8570 = vunpack.c.l.b16 %v8431
    %v8571 = vunpack.c.h.b16 %v8431
    %v8572 = vunpack.c.l.b16 %v8432
    %v8573 = vunpack.c.h.b16 %v8432
    %v8574 = vunpack.c.l.b16 %v8433
    %v8575 = vunpack.c.h.b16 %v8433
    %v8576 = vunpack.c.l.b16 %v8434
    %v8577 = vunpack.c.h.b16 %v8434
    %v8578 = vunpack.c.l.b16 %v8435
    %v8579 = vunpack.c.h.b16 %v8435
    %v8580 = vunpack.c.l.b16 %v8436
    %v8581 = vunpack.c.h.b16 %v8436
    %v8582 = vunpack.c.l.b16 %v8437
    %v8583 = vunpack.c.h.b16 %v8437
    %v8584 = vunpack.c.l.b16 %v8438
    %v8585 = vunpack.c.h.b16 %v8438
    %v8586 = vunpack.c.l.b16 %v8439
    %v8587 = vunpack.c.h.b16 %v8439
    %v8588 = vunpack.c.l.b16 %v8440
    %v8589 = vunpack.c.h.b16 %v8440
    %v8590 = vunpack.c.l.b16 %v8441
    %v8591 = vunpack.c.h.b16 %v8441
    %v8592 = vunpack.c.l.b16 %v8442
    %v8593 = vunpack.c.h.b16 %v8442
    %v8594 = vunpack.c.l.b16 %v8443
    %v8595 = vunpack.c.h.b16 %v8443
    %v8596 = vunpack.c.l.b16 %v8444
    %v8597 = vunpack.c.h.b16 %v8444
    %v8598 = vunpack.c.l.b16 %v8445
    %v8599 = vunpack.c.h.b16 %v8445
    %v8600 = vunpack.c.l.b16 %v8446
    %v8601 = vunpack.c.h.b16 %v8446
    %v8602 = vunpack.c.l.b16 %v8447
    %v8603 = vunpack.c.h.b16 %v8447
    %v8604 = vunpack.c.l.b16 %v8448
    %v8605 = vunpack.c.h.b16 %v8448
    %v8606 = vunpack.c.l.b16 %v8449
    %v8607 = vunpack.c.h.b16 %v8449
    %v8608 = vunpack.c.l.b16 %v8450
    %v8609 = vunpack.c.h.b16 %v8450
    %v8610 = vunpack.c.l.b16 %v8451
    %v8611 = vunpack.c.h.b16 %v8451
    %v8612 = vunpack.c.l.b16 %v8452
    %v8613 = vunpack.c.h.b16 %v8452
    %v8614 = vunpack.c.l.b16 %v8453
    %v8615 = vunpack.c.h.b16 %v8453
    %v8616 = vunpack.c.l.b16 %v8454
    %v8617 = vunpack.c.h.b16 %v8454
    %v8618 = vunpack.c.l.b16 %v8455
    %v8619 = vunpack.c.h.b16 %v8455
    %v8620 = vunpack.c.l.b16 %v8456
    %v8621 = vunpack.c.h.b16 %v8456
    %v8622 = vunpack.c.l.b16 %v8457
    %v8623 = vunpack.c.h.b16 %v8457
    %v8624 = vunpack.c.l.b16 %v8458
    %v8625 = vunpack.c.h.b16 %v8458
    %v8626 = vunpack.c.l.b16 %v8459
    %v8627 = vunpack.c.h.b16 %v8459
    %v8628 = vunpack.c.l.b16 %v8460
    %v8629 = vunpack.c.h.b16 %v8460
    %v8630 = vunpack.c.l.b16 %v8461
    %v8631 = vunpack.c.h.b16 %v8461
    %v8632 = vunpack.c.l.b16 %v8462
    %v8633 = vunpack.c.h.b16 %v8462
    %v8634 = vunpack.c.l.b16 %v8463
    %v8635 = vunpack.c.h.b16 %v8463
    %v8636 = vunpack.c.l.b16 %v8464
    %v8637 = vunpack.c.h.b16 %v8464
    %v8638 = vunpack.c.l.b16 %v8465
    %v8639 = vunpack.c.h.b16 %v8465
    %v8640 = vunpack.c.l.b16 %v8466
    %v8641 = vunpack.c.h.b16 %v8466
    %v8642 = vunpack.c.l.b16 %v8467
    %v8643 = vunpack.c.h.b16 %v8467
    %v8644 = vunpack.c.l.b16 %v8468
    %v8645 = vunpack.c.h.b16 %v8468
    %v8646 = vunpack.c.l.b16 %v8469
    %v8647 = vunpack.c.h.b16 %v8469
    %v8648 = vunpack.c.l.b16 %v8470
    %v8649 = vunpack.c.h.b16 %v8470
    %v8650 = vunpack.c.l.b16 %v8471
    %v8651 = vunpack.c.h.b16 %v8471
    %v8652 = vunpack.c.l.b16 %v8472
    %v8653 = vunpack.c.h.b16 %v8472
    %v8654 = vunpack.c.l.b16 %v8473
    %v8655 = vunpack.c.h.b16 %v8473
    %v8656 = vunpack.c.l.b16 %v8474
    %v8657 = vunpack.c.h.b16 %v8474
    %v8658 = vunpack.c.l.b16 %v8475
    %v8659 = vunpack.c.h.b16 %v8475
    %v8660 = vunpack.c.l.b16 %v8476
    %v8661 = vunpack.c.h.b16 %v8476
    %v8662 = vunpack.c.l.b16 %v8477
    %v8663 = vunpack.c.h.b16 %v8477
    %v8664 = vunpack.c.l.b16 %v8478
    %v8665 = vunpack.c.h.b16 %v8478
    %v8666 = vunpack.c.l.b16 %v8479
    %v8667 = vunpack.c.h.b16 %v8479
    %v8668 = vunpack.c.l.b16 %v8480
    %v8669 = vunpack.c.h.b16 %v8480
    %v8670 = vunpack.c.l.b16 %v8481
    %v8671 = vunpack.c.h.b16 %v8481
    %v8672 = vunpack.c.l.b16 %v8482
    %v8673 = vunpack.c.h.b16 %v8482
    %v8674 = vunpack.c.l.b16 %v8483
    %v8675 = vunpack.c.h.b16 %v8483
    %v8676 = vpack.c.b16 %v8556, %v8548
    %v8677 = vpack.c.b16 %v8557, %v8549
    %v8678 = vpack.c.b16 %v8558, %v8550
    %v8679 = vpack.c.b16 %v8559, %v8551
    %v8680 = vpack.c.b16 %v8560, %v8552
    %v8681 = vpack.c.b16 %v8561, %v8553
    %v8682 = vpack.c.b16 %v8562, %v8554
    %v8683 = vpack.c.b16 %v8563, %v8555
    %v8684 = vpack.c.b16 %v8572, %v8564
    %v8685 = vpack.c.b16 %v8573, %v8565
    %v8686 = vpack.c.b16 %v8574, %v8566
    %v8687 = vpack.c.b16 %v8575, %v8567
    %v8688 = vpack.c.b16 %v8576, %v8568
    %v8689 = vpack.c.b16 %v8577, %v8569
    %v8690 = vpack.c.b16 %v8578, %v8570
    %v8691 = vpack.c.b16 %v8579, %v8571
    %v8692 = vpack.c.b16 %v8588, %v8580
    %v8693 = vpack.c.b16 %v8589, %v8581
    %v8694 = vpack.c.b16 %v8590, %v8582
    %v8695 = vpack.c.b16 %v8591, %v8583
    %v8696 = vpack.c.b16 %v8592, %v8584
    %v8697 = vpack.c.b16 %v8593, %v8585
    %v8698 = vpack.c.b16 %v8594, %v8586
    %v8699 = vpack.c.b16 %v8595, %v8587
    %v8700 = vpack.c.b16 %v8604, %v8596
    %v8701 = vpack.c.b16 %v8605, %v8597
    %v8702 = vpack.c.b16 %v8606, %v8598
    %v8703 = vpack.c.b16 %v8607, %v8599
    %v8704 = vpack.c.b16 %v8608, %v8600
    %v8705 = vpack.c.b16 %v8609, %v8601
    %v8706 = vpack.c.b16 %v8610, %v8602
    %v8707 = vpack.c.b16 %v8611, %v8603
    %v8708 = vpack.c.b16 %v8620, %v8612
    %v8709 = vpack.c.b16 %v8621, %v8613
    %v8710 = vpack.c.b16 %v8622, %v8614
    %v8711 = vpack.c.b16 %v8623, %v8615
    %v8712 = vpack.c.b16 %v8624, %v8616
    %v8713 = vpack.c.b16 %v8625, %v8617
    %v8714 = vpack.c.b16 %v8626, %v8618
    %v8715 = vpack.c.b16 %v8627, %v8619
    %v8716 = vpack.c.b16 %v8636, %v8628
    %v8717 = vpack.c.b16 %v8637, %v8629
    %v8718 = vpack.c.b16 %v8638, %v8630
    %v8719 = vpack.c.b16 %v8639, %v8631
    %v8720 = vpack.c.b16 %v8640, %v8632
    %v8721 = vpack.c.b16 %v8641, %v8633
    %v8722 = vpack.c.b16 %v8642, %v8634
    %v8723 = vpack.c.b16 %v8643, %v8635
    %v8724 = vpack.c.b16 %v8652, %v8644
    %v8725 = vpack.c.b16 %v8653, %v8645
    %v8726 = vpack.c.b16 %v8654, %v8646
    %v8727 = vpack.c.b16 %v8655, %v8647
    %v8728 = vpack.c.b16 %v8656, %v8648
    %v8729 = vpack.c.b16 %v8657, %v8649
    %v8730 = vpack.c.b16 %v8658, %v8650
    %v8731 = vpack.c.b16 %v8659, %v8651
    %v8732 = vpack.c.b16 %v8668, %v8660
    %v8733 = vpack.c.b16 %v8669, %v8661
    %v8734 = vpack.c.b16 %v8670, %v8662
    %v8735 = vpack.c.b16 %v8671, %v8663
    %v8736 = vpack.c.b16 %v8672, %v8664
    %v8737 = vpack.c.b16 %v8673, %v8665
    %v8738 = vpack.c.b16 %v8674, %v8666
    %v8739 = vpack.c.b16 %v8675, %v8667
    %8804 = vmatpush.bf16.msra.mxu0 %v8732
    %8805 = vmatpush.bf16.msra.mxu0 %v8724
    %8806 = vmatpush.bf16.msra.mxu0 %v8716
    %8807 = vmatpush.bf16.msra.mxu0 %v8708
    %8808 = vmatpush.bf16.msra.mxu0 %v8700
    %8809 = vmatpush.bf16.msra.mxu0 %v8692
    %8810 = vmatpush.bf16.msra.mxu0 %v8684
    %8811 = vmatpush.bf16.msra.mxu0 %v8676
    %8812 = vmatmul.bf16.gmra.mxu0 %v8418
    %v8813 = vpop.f32.mrf.mxu0
    %v8814 = vadd.f32 0.0, %v8813
    %v8815 = vpop.f32.mrf.mxu0
    %8816 = vdwg.mxu0
    %8817 = vmatpush.bf16.msra.mxu0 %v8733
    %8818 = vmatpush.bf16.msra.mxu0 %v8725
    %8819 = vmatpush.bf16.msra.mxu0 %v8717
    %8820 = vmatpush.bf16.msra.mxu0 %v8709
    %8821 = vmatpush.bf16.msra.mxu0 %v8701
    %8822 = vmatpush.bf16.msra.mxu0 %v8693
    %8823 = vmatpush.bf16.msra.mxu0 %v8685
    %8824 = vmatpush.bf16.msra.mxu0 %v8677
    %8825 = vmatmul.bf16.gmra.mxu0 %v8418
    %v8826 = vpop.f32.mrf.mxu0
    %v8827 = vadd.f32 0.0, %v8826
    %v8828 = vpop.f32.mrf.mxu0
    %8829 = vdwg.mxu0
    %8830 = vmatpush.bf16.msra.mxu0 %v8734
    %8831 = vmatpush.bf16.msra.mxu0 %v8726
    %8832 = vmatpush.bf16.msra.mxu0 %v8718
    %8833 = vmatpush.bf16.msra.mxu0 %v8710
    %8834 = vmatpush.bf16.msra.mxu0 %v8702
    %8835 = vmatpush.bf16.msra.mxu0 %v8694
    %8836 = vmatpush.bf16.msra.mxu0 %v8686
    %8837 = vmatpush.bf16.msra.mxu0 %v8678
    %8838 = vmatmul.bf16.gmra.mxu0 %v8418
    %v8839 = vpop.f32.mrf.mxu0
    %v8840 = vadd.f32 0.0, %v8839
    %v8841 = vpop.f32.mrf.mxu0
    %8842 = vdwg.mxu0
    %8843 = vmatpush.bf16.msra.mxu0 %v8735
    %8844 = vmatpush.bf16.msra.mxu0 %v8727
    %8845 = vmatpush.bf16.msra.mxu0 %v8719
    %8846 = vmatpush.bf16.msra.mxu0 %v8711
    %8847 = vmatpush.bf16.msra.mxu0 %v8703
    %8848 = vmatpush.bf16.msra.mxu0 %v8695
    %8849 = vmatpush.bf16.msra.mxu0 %v8687
    %8850 = vmatpush.bf16.msra.mxu0 %v8679
    %8851 = vmatmul.bf16.gmra.mxu0 %v8418
    %v8852 = vpop.f32.mrf.mxu0
    %v8853 = vadd.f32 0.0, %v8852
    %v8854 = vpop.f32.mrf.mxu0
    %8855 = vdwg.mxu0
    %8856 = vmatpush.bf16.msra.mxu0 %v8736
    %8857 = vmatpush.bf16.msra.mxu0 %v8728
    %8858 = vmatpush.bf16.msra.mxu0 %v8720
    %8859 = vmatpush.bf16.msra.mxu0 %v8712
    %8860 = vmatpush.bf16.msra.mxu0 %v8704
    %8861 = vmatpush.bf16.msra.mxu0 %v8696
    %8862 = vmatpush.bf16.msra.mxu0 %v8688
    %8863 = vmatpush.bf16.msra.mxu0 %v8680
    %8864 = vmatmul.bf16.gmra.mxu0 %v8418
    %v8865 = vpop.f32.mrf.mxu0
    %v8866 = vadd.f32 0.0, %v8865
    %v8867 = vpop.f32.mrf.mxu0
    %8868 = vdwg.mxu0
    %8869 = vmatpush.bf16.msra.mxu0 %v8737
    %8870 = vmatpush.bf16.msra.mxu0 %v8729
    %8871 = vmatpush.bf16.msra.mxu0 %v8721
    %8872 = vmatpush.bf16.msra.mxu0 %v8713
    %8873 = vmatpush.bf16.msra.mxu0 %v8705
    %8874 = vmatpush.bf16.msra.mxu0 %v8697
    %8875 = vmatpush.bf16.msra.mxu0 %v8689
    %8876 = vmatpush.bf16.msra.mxu0 %v8681
    %8877 = vmatmul.bf16.gmra.mxu0 %v8418
    %v8878 = vpop.f32.mrf.mxu0
    %v8879 = vadd.f32 0.0, %v8878
    %v8880 = vpop.f32.mrf.mxu0
    %8881 = vdwg.mxu0
    %8882 = vmatpush.bf16.msra.mxu0 %v8738
    %8883 = vmatpush.bf16.msra.mxu0 %v8730
    %8884 = vmatpush.bf16.msra.mxu0 %v8722
    %8885 = vmatpush.bf16.msra.mxu0 %v8714
    %8886 = vmatpush.bf16.msra.mxu0 %v8706
    %8887 = vmatpush.bf16.msra.mxu0 %v8698
    %8888 = vmatpush.bf16.msra.mxu0 %v8690
    %8889 = vmatpush.bf16.msra.mxu0 %v8682
    %8890 = vmatmul.bf16.gmra.mxu0 %v8418
    %v8891 = vpop.f32.mrf.mxu0
    %v8892 = vadd.f32 0.0, %v8891
    %v8893 = vpop.f32.mrf.mxu0
    %8894 = vdwg.mxu0
    %8895 = vmatpush.bf16.msra.mxu0 %v8739
    %8896 = vmatpush.bf16.msra.mxu0 %v8731
    %8897 = vmatpush.bf16.msra.mxu0 %v8723
    %8898 = vmatpush.bf16.msra.mxu0 %v8715
    %8899 = vmatpush.bf16.msra.mxu0 %v8707
    %8900 = vmatpush.bf16.msra.mxu0 %v8699
    %8901 = vmatpush.bf16.msra.mxu0 %v8691
    %8902 = vmatpush.bf16.msra.mxu0 %v8683
    %8903 = vmatmul.bf16.gmra.mxu0 %v8418
    %v8904 = vpop.f32.mrf.mxu0
    %v8905 = vadd.f32 0.0, %v8904
    %v8906 = vpop.f32.mrf.mxu0
    %8907 = vdwg.mxu0
    %v8908 = vadd.f32 %v8405, %v8814
    %v8909 = vadd.f32 %v8406, %v8827
    %v8910 = vadd.f32 %v8407, %v8840
    %v8911 = vadd.f32 %v8408, %v8853
    %v8912 = vadd.f32 %v8409, %v8866
    %v8913 = vadd.f32 %v8410, %v8879
    %v8914 = vadd.f32 %v8411, %v8892
    %v8915 = vadd.f32 %v8412, %v8905
    %v8916 = vrot.slane %v2388, 5
    %v8918 = vrot.slane %v2396, 4
    %v8920 = vsel %vm2400, %v8916, %v8918
    %v8921 = vpack.c.bf16 %v8920, %v8920
    %s8922 = scalar_lea.vmem [#allocation22], 6656
    %v8923 = vld [vmem:[%s8922] sm:$0xff]
    %v8924 = vld [vmem:[%s8922 + $0x8] sm:$0xff]
    %v8925 = vld [vmem:[%s8922 + $0x10] sm:$0xff]
    %v8926 = vld [vmem:[%s8922 + $0x18] sm:$0xff]
    %v8927 = vld [vmem:[%s8922 + $0x20] sm:$0xff]
    %v8928 = vld [vmem:[%s8922 + $0x28] sm:$0xff]
    %v8929 = vld [vmem:[%s8922 + $0x30] sm:$0xff]
    %v8930 = vld [vmem:[%s8922 + $0x38] sm:$0xff]
    %v8931 = vld [vmem:[%s8922 + $0x40] sm:$0xff]
    %v8932 = vld [vmem:[%s8922 + $0x48] sm:$0xff]
    %v8933 = vld [vmem:[%s8922 + $0x50] sm:$0xff]
    %v8934 = vld [vmem:[%s8922 + $0x58] sm:$0xff]
    %v8935 = vld [vmem:[%s8922 + $0x60] sm:$0xff]
    %v8936 = vld [vmem:[%s8922 + $0x68] sm:$0xff]
    %v8937 = vld [vmem:[%s8922 + $0x70] sm:$0xff]
    %v8938 = vld [vmem:[%s8922 + $0x78] sm:$0xff]
    %v8939 = vld [vmem:[%s8922 + $0x80] sm:$0xff]
    %v8940 = vld [vmem:[%s8922 + $0x88] sm:$0xff]
    %v8941 = vld [vmem:[%s8922 + $0x90] sm:$0xff]
    %v8942 = vld [vmem:[%s8922 + $0x98] sm:$0xff]
    %v8943 = vld [vmem:[%s8922 + $0xa0] sm:$0xff]
    %v8944 = vld [vmem:[%s8922 + $0xa8] sm:$0xff]
    %v8945 = vld [vmem:[%s8922 + $0xb0] sm:$0xff]
    %v8946 = vld [vmem:[%s8922 + $0xb8] sm:$0xff]
    %v8947 = vld [vmem:[%s8922 + $0xc0] sm:$0xff]
    %v8948 = vld [vmem:[%s8922 + $0xc8] sm:$0xff]
    %v8949 = vld [vmem:[%s8922 + $0xd0] sm:$0xff]
    %v8950 = vld [vmem:[%s8922 + $0xd8] sm:$0xff]
    %v8951 = vld [vmem:[%s8922 + $0xe0] sm:$0xff]
    %v8952 = vld [vmem:[%s8922 + $0xe8] sm:$0xff]
    %v8953 = vld [vmem:[%s8922 + $0xf0] sm:$0xff]
    %v8954 = vld [vmem:[%s8922 + $0xf8] sm:$0xff]
    %v8955 = vld [vmem:[%s8922 + $0x100] sm:$0xff]
    %v8956 = vld [vmem:[%s8922 + $0x108] sm:$0xff]
    %v8957 = vld [vmem:[%s8922 + $0x110] sm:$0xff]
    %v8958 = vld [vmem:[%s8922 + $0x118] sm:$0xff]
    %v8959 = vld [vmem:[%s8922 + $0x120] sm:$0xff]
    %v8960 = vld [vmem:[%s8922 + $0x128] sm:$0xff]
    %v8961 = vld [vmem:[%s8922 + $0x130] sm:$0xff]
    %v8962 = vld [vmem:[%s8922 + $0x138] sm:$0xff]
    %v8963 = vld [vmem:[%s8922 + $0x140] sm:$0xff]
    %v8964 = vld [vmem:[%s8922 + $0x148] sm:$0xff]
    %v8965 = vld [vmem:[%s8922 + $0x150] sm:$0xff]
    %v8966 = vld [vmem:[%s8922 + $0x158] sm:$0xff]
    %v8967 = vld [vmem:[%s8922 + $0x160] sm:$0xff]
    %v8968 = vld [vmem:[%s8922 + $0x168] sm:$0xff]
    %v8969 = vld [vmem:[%s8922 + $0x170] sm:$0xff]
    %v8970 = vld [vmem:[%s8922 + $0x178] sm:$0xff]
    %v8971 = vld [vmem:[%s8922 + $0x180] sm:$0xff]
    %v8972 = vld [vmem:[%s8922 + $0x188] sm:$0xff]
    %v8973 = vld [vmem:[%s8922 + $0x190] sm:$0xff]
    %v8974 = vld [vmem:[%s8922 + $0x198] sm:$0xff]
    %v8975 = vld [vmem:[%s8922 + $0x1a0] sm:$0xff]
    %v8976 = vld [vmem:[%s8922 + $0x1a8] sm:$0xff]
    %v8977 = vld [vmem:[%s8922 + $0x1b0] sm:$0xff]
    %v8978 = vld [vmem:[%s8922 + $0x1b8] sm:$0xff]
    %v8979 = vld [vmem:[%s8922 + $0x1c0] sm:$0xff]
    %v8980 = vld [vmem:[%s8922 + $0x1c8] sm:$0xff]
    %v8981 = vld [vmem:[%s8922 + $0x1d0] sm:$0xff]
    %v8982 = vld [vmem:[%s8922 + $0x1d8] sm:$0xff]
    %v8983 = vld [vmem:[%s8922 + $0x1e0] sm:$0xff]
    %v8984 = vld [vmem:[%s8922 + $0x1e8] sm:$0xff]
    %v8985 = vld [vmem:[%s8922 + $0x1f0] sm:$0xff]
    %v8986 = vld [vmem:[%s8922 + $0x1f8] sm:$0xff]
    %v9051 = vunpack.c.l.b16 %v8923
    %v9052 = vunpack.c.h.b16 %v8923
    %v9053 = vunpack.c.l.b16 %v8924
    %v9054 = vunpack.c.h.b16 %v8924
    %v9055 = vunpack.c.l.b16 %v8925
    %v9056 = vunpack.c.h.b16 %v8925
    %v9057 = vunpack.c.l.b16 %v8926
    %v9058 = vunpack.c.h.b16 %v8926
    %v9059 = vunpack.c.l.b16 %v8927
    %v9060 = vunpack.c.h.b16 %v8927
    %v9061 = vunpack.c.l.b16 %v8928
    %v9062 = vunpack.c.h.b16 %v8928
    %v9063 = vunpack.c.l.b16 %v8929
    %v9064 = vunpack.c.h.b16 %v8929
    %v9065 = vunpack.c.l.b16 %v8930
    %v9066 = vunpack.c.h.b16 %v8930
    %v9067 = vunpack.c.l.b16 %v8931
    %v9068 = vunpack.c.h.b16 %v8931
    %v9069 = vunpack.c.l.b16 %v8932
    %v9070 = vunpack.c.h.b16 %v8932
    %v9071 = vunpack.c.l.b16 %v8933
    %v9072 = vunpack.c.h.b16 %v8933
    %v9073 = vunpack.c.l.b16 %v8934
    %v9074 = vunpack.c.h.b16 %v8934
    %v9075 = vunpack.c.l.b16 %v8935
    %v9076 = vunpack.c.h.b16 %v8935
    %v9077 = vunpack.c.l.b16 %v8936
    %v9078 = vunpack.c.h.b16 %v8936
    %v9079 = vunpack.c.l.b16 %v8937
    %v9080 = vunpack.c.h.b16 %v8937
    %v9081 = vunpack.c.l.b16 %v8938
    %v9082 = vunpack.c.h.b16 %v8938
    %v9083 = vunpack.c.l.b16 %v8939
    %v9084 = vunpack.c.h.b16 %v8939
    %v9085 = vunpack.c.l.b16 %v8940
    %v9086 = vunpack.c.h.b16 %v8940
    %v9087 = vunpack.c.l.b16 %v8941
    %v9088 = vunpack.c.h.b16 %v8941
    %v9089 = vunpack.c.l.b16 %v8942
    %v9090 = vunpack.c.h.b16 %v8942
    %v9091 = vunpack.c.l.b16 %v8943
    %v9092 = vunpack.c.h.b16 %v8943
    %v9093 = vunpack.c.l.b16 %v8944
    %v9094 = vunpack.c.h.b16 %v8944
    %v9095 = vunpack.c.l.b16 %v8945
    %v9096 = vunpack.c.h.b16 %v8945
    %v9097 = vunpack.c.l.b16 %v8946
    %v9098 = vunpack.c.h.b16 %v8946
    %v9099 = vunpack.c.l.b16 %v8947
    %v9100 = vunpack.c.h.b16 %v8947
    %v9101 = vunpack.c.l.b16 %v8948
    %v9102 = vunpack.c.h.b16 %v8948
    %v9103 = vunpack.c.l.b16 %v8949
    %v9104 = vunpack.c.h.b16 %v8949
    %v9105 = vunpack.c.l.b16 %v8950
    %v9106 = vunpack.c.h.b16 %v8950
    %v9107 = vunpack.c.l.b16 %v8951
    %v9108 = vunpack.c.h.b16 %v8951
    %v9109 = vunpack.c.l.b16 %v8952
    %v9110 = vunpack.c.h.b16 %v8952
    %v9111 = vunpack.c.l.b16 %v8953
    %v9112 = vunpack.c.h.b16 %v8953
    %v9113 = vunpack.c.l.b16 %v8954
    %v9114 = vunpack.c.h.b16 %v8954
    %v9115 = vunpack.c.l.b16 %v8955
    %v9116 = vunpack.c.h.b16 %v8955
    %v9117 = vunpack.c.l.b16 %v8956
    %v9118 = vunpack.c.h.b16 %v8956
    %v9119 = vunpack.c.l.b16 %v8957
    %v9120 = vunpack.c.h.b16 %v8957
    %v9121 = vunpack.c.l.b16 %v8958
    %v9122 = vunpack.c.h.b16 %v8958
    %v9123 = vunpack.c.l.b16 %v8959
    %v9124 = vunpack.c.h.b16 %v8959
    %v9125 = vunpack.c.l.b16 %v8960
    %v9126 = vunpack.c.h.b16 %v8960
    %v9127 = vunpack.c.l.b16 %v8961
    %v9128 = vunpack.c.h.b16 %v8961
    %v9129 = vunpack.c.l.b16 %v8962
    %v9130 = vunpack.c.h.b16 %v8962
    %v9131 = vunpack.c.l.b16 %v8963
    %v9132 = vunpack.c.h.b16 %v8963
    %v9133 = vunpack.c.l.b16 %v8964
    %v9134 = vunpack.c.h.b16 %v8964
    %v9135 = vunpack.c.l.b16 %v8965
    %v9136 = vunpack.c.h.b16 %v8965
    %v9137 = vunpack.c.l.b16 %v8966
    %v9138 = vunpack.c.h.b16 %v8966
    %v9139 = vunpack.c.l.b16 %v8967
    %v9140 = vunpack.c.h.b16 %v8967
    %v9141 = vunpack.c.l.b16 %v8968
    %v9142 = vunpack.c.h.b16 %v8968
    %v9143 = vunpack.c.l.b16 %v8969
    %v9144 = vunpack.c.h.b16 %v8969
    %v9145 = vunpack.c.l.b16 %v8970
    %v9146 = vunpack.c.h.b16 %v8970
    %v9147 = vunpack.c.l.b16 %v8971
    %v9148 = vunpack.c.h.b16 %v8971
    %v9149 = vunpack.c.l.b16 %v8972
    %v9150 = vunpack.c.h.b16 %v8972
    %v9151 = vunpack.c.l.b16 %v8973
    %v9152 = vunpack.c.h.b16 %v8973
    %v9153 = vunpack.c.l.b16 %v8974
    %v9154 = vunpack.c.h.b16 %v8974
    %v9155 = vunpack.c.l.b16 %v8975
    %v9156 = vunpack.c.h.b16 %v8975
    %v9157 = vunpack.c.l.b16 %v8976
    %v9158 = vunpack.c.h.b16 %v8976
    %v9159 = vunpack.c.l.b16 %v8977
    %v9160 = vunpack.c.h.b16 %v8977
    %v9161 = vunpack.c.l.b16 %v8978
    %v9162 = vunpack.c.h.b16 %v8978
    %v9163 = vunpack.c.l.b16 %v8979
    %v9164 = vunpack.c.h.b16 %v8979
    %v9165 = vunpack.c.l.b16 %v8980
    %v9166 = vunpack.c.h.b16 %v8980
    %v9167 = vunpack.c.l.b16 %v8981
    %v9168 = vunpack.c.h.b16 %v8981
    %v9169 = vunpack.c.l.b16 %v8982
    %v9170 = vunpack.c.h.b16 %v8982
    %v9171 = vunpack.c.l.b16 %v8983
    %v9172 = vunpack.c.h.b16 %v8983
    %v9173 = vunpack.c.l.b16 %v8984
    %v9174 = vunpack.c.h.b16 %v8984
    %v9175 = vunpack.c.l.b16 %v8985
    %v9176 = vunpack.c.h.b16 %v8985
    %v9177 = vunpack.c.l.b16 %v8986
    %v9178 = vunpack.c.h.b16 %v8986
    %v9179 = vpack.c.b16 %v9059, %v9051
    %v9180 = vpack.c.b16 %v9060, %v9052
    %v9181 = vpack.c.b16 %v9061, %v9053
    %v9182 = vpack.c.b16 %v9062, %v9054
    %v9183 = vpack.c.b16 %v9063, %v9055
    %v9184 = vpack.c.b16 %v9064, %v9056
    %v9185 = vpack.c.b16 %v9065, %v9057
    %v9186 = vpack.c.b16 %v9066, %v9058
    %v9187 = vpack.c.b16 %v9075, %v9067
    %v9188 = vpack.c.b16 %v9076, %v9068
    %v9189 = vpack.c.b16 %v9077, %v9069
    %v9190 = vpack.c.b16 %v9078, %v9070
    %v9191 = vpack.c.b16 %v9079, %v9071
    %v9192 = vpack.c.b16 %v9080, %v9072
    %v9193 = vpack.c.b16 %v9081, %v9073
    %v9194 = vpack.c.b16 %v9082, %v9074
    %v9195 = vpack.c.b16 %v9091, %v9083
    %v9196 = vpack.c.b16 %v9092, %v9084
    %v9197 = vpack.c.b16 %v9093, %v9085
    %v9198 = vpack.c.b16 %v9094, %v9086
    %v9199 = vpack.c.b16 %v9095, %v9087
    %v9200 = vpack.c.b16 %v9096, %v9088
    %v9201 = vpack.c.b16 %v9097, %v9089
    %v9202 = vpack.c.b16 %v9098, %v9090
    %v9203 = vpack.c.b16 %v9107, %v9099
    %v9204 = vpack.c.b16 %v9108, %v9100
    %v9205 = vpack.c.b16 %v9109, %v9101
    %v9206 = vpack.c.b16 %v9110, %v9102
    %v9207 = vpack.c.b16 %v9111, %v9103
    %v9208 = vpack.c.b16 %v9112, %v9104
    %v9209 = vpack.c.b16 %v9113, %v9105
    %v9210 = vpack.c.b16 %v9114, %v9106
    %v9211 = vpack.c.b16 %v9123, %v9115
    %v9212 = vpack.c.b16 %v9124, %v9116
    %v9213 = vpack.c.b16 %v9125, %v9117
    %v9214 = vpack.c.b16 %v9126, %v9118
    %v9215 = vpack.c.b16 %v9127, %v9119
    %v9216 = vpack.c.b16 %v9128, %v9120
    %v9217 = vpack.c.b16 %v9129, %v9121
    %v9218 = vpack.c.b16 %v9130, %v9122
    %v9219 = vpack.c.b16 %v9139, %v9131
    %v9220 = vpack.c.b16 %v9140, %v9132
    %v9221 = vpack.c.b16 %v9141, %v9133
    %v9222 = vpack.c.b16 %v9142, %v9134
    %v9223 = vpack.c.b16 %v9143, %v9135
    %v9224 = vpack.c.b16 %v9144, %v9136
    %v9225 = vpack.c.b16 %v9145, %v9137
    %v9226 = vpack.c.b16 %v9146, %v9138
    %v9227 = vpack.c.b16 %v9155, %v9147
    %v9228 = vpack.c.b16 %v9156, %v9148
    %v9229 = vpack.c.b16 %v9157, %v9149
    %v9230 = vpack.c.b16 %v9158, %v9150
    %v9231 = vpack.c.b16 %v9159, %v9151
    %v9232 = vpack.c.b16 %v9160, %v9152
    %v9233 = vpack.c.b16 %v9161, %v9153
    %v9234 = vpack.c.b16 %v9162, %v9154
    %v9235 = vpack.c.b16 %v9171, %v9163
    %v9236 = vpack.c.b16 %v9172, %v9164
    %v9237 = vpack.c.b16 %v9173, %v9165
    %v9238 = vpack.c.b16 %v9174, %v9166
    %v9239 = vpack.c.b16 %v9175, %v9167
    %v9240 = vpack.c.b16 %v9176, %v9168
    %v9241 = vpack.c.b16 %v9177, %v9169
    %v9242 = vpack.c.b16 %v9178, %v9170
    %9307 = vmatpush.bf16.msra.mxu0 %v9235
    %9308 = vmatpush.bf16.msra.mxu0 %v9227
    %9309 = vmatpush.bf16.msra.mxu0 %v9219
    %9310 = vmatpush.bf16.msra.mxu0 %v9211
    %9311 = vmatpush.bf16.msra.mxu0 %v9203
    %9312 = vmatpush.bf16.msra.mxu0 %v9195
    %9313 = vmatpush.bf16.msra.mxu0 %v9187
    %9314 = vmatpush.bf16.msra.mxu0 %v9179
    %9315 = vmatmul.bf16.gmra.mxu0 %v8921
    %v9316 = vpop.f32.mrf.mxu0
    %v9317 = vadd.f32 0.0, %v9316
    %v9318 = vpop.f32.mrf.mxu0
    %9319 = vdwg.mxu0
    %9320 = vmatpush.bf16.msra.mxu0 %v9236
    %9321 = vmatpush.bf16.msra.mxu0 %v9228
    %9322 = vmatpush.bf16.msra.mxu0 %v9220
    %9323 = vmatpush.bf16.msra.mxu0 %v9212
    %9324 = vmatpush.bf16.msra.mxu0 %v9204
    %9325 = vmatpush.bf16.msra.mxu0 %v9196
    %9326 = vmatpush.bf16.msra.mxu0 %v9188
    %9327 = vmatpush.bf16.msra.mxu0 %v9180
    %9328 = vmatmul.bf16.gmra.mxu0 %v8921
    %v9329 = vpop.f32.mrf.mxu0
    %v9330 = vadd.f32 0.0, %v9329
    %v9331 = vpop.f32.mrf.mxu0
    %9332 = vdwg.mxu0
    %9333 = vmatpush.bf16.msra.mxu0 %v9237
    %9334 = vmatpush.bf16.msra.mxu0 %v9229
    %9335 = vmatpush.bf16.msra.mxu0 %v9221
    %9336 = vmatpush.bf16.msra.mxu0 %v9213
    %9337 = vmatpush.bf16.msra.mxu0 %v9205
    %9338 = vmatpush.bf16.msra.mxu0 %v9197
    %9339 = vmatpush.bf16.msra.mxu0 %v9189
    %9340 = vmatpush.bf16.msra.mxu0 %v9181
    %9341 = vmatmul.bf16.gmra.mxu0 %v8921
    %v9342 = vpop.f32.mrf.mxu0
    %v9343 = vadd.f32 0.0, %v9342
    %v9344 = vpop.f32.mrf.mxu0
    %9345 = vdwg.mxu0
    %9346 = vmatpush.bf16.msra.mxu0 %v9238
    %9347 = vmatpush.bf16.msra.mxu0 %v9230
    %9348 = vmatpush.bf16.msra.mxu0 %v9222
    %9349 = vmatpush.bf16.msra.mxu0 %v9214
    %9350 = vmatpush.bf16.msra.mxu0 %v9206
    %9351 = vmatpush.bf16.msra.mxu0 %v9198
    %9352 = vmatpush.bf16.msra.mxu0 %v9190
    %9353 = vmatpush.bf16.msra.mxu0 %v9182
    %9354 = vmatmul.bf16.gmra.mxu0 %v8921
    %v9355 = vpop.f32.mrf.mxu0
    %v9356 = vadd.f32 0.0, %v9355
    %v9357 = vpop.f32.mrf.mxu0
    %9358 = vdwg.mxu0
    %9359 = vmatpush.bf16.msra.mxu0 %v9239
    %9360 = vmatpush.bf16.msra.mxu0 %v9231
    %9361 = vmatpush.bf16.msra.mxu0 %v9223
    %9362 = vmatpush.bf16.msra.mxu0 %v9215
    %9363 = vmatpush.bf16.msra.mxu0 %v9207
    %9364 = vmatpush.bf16.msra.mxu0 %v9199
    %9365 = vmatpush.bf16.msra.mxu0 %v9191
    %9366 = vmatpush.bf16.msra.mxu0 %v9183
    %9367 = vmatmul.bf16.gmra.mxu0 %v8921
    %v9368 = vpop.f32.mrf.mxu0
    %v9369 = vadd.f32 0.0, %v9368
    %v9370 = vpop.f32.mrf.mxu0
    %9371 = vdwg.mxu0
    %9372 = vmatpush.bf16.msra.mxu0 %v9240
    %9373 = vmatpush.bf16.msra.mxu0 %v9232
    %9374 = vmatpush.bf16.msra.mxu0 %v9224
    %9375 = vmatpush.bf16.msra.mxu0 %v9216
    %9376 = vmatpush.bf16.msra.mxu0 %v9208
    %9377 = vmatpush.bf16.msra.mxu0 %v9200
    %9378 = vmatpush.bf16.msra.mxu0 %v9192
    %9379 = vmatpush.bf16.msra.mxu0 %v9184
    %9380 = vmatmul.bf16.gmra.mxu0 %v8921
    %v9381 = vpop.f32.mrf.mxu0
    %v9382 = vadd.f32 0.0, %v9381
    %v9383 = vpop.f32.mrf.mxu0
    %9384 = vdwg.mxu0
    %9385 = vmatpush.bf16.msra.mxu0 %v9241
    %9386 = vmatpush.bf16.msra.mxu0 %v9233
    %9387 = vmatpush.bf16.msra.mxu0 %v9225
    %9388 = vmatpush.bf16.msra.mxu0 %v9217
    %9389 = vmatpush.bf16.msra.mxu0 %v9209
    %9390 = vmatpush.bf16.msra.mxu0 %v9201
    %9391 = vmatpush.bf16.msra.mxu0 %v9193
    %9392 = vmatpush.bf16.msra.mxu0 %v9185
    %9393 = vmatmul.bf16.gmra.mxu0 %v8921
    %v9394 = vpop.f32.mrf.mxu0
    %v9395 = vadd.f32 0.0, %v9394
    %v9396 = vpop.f32.mrf.mxu0
    %9397 = vdwg.mxu0
    %9398 = vmatpush.bf16.msra.mxu0 %v9242
    %9399 = vmatpush.bf16.msra.mxu0 %v9234
    %9400 = vmatpush.bf16.msra.mxu0 %v9226
    %9401 = vmatpush.bf16.msra.mxu0 %v9218
    %9402 = vmatpush.bf16.msra.mxu0 %v9210
    %9403 = vmatpush.bf16.msra.mxu0 %v9202
    %9404 = vmatpush.bf16.msra.mxu0 %v9194
    %9405 = vmatpush.bf16.msra.mxu0 %v9186
    %9406 = vmatmul.bf16.gmra.mxu0 %v8921
    %v9407 = vpop.f32.mrf.mxu0
    %v9408 = vadd.f32 0.0, %v9407
    %v9409 = vpop.f32.mrf.mxu0
    %9410 = vdwg.mxu0
    %v9411 = vadd.f32 %v8908, %v9317
    %v9412 = vadd.f32 %v8909, %v9330
    %v9413 = vadd.f32 %v8910, %v9343
    %v9414 = vadd.f32 %v8911, %v9356
    %v9415 = vadd.f32 %v8912, %v9369
    %v9416 = vadd.f32 %v8913, %v9382
    %v9417 = vadd.f32 %v8914, %v9395
    %v9418 = vadd.f32 %v8915, %v9408
    %v9419 = vrot.slane %v2388, 6
    %v9421 = vrot.slane %v2396, 5
    %v9423 = vsel %vm2400, %v9419, %v9421
    %v9424 = vpack.c.bf16 %v9423, %v9423
    %s9425 = scalar_lea.vmem [#allocation22], 7168
    %v9426 = vld [vmem:[%s9425] sm:$0xff]
    %v9427 = vld [vmem:[%s9425 + $0x8] sm:$0xff]
    %v9428 = vld [vmem:[%s9425 + $0x10] sm:$0xff]
    %v9429 = vld [vmem:[%s9425 + $0x18] sm:$0xff]
    %v9430 = vld [vmem:[%s9425 + $0x20] sm:$0xff]
    %v9431 = vld [vmem:[%s9425 + $0x28] sm:$0xff]
    %v9432 = vld [vmem:[%s9425 + $0x30] sm:$0xff]
    %v9433 = vld [vmem:[%s9425 + $0x38] sm:$0xff]
    %v9434 = vld [vmem:[%s9425 + $0x40] sm:$0xff]
    %v9435 = vld [vmem:[%s9425 + $0x48] sm:$0xff]
    %v9436 = vld [vmem:[%s9425 + $0x50] sm:$0xff]
    %v9437 = vld [vmem:[%s9425 + $0x58] sm:$0xff]
    %v9438 = vld [vmem:[%s9425 + $0x60] sm:$0xff]
    %v9439 = vld [vmem:[%s9425 + $0x68] sm:$0xff]
    %v9440 = vld [vmem:[%s9425 + $0x70] sm:$0xff]
    %v9441 = vld [vmem:[%s9425 + $0x78] sm:$0xff]
    %v9442 = vld [vmem:[%s9425 + $0x80] sm:$0xff]
    %v9443 = vld [vmem:[%s9425 + $0x88] sm:$0xff]
    %v9444 = vld [vmem:[%s9425 + $0x90] sm:$0xff]
    %v9445 = vld [vmem:[%s9425 + $0x98] sm:$0xff]
    %v9446 = vld [vmem:[%s9425 + $0xa0] sm:$0xff]
    %v9447 = vld [vmem:[%s9425 + $0xa8] sm:$0xff]
    %v9448 = vld [vmem:[%s9425 + $0xb0] sm:$0xff]
    %v9449 = vld [vmem:[%s9425 + $0xb8] sm:$0xff]
    %v9450 = vld [vmem:[%s9425 + $0xc0] sm:$0xff]
    %v9451 = vld [vmem:[%s9425 + $0xc8] sm:$0xff]
    %v9452 = vld [vmem:[%s9425 + $0xd0] sm:$0xff]
    %v9453 = vld [vmem:[%s9425 + $0xd8] sm:$0xff]
    %v9454 = vld [vmem:[%s9425 + $0xe0] sm:$0xff]
    %v9455 = vld [vmem:[%s9425 + $0xe8] sm:$0xff]
    %v9456 = vld [vmem:[%s9425 + $0xf0] sm:$0xff]
    %v9457 = vld [vmem:[%s9425 + $0xf8] sm:$0xff]
    %v9458 = vld [vmem:[%s9425 + $0x100] sm:$0xff]
    %v9459 = vld [vmem:[%s9425 + $0x108] sm:$0xff]
    %v9460 = vld [vmem:[%s9425 + $0x110] sm:$0xff]
    %v9461 = vld [vmem:[%s9425 + $0x118] sm:$0xff]
    %v9462 = vld [vmem:[%s9425 + $0x120] sm:$0xff]
    %v9463 = vld [vmem:[%s9425 + $0x128] sm:$0xff]
    %v9464 = vld [vmem:[%s9425 + $0x130] sm:$0xff]
    %v9465 = vld [vmem:[%s9425 + $0x138] sm:$0xff]
    %v9466 = vld [vmem:[%s9425 + $0x140] sm:$0xff]
    %v9467 = vld [vmem:[%s9425 + $0x148] sm:$0xff]
    %v9468 = vld [vmem:[%s9425 + $0x150] sm:$0xff]
    %v9469 = vld [vmem:[%s9425 + $0x158] sm:$0xff]
    %v9470 = vld [vmem:[%s9425 + $0x160] sm:$0xff]
    %v9471 = vld [vmem:[%s9425 + $0x168] sm:$0xff]
    %v9472 = vld [vmem:[%s9425 + $0x170] sm:$0xff]
    %v9473 = vld [vmem:[%s9425 + $0x178] sm:$0xff]
    %v9474 = vld [vmem:[%s9425 + $0x180] sm:$0xff]
    %v9475 = vld [vmem:[%s9425 + $0x188] sm:$0xff]
    %v9476 = vld [vmem:[%s9425 + $0x190] sm:$0xff]
    %v9477 = vld [vmem:[%s9425 + $0x198] sm:$0xff]
    %v9478 = vld [vmem:[%s9425 + $0x1a0] sm:$0xff]
    %v9479 = vld [vmem:[%s9425 + $0x1a8] sm:$0xff]
    %v9480 = vld [vmem:[%s9425 + $0x1b0] sm:$0xff]
    %v9481 = vld [vmem:[%s9425 + $0x1b8] sm:$0xff]
    %v9482 = vld [vmem:[%s9425 + $0x1c0] sm:$0xff]
    %v9483 = vld [vmem:[%s9425 + $0x1c8] sm:$0xff]
    %v9484 = vld [vmem:[%s9425 + $0x1d0] sm:$0xff]
    %v9485 = vld [vmem:[%s9425 + $0x1d8] sm:$0xff]
    %v9486 = vld [vmem:[%s9425 + $0x1e0] sm:$0xff]
    %v9487 = vld [vmem:[%s9425 + $0x1e8] sm:$0xff]
    %v9488 = vld [vmem:[%s9425 + $0x1f0] sm:$0xff]
    %v9489 = vld [vmem:[%s9425 + $0x1f8] sm:$0xff]
    %v9554 = vunpack.c.l.b16 %v9426
    %v9555 = vunpack.c.h.b16 %v9426
    %v9556 = vunpack.c.l.b16 %v9427
    %v9557 = vunpack.c.h.b16 %v9427
    %v9558 = vunpack.c.l.b16 %v9428
    %v9559 = vunpack.c.h.b16 %v9428
    %v9560 = vunpack.c.l.b16 %v9429
    %v9561 = vunpack.c.h.b16 %v9429
    %v9562 = vunpack.c.l.b16 %v9430
    %v9563 = vunpack.c.h.b16 %v9430
    %v9564 = vunpack.c.l.b16 %v9431
    %v9565 = vunpack.c.h.b16 %v9431
    %v9566 = vunpack.c.l.b16 %v9432
    %v9567 = vunpack.c.h.b16 %v9432
    %v9568 = vunpack.c.l.b16 %v9433
    %v9569 = vunpack.c.h.b16 %v9433
    %v9570 = vunpack.c.l.b16 %v9434
    %v9571 = vunpack.c.h.b16 %v9434
    %v9572 = vunpack.c.l.b16 %v9435
    %v9573 = vunpack.c.h.b16 %v9435
    %v9574 = vunpack.c.l.b16 %v9436
    %v9575 = vunpack.c.h.b16 %v9436
    %v9576 = vunpack.c.l.b16 %v9437
    %v9577 = vunpack.c.h.b16 %v9437
    %v9578 = vunpack.c.l.b16 %v9438
    %v9579 = vunpack.c.h.b16 %v9438
    %v9580 = vunpack.c.l.b16 %v9439
    %v9581 = vunpack.c.h.b16 %v9439
    %v9582 = vunpack.c.l.b16 %v9440
    %v9583 = vunpack.c.h.b16 %v9440
    %v9584 = vunpack.c.l.b16 %v9441
    %v9585 = vunpack.c.h.b16 %v9441
    %v9586 = vunpack.c.l.b16 %v9442
    %v9587 = vunpack.c.h.b16 %v9442
    %v9588 = vunpack.c.l.b16 %v9443
    %v9589 = vunpack.c.h.b16 %v9443
    %v9590 = vunpack.c.l.b16 %v9444
    %v9591 = vunpack.c.h.b16 %v9444
    %v9592 = vunpack.c.l.b16 %v9445
    %v9593 = vunpack.c.h.b16 %v9445
    %v9594 = vunpack.c.l.b16 %v9446
    %v9595 = vunpack.c.h.b16 %v9446
    %v9596 = vunpack.c.l.b16 %v9447
    %v9597 = vunpack.c.h.b16 %v9447
    %v9598 = vunpack.c.l.b16 %v9448
    %v9599 = vunpack.c.h.b16 %v9448
    %v9600 = vunpack.c.l.b16 %v9449
    %v9601 = vunpack.c.h.b16 %v9449
    %v9602 = vunpack.c.l.b16 %v9450
    %v9603 = vunpack.c.h.b16 %v9450
    %v9604 = vunpack.c.l.b16 %v9451
    %v9605 = vunpack.c.h.b16 %v9451
    %v9606 = vunpack.c.l.b16 %v9452
    %v9607 = vunpack.c.h.b16 %v9452
    %v9608 = vunpack.c.l.b16 %v9453
    %v9609 = vunpack.c.h.b16 %v9453
    %v9610 = vunpack.c.l.b16 %v9454
    %v9611 = vunpack.c.h.b16 %v9454
    %v9612 = vunpack.c.l.b16 %v9455
    %v9613 = vunpack.c.h.b16 %v9455
    %v9614 = vunpack.c.l.b16 %v9456
    %v9615 = vunpack.c.h.b16 %v9456
    %v9616 = vunpack.c.l.b16 %v9457
    %v9617 = vunpack.c.h.b16 %v9457
    %v9618 = vunpack.c.l.b16 %v9458
    %v9619 = vunpack.c.h.b16 %v9458
    %v9620 = vunpack.c.l.b16 %v9459
    %v9621 = vunpack.c.h.b16 %v9459
    %v9622 = vunpack.c.l.b16 %v9460
    %v9623 = vunpack.c.h.b16 %v9460
    %v9624 = vunpack.c.l.b16 %v9461
    %v9625 = vunpack.c.h.b16 %v9461
    %v9626 = vunpack.c.l.b16 %v9462
    %v9627 = vunpack.c.h.b16 %v9462
    %v9628 = vunpack.c.l.b16 %v9463
    %v9629 = vunpack.c.h.b16 %v9463
    %v9630 = vunpack.c.l.b16 %v9464
    %v9631 = vunpack.c.h.b16 %v9464
    %v9632 = vunpack.c.l.b16 %v9465
    %v9633 = vunpack.c.h.b16 %v9465
    %v9634 = vunpack.c.l.b16 %v9466
    %v9635 = vunpack.c.h.b16 %v9466
    %v9636 = vunpack.c.l.b16 %v9467
    %v9637 = vunpack.c.h.b16 %v9467
    %v9638 = vunpack.c.l.b16 %v9468
    %v9639 = vunpack.c.h.b16 %v9468
    %v9640 = vunpack.c.l.b16 %v9469
    %v9641 = vunpack.c.h.b16 %v9469
    %v9642 = vunpack.c.l.b16 %v9470
    %v9643 = vunpack.c.h.b16 %v9470
    %v9644 = vunpack.c.l.b16 %v9471
    %v9645 = vunpack.c.h.b16 %v9471
    %v9646 = vunpack.c.l.b16 %v9472
    %v9647 = vunpack.c.h.b16 %v9472
    %v9648 = vunpack.c.l.b16 %v9473
    %v9649 = vunpack.c.h.b16 %v9473
    %v9650 = vunpack.c.l.b16 %v9474
    %v9651 = vunpack.c.h.b16 %v9474
    %v9652 = vunpack.c.l.b16 %v9475
    %v9653 = vunpack.c.h.b16 %v9475
    %v9654 = vunpack.c.l.b16 %v9476
    %v9655 = vunpack.c.h.b16 %v9476
    %v9656 = vunpack.c.l.b16 %v9477
    %v9657 = vunpack.c.h.b16 %v9477
    %v9658 = vunpack.c.l.b16 %v9478
    %v9659 = vunpack.c.h.b16 %v9478
    %v9660 = vunpack.c.l.b16 %v9479
    %v9661 = vunpack.c.h.b16 %v9479
    %v9662 = vunpack.c.l.b16 %v9480
    %v9663 = vunpack.c.h.b16 %v9480
    %v9664 = vunpack.c.l.b16 %v9481
    %v9665 = vunpack.c.h.b16 %v9481
    %v9666 = vunpack.c.l.b16 %v9482
    %v9667 = vunpack.c.h.b16 %v9482
    %v9668 = vunpack.c.l.b16 %v9483
    %v9669 = vunpack.c.h.b16 %v9483
    %v9670 = vunpack.c.l.b16 %v9484
    %v9671 = vunpack.c.h.b16 %v9484
    %v9672 = vunpack.c.l.b16 %v9485
    %v9673 = vunpack.c.h.b16 %v9485
    %v9674 = vunpack.c.l.b16 %v9486
    %v9675 = vunpack.c.h.b16 %v9486
    %v9676 = vunpack.c.l.b16 %v9487
    %v9677 = vunpack.c.h.b16 %v9487
    %v9678 = vunpack.c.l.b16 %v9488
    %v9679 = vunpack.c.h.b16 %v9488
    %v9680 = vunpack.c.l.b16 %v9489
    %v9681 = vunpack.c.h.b16 %v9489
    %v9682 = vpack.c.b16 %v9562, %v9554
    %v9683 = vpack.c.b16 %v9563, %v9555
    %v9684 = vpack.c.b16 %v9564, %v9556
    %v9685 = vpack.c.b16 %v9565, %v9557
    %v9686 = vpack.c.b16 %v9566, %v9558
    %v9687 = vpack.c.b16 %v9567, %v9559
    %v9688 = vpack.c.b16 %v9568, %v9560
    %v9689 = vpack.c.b16 %v9569, %v9561
    %v9690 = vpack.c.b16 %v9578, %v9570
    %v9691 = vpack.c.b16 %v9579, %v9571
    %v9692 = vpack.c.b16 %v9580, %v9572
    %v9693 = vpack.c.b16 %v9581, %v9573
    %v9694 = vpack.c.b16 %v9582, %v9574
    %v9695 = vpack.c.b16 %v9583, %v9575
    %v9696 = vpack.c.b16 %v9584, %v9576
    %v9697 = vpack.c.b16 %v9585, %v9577
    %v9698 = vpack.c.b16 %v9594, %v9586
    %v9699 = vpack.c.b16 %v9595, %v9587
    %v9700 = vpack.c.b16 %v9596, %v9588
    %v9701 = vpack.c.b16 %v9597, %v9589
    %v9702 = vpack.c.b16 %v9598, %v9590
    %v9703 = vpack.c.b16 %v9599, %v9591
    %v9704 = vpack.c.b16 %v9600, %v9592
    %v9705 = vpack.c.b16 %v9601, %v9593
    %v9706 = vpack.c.b16 %v9610, %v9602
    %v9707 = vpack.c.b16 %v9611, %v9603
    %v9708 = vpack.c.b16 %v9612, %v9604
    %v9709 = vpack.c.b16 %v9613, %v9605
    %v9710 = vpack.c.b16 %v9614, %v9606
    %v9711 = vpack.c.b16 %v9615, %v9607
    %v9712 = vpack.c.b16 %v9616, %v9608
    %v9713 = vpack.c.b16 %v9617, %v9609
    %v9714 = vpack.c.b16 %v9626, %v9618
    %v9715 = vpack.c.b16 %v9627, %v9619
    %v9716 = vpack.c.b16 %v9628, %v9620
    %v9717 = vpack.c.b16 %v9629, %v9621
    %v9718 = vpack.c.b16 %v9630, %v9622
    %v9719 = vpack.c.b16 %v9631, %v9623
    %v9720 = vpack.c.b16 %v9632, %v9624
    %v9721 = vpack.c.b16 %v9633, %v9625
    %v9722 = vpack.c.b16 %v9642, %v9634
    %v9723 = vpack.c.b16 %v9643, %v9635
    %v9724 = vpack.c.b16 %v9644, %v9636
    %v9725 = vpack.c.b16 %v9645, %v9637
    %v9726 = vpack.c.b16 %v9646, %v9638
    %v9727 = vpack.c.b16 %v9647, %v9639
    %v9728 = vpack.c.b16 %v9648, %v9640
    %v9729 = vpack.c.b16 %v9649, %v9641
    %v9730 = vpack.c.b16 %v9658, %v9650
    %v9731 = vpack.c.b16 %v9659, %v9651
    %v9732 = vpack.c.b16 %v9660, %v9652
    %v9733 = vpack.c.b16 %v9661, %v9653
    %v9734 = vpack.c.b16 %v9662, %v9654
    %v9735 = vpack.c.b16 %v9663, %v9655
    %v9736 = vpack.c.b16 %v9664, %v9656
    %v9737 = vpack.c.b16 %v9665, %v9657
    %v9738 = vpack.c.b16 %v9674, %v9666
    %v9739 = vpack.c.b16 %v9675, %v9667
    %v9740 = vpack.c.b16 %v9676, %v9668
    %v9741 = vpack.c.b16 %v9677, %v9669
    %v9742 = vpack.c.b16 %v9678, %v9670
    %v9743 = vpack.c.b16 %v9679, %v9671
    %v9744 = vpack.c.b16 %v9680, %v9672
    %v9745 = vpack.c.b16 %v9681, %v9673
    %9810 = vmatpush.bf16.msra.mxu0 %v9738
    %9811 = vmatpush.bf16.msra.mxu0 %v9730
    %9812 = vmatpush.bf16.msra.mxu0 %v9722
    %9813 = vmatpush.bf16.msra.mxu0 %v9714
    %9814 = vmatpush.bf16.msra.mxu0 %v9706
    %9815 = vmatpush.bf16.msra.mxu0 %v9698
    %9816 = vmatpush.bf16.msra.mxu0 %v9690
    %9817 = vmatpush.bf16.msra.mxu0 %v9682
    %9818 = vmatmul.bf16.gmra.mxu0 %v9424
    %v9819 = vpop.f32.mrf.mxu0
    %v9820 = vadd.f32 0.0, %v9819
    %v9821 = vpop.f32.mrf.mxu0
    %9822 = vdwg.mxu0
    %9823 = vmatpush.bf16.msra.mxu0 %v9739
    %9824 = vmatpush.bf16.msra.mxu0 %v9731
    %9825 = vmatpush.bf16.msra.mxu0 %v9723
    %9826 = vmatpush.bf16.msra.mxu0 %v9715
    %9827 = vmatpush.bf16.msra.mxu0 %v9707
    %9828 = vmatpush.bf16.msra.mxu0 %v9699
    %9829 = vmatpush.bf16.msra.mxu0 %v9691
    %9830 = vmatpush.bf16.msra.mxu0 %v9683
    %9831 = vmatmul.bf16.gmra.mxu0 %v9424
    %v9832 = vpop.f32.mrf.mxu0
    %v9833 = vadd.f32 0.0, %v9832
    %v9834 = vpop.f32.mrf.mxu0
    %9835 = vdwg.mxu0
    %9836 = vmatpush.bf16.msra.mxu0 %v9740
    %9837 = vmatpush.bf16.msra.mxu0 %v9732
    %9838 = vmatpush.bf16.msra.mxu0 %v9724
    %9839 = vmatpush.bf16.msra.mxu0 %v9716
    %9840 = vmatpush.bf16.msra.mxu0 %v9708
    %9841 = vmatpush.bf16.msra.mxu0 %v9700
    %9842 = vmatpush.bf16.msra.mxu0 %v9692
    %9843 = vmatpush.bf16.msra.mxu0 %v9684
    %9844 = vmatmul.bf16.gmra.mxu0 %v9424
    %v9845 = vpop.f32.mrf.mxu0
    %v9846 = vadd.f32 0.0, %v9845
    %v9847 = vpop.f32.mrf.mxu0
    %9848 = vdwg.mxu0
    %9849 = vmatpush.bf16.msra.mxu0 %v9741
    %9850 = vmatpush.bf16.msra.mxu0 %v9733
    %9851 = vmatpush.bf16.msra.mxu0 %v9725
    %9852 = vmatpush.bf16.msra.mxu0 %v9717
    %9853 = vmatpush.bf16.msra.mxu0 %v9709
    %9854 = vmatpush.bf16.msra.mxu0 %v9701
    %9855 = vmatpush.bf16.msra.mxu0 %v9693
    %9856 = vmatpush.bf16.msra.mxu0 %v9685
    %9857 = vmatmul.bf16.gmra.mxu0 %v9424
    %v9858 = vpop.f32.mrf.mxu0
    %v9859 = vadd.f32 0.0, %v9858
    %v9860 = vpop.f32.mrf.mxu0
    %9861 = vdwg.mxu0
    %9862 = vmatpush.bf16.msra.mxu0 %v9742
    %9863 = vmatpush.bf16.msra.mxu0 %v9734
    %9864 = vmatpush.bf16.msra.mxu0 %v9726
    %9865 = vmatpush.bf16.msra.mxu0 %v9718
    %9866 = vmatpush.bf16.msra.mxu0 %v9710
    %9867 = vmatpush.bf16.msra.mxu0 %v9702
    %9868 = vmatpush.bf16.msra.mxu0 %v9694
    %9869 = vmatpush.bf16.msra.mxu0 %v9686
    %9870 = vmatmul.bf16.gmra.mxu0 %v9424
    %v9871 = vpop.f32.mrf.mxu0
    %v9872 = vadd.f32 0.0, %v9871
    %v9873 = vpop.f32.mrf.mxu0
    %9874 = vdwg.mxu0
    %9875 = vmatpush.bf16.msra.mxu0 %v9743
    %9876 = vmatpush.bf16.msra.mxu0 %v9735
    %9877 = vmatpush.bf16.msra.mxu0 %v9727
    %9878 = vmatpush.bf16.msra.mxu0 %v9719
    %9879 = vmatpush.bf16.msra.mxu0 %v9711
    %9880 = vmatpush.bf16.msra.mxu0 %v9703
    %9881 = vmatpush.bf16.msra.mxu0 %v9695
    %9882 = vmatpush.bf16.msra.mxu0 %v9687
    %9883 = vmatmul.bf16.gmra.mxu0 %v9424
    %v9884 = vpop.f32.mrf.mxu0
    %v9885 = vadd.f32 0.0, %v9884
    %v9886 = vpop.f32.mrf.mxu0
    %9887 = vdwg.mxu0
    %9888 = vmatpush.bf16.msra.mxu0 %v9744
    %9889 = vmatpush.bf16.msra.mxu0 %v9736
    %9890 = vmatpush.bf16.msra.mxu0 %v9728
    %9891 = vmatpush.bf16.msra.mxu0 %v9720
    %9892 = vmatpush.bf16.msra.mxu0 %v9712
    %9893 = vmatpush.bf16.msra.mxu0 %v9704
    %9894 = vmatpush.bf16.msra.mxu0 %v9696
    %9895 = vmatpush.bf16.msra.mxu0 %v9688
    %9896 = vmatmul.bf16.gmra.mxu0 %v9424
    %v9897 = vpop.f32.mrf.mxu0
    %v9898 = vadd.f32 0.0, %v9897
    %v9899 = vpop.f32.mrf.mxu0
    %9900 = vdwg.mxu0
    %9901 = vmatpush.bf16.msra.mxu0 %v9745
    %9902 = vmatpush.bf16.msra.mxu0 %v9737
    %9903 = vmatpush.bf16.msra.mxu0 %v9729
    %9904 = vmatpush.bf16.msra.mxu0 %v9721
    %9905 = vmatpush.bf16.msra.mxu0 %v9713
    %9906 = vmatpush.bf16.msra.mxu0 %v9705
    %9907 = vmatpush.bf16.msra.mxu0 %v9697
    %9908 = vmatpush.bf16.msra.mxu0 %v9689
    %9909 = vmatmul.bf16.gmra.mxu0 %v9424
    %v9910 = vpop.f32.mrf.mxu0
    %v9911 = vadd.f32 0.0, %v9910
    %v9912 = vpop.f32.mrf.mxu0
    %9913 = vdwg.mxu0
    %v9914 = vadd.f32 %v9411, %v9820
    %v9915 = vadd.f32 %v9412, %v9833
    %v9916 = vadd.f32 %v9413, %v9846
    %v9917 = vadd.f32 %v9414, %v9859
    %v9918 = vadd.f32 %v9415, %v9872
    %v9919 = vadd.f32 %v9416, %v9885
    %v9920 = vadd.f32 %v9417, %v9898
    %v9921 = vadd.f32 %v9418, %v9911
    %v9922 = vrot.slane %v2388, 7
    %v9924 = vrot.slane %v2396, 6
    %v9926 = vsel %vm2400, %v9922, %v9924
    %v9927 = vpack.c.bf16 %v9926, %v9926
    %s9928 = scalar_lea.vmem [#allocation22], 7680
    %v9929 = vld [vmem:[%s9928] sm:$0xff]
    %v9930 = vld [vmem:[%s9928 + $0x8] sm:$0xff]
    %v9931 = vld [vmem:[%s9928 + $0x10] sm:$0xff]
    %v9932 = vld [vmem:[%s9928 + $0x18] sm:$0xff]
    %v9933 = vld [vmem:[%s9928 + $0x20] sm:$0xff]
    %v9934 = vld [vmem:[%s9928 + $0x28] sm:$0xff]
    %v9935 = vld [vmem:[%s9928 + $0x30] sm:$0xff]
    %v9936 = vld [vmem:[%s9928 + $0x38] sm:$0xff]
    %v9937 = vld [vmem:[%s9928 + $0x40] sm:$0xff]
    %v9938 = vld [vmem:[%s9928 + $0x48] sm:$0xff]
    %v9939 = vld [vmem:[%s9928 + $0x50] sm:$0xff]
    %v9940 = vld [vmem:[%s9928 + $0x58] sm:$0xff]
    %v9941 = vld [vmem:[%s9928 + $0x60] sm:$0xff]
    %v9942 = vld [vmem:[%s9928 + $0x68] sm:$0xff]
    %v9943 = vld [vmem:[%s9928 + $0x70] sm:$0xff]
    %v9944 = vld [vmem:[%s9928 + $0x78] sm:$0xff]
    %v9945 = vld [vmem:[%s9928 + $0x80] sm:$0xff]
    %v9946 = vld [vmem:[%s9928 + $0x88] sm:$0xff]
    %v9947 = vld [vmem:[%s9928 + $0x90] sm:$0xff]
    %v9948 = vld [vmem:[%s9928 + $0x98] sm:$0xff]
    %v9949 = vld [vmem:[%s9928 + $0xa0] sm:$0xff]
    %v9950 = vld [vmem:[%s9928 + $0xa8] sm:$0xff]
    %v9951 = vld [vmem:[%s9928 + $0xb0] sm:$0xff]
    %v9952 = vld [vmem:[%s9928 + $0xb8] sm:$0xff]
    %v9953 = vld [vmem:[%s9928 + $0xc0] sm:$0xff]
    %v9954 = vld [vmem:[%s9928 + $0xc8] sm:$0xff]
    %v9955 = vld [vmem:[%s9928 + $0xd0] sm:$0xff]
    %v9956 = vld [vmem:[%s9928 + $0xd8] sm:$0xff]
    %v9957 = vld [vmem:[%s9928 + $0xe0] sm:$0xff]
    %v9958 = vld [vmem:[%s9928 + $0xe8] sm:$0xff]
    %v9959 = vld [vmem:[%s9928 + $0xf0] sm:$0xff]
    %v9960 = vld [vmem:[%s9928 + $0xf8] sm:$0xff]
    %v9961 = vld [vmem:[%s9928 + $0x100] sm:$0xff]
    %v9962 = vld [vmem:[%s9928 + $0x108] sm:$0xff]
    %v9963 = vld [vmem:[%s9928 + $0x110] sm:$0xff]
    %v9964 = vld [vmem:[%s9928 + $0x118] sm:$0xff]
    %v9965 = vld [vmem:[%s9928 + $0x120] sm:$0xff]
    %v9966 = vld [vmem:[%s9928 + $0x128] sm:$0xff]
    %v9967 = vld [vmem:[%s9928 + $0x130] sm:$0xff]
    %v9968 = vld [vmem:[%s9928 + $0x138] sm:$0xff]
    %v9969 = vld [vmem:[%s9928 + $0x140] sm:$0xff]
    %v9970 = vld [vmem:[%s9928 + $0x148] sm:$0xff]
    %v9971 = vld [vmem:[%s9928 + $0x150] sm:$0xff]
    %v9972 = vld [vmem:[%s9928 + $0x158] sm:$0xff]
    %v9973 = vld [vmem:[%s9928 + $0x160] sm:$0xff]
    %v9974 = vld [vmem:[%s9928 + $0x168] sm:$0xff]
    %v9975 = vld [vmem:[%s9928 + $0x170] sm:$0xff]
    %v9976 = vld [vmem:[%s9928 + $0x178] sm:$0xff]
    %v9977 = vld [vmem:[%s9928 + $0x180] sm:$0xff]
    %v9978 = vld [vmem:[%s9928 + $0x188] sm:$0xff]
    %v9979 = vld [vmem:[%s9928 + $0x190] sm:$0xff]
    %v9980 = vld [vmem:[%s9928 + $0x198] sm:$0xff]
    %v9981 = vld [vmem:[%s9928 + $0x1a0] sm:$0xff]
    %v9982 = vld [vmem:[%s9928 + $0x1a8] sm:$0xff]
    %v9983 = vld [vmem:[%s9928 + $0x1b0] sm:$0xff]
    %v9984 = vld [vmem:[%s9928 + $0x1b8] sm:$0xff]
    %v9985 = vld [vmem:[%s9928 + $0x1c0] sm:$0xff]
    %v9986 = vld [vmem:[%s9928 + $0x1c8] sm:$0xff]
    %v9987 = vld [vmem:[%s9928 + $0x1d0] sm:$0xff]
    %v9988 = vld [vmem:[%s9928 + $0x1d8] sm:$0xff]
    %v9989 = vld [vmem:[%s9928 + $0x1e0] sm:$0xff]
    %v9990 = vld [vmem:[%s9928 + $0x1e8] sm:$0xff]
    %v9991 = vld [vmem:[%s9928 + $0x1f0] sm:$0xff]
    %v9992 = vld [vmem:[%s9928 + $0x1f8] sm:$0xff]
    %v10057 = vunpack.c.l.b16 %v9929
    %v10058 = vunpack.c.h.b16 %v9929
    %v10059 = vunpack.c.l.b16 %v9930
    %v10060 = vunpack.c.h.b16 %v9930
    %v10061 = vunpack.c.l.b16 %v9931
    %v10062 = vunpack.c.h.b16 %v9931
    %v10063 = vunpack.c.l.b16 %v9932
    %v10064 = vunpack.c.h.b16 %v9932
    %v10065 = vunpack.c.l.b16 %v9933
    %v10066 = vunpack.c.h.b16 %v9933
    %v10067 = vunpack.c.l.b16 %v9934
    %v10068 = vunpack.c.h.b16 %v9934
    %v10069 = vunpack.c.l.b16 %v9935
    %v10070 = vunpack.c.h.b16 %v9935
    %v10071 = vunpack.c.l.b16 %v9936
    %v10072 = vunpack.c.h.b16 %v9936
    %v10073 = vunpack.c.l.b16 %v9937
    %v10074 = vunpack.c.h.b16 %v9937
    %v10075 = vunpack.c.l.b16 %v9938
    %v10076 = vunpack.c.h.b16 %v9938
    %v10077 = vunpack.c.l.b16 %v9939
    %v10078 = vunpack.c.h.b16 %v9939
    %v10079 = vunpack.c.l.b16 %v9940
    %v10080 = vunpack.c.h.b16 %v9940
    %v10081 = vunpack.c.l.b16 %v9941
    %v10082 = vunpack.c.h.b16 %v9941
    %v10083 = vunpack.c.l.b16 %v9942
    %v10084 = vunpack.c.h.b16 %v9942
    %v10085 = vunpack.c.l.b16 %v9943
    %v10086 = vunpack.c.h.b16 %v9943
    %v10087 = vunpack.c.l.b16 %v9944
    %v10088 = vunpack.c.h.b16 %v9944
    %v10089 = vunpack.c.l.b16 %v9945
    %v10090 = vunpack.c.h.b16 %v9945
    %v10091 = vunpack.c.l.b16 %v9946
    %v10092 = vunpack.c.h.b16 %v9946
    %v10093 = vunpack.c.l.b16 %v9947
    %v10094 = vunpack.c.h.b16 %v9947
    %v10095 = vunpack.c.l.b16 %v9948
    %v10096 = vunpack.c.h.b16 %v9948
    %v10097 = vunpack.c.l.b16 %v9949
    %v10098 = vunpack.c.h.b16 %v9949
    %v10099 = vunpack.c.l.b16 %v9950
    %v10100 = vunpack.c.h.b16 %v9950
    %v10101 = vunpack.c.l.b16 %v9951
    %v10102 = vunpack.c.h.b16 %v9951
    %v10103 = vunpack.c.l.b16 %v9952
    %v10104 = vunpack.c.h.b16 %v9952
    %v10105 = vunpack.c.l.b16 %v9953
    %v10106 = vunpack.c.h.b16 %v9953
    %v10107 = vunpack.c.l.b16 %v9954
    %v10108 = vunpack.c.h.b16 %v9954
    %v10109 = vunpack.c.l.b16 %v9955
    %v10110 = vunpack.c.h.b16 %v9955
    %v10111 = vunpack.c.l.b16 %v9956
    %v10112 = vunpack.c.h.b16 %v9956
    %v10113 = vunpack.c.l.b16 %v9957
    %v10114 = vunpack.c.h.b16 %v9957
    %v10115 = vunpack.c.l.b16 %v9958
    %v10116 = vunpack.c.h.b16 %v9958
    %v10117 = vunpack.c.l.b16 %v9959
    %v10118 = vunpack.c.h.b16 %v9959
    %v10119 = vunpack.c.l.b16 %v9960
    %v10120 = vunpack.c.h.b16 %v9960
    %v10121 = vunpack.c.l.b16 %v9961
    %v10122 = vunpack.c.h.b16 %v9961
    %v10123 = vunpack.c.l.b16 %v9962
    %v10124 = vunpack.c.h.b16 %v9962
    %v10125 = vunpack.c.l.b16 %v9963
    %v10126 = vunpack.c.h.b16 %v9963
    %v10127 = vunpack.c.l.b16 %v9964
    %v10128 = vunpack.c.h.b16 %v9964
    %v10129 = vunpack.c.l.b16 %v9965
    %v10130 = vunpack.c.h.b16 %v9965
    %v10131 = vunpack.c.l.b16 %v9966
    %v10132 = vunpack.c.h.b16 %v9966
    %v10133 = vunpack.c.l.b16 %v9967
    %v10134 = vunpack.c.h.b16 %v9967
    %v10135 = vunpack.c.l.b16 %v9968
    %v10136 = vunpack.c.h.b16 %v9968
    %v10137 = vunpack.c.l.b16 %v9969
    %v10138 = vunpack.c.h.b16 %v9969
    %v10139 = vunpack.c.l.b16 %v9970
    %v10140 = vunpack.c.h.b16 %v9970
    %v10141 = vunpack.c.l.b16 %v9971
    %v10142 = vunpack.c.h.b16 %v9971
    %v10143 = vunpack.c.l.b16 %v9972
    %v10144 = vunpack.c.h.b16 %v9972
    %v10145 = vunpack.c.l.b16 %v9973
    %v10146 = vunpack.c.h.b16 %v9973
    %v10147 = vunpack.c.l.b16 %v9974
    %v10148 = vunpack.c.h.b16 %v9974
    %v10149 = vunpack.c.l.b16 %v9975
    %v10150 = vunpack.c.h.b16 %v9975
    %v10151 = vunpack.c.l.b16 %v9976
    %v10152 = vunpack.c.h.b16 %v9976
    %v10153 = vunpack.c.l.b16 %v9977
    %v10154 = vunpack.c.h.b16 %v9977
    %v10155 = vunpack.c.l.b16 %v9978
    %v10156 = vunpack.c.h.b16 %v9978
    %v10157 = vunpack.c.l.b16 %v9979
    %v10158 = vunpack.c.h.b16 %v9979
    %v10159 = vunpack.c.l.b16 %v9980
    %v10160 = vunpack.c.h.b16 %v9980
    %v10161 = vunpack.c.l.b16 %v9981
    %v10162 = vunpack.c.h.b16 %v9981
    %v10163 = vunpack.c.l.b16 %v9982
    %v10164 = vunpack.c.h.b16 %v9982
    %v10165 = vunpack.c.l.b16 %v9983
    %v10166 = vunpack.c.h.b16 %v9983
    %v10167 = vunpack.c.l.b16 %v9984
    %v10168 = vunpack.c.h.b16 %v9984
    %v10169 = vunpack.c.l.b16 %v9985
    %v10170 = vunpack.c.h.b16 %v9985
    %v10171 = vunpack.c.l.b16 %v9986
    %v10172 = vunpack.c.h.b16 %v9986
    %v10173 = vunpack.c.l.b16 %v9987
    %v10174 = vunpack.c.h.b16 %v9987
    %v10175 = vunpack.c.l.b16 %v9988
    %v10176 = vunpack.c.h.b16 %v9988
    %v10177 = vunpack.c.l.b16 %v9989
    %v10178 = vunpack.c.h.b16 %v9989
    %v10179 = vunpack.c.l.b16 %v9990
    %v10180 = vunpack.c.h.b16 %v9990
    %v10181 = vunpack.c.l.b16 %v9991
    %v10182 = vunpack.c.h.b16 %v9991
    %v10183 = vunpack.c.l.b16 %v9992
    %v10184 = vunpack.c.h.b16 %v9992
    %v10185 = vpack.c.b16 %v10065, %v10057
    %v10186 = vpack.c.b16 %v10066, %v10058
    %v10187 = vpack.c.b16 %v10067, %v10059
    %v10188 = vpack.c.b16 %v10068, %v10060
    %v10189 = vpack.c.b16 %v10069, %v10061
    %v10190 = vpack.c.b16 %v10070, %v10062
    %v10191 = vpack.c.b16 %v10071, %v10063
    %v10192 = vpack.c.b16 %v10072, %v10064
    %v10193 = vpack.c.b16 %v10081, %v10073
    %v10194 = vpack.c.b16 %v10082, %v10074
    %v10195 = vpack.c.b16 %v10083, %v10075
    %v10196 = vpack.c.b16 %v10084, %v10076
    %v10197 = vpack.c.b16 %v10085, %v10077
    %v10198 = vpack.c.b16 %v10086, %v10078
    %v10199 = vpack.c.b16 %v10087, %v10079
    %v10200 = vpack.c.b16 %v10088, %v10080
    %v10201 = vpack.c.b16 %v10097, %v10089
    %v10202 = vpack.c.b16 %v10098, %v10090
    %v10203 = vpack.c.b16 %v10099, %v10091
    %v10204 = vpack.c.b16 %v10100, %v10092
    %v10205 = vpack.c.b16 %v10101, %v10093
    %v10206 = vpack.c.b16 %v10102, %v10094
    %v10207 = vpack.c.b16 %v10103, %v10095
    %v10208 = vpack.c.b16 %v10104, %v10096
    %v10209 = vpack.c.b16 %v10113, %v10105
    %v10210 = vpack.c.b16 %v10114, %v10106
    %v10211 = vpack.c.b16 %v10115, %v10107
    %v10212 = vpack.c.b16 %v10116, %v10108
    %v10213 = vpack.c.b16 %v10117, %v10109
    %v10214 = vpack.c.b16 %v10118, %v10110
    %v10215 = vpack.c.b16 %v10119, %v10111
    %v10216 = vpack.c.b16 %v10120, %v10112
    %v10217 = vpack.c.b16 %v10129, %v10121
    %v10218 = vpack.c.b16 %v10130, %v10122
    %v10219 = vpack.c.b16 %v10131, %v10123
    %v10220 = vpack.c.b16 %v10132, %v10124
    %v10221 = vpack.c.b16 %v10133, %v10125
    %v10222 = vpack.c.b16 %v10134, %v10126
    %v10223 = vpack.c.b16 %v10135, %v10127
    %v10224 = vpack.c.b16 %v10136, %v10128
    %v10225 = vpack.c.b16 %v10145, %v10137
    %v10226 = vpack.c.b16 %v10146, %v10138
    %v10227 = vpack.c.b16 %v10147, %v10139
    %v10228 = vpack.c.b16 %v10148, %v10140
    %v10229 = vpack.c.b16 %v10149, %v10141
    %v10230 = vpack.c.b16 %v10150, %v10142
    %v10231 = vpack.c.b16 %v10151, %v10143
    %v10232 = vpack.c.b16 %v10152, %v10144
    %v10233 = vpack.c.b16 %v10161, %v10153
    %v10234 = vpack.c.b16 %v10162, %v10154
    %v10235 = vpack.c.b16 %v10163, %v10155
    %v10236 = vpack.c.b16 %v10164, %v10156
    %v10237 = vpack.c.b16 %v10165, %v10157
    %v10238 = vpack.c.b16 %v10166, %v10158
    %v10239 = vpack.c.b16 %v10167, %v10159
    %v10240 = vpack.c.b16 %v10168, %v10160
    %v10241 = vpack.c.b16 %v10177, %v10169
    %v10242 = vpack.c.b16 %v10178, %v10170
    %v10243 = vpack.c.b16 %v10179, %v10171
    %v10244 = vpack.c.b16 %v10180, %v10172
    %v10245 = vpack.c.b16 %v10181, %v10173
    %v10246 = vpack.c.b16 %v10182, %v10174
    %v10247 = vpack.c.b16 %v10183, %v10175
    %v10248 = vpack.c.b16 %v10184, %v10176
    %10313 = vmatpush.bf16.msra.mxu0 %v10241
    %10314 = vmatpush.bf16.msra.mxu0 %v10233
    %10315 = vmatpush.bf16.msra.mxu0 %v10225
    %10316 = vmatpush.bf16.msra.mxu0 %v10217
    %10317 = vmatpush.bf16.msra.mxu0 %v10209
    %10318 = vmatpush.bf16.msra.mxu0 %v10201
    %10319 = vmatpush.bf16.msra.mxu0 %v10193
    %10320 = vmatpush.bf16.msra.mxu0 %v10185
    %10321 = vmatmul.bf16.gmra.mxu0 %v9927
    %v10322 = vpop.f32.mrf.mxu0
    %v10323 = vadd.f32 0.0, %v10322
    %v10324 = vpop.f32.mrf.mxu0
    %10325 = vdwg.mxu0
    %10326 = vmatpush.bf16.msra.mxu0 %v10242
    %10327 = vmatpush.bf16.msra.mxu0 %v10234
    %10328 = vmatpush.bf16.msra.mxu0 %v10226
    %10329 = vmatpush.bf16.msra.mxu0 %v10218
    %10330 = vmatpush.bf16.msra.mxu0 %v10210
    %10331 = vmatpush.bf16.msra.mxu0 %v10202
    %10332 = vmatpush.bf16.msra.mxu0 %v10194
    %10333 = vmatpush.bf16.msra.mxu0 %v10186
    %10334 = vmatmul.bf16.gmra.mxu0 %v9927
    %v10335 = vpop.f32.mrf.mxu0
    %v10336 = vadd.f32 0.0, %v10335
    %v10337 = vpop.f32.mrf.mxu0
    %10338 = vdwg.mxu0
    %10339 = vmatpush.bf16.msra.mxu0 %v10243
    %10340 = vmatpush.bf16.msra.mxu0 %v10235
    %10341 = vmatpush.bf16.msra.mxu0 %v10227
    %10342 = vmatpush.bf16.msra.mxu0 %v10219
    %10343 = vmatpush.bf16.msra.mxu0 %v10211
    %10344 = vmatpush.bf16.msra.mxu0 %v10203
    %10345 = vmatpush.bf16.msra.mxu0 %v10195
    %10346 = vmatpush.bf16.msra.mxu0 %v10187
    %10347 = vmatmul.bf16.gmra.mxu0 %v9927
    %v10348 = vpop.f32.mrf.mxu0
    %v10349 = vadd.f32 0.0, %v10348
    %v10350 = vpop.f32.mrf.mxu0
    %10351 = vdwg.mxu0
    %10352 = vmatpush.bf16.msra.mxu0 %v10244
    %10353 = vmatpush.bf16.msra.mxu0 %v10236
    %10354 = vmatpush.bf16.msra.mxu0 %v10228
    %10355 = vmatpush.bf16.msra.mxu0 %v10220
    %10356 = vmatpush.bf16.msra.mxu0 %v10212
    %10357 = vmatpush.bf16.msra.mxu0 %v10204
    %10358 = vmatpush.bf16.msra.mxu0 %v10196
    %10359 = vmatpush.bf16.msra.mxu0 %v10188
    %10360 = vmatmul.bf16.gmra.mxu0 %v9927
    %v10361 = vpop.f32.mrf.mxu0
    %v10362 = vadd.f32 0.0, %v10361
    %v10363 = vpop.f32.mrf.mxu0
    %10364 = vdwg.mxu0
    %10365 = vmatpush.bf16.msra.mxu0 %v10245
    %10366 = vmatpush.bf16.msra.mxu0 %v10237
    %10367 = vmatpush.bf16.msra.mxu0 %v10229
    %10368 = vmatpush.bf16.msra.mxu0 %v10221
    %10369 = vmatpush.bf16.msra.mxu0 %v10213
    %10370 = vmatpush.bf16.msra.mxu0 %v10205
    %10371 = vmatpush.bf16.msra.mxu0 %v10197
    %10372 = vmatpush.bf16.msra.mxu0 %v10189
    %10373 = vmatmul.bf16.gmra.mxu0 %v9927
    %v10374 = vpop.f32.mrf.mxu0
    %v10375 = vadd.f32 0.0, %v10374
    %v10376 = vpop.f32.mrf.mxu0
    %10377 = vdwg.mxu0
    %10378 = vmatpush.bf16.msra.mxu0 %v10246
    %10379 = vmatpush.bf16.msra.mxu0 %v10238
    %10380 = vmatpush.bf16.msra.mxu0 %v10230
    %10381 = vmatpush.bf16.msra.mxu0 %v10222
    %10382 = vmatpush.bf16.msra.mxu0 %v10214
    %10383 = vmatpush.bf16.msra.mxu0 %v10206
    %10384 = vmatpush.bf16.msra.mxu0 %v10198
    %10385 = vmatpush.bf16.msra.mxu0 %v10190
    %10386 = vmatmul.bf16.gmra.mxu0 %v9927
    %v10387 = vpop.f32.mrf.mxu0
    %v10388 = vadd.f32 0.0, %v10387
    %v10389 = vpop.f32.mrf.mxu0
    %10390 = vdwg.mxu0
    %10391 = vmatpush.bf16.msra.mxu0 %v10247
    %10392 = vmatpush.bf16.msra.mxu0 %v10239
    %10393 = vmatpush.bf16.msra.mxu0 %v10231
    %10394 = vmatpush.bf16.msra.mxu0 %v10223
    %10395 = vmatpush.bf16.msra.mxu0 %v10215
    %10396 = vmatpush.bf16.msra.mxu0 %v10207
    %10397 = vmatpush.bf16.msra.mxu0 %v10199
    %10398 = vmatpush.bf16.msra.mxu0 %v10191
    %10399 = vmatmul.bf16.gmra.mxu0 %v9927
    %v10400 = vpop.f32.mrf.mxu0
    %v10401 = vadd.f32 0.0, %v10400
    %v10402 = vpop.f32.mrf.mxu0
    %10403 = vdwg.mxu0
    %10404 = vmatpush.bf16.msra.mxu0 %v10248
    %10405 = vmatpush.bf16.msra.mxu0 %v10240
    %10406 = vmatpush.bf16.msra.mxu0 %v10232
    %10407 = vmatpush.bf16.msra.mxu0 %v10224
    %10408 = vmatpush.bf16.msra.mxu0 %v10216
    %10409 = vmatpush.bf16.msra.mxu0 %v10208
    %10410 = vmatpush.bf16.msra.mxu0 %v10200
    %10411 = vmatpush.bf16.msra.mxu0 %v10192
    %10412 = vmatmul.bf16.gmra.mxu0 %v9927
    %v10413 = vpop.f32.mrf.mxu0
    %v10414 = vadd.f32 0.0, %v10413
    %v10415 = vpop.f32.mrf.mxu0
    %10416 = vdwg.mxu0
    %v10417 = vadd.f32 %v9914, %v10323
    %v10418 = vadd.f32 %v9915, %v10336
    %v10419 = vadd.f32 %v9916, %v10349
    %v10420 = vadd.f32 %v9917, %v10362
    %v10421 = vadd.f32 %v9918, %v10375
    %v10422 = vadd.f32 %v9919, %v10388
    %v10423 = vadd.f32 %v9920, %v10401
    %v10424 = vadd.f32 %v9921, %v10414
    %v10425 = vld [vmem:[#allocation23] sm:$0xff]
    %v10427 = vperm.slane %v10425, 0
    %v10428 = vperm.slane %v10425, 1
    %v10429 = vperm.slane %v10425, 2
    %v10430 = vperm.slane %v10425, 3
    %v10431 = vperm.slane %v10425, 4
    %v10432 = vperm.slane %v10425, 5
    %v10433 = vperm.slane %v10425, 6
    %v10434 = vperm.slane %v10425, 7
    %v10443 = vadd.f32 %v10417, %v10427
    %v10444 = vadd.f32 %v10418, %v10428
    %v10445 = vadd.f32 %v10419, %v10429
    %v10446 = vadd.f32 %v10420, %v10430
    %v10447 = vadd.f32 %v10421, %v10431
    %v10448 = vadd.f32 %v10422, %v10432
    %v10449 = vadd.f32 %v10423, %v10433
    %v10450 = vadd.f32 %v10424, %v10434
    %vm10451 = vcmp.ge.f32.partialorder %v10443, 0.0
    %vm10452 = vcmp.ge.f32.partialorder %v10444, 0.0
    %vm10453 = vcmp.ge.f32.partialorder %v10445, 0.0
    %vm10454 = vcmp.ge.f32.partialorder %v10446, 0.0
    %vm10455 = vcmp.ge.f32.partialorder %v10447, 0.0
    %vm10456 = vcmp.ge.f32.partialorder %v10448, 0.0
    %vm10457 = vcmp.ge.f32.partialorder %v10449, 0.0
    %vm10458 = vcmp.ge.f32.partialorder %v10450, 0.0
    %v10459 = vmul.f32 %v10443, 0.01
    %v10460 = vmul.f32 %v10444, 0.01
    %v10461 = vmul.f32 %v10445, 0.01
    %v10462 = vmul.f32 %v10446, 0.01
    %v10463 = vmul.f32 %v10447, 0.01
    %v10464 = vmul.f32 %v10448, 0.01
    %v10465 = vmul.f32 %v10449, 0.01
    %v10466 = vmul.f32 %v10450, 0.01
    %v10467 = vsel %vm10451, %v10443, %v10459
    %v10468 = vsel %vm10452, %v10444, %v10460
    %v10469 = vsel %vm10453, %v10445, %v10461
    %v10470 = vsel %vm10454, %v10446, %v10462
    %v10471 = vsel %vm10455, %v10447, %v10463
    %v10472 = vsel %vm10456, %v10448, %v10464
    %v10473 = vsel %vm10457, %v10449, %v10465
    %v10474 = vsel %vm10458, %v10450, %v10466
    %vm10475 = vcmask 1041408
    %v10476 = vsel %vm10475, %v10467, 0.0
    %v10477 = vrot.slane %v10476, 4
    %v10478 = vadd.f32 %v10476, %v10477
    %v10479 = vrot.slane %v10478, 2
    %v10480 = vadd.f32 %v10478, %v10479
    %v10481 = vrot.slane %v10480, 1
    %v10482 = vadd.f32 %v10480, %v10481
    %v10483 = vsel %vm10475, %v10468, 0.0
    %v10484 = vrot.slane %v10483, 4
    %v10485 = vadd.f32 %v10483, %v10484
    %v10486 = vrot.slane %v10485, 2
    %v10487 = vadd.f32 %v10485, %v10486
    %v10488 = vrot.slane %v10487, 1
    %v10489 = vadd.f32 %v10487, %v10488
    %v10490 = vsel %vm10475, %v10469, 0.0
    %v10491 = vrot.slane %v10490, 4
    %v10492 = vadd.f32 %v10490, %v10491
    %v10493 = vrot.slane %v10492, 2
    %v10494 = vadd.f32 %v10492, %v10493
    %v10495 = vrot.slane %v10494, 1
    %v10496 = vadd.f32 %v10494, %v10495
    %v10497 = vsel %vm10475, %v10470, 0.0
    %v10498 = vrot.slane %v10497, 4
    %v10499 = vadd.f32 %v10497, %v10498
    %v10500 = vrot.slane %v10499, 2
    %v10501 = vadd.f32 %v10499, %v10500
    %v10502 = vrot.slane %v10501, 1
    %v10503 = vadd.f32 %v10501, %v10502
    %v10504 = vsel %vm10475, %v10471, 0.0
    %v10505 = vrot.slane %v10504, 4
    %v10506 = vadd.f32 %v10504, %v10505
    %v10507 = vrot.slane %v10506, 2
    %v10508 = vadd.f32 %v10506, %v10507
    %v10509 = vrot.slane %v10508, 1
    %v10510 = vadd.f32 %v10508, %v10509
    %v10511 = vsel %vm10475, %v10472, 0.0
    %v10512 = vrot.slane %v10511, 4
    %v10513 = vadd.f32 %v10511, %v10512
    %v10514 = vrot.slane %v10513, 2
    %v10515 = vadd.f32 %v10513, %v10514
    %v10516 = vrot.slane %v10515, 1
    %v10517 = vadd.f32 %v10515, %v10516
    %v10518 = vsel %vm10475, %v10473, 0.0
    %v10519 = vrot.slane %v10518, 4
    %v10520 = vadd.f32 %v10518, %v10519
    %v10521 = vrot.slane %v10520, 2
    %v10522 = vadd.f32 %v10520, %v10521
    %v10523 = vrot.slane %v10522, 1
    %v10524 = vadd.f32 %v10522, %v10523
    %v10525 = vsel %vm10475, %v10474, 0.0
    %v10526 = vrot.slane %v10525, 4
    %v10527 = vadd.f32 %v10525, %v10526
    %v10528 = vrot.slane %v10527, 2
    %v10529 = vadd.f32 %v10527, %v10528
    %v10530 = vrot.slane %v10529, 1
    %v10531 = vadd.f32 %v10529, %v10530
    %v10532 = vmul.f32 %v10467, %v10467
    %v10533 = vmul.f32 %v10468, %v10468
    %v10534 = vmul.f32 %v10469, %v10469
    %v10535 = vmul.f32 %v10470, %v10470
    %v10536 = vmul.f32 %v10471, %v10471
    %v10537 = vmul.f32 %v10472, %v10472
    %v10538 = vmul.f32 %v10473, %v10473
    %v10539 = vmul.f32 %v10474, %v10474
    %v10540 = vsel %vm10475, %v10532, 0.0
    %v10541 = vrot.slane %v10540, 4
    %v10542 = vadd.f32 %v10540, %v10541
    %v10543 = vrot.slane %v10542, 2
    %v10544 = vadd.f32 %v10542, %v10543
    %v10545 = vrot.slane %v10544, 1
    %v10546 = vadd.f32 %v10544, %v10545
    %v10547 = vsel %vm10475, %v10533, 0.0
    %v10548 = vrot.slane %v10547, 4
    %v10549 = vadd.f32 %v10547, %v10548
    %v10550 = vrot.slane %v10549, 2
    %v10551 = vadd.f32 %v10549, %v10550
    %v10552 = vrot.slane %v10551, 1
    %v10553 = vadd.f32 %v10551, %v10552
    %v10554 = vsel %vm10475, %v10534, 0.0
    %v10555 = vrot.slane %v10554, 4
    %v10556 = vadd.f32 %v10554, %v10555
    %v10557 = vrot.slane %v10556, 2
    %v10558 = vadd.f32 %v10556, %v10557
    %v10559 = vrot.slane %v10558, 1
    %v10560 = vadd.f32 %v10558, %v10559
    %v10561 = vsel %vm10475, %v10535, 0.0
    %v10562 = vrot.slane %v10561, 4
    %v10563 = vadd.f32 %v10561, %v10562
    %v10564 = vrot.slane %v10563, 2
    %v10565 = vadd.f32 %v10563, %v10564
    %v10566 = vrot.slane %v10565, 1
    %v10567 = vadd.f32 %v10565, %v10566
    %v10568 = vsel %vm10475, %v10536, 0.0
    %v10569 = vrot.slane %v10568, 4
    %v10570 = vadd.f32 %v10568, %v10569
    %v10571 = vrot.slane %v10570, 2
    %v10572 = vadd.f32 %v10570, %v10571
    %v10573 = vrot.slane %v10572, 1
    %v10574 = vadd.f32 %v10572, %v10573
    %v10575 = vsel %vm10475, %v10537, 0.0
    %v10576 = vrot.slane %v10575, 4
    %v10577 = vadd.f32 %v10575, %v10576
    %v10578 = vrot.slane %v10577, 2
    %v10579 = vadd.f32 %v10577, %v10578
    %v10580 = vrot.slane %v10579, 1
    %v10581 = vadd.f32 %v10579, %v10580
    %v10582 = vsel %vm10475, %v10538, 0.0
    %v10583 = vrot.slane %v10582, 4
    %v10584 = vadd.f32 %v10582, %v10583
    %v10585 = vrot.slane %v10584, 2
    %v10586 = vadd.f32 %v10584, %v10585
    %v10587 = vrot.slane %v10586, 1
    %v10588 = vadd.f32 %v10586, %v10587
    %v10589 = vsel %vm10475, %v10539, 0.0
    %v10590 = vrot.slane %v10589, 4
    %v10591 = vadd.f32 %v10589, %v10590
    %v10592 = vrot.slane %v10591, 2
    %v10593 = vadd.f32 %v10591, %v10592
    %v10594 = vrot.slane %v10593, 1
    %v10595 = vadd.f32 %v10593, %v10594
    %v10596 = vmul.f32 %v10482, 0.5
    %v10597 = vmul.f32 %v10489, 0.5
    %v10598 = vmul.f32 %v10496, 0.5
    %v10599 = vmul.f32 %v10503, 0.5
    %v10600 = vmul.f32 %v10510, 0.5
    %v10601 = vmul.f32 %v10517, 0.5
    %v10602 = vmul.f32 %v10524, 0.5
    %v10603 = vmul.f32 %v10531, 0.5
    %v10604 = vmul.f32 %v10546, 0.5
    %v10605 = vmul.f32 %v10553, 0.5
    %v10606 = vmul.f32 %v10560, 0.5
    %v10607 = vmul.f32 %v10567, 0.5
    %v10608 = vmul.f32 %v10574, 0.5
    %v10609 = vmul.f32 %v10581, 0.5
    %v10610 = vmul.f32 %v10588, 0.5
    %v10611 = vmul.f32 %v10595, 0.5
    %v10612 = vmul.f32 %v10596, %v10596
    %v10613 = vmul.f32 %v10597, %v10597
    %v10614 = vmul.f32 %v10598, %v10598
    %v10615 = vmul.f32 %v10599, %v10599
    %v10616 = vmul.f32 %v10600, %v10600
    %v10617 = vmul.f32 %v10601, %v10601
    %v10618 = vmul.f32 %v10602, %v10602
    %v10619 = vmul.f32 %v10603, %v10603
    %v10620 = vsub.f32 %v10604, %v10612
    %v10621 = vsub.f32 %v10605, %v10613
    %v10622 = vsub.f32 %v10606, %v10614
    %v10623 = vsub.f32 %v10607, %v10615
    %v10624 = vsub.f32 %v10608, %v10616
    %v10625 = vsub.f32 %v10609, %v10617
    %v10626 = vsub.f32 %v10610, %v10618
    %v10627 = vsub.f32 %v10611, %v10619
    %v10628 = vadd.f32 %v10620, 1e-05
    %v10629 = vadd.f32 %v10621, 1e-05
    %v10630 = vadd.f32 %v10622, 1e-05
    %v10631 = vadd.f32 %v10623, 1e-05
    %v10632 = vadd.f32 %v10624, 1e-05
    %v10633 = vadd.f32 %v10625, 1e-05
    %v10634 = vadd.f32 %v10626, 1e-05
    %v10635 = vadd.f32 %v10627, 1e-05
    %v10636 = vrsqrt.pop %v10628
    %v10637 = vmul.f32 %v10636, %v10628
    %v10638 = vmul.f32 %v10637, %v10636
    %v10639 = vmul.f32 0.5, %v10638
    %v10640 = vsub.f32 1.5, %v10639
    %v10641 = vmul.f32 %v10636, %v10640
    %vm10642 = vweird.f32 %v10628
    %vm10643 = vweird.f32 %v10636
    %vm10644 = vmor %vm10642, %vm10643
    %v10645 = vsel %vm10644, %v10636, %v10641
    %v10646 = vrsqrt.pop %v10629
    %v10647 = vmul.f32 %v10646, %v10629
    %v10648 = vmul.f32 %v10647, %v10646
    %v10649 = vmul.f32 0.5, %v10648
    %v10650 = vsub.f32 1.5, %v10649
    %v10651 = vmul.f32 %v10646, %v10650
    %vm10652 = vweird.f32 %v10629
    %vm10653 = vweird.f32 %v10646
    %vm10654 = vmor %vm10652, %vm10653
    %v10655 = vsel %vm10654, %v10646, %v10651
    %v10656 = vrsqrt.pop %v10630
    %v10657 = vmul.f32 %v10656, %v10630
    %v10658 = vmul.f32 %v10657, %v10656
    %v10659 = vmul.f32 0.5, %v10658
    %v10660 = vsub.f32 1.5, %v10659
    %v10661 = vmul.f32 %v10656, %v10660
    %vm10662 = vweird.f32 %v10630
    %vm10663 = vweird.f32 %v10656
    %vm10664 = vmor %vm10662, %vm10663
    %v10665 = vsel %vm10664, %v10656, %v10661
    %v10666 = vrsqrt.pop %v10631
    %v10667 = vmul.f32 %v10666, %v10631
    %v10668 = vmul.f32 %v10667, %v10666
    %v10669 = vmul.f32 0.5, %v10668
    %v10670 = vsub.f32 1.5, %v10669
    %v10671 = vmul.f32 %v10666, %v10670
    %vm10672 = vweird.f32 %v10631
    %vm10673 = vweird.f32 %v10666
    %vm10674 = vmor %vm10672, %vm10673
    %v10675 = vsel %vm10674, %v10666, %v10671
    %v10676 = vrsqrt.pop %v10632
    %v10677 = vmul.f32 %v10676, %v10632
    %v10678 = vmul.f32 %v10677, %v10676
    %v10679 = vmul.f32 0.5, %v10678
    %v10680 = vsub.f32 1.5, %v10679
    %v10681 = vmul.f32 %v10676, %v10680
    %vm10682 = vweird.f32 %v10632
    %vm10683 = vweird.f32 %v10676
    %vm10684 = vmor %vm10682, %vm10683
    %v10685 = vsel %vm10684, %v10676, %v10681
    %v10686 = vrsqrt.pop %v10633
    %v10687 = vmul.f32 %v10686, %v10633
    %v10688 = vmul.f32 %v10687, %v10686
    %v10689 = vmul.f32 0.5, %v10688
    %v10690 = vsub.f32 1.5, %v10689
    %v10691 = vmul.f32 %v10686, %v10690
    %vm10692 = vweird.f32 %v10633
    %vm10693 = vweird.f32 %v10686
    %vm10694 = vmor %vm10692, %vm10693
    %v10695 = vsel %vm10694, %v10686, %v10691
    %v10696 = vrsqrt.pop %v10634
    %v10697 = vmul.f32 %v10696, %v10634
    %v10698 = vmul.f32 %v10697, %v10696
    %v10699 = vmul.f32 0.5, %v10698
    %v10700 = vsub.f32 1.5, %v10699
    %v10701 = vmul.f32 %v10696, %v10700
    %vm10702 = vweird.f32 %v10634
    %vm10703 = vweird.f32 %v10696
    %vm10704 = vmor %vm10702, %vm10703
    %v10705 = vsel %vm10704, %v10696, %v10701
    %v10706 = vrsqrt.pop %v10635
    %v10707 = vmul.f32 %v10706, %v10635
    %v10708 = vmul.f32 %v10707, %v10706
    %v10709 = vmul.f32 0.5, %v10708
    %v10710 = vsub.f32 1.5, %v10709
    %v10711 = vmul.f32 %v10706, %v10710
    %vm10712 = vweird.f32 %v10635
    %vm10713 = vweird.f32 %v10706
    %vm10714 = vmor %vm10712, %vm10713
    %v10715 = vsel %vm10714, %v10706, %v10711
    %v10716 = vsub.f32 %v10467, %v10596
    %v10717 = vsub.f32 %v10468, %v10597
    %v10718 = vsub.f32 %v10469, %v10598
    %v10719 = vsub.f32 %v10470, %v10599
    %v10720 = vsub.f32 %v10471, %v10600
    %v10721 = vsub.f32 %v10472, %v10601
    %v10722 = vsub.f32 %v10473, %v10602
    %v10723 = vsub.f32 %v10474, %v10603
    %v10724 = vmul.f32 %v10716, %v10645
    %v10725 = vmul.f32 %v10717, %v10655
    %v10726 = vmul.f32 %v10718, %v10665
    %v10727 = vmul.f32 %v10719, %v10675
    %v10728 = vmul.f32 %v10720, %v10685
    %v10729 = vmul.f32 %v10721, %v10695
    %v10730 = vmul.f32 %v10722, %v10705
    %v10731 = vmul.f32 %v10723, %v10715
    %v10732 = vld [vmem:[#allocation25] sm:$0xff]
    %v10734 = vperm.slane %v10732, 0
    %v10735 = vperm.slane %v10732, 1
    %v10736 = vperm.slane %v10732, 2
    %v10737 = vperm.slane %v10732, 3
    %v10738 = vperm.slane %v10732, 4
    %v10739 = vperm.slane %v10732, 5
    %v10740 = vperm.slane %v10732, 6
    %v10741 = vperm.slane %v10732, 7
    %v10750 = vmul.f32 %v10724, %v10734
    %v10751 = vmul.f32 %v10725, %v10735
    %v10752 = vmul.f32 %v10726, %v10736
    %v10753 = vmul.f32 %v10727, %v10737
    %v10754 = vmul.f32 %v10728, %v10738
    %v10755 = vmul.f32 %v10729, %v10739
    %v10756 = vmul.f32 %v10730, %v10740
    %v10757 = vmul.f32 %v10731, %v10741
    %v10758 = vld [vmem:[#allocation26] sm:$0xff]
    %v10760 = vperm.slane %v10758, 0
    %v10761 = vperm.slane %v10758, 1
    %v10762 = vperm.slane %v10758, 2
    %v10763 = vperm.slane %v10758, 3
    %v10764 = vperm.slane %v10758, 4
    %v10765 = vperm.slane %v10758, 5
    %v10766 = vperm.slane %v10758, 6
    %v10767 = vperm.slane %v10758, 7
    %v10776 = vadd.f32 %v10750, %v10760
    %v10777 = vadd.f32 %v10751, %v10761
    %v10778 = vadd.f32 %v10752, %v10762
    %v10779 = vadd.f32 %v10753, %v10763
    %v10780 = vadd.f32 %v10754, %v10764
    %v10781 = vadd.f32 %v10755, %v10765
    %v10782 = vadd.f32 %v10756, %v10766
    %v10783 = vadd.f32 %v10757, %v10767
    %v10784 = vpack.c.bf16 %v10776, %v10776
    %v10785 = vpack.c.bf16 %v10777, %v10777
    %v10786 = vpack.c.bf16 %v10778, %v10778
    %v10787 = vpack.c.bf16 %v10779, %v10779
    %v10788 = vpack.c.bf16 %v10780, %v10780
    %v10789 = vpack.c.bf16 %v10781, %v10781
    %v10790 = vpack.c.bf16 %v10782, %v10782
    %v10791 = vpack.c.bf16 %v10783, %v10783
    %v10792 = vld [vmem:[#allocation28] sm:$0xf]
    %v10793 = vld [vmem:[#allocation28 + $0x4] sm:$0xf]
    %v10794 = vld [vmem:[#allocation28 + $0x8] sm:$0xf]
    %v10795 = vld [vmem:[#allocation28 + $0xc] sm:$0xf]
    %v10796 = vld [vmem:[#allocation28 + $0x10] sm:$0xf]
    %v10797 = vld [vmem:[#allocation28 + $0x14] sm:$0xf]
    %v10798 = vld [vmem:[#allocation28 + $0x18] sm:$0xf]
    %v10799 = vld [vmem:[#allocation28 + $0x1c] sm:$0xf]
    %v10800 = vld [vmem:[#allocation28 + $0x20] sm:$0xf]
    %v10801 = vld [vmem:[#allocation28 + $0x24] sm:$0xf]
    %v10802 = vld [vmem:[#allocation28 + $0x28] sm:$0xf]
    %v10803 = vld [vmem:[#allocation28 + $0x2c] sm:$0xf]
    %v10804 = vld [vmem:[#allocation28 + $0x30] sm:$0xf]
    %v10805 = vld [vmem:[#allocation28 + $0x34] sm:$0xf]
    %v10806 = vld [vmem:[#allocation28 + $0x38] sm:$0xf]
    %v10807 = vld [vmem:[#allocation28 + $0x3c] sm:$0xf]
    %v10808 = vld [vmem:[#allocation28 + $0x40] sm:$0xf]
    %v10809 = vld [vmem:[#allocation28 + $0x44] sm:$0xf]
    %v10810 = vld [vmem:[#allocation28 + $0x48] sm:$0xf]
    %v10811 = vld [vmem:[#allocation28 + $0x4c] sm:$0xf]
    %v10812 = vld [vmem:[#allocation28 + $0x50] sm:$0xf]
    %v10813 = vld [vmem:[#allocation28 + $0x54] sm:$0xf]
    %v10814 = vld [vmem:[#allocation28 + $0x58] sm:$0xf]
    %v10815 = vld [vmem:[#allocation28 + $0x5c] sm:$0xf]
    %v10816 = vld [vmem:[#allocation28 + $0x60] sm:$0xf]
    %v10817 = vld [vmem:[#allocation28 + $0x64] sm:$0xf]
    %v10818 = vld [vmem:[#allocation28 + $0x68] sm:$0xf]
    %v10819 = vld [vmem:[#allocation28 + $0x6c] sm:$0xf]
    %v10820 = vld [vmem:[#allocation28 + $0x70] sm:$0xf]
    %v10821 = vld [vmem:[#allocation28 + $0x74] sm:$0xf]
    %v10822 = vld [vmem:[#allocation28 + $0x78] sm:$0xf]
    %v10823 = vld [vmem:[#allocation28 + $0x7c] sm:$0xf]
    %v10824 = vld [vmem:[#allocation28 + $0x80] sm:$0xf]
    %v10825 = vld [vmem:[#allocation28 + $0x84] sm:$0xf]
    %v10826 = vld [vmem:[#allocation28 + $0x88] sm:$0xf]
    %v10827 = vld [vmem:[#allocation28 + $0x8c] sm:$0xf]
    %v10828 = vld [vmem:[#allocation28 + $0x90] sm:$0xf]
    %v10829 = vld [vmem:[#allocation28 + $0x94] sm:$0xf]
    %v10830 = vld [vmem:[#allocation28 + $0x98] sm:$0xf]
    %v10831 = vld [vmem:[#allocation28 + $0x9c] sm:$0xf]
    %v10832 = vld [vmem:[#allocation28 + $0xa0] sm:$0xf]
    %v10833 = vld [vmem:[#allocation28 + $0xa4] sm:$0xf]
    %v10834 = vld [vmem:[#allocation28 + $0xa8] sm:$0xf]
    %v10835 = vld [vmem:[#allocation28 + $0xac] sm:$0xf]
    %v10836 = vld [vmem:[#allocation28 + $0xb0] sm:$0xf]
    %v10837 = vld [vmem:[#allocation28 + $0xb4] sm:$0xf]
    %v10838 = vld [vmem:[#allocation28 + $0xb8] sm:$0xf]
    %v10839 = vld [vmem:[#allocation28 + $0xbc] sm:$0xf]
    %v10840 = vld [vmem:[#allocation28 + $0xc0] sm:$0xf]
    %v10841 = vld [vmem:[#allocation28 + $0xc4] sm:$0xf]
    %v10842 = vld [vmem:[#allocation28 + $0xc8] sm:$0xf]
    %v10843 = vld [vmem:[#allocation28 + $0xcc] sm:$0xf]
    %v10844 = vld [vmem:[#allocation28 + $0xd0] sm:$0xf]
    %v10845 = vld [vmem:[#allocation28 + $0xd4] sm:$0xf]
    %v10846 = vld [vmem:[#allocation28 + $0xd8] sm:$0xf]
    %v10847 = vld [vmem:[#allocation28 + $0xdc] sm:$0xf]
    %v10848 = vld [vmem:[#allocation28 + $0xe0] sm:$0xf]
    %v10849 = vld [vmem:[#allocation28 + $0xe4] sm:$0xf]
    %v10850 = vld [vmem:[#allocation28 + $0xe8] sm:$0xf]
    %v10851 = vld [vmem:[#allocation28 + $0xec] sm:$0xf]
    %v10852 = vld [vmem:[#allocation28 + $0xf0] sm:$0xf]
    %v10853 = vld [vmem:[#allocation28 + $0xf4] sm:$0xf]
    %v10854 = vld [vmem:[#allocation28 + $0xf8] sm:$0xf]
    %v10855 = vld [vmem:[#allocation28 + $0xfc] sm:$0xf]
    %v10856 = vld [vmem:[#allocation28 + $0x100] sm:$0xf]
    %v10857 = vld [vmem:[#allocation28 + $0x104] sm:$0xf]
    %v10858 = vld [vmem:[#allocation28 + $0x108] sm:$0xf]
    %v10859 = vld [vmem:[#allocation28 + $0x10c] sm:$0xf]
    %v10860 = vld [vmem:[#allocation28 + $0x110] sm:$0xf]
    %v10861 = vld [vmem:[#allocation28 + $0x114] sm:$0xf]
    %v10862 = vld [vmem:[#allocation28 + $0x118] sm:$0xf]
    %v10863 = vld [vmem:[#allocation28 + $0x11c] sm:$0xf]
    %v10864 = vld [vmem:[#allocation28 + $0x120] sm:$0xf]
    %v10865 = vld [vmem:[#allocation28 + $0x124] sm:$0xf]
    %v10866 = vld [vmem:[#allocation28 + $0x128] sm:$0xf]
    %v10867 = vld [vmem:[#allocation28 + $0x12c] sm:$0xf]
    %v10868 = vld [vmem:[#allocation28 + $0x130] sm:$0xf]
    %v10869 = vld [vmem:[#allocation28 + $0x134] sm:$0xf]
    %v10870 = vld [vmem:[#allocation28 + $0x138] sm:$0xf]
    %v10871 = vld [vmem:[#allocation28 + $0x13c] sm:$0xf]
    %v10872 = vld [vmem:[#allocation28 + $0x140] sm:$0xf]
    %v10873 = vld [vmem:[#allocation28 + $0x144] sm:$0xf]
    %v10874 = vld [vmem:[#allocation28 + $0x148] sm:$0xf]
    %v10875 = vld [vmem:[#allocation28 + $0x14c] sm:$0xf]
    %v10876 = vld [vmem:[#allocation28 + $0x150] sm:$0xf]
    %v10877 = vld [vmem:[#allocation28 + $0x154] sm:$0xf]
    %v10878 = vld [vmem:[#allocation28 + $0x158] sm:$0xf]
    %v10879 = vld [vmem:[#allocation28 + $0x15c] sm:$0xf]
    %v10880 = vld [vmem:[#allocation28 + $0x160] sm:$0xf]
    %v10881 = vld [vmem:[#allocation28 + $0x164] sm:$0xf]
    %v10882 = vld [vmem:[#allocation28 + $0x168] sm:$0xf]
    %v10883 = vld [vmem:[#allocation28 + $0x16c] sm:$0xf]
    %v10884 = vld [vmem:[#allocation28 + $0x170] sm:$0xf]
    %v10885 = vld [vmem:[#allocation28 + $0x174] sm:$0xf]
    %v10886 = vld [vmem:[#allocation28 + $0x178] sm:$0xf]
    %v10887 = vld [vmem:[#allocation28 + $0x17c] sm:$0xf]
    %v10888 = vld [vmem:[#allocation28 + $0x180] sm:$0xf]
    %v10889 = vld [vmem:[#allocation28 + $0x184] sm:$0xf]
    %v10890 = vld [vmem:[#allocation28 + $0x188] sm:$0xf]
    %v10891 = vld [vmem:[#allocation28 + $0x18c] sm:$0xf]
    %v10892 = vld [vmem:[#allocation28 + $0x190] sm:$0xf]
    %v10893 = vld [vmem:[#allocation28 + $0x194] sm:$0xf]
    %v10894 = vld [vmem:[#allocation28 + $0x198] sm:$0xf]
    %v10895 = vld [vmem:[#allocation28 + $0x19c] sm:$0xf]
    %v10896 = vld [vmem:[#allocation28 + $0x1a0] sm:$0xf]
    %v10897 = vld [vmem:[#allocation28 + $0x1a4] sm:$0xf]
    %v10898 = vld [vmem:[#allocation28 + $0x1a8] sm:$0xf]
    %v10899 = vld [vmem:[#allocation28 + $0x1ac] sm:$0xf]
    %v10900 = vld [vmem:[#allocation28 + $0x1b0] sm:$0xf]
    %v10901 = vld [vmem:[#allocation28 + $0x1b4] sm:$0xf]
    %v10902 = vld [vmem:[#allocation28 + $0x1b8] sm:$0xf]
    %v10903 = vld [vmem:[#allocation28 + $0x1bc] sm:$0xf]
    %v10904 = vld [vmem:[#allocation28 + $0x1c0] sm:$0xf]
    %v10905 = vld [vmem:[#allocation28 + $0x1c4] sm:$0xf]
    %v10906 = vld [vmem:[#allocation28 + $0x1c8] sm:$0xf]
    %v10907 = vld [vmem:[#allocation28 + $0x1cc] sm:$0xf]
    %v10908 = vld [vmem:[#allocation28 + $0x1d0] sm:$0xf]
    %v10909 = vld [vmem:[#allocation28 + $0x1d4] sm:$0xf]
    %v10910 = vld [vmem:[#allocation28 + $0x1d8] sm:$0xf]
    %v10911 = vld [vmem:[#allocation28 + $0x1dc] sm:$0xf]
    %v10912 = vld [vmem:[#allocation28 + $0x1e0] sm:$0xf]
    %v10913 = vld [vmem:[#allocation28 + $0x1e4] sm:$0xf]
    %v10914 = vld [vmem:[#allocation28 + $0x1e8] sm:$0xf]
    %v10915 = vld [vmem:[#allocation28 + $0x1ec] sm:$0xf]
    %v10916 = vld [vmem:[#allocation28 + $0x1f0] sm:$0xf]
    %v10917 = vld [vmem:[#allocation28 + $0x1f4] sm:$0xf]
    %v10918 = vld [vmem:[#allocation28 + $0x1f8] sm:$0xf]
    %v10919 = vld [vmem:[#allocation28 + $0x1fc] sm:$0xf]
    %v10920 = vld [vmem:[#allocation29] sm:$0x1]
    %v10922 = vperm.slane %v10920, 0
    %v11052 = vunpack.c.l.b16 %v10792
    %v11053 = vunpack.c.l.b16 %v10793
    %v11054 = vunpack.c.l.b16 %v10794
    %v11055 = vunpack.c.l.b16 %v10795
    %v11056 = vunpack.c.l.b16 %v10796
    %v11057 = vunpack.c.l.b16 %v10797
    %v11058 = vunpack.c.l.b16 %v10798
    %v11059 = vunpack.c.l.b16 %v10799
    %v11060 = vunpack.c.l.b16 %v10800
    %v11061 = vunpack.c.l.b16 %v10801
    %v11062 = vunpack.c.l.b16 %v10802
    %v11063 = vunpack.c.l.b16 %v10803
    %v11064 = vunpack.c.l.b16 %v10804
    %v11065 = vunpack.c.l.b16 %v10805
    %v11066 = vunpack.c.l.b16 %v10806
    %v11067 = vunpack.c.l.b16 %v10807
    %v11068 = vunpack.c.l.b16 %v10808
    %v11069 = vunpack.c.l.b16 %v10809
    %v11070 = vunpack.c.l.b16 %v10810
    %v11071 = vunpack.c.l.b16 %v10811
    %v11072 = vunpack.c.l.b16 %v10812
    %v11073 = vunpack.c.l.b16 %v10813
    %v11074 = vunpack.c.l.b16 %v10814
    %v11075 = vunpack.c.l.b16 %v10815
    %v11076 = vunpack.c.l.b16 %v10816
    %v11077 = vunpack.c.l.b16 %v10817
    %v11078 = vunpack.c.l.b16 %v10818
    %v11079 = vunpack.c.l.b16 %v10819
    %v11080 = vunpack.c.l.b16 %v10820
    %v11081 = vunpack.c.l.b16 %v10821
    %v11082 = vunpack.c.l.b16 %v10822
    %v11083 = vunpack.c.l.b16 %v10823
    %v11084 = vunpack.c.l.b16 %v10824
    %v11085 = vunpack.c.l.b16 %v10825
    %v11086 = vunpack.c.l.b16 %v10826
    %v11087 = vunpack.c.l.b16 %v10827
    %v11088 = vunpack.c.l.b16 %v10828
    %v11089 = vunpack.c.l.b16 %v10829
    %v11090 = vunpack.c.l.b16 %v10830
    %v11091 = vunpack.c.l.b16 %v10831
    %v11092 = vunpack.c.l.b16 %v10832
    %v11093 = vunpack.c.l.b16 %v10833
    %v11094 = vunpack.c.l.b16 %v10834
    %v11095 = vunpack.c.l.b16 %v10835
    %v11096 = vunpack.c.l.b16 %v10836
    %v11097 = vunpack.c.l.b16 %v10837
    %v11098 = vunpack.c.l.b16 %v10838
    %v11099 = vunpack.c.l.b16 %v10839
    %v11100 = vunpack.c.l.b16 %v10840
    %v11101 = vunpack.c.l.b16 %v10841
    %v11102 = vunpack.c.l.b16 %v10842
    %v11103 = vunpack.c.l.b16 %v10843
    %v11104 = vunpack.c.l.b16 %v10844
    %v11105 = vunpack.c.l.b16 %v10845
    %v11106 = vunpack.c.l.b16 %v10846
    %v11107 = vunpack.c.l.b16 %v10847
    %v11108 = vunpack.c.l.b16 %v10848
    %v11109 = vunpack.c.l.b16 %v10849
    %v11110 = vunpack.c.l.b16 %v10850
    %v11111 = vunpack.c.l.b16 %v10851
    %v11112 = vunpack.c.l.b16 %v10852
    %v11113 = vunpack.c.l.b16 %v10853
    %v11114 = vunpack.c.l.b16 %v10854
    %v11115 = vunpack.c.l.b16 %v10855
    %v11116 = vunpack.c.l.b16 %v10856
    %v11117 = vunpack.c.l.b16 %v10857
    %v11118 = vunpack.c.l.b16 %v10858
    %v11119 = vunpack.c.l.b16 %v10859
    %v11120 = vunpack.c.l.b16 %v10860
    %v11121 = vunpack.c.l.b16 %v10861
    %v11122 = vunpack.c.l.b16 %v10862
    %v11123 = vunpack.c.l.b16 %v10863
    %v11124 = vunpack.c.l.b16 %v10864
    %v11125 = vunpack.c.l.b16 %v10865
    %v11126 = vunpack.c.l.b16 %v10866
    %v11127 = vunpack.c.l.b16 %v10867
    %v11128 = vunpack.c.l.b16 %v10868
    %v11129 = vunpack.c.l.b16 %v10869
    %v11130 = vunpack.c.l.b16 %v10870
    %v11131 = vunpack.c.l.b16 %v10871
    %v11132 = vunpack.c.l.b16 %v10872
    %v11133 = vunpack.c.l.b16 %v10873
    %v11134 = vunpack.c.l.b16 %v10874
    %v11135 = vunpack.c.l.b16 %v10875
    %v11136 = vunpack.c.l.b16 %v10876
    %v11137 = vunpack.c.l.b16 %v10877
    %v11138 = vunpack.c.l.b16 %v10878
    %v11139 = vunpack.c.l.b16 %v10879
    %v11140 = vunpack.c.l.b16 %v10880
    %v11141 = vunpack.c.l.b16 %v10881
    %v11142 = vunpack.c.l.b16 %v10882
    %v11143 = vunpack.c.l.b16 %v10883
    %v11144 = vunpack.c.l.b16 %v10884
    %v11145 = vunpack.c.l.b16 %v10885
    %v11146 = vunpack.c.l.b16 %v10886
    %v11147 = vunpack.c.l.b16 %v10887
    %v11148 = vunpack.c.l.b16 %v10888
    %v11149 = vunpack.c.l.b16 %v10889
    %v11150 = vunpack.c.l.b16 %v10890
    %v11151 = vunpack.c.l.b16 %v10891
    %v11152 = vunpack.c.l.b16 %v10892
    %v11153 = vunpack.c.l.b16 %v10893
    %v11154 = vunpack.c.l.b16 %v10894
    %v11155 = vunpack.c.l.b16 %v10895
    %v11156 = vunpack.c.l.b16 %v10896
    %v11157 = vunpack.c.l.b16 %v10897
    %v11158 = vunpack.c.l.b16 %v10898
    %v11159 = vunpack.c.l.b16 %v10899
    %v11160 = vunpack.c.l.b16 %v10900
    %v11161 = vunpack.c.l.b16 %v10901
    %v11162 = vunpack.c.l.b16 %v10902
    %v11163 = vunpack.c.l.b16 %v10903
    %v11164 = vunpack.c.l.b16 %v10904
    %v11165 = vunpack.c.l.b16 %v10905
    %v11166 = vunpack.c.l.b16 %v10906
    %v11167 = vunpack.c.l.b16 %v10907
    %v11168 = vunpack.c.l.b16 %v10908
    %v11169 = vunpack.c.l.b16 %v10909
    %v11170 = vunpack.c.l.b16 %v10910
    %v11171 = vunpack.c.l.b16 %v10911
    %v11172 = vunpack.c.l.b16 %v10912
    %v11173 = vunpack.c.l.b16 %v10913
    %v11174 = vunpack.c.l.b16 %v10914
    %v11175 = vunpack.c.l.b16 %v10915
    %v11176 = vunpack.c.l.b16 %v10916
    %v11177 = vunpack.c.l.b16 %v10917
    %v11178 = vunpack.c.l.b16 %v10918
    %v11179 = vunpack.c.l.b16 %v10919
    %v11180 = vpack.c.b16 %v11053, %v11052
    %v11181 = vpack.c.b16 %v11055, %v11054
    %v11182 = vpack.c.b16 %v11057, %v11056
    %v11183 = vpack.c.b16 %v11059, %v11058
    %v11184 = vpack.c.b16 %v11061, %v11060
    %v11185 = vpack.c.b16 %v11063, %v11062
    %v11186 = vpack.c.b16 %v11065, %v11064
    %v11187 = vpack.c.b16 %v11067, %v11066
    %v11188 = vpack.c.b16 %v11069, %v11068
    %v11189 = vpack.c.b16 %v11071, %v11070
    %v11190 = vpack.c.b16 %v11073, %v11072
    %v11191 = vpack.c.b16 %v11075, %v11074
    %v11192 = vpack.c.b16 %v11077, %v11076
    %v11193 = vpack.c.b16 %v11079, %v11078
    %v11194 = vpack.c.b16 %v11081, %v11080
    %v11195 = vpack.c.b16 %v11083, %v11082
    %v11196 = vpack.c.b16 %v11085, %v11084
    %v11197 = vpack.c.b16 %v11087, %v11086
    %v11198 = vpack.c.b16 %v11089, %v11088
    %v11199 = vpack.c.b16 %v11091, %v11090
    %v11200 = vpack.c.b16 %v11093, %v11092
    %v11201 = vpack.c.b16 %v11095, %v11094
    %v11202 = vpack.c.b16 %v11097, %v11096
    %v11203 = vpack.c.b16 %v11099, %v11098
    %v11204 = vpack.c.b16 %v11101, %v11100
    %v11205 = vpack.c.b16 %v11103, %v11102
    %v11206 = vpack.c.b16 %v11105, %v11104
    %v11207 = vpack.c.b16 %v11107, %v11106
    %v11208 = vpack.c.b16 %v11109, %v11108
    %v11209 = vpack.c.b16 %v11111, %v11110
    %v11210 = vpack.c.b16 %v11113, %v11112
    %v11211 = vpack.c.b16 %v11115, %v11114
    %v11212 = vpack.c.b16 %v11117, %v11116
    %v11213 = vpack.c.b16 %v11119, %v11118
    %v11214 = vpack.c.b16 %v11121, %v11120
    %v11215 = vpack.c.b16 %v11123, %v11122
    %v11216 = vpack.c.b16 %v11125, %v11124
    %v11217 = vpack.c.b16 %v11127, %v11126
    %v11218 = vpack.c.b16 %v11129, %v11128
    %v11219 = vpack.c.b16 %v11131, %v11130
    %v11220 = vpack.c.b16 %v11133, %v11132
    %v11221 = vpack.c.b16 %v11135, %v11134
    %v11222 = vpack.c.b16 %v11137, %v11136
    %v11223 = vpack.c.b16 %v11139, %v11138
    %v11224 = vpack.c.b16 %v11141, %v11140
    %v11225 = vpack.c.b16 %v11143, %v11142
    %v11226 = vpack.c.b16 %v11145, %v11144
    %v11227 = vpack.c.b16 %v11147, %v11146
    %v11228 = vpack.c.b16 %v11149, %v11148
    %v11229 = vpack.c.b16 %v11151, %v11150
    %v11230 = vpack.c.b16 %v11153, %v11152
    %v11231 = vpack.c.b16 %v11155, %v11154
    %v11232 = vpack.c.b16 %v11157, %v11156
    %v11233 = vpack.c.b16 %v11159, %v11158
    %v11234 = vpack.c.b16 %v11161, %v11160
    %v11235 = vpack.c.b16 %v11163, %v11162
    %v11236 = vpack.c.b16 %v11165, %v11164
    %v11237 = vpack.c.b16 %v11167, %v11166
    %v11238 = vpack.c.b16 %v11169, %v11168
    %v11239 = vpack.c.b16 %v11171, %v11170
    %v11240 = vpack.c.b16 %v11173, %v11172
    %v11241 = vpack.c.b16 %v11175, %v11174
    %v11242 = vpack.c.b16 %v11177, %v11176
    %v11243 = vpack.c.b16 %v11179, %v11178
    %11308 = vmatpush.bf16.msra.mxu0 %v11187
    %11309 = vmatpush.bf16.msra.mxu0 %v11186
    %11310 = vmatpush.bf16.msra.mxu0 %v11185
    %11311 = vmatpush.bf16.msra.mxu0 %v11184
    %11312 = vmatpush.bf16.msra.mxu0 %v11183
    %11313 = vmatpush.bf16.msra.mxu0 %v11182
    %11314 = vmatpush.bf16.msra.mxu0 %v11181
    %11315 = vmatpush.bf16.msra.mxu0 %v11180
    %11316 = vmatmul.bf16.gmra.mxu0 %v10784
    %v11317 = vpop.f32.mrf.mxu0
    %v11318 = vadd.f32 %v10922, %v11317
    %v11319 = vpop.f32.mrf.mxu0
    %11320 = vdwg.mxu0
    %11321 = vmatpush.bf16.msra.mxu0 %v11195
    %11322 = vmatpush.bf16.msra.mxu0 %v11194
    %11323 = vmatpush.bf16.msra.mxu0 %v11193
    %11324 = vmatpush.bf16.msra.mxu0 %v11192
    %11325 = vmatpush.bf16.msra.mxu0 %v11191
    %11326 = vmatpush.bf16.msra.mxu0 %v11190
    %11327 = vmatpush.bf16.msra.mxu0 %v11189
    %11328 = vmatpush.bf16.msra.mxu0 %v11188
    %11329 = vmatmul.bf16.gmra.mxu0 %v10785
    %v11330 = vpop.f32.mrf.mxu0
    %v11331 = vadd.f32 %v11318, %v11330
    %v11332 = vpop.f32.mrf.mxu0
    %11333 = vdwg.mxu0
    %11334 = vmatpush.bf16.msra.mxu0 %v11203
    %11335 = vmatpush.bf16.msra.mxu0 %v11202
    %11336 = vmatpush.bf16.msra.mxu0 %v11201
    %11337 = vmatpush.bf16.msra.mxu0 %v11200
    %11338 = vmatpush.bf16.msra.mxu0 %v11199
    %11339 = vmatpush.bf16.msra.mxu0 %v11198
    %11340 = vmatpush.bf16.msra.mxu0 %v11197
    %11341 = vmatpush.bf16.msra.mxu0 %v11196
    %11342 = vmatmul.bf16.gmra.mxu0 %v10786
    %v11343 = vpop.f32.mrf.mxu0
    %v11344 = vadd.f32 %v11331, %v11343
    %v11345 = vpop.f32.mrf.mxu0
    %11346 = vdwg.mxu0
    %11347 = vmatpush.bf16.msra.mxu0 %v11211
    %11348 = vmatpush.bf16.msra.mxu0 %v11210
    %11349 = vmatpush.bf16.msra.mxu0 %v11209
    %11350 = vmatpush.bf16.msra.mxu0 %v11208
    %11351 = vmatpush.bf16.msra.mxu0 %v11207
    %11352 = vmatpush.bf16.msra.mxu0 %v11206
    %11353 = vmatpush.bf16.msra.mxu0 %v11205
    %11354 = vmatpush.bf16.msra.mxu0 %v11204
    %11355 = vmatmul.bf16.gmra.mxu0 %v10787
    %v11356 = vpop.f32.mrf.mxu0
    %v11357 = vadd.f32 %v11344, %v11356
    %v11358 = vpop.f32.mrf.mxu0
    %11359 = vdwg.mxu0
    %11360 = vmatpush.bf16.msra.mxu0 %v11219
    %11361 = vmatpush.bf16.msra.mxu0 %v11218
    %11362 = vmatpush.bf16.msra.mxu0 %v11217
    %11363 = vmatpush.bf16.msra.mxu0 %v11216
    %11364 = vmatpush.bf16.msra.mxu0 %v11215
    %11365 = vmatpush.bf16.msra.mxu0 %v11214
    %11366 = vmatpush.bf16.msra.mxu0 %v11213
    %11367 = vmatpush.bf16.msra.mxu0 %v11212
    %11368 = vmatmul.bf16.gmra.mxu0 %v10788
    %v11369 = vpop.f32.mrf.mxu0
    %v11370 = vadd.f32 %v11357, %v11369
    %v11371 = vpop.f32.mrf.mxu0
    %11372 = vdwg.mxu0
    %11373 = vmatpush.bf16.msra.mxu0 %v11227
    %11374 = vmatpush.bf16.msra.mxu0 %v11226
    %11375 = vmatpush.bf16.msra.mxu0 %v11225
    %11376 = vmatpush.bf16.msra.mxu0 %v11224
    %11377 = vmatpush.bf16.msra.mxu0 %v11223
    %11378 = vmatpush.bf16.msra.mxu0 %v11222
    %11379 = vmatpush.bf16.msra.mxu0 %v11221
    %11380 = vmatpush.bf16.msra.mxu0 %v11220
    %11381 = vmatmul.bf16.gmra.mxu0 %v10789
    %v11382 = vpop.f32.mrf.mxu0
    %v11383 = vadd.f32 %v11370, %v11382
    %v11384 = vpop.f32.mrf.mxu0
    %11385 = vdwg.mxu0
    %11386 = vmatpush.bf16.msra.mxu0 %v11235
    %11387 = vmatpush.bf16.msra.mxu0 %v11234
    %11388 = vmatpush.bf16.msra.mxu0 %v11233
    %11389 = vmatpush.bf16.msra.mxu0 %v11232
    %11390 = vmatpush.bf16.msra.mxu0 %v11231
    %11391 = vmatpush.bf16.msra.mxu0 %v11230
    %11392 = vmatpush.bf16.msra.mxu0 %v11229
    %11393 = vmatpush.bf16.msra.mxu0 %v11228
    %11394 = vmatmul.bf16.gmra.mxu0 %v10790
    %v11395 = vpop.f32.mrf.mxu0
    %v11396 = vadd.f32 %v11383, %v11395
    %v11397 = vpop.f32.mrf.mxu0
    %11398 = vdwg.mxu0
    %11399 = vmatpush.bf16.msra.mxu0 %v11243
    %11400 = vmatpush.bf16.msra.mxu0 %v11242
    %11401 = vmatpush.bf16.msra.mxu0 %v11241
    %11402 = vmatpush.bf16.msra.mxu0 %v11240
    %11403 = vmatpush.bf16.msra.mxu0 %v11239
    %11404 = vmatpush.bf16.msra.mxu0 %v11238
    %11405 = vmatpush.bf16.msra.mxu0 %v11237
    %11406 = vmatpush.bf16.msra.mxu0 %v11236
    %11407 = vmatmul.bf16.gmra.mxu0 %v10791
    %v11408 = vpop.f32.mrf.mxu0
    %v11409 = vadd.f32 %v11396, %v11408
    %v11410 = vpop.f32.mrf.mxu0
    %11411 = vdwg.mxu0
    %vm11412 = vcmp.ge.f32.partialorder %v11409, 0.0
    %v11413 = vmul.f32 %v11409, 0.01
    %v11414 = vsel %vm11412, %v11409, %v11413
    %v11415 = vsel %vm10475, %v11414, 0.0
    %v11416 = vrot.slane %v11415, 4
    %v11417 = vadd.f32 %v11415, %v11416
    %v11418 = vrot.slane %v11417, 2
    %v11419 = vadd.f32 %v11417, %v11418
    %v11420 = vrot.slane %v11419, 1
    %v11421 = vadd.f32 %v11419, %v11420
    %v11422 = vmul.f32 %v11414, %v11414
    %v11423 = vsel %vm10475, %v11422, 0.0
    %v11424 = vrot.slane %v11423, 4
    %v11425 = vadd.f32 %v11423, %v11424
    %v11426 = vrot.slane %v11425, 2
    %v11427 = vadd.f32 %v11425, %v11426
    %v11428 = vrot.slane %v11427, 1
    %v11429 = vadd.f32 %v11427, %v11428
    %v11430 = vmul.f32 %v11421, 0.5
    %v11431 = vmul.f32 %v11429, 0.5
    %v11432 = vmul.f32 %v11430, %v11430
    %v11433 = vsub.f32 %v11431, %v11432
    %v11434 = vadd.f32 %v11433, 1e-05
    %v11435 = vrsqrt.pop %v11434
    %v11436 = vmul.f32 %v11435, %v11434
    %v11437 = vmul.f32 %v11436, %v11435
    %v11438 = vmul.f32 0.5, %v11437
    %v11439 = vsub.f32 1.5, %v11438
    %v11440 = vmul.f32 %v11435, %v11439
    %vm11441 = vweird.f32 %v11434
    %vm11442 = vweird.f32 %v11435
    %vm11443 = vmor %vm11441, %vm11442
    %v11444 = vsel %vm11443, %v11435, %v11440
    %v11445 = vsub.f32 %v11414, %v11430
    %v11446 = vmul.f32 %v11445, %v11444
    %v11447 = vld [vmem:[#allocation31] sm:$0x1]
    %v11449 = vperm.slane %v11447, 0
    %v11451 = vmul.f32 %v11446, %v11449
    %v11452 = vld [vmem:[#allocation32] sm:$0x1]
    %v11454 = vperm.slane %v11452, 0
    %v11456 = vadd.f32 %v11451, %v11454
    %v11457 = vpack.c.bf16 %v11456, %v11456
    %v11458 = vld [vmem:[#allocation34] sm:$0xf]
    %v11459 = vld [vmem:[#allocation34 + $0x4] sm:$0xf]
    %v11460 = vld [vmem:[#allocation34 + $0x8] sm:$0xf]
    %v11461 = vld [vmem:[#allocation34 + $0xc] sm:$0xf]
    %v11462 = vld [vmem:[#allocation34 + $0x10] sm:$0xf]
    %v11463 = vld [vmem:[#allocation34 + $0x14] sm:$0xf]
    %v11464 = vld [vmem:[#allocation34 + $0x18] sm:$0xf]
    %v11465 = vld [vmem:[#allocation34 + $0x1c] sm:$0xf]
    %v11466 = vld [vmem:[#allocation34 + $0x20] sm:$0xf]
    %v11467 = vld [vmem:[#allocation34 + $0x24] sm:$0xf]
    %v11468 = vld [vmem:[#allocation34 + $0x28] sm:$0xf]
    %v11469 = vld [vmem:[#allocation34 + $0x2c] sm:$0xf]
    %v11470 = vld [vmem:[#allocation34 + $0x30] sm:$0xf]
    %v11471 = vld [vmem:[#allocation34 + $0x34] sm:$0xf]
    %v11472 = vld [vmem:[#allocation34 + $0x38] sm:$0xf]
    %v11473 = vld [vmem:[#allocation34 + $0x3c] sm:$0xf]
    %v11474 = vld [vmem:[#allocation35] sm:$0x1]
    %v11476 = vperm.slane %v11474, 0
    %v11494 = vunpack.c.l.b16 %v11458
    %v11495 = vunpack.c.l.b16 %v11459
    %v11496 = vunpack.c.l.b16 %v11460
    %v11497 = vunpack.c.l.b16 %v11461
    %v11498 = vunpack.c.l.b16 %v11462
    %v11499 = vunpack.c.l.b16 %v11463
    %v11500 = vunpack.c.l.b16 %v11464
    %v11501 = vunpack.c.l.b16 %v11465
    %v11502 = vunpack.c.l.b16 %v11466
    %v11503 = vunpack.c.l.b16 %v11467
    %v11504 = vunpack.c.l.b16 %v11468
    %v11505 = vunpack.c.l.b16 %v11469
    %v11506 = vunpack.c.l.b16 %v11470
    %v11507 = vunpack.c.l.b16 %v11471
    %v11508 = vunpack.c.l.b16 %v11472
    %v11509 = vunpack.c.l.b16 %v11473
    %v11510 = vpack.c.b16 %v11495, %v11494
    %v11511 = vpack.c.b16 %v11497, %v11496
    %v11512 = vpack.c.b16 %v11499, %v11498
    %v11513 = vpack.c.b16 %v11501, %v11500
    %v11514 = vpack.c.b16 %v11503, %v11502
    %v11515 = vpack.c.b16 %v11505, %v11504
    %v11516 = vpack.c.b16 %v11507, %v11506
    %v11517 = vpack.c.b16 %v11509, %v11508
    %11526 = vmatpush.bf16.msra.mxu0 %v11517
    %11527 = vmatpush.bf16.msra.mxu0 %v11516
    %11528 = vmatpush.bf16.msra.mxu0 %v11515
    %11529 = vmatpush.bf16.msra.mxu0 %v11514
    %11530 = vmatpush.bf16.msra.mxu0 %v11513
    %11531 = vmatpush.bf16.msra.mxu0 %v11512
    %11532 = vmatpush.bf16.msra.mxu0 %v11511
    %11533 = vmatpush.bf16.msra.mxu0 %v11510
    %11534 = vmatmul.bf16.gmra.mxu0 %v11457
    %v11535 = vpop.f32.mrf.mxu0
    %v11536 = vadd.f32 %v11476, %v11535
    %v11537 = vpop.f32.mrf.mxu0
    %11538 = vdwg.mxu0
    %11539 = vst [vmem:[#allocation37] sm:$0x3] %v11536
    // Predicated region
    $region182: #{net_forward.1} parent=1 // pred_check
      _
    $region183: #{net_forward.1} parent=1 // pred_check_branch
      %11541 = sbr.rel (0) target = $region185
    $region184: #{net_forward.1} parent=1 // pred_region
      %11543 = vsyncadd [#allocation4], 0
      %s11545 = sshll.u32 [#allocation37], 4
      %s11546 = int_to_ptr.vmem [resolvable:$true] %s11545
      %s11547 = sshll.u32 %s23, 4
      %s11548 = int_to_ptr.hbm [resolvable:$true] %s11547
      %11550 = dma.vmem_to_hbm [thread:$0]  %s11546, 32, %s11548, [#allocation4]
    $region185: #{net_forward.1} parent=1 // pred_fallthru
      _
    // Predicated region
    $region186: #{net_forward.1} parent=1 // pred_check
      _
    $region187: #{net_forward.1} parent=1 // pred_check_branch
      %11552 = sbr.rel (0) target = $region189
    $region188: #{net_forward.1} parent=1 // pred_region
      %11554 = dma.done [#allocation4], 32
    $region189: #{net_forward.1} parent=1 // pred_fallthru
      _
    %11555 = vsyncpa [#allocation3], 1
    %11556 = vsyncpa [#allocation6], 1
    %11557 = vsyncpa [#allocation9], 1
    %11558 = vsyncpa [#allocation12], 1
    %11559 = vsyncpa [#allocation15], 1
    %11560 = vsyncpa [#allocation18], 1
    %11561 = vsyncpa [#allocation21], 1
    %11562 = vsyncpa [#allocation24], 1
    %11563 = vsyncpa [#allocation27], 1
    %11564 = vsyncpa [#allocation30], 1
    %11565 = vsyncpa [#allocation33], 1
    %11566 = vsyncpa [#allocation36], 1
    %11567 = vsyncpa [#allocation4], 1

</llo_original>
